<compile_context>
chip_gen: v5e
topology: v5e:2x2
jax: 0.10.0
libtpu: 0.0.40
codegen_flags: <defaults>
</compile_context>

<pallas_src>
import functools
import math

import jax
import jax.numpy as jnp
from jax.experimental import pallas as pl
from jax.experimental.pallas import tpu as pltpu

TN = 1024  # points per grid step (sublane-aligned)


def _stroke_field_kernel(coords_ref, radius_ref, centers2_ref, cnorm_ref, srad_ref,
                         dc_ref, tri_ref, out_ref, *, inv_bound, half_inv_sdf_delta,
                         inv_scale_radius):
    # _warp_coords (warp_fn=None): coords / (bbox_size / 2)
    x = coords_ref[...] * inv_bound                                   # [TN, 3]

    # sphere SDF:  ||x - c|| - r_stroke,  ||x-c||^2 = ||x||^2 - 2 x.c + ||c||^2
    # (the factor of 2 is pre-folded into centers2)
    xc2 = jnp.dot(x, centers2_ref[...],
                  preferred_element_type=jnp.float32)                 # [TN, K] (MXU)
    xn = jnp.sum(x * x, axis=-1, keepdims=True)                       # [TN, 1]
    d2 = jnp.maximum(xn - xc2 + cnorm_ref[...], 0.0)
    sdf = jnp.sqrt(d2) - srad_ref[...]                                # [TN, K]

    # adaptive delta: delta = sdf_delta * r / srad (+eps), alpha = 0.5 - sdf/(2*delta)
    # rewritten divide-free: alpha = 0.5 - sdf * (0.5/sdf_delta) * srad / max(r, eps)
    r_inv = pl.reciprocal(jnp.maximum(radius_ref[...], 1e-6),
                          approx=True) * half_inv_sdf_delta           # [TN, 1]
    if inv_scale_radius:
        half_inv_delta = r_inv * srad_ref[...]                        # [TN, K]
    else:
        half_inv_delta = r_inv                                        # broadcast
    # use_laplace_transform=False -> clipped linear ramp of the SDF
    alpha = jnp.clip(0.5 - sdf * half_inv_delta, 0.0, 1.0)            # [TN, K]

    # 'over' composition: w_k = a_k * prod_{j>k} (1 - a_j), done in log space with a
    # bf16 MXU matmul against the (resident) strictly-lower-triangular mask tri[j,k]=1
    # iff j>k, so trans[:,k] = exp(sum_{j>k} log(1-a_j)).
    log1m = jnp.log(1.0 - jnp.minimum(alpha, 1.0 - 1e-6))             # [TN, K] f32
    trans = jnp.exp(jnp.dot(log1m.astype(jnp.bfloat16), tri_ref[...],
                            preferred_element_type=jnp.float32))      # [TN, K] f32
    w = alpha * trans                                                 # [TN, K]

    # fused density|rgb matmul: dc = [density*scale | r | g | b]  -> [TN, 4]
    out_ref[...] = jnp.dot(w, dc_ref[...], preferred_element_type=jnp.float32)


def stroke_field_forward(coords, radius, params, *,
                         bbox_size=4.0, density_scale=20.0, sdf_delta_eval=1.0,
                         inv_scale_radius=True, no_adaptive_delta=False,
                         no_warp=False, tile_n=TN):
    """Eval-mode StrokeField.forward -> dict(coord, density, rgb, normals)."""
    shape_params = jnp.asarray(params["shape_params"], jnp.float32)    # [K, 4]
    color_params = jnp.asarray(params["color_params"], jnp.float32)    # [K, 3]
    density_params = jnp.asarray(params["density_params"], jnp.float32)  # [K]
    K = shape_params.shape[0]

    centers = shape_params[:, :3].T                                    # [3, K]
    centers2 = 2.0 * centers                                           # fold 2*x.c
    srad = shape_params[:, 3:4].T                                      # [1, K]
    cnorm = jnp.sum(centers * centers, axis=0, keepdims=True)          # [1, K]
    dens = (density_params * density_scale)[:, None]                   # [K, 1]
    dc = jnp.concatenate([dens, color_params], axis=-1)                # [K, 4]

    # strictly-lower-triangular mask (tri[j, k] = 1 iff j > k), built once on the host
    idx = jnp.arange(K)
    tri = (idx[:, None] > idx[None, :]).astype(jnp.bfloat16)           # [K, K]

    batch_shape = coords.shape[:-1]
    N = math.prod(batch_shape)
    coords_flat = jnp.asarray(coords, jnp.float32).reshape(N, 3)
    radius_flat = jnp.asarray(radius, jnp.float32).reshape(N, -1)[:, :1]
    if no_adaptive_delta:
        radius_flat = jnp.full_like(radius_flat, jnp.mean(radius_flat))

    # pad flattened point count to a multiple of the tile size
    n_pad = pl.cdiv(N, tile_n) * tile_n
    if n_pad != N:
        coords_flat = jnp.pad(coords_flat, ((0, n_pad - N), (0, 0)))
        radius_flat = jnp.pad(radius_flat, ((0, n_pad - N), (0, 0)),
                              constant_values=1.0)

    inv_bound = 1.0 if no_warp else 2.0 / bbox_size

    kernel = functools.partial(
        _stroke_field_kernel,
        inv_bound=inv_bound,
        half_inv_sdf_delta=0.5 / float(sdf_delta_eval),
        inv_scale_radius=inv_scale_radius)

    out = pl.pallas_call(
        kernel,
        out_shape=jax.ShapeDtypeStruct((n_pad, 4), jnp.float32),
        grid_spec=pltpu.PrefetchScalarGridSpec(
            num_scalar_prefetch=0,
            grid=(n_pad // tile_n,),
            in_specs=[
                pl.BlockSpec((tile_n, 3), lambda i: (i, 0)),   # coords
                pl.BlockSpec((tile_n, 1), lambda i: (i, 0)),   # per-sample radius
                pl.BlockSpec((3, K), lambda i: (0, 0)),        # 2 * centers
                pl.BlockSpec((1, K), lambda i: (0, 0)),        # ||c||^2
                pl.BlockSpec((1, K), lambda i: (0, 0)),        # stroke radii
                pl.BlockSpec((K, 4), lambda i: (0, 0)),        # density|rgb
                pl.BlockSpec((K, K), lambda i: (0, 0)),        # strict lower-tri mask
            ],
            out_specs=pl.BlockSpec((tile_n, 4), lambda i: (i, 0))),
        compiler_params=pltpu.CompilerParams(
            dimension_semantics=("parallel",)),
    )(coords_flat, radius_flat, centers2, cnorm, srad, dc, tri)

    out = out[:N]
    density = out[:, 0].reshape(batch_shape)
    rgb = out[:, 1:4].reshape(*batch_shape, 3)
    # warped coords are a pure scalar scale of the input -> XLA fuses this for free
    coords_warped = jnp.asarray(coords, jnp.float32) * inv_bound
    return dict(
        coord=coords_warped,
        density=density,
        rgb=rgb,
        normals=None,  # disable_density_normals=True
    )


if __name__ == "__main__":
    B, S, K = 2, 1024, 128   # 2 rays x 1024 samples, 128 active strokes

    key = jax.random.PRNGKey(0)
    kc, kr, k1, k2, k3 = jax.random.split(key, 5)
    coords = jax.random.uniform(kc, (B, S, 3), minval=-2.0, maxval=2.0)
    radius = jax.random.uniform(kr, (B, S, 1), minval=0.01, maxval=0.05)

    # synthetic parameters (module shapes: [K, d_shape], [K, d_color], [K])
    shape_params = jnp.concatenate(
        [jax.random.uniform(k1, (K, 3), minval=-1.0, maxval=1.0),   # sphere centers
         jax.random.uniform(k2, (K, 1), minval=0.1, maxval=0.6)],   # sphere radii
        axis=-1)
    color_params = jax.random.uniform(k3, (K, 3), minval=0.0, maxval=1.0)
    density_params = jnp.ones((K,), jnp.float32)
    params = dict(shape_params=shape_params,
                  color_params=color_params,
                  density_params=density_params)

    out = stroke_field_forward(coords, radius, params)
    jax.block_until_ready(out)
    assert out["density"].shape == (B, S)
    assert out["rgb"].shape == (B, S, 3)
    assert out["coord"].shape == (B, S, 3)
    print("KERNEL_OK")
</pallas_src>

<mosaic_0001>
module attributes {stable_mosaic.version = 11 : i64} {
  func.func @_stroke_field_kernel(%arg0: i32, %arg1: memref<1024x3xf32, #tpu.memory_space<vmem>>, %arg2: memref<1024x1xf32, #tpu.memory_space<vmem>>, %arg3: memref<3x128xf32, #tpu.memory_space<vmem>>, %arg4: memref<1x128xf32, #tpu.memory_space<vmem>>, %arg5: memref<1x128xf32, #tpu.memory_space<vmem>>, %arg6: memref<128x4xf32, #tpu.memory_space<vmem>>, %arg7: memref<128x128xbf16, #tpu.memory_space<vmem>>, %arg8: memref<1024x4xf32, #tpu.memory_space<vmem>>) attributes {dimension_semantics = [#tpu.dimension_semantics<parallel>], iteration_bounds = array<i64: 2>, scalar_prefetch = 0 : i64, scratch_operands = 0 : i64, tpu.core_type = #tpu.core_type<tc>, window_params = [{transform_indices = @transform_0, window_bounds = array<i64: 1024, 3>}, {transform_indices = @transform_1, window_bounds = array<i64: 1024, 1>}, {pipeline_mode = #tpu.pipeline_mode<synchronous>, transform_indices = @transform_2, window_bounds = array<i64: 3, 128>}, {pipeline_mode = #tpu.pipeline_mode<synchronous>, transform_indices = @transform_3, window_bounds = array<i64: 1, 128>}, {pipeline_mode = #tpu.pipeline_mode<synchronous>, transform_indices = @transform_4, window_bounds = array<i64: 1, 128>}, {pipeline_mode = #tpu.pipeline_mode<synchronous>, transform_indices = @transform_5, window_bounds = array<i64: 128, 4>}, {pipeline_mode = #tpu.pipeline_mode<synchronous>, transform_indices = @transform_6, window_bounds = array<i64: 128, 128>}, {transform_indices = @transform_7, window_bounds = array<i64: 1024, 4>}]} {
    %c0 = arith.constant 0 : index
    %c0_0 = arith.constant 0 : index
    %0 = vector.load %arg1[%c0, %c0_0] : memref<1024x3xf32, #tpu.memory_space<vmem>>, vector<1024x3xf32>
    %cst = arith.constant 5.000000e-01 : f32
    %1 = vector.broadcast %cst : f32 to vector<1024x3xf32>
    %2 = arith.mulf %0, %1 : vector<1024x3xf32>
    %c0_1 = arith.constant 0 : index
    %c0_2 = arith.constant 0 : index
    %3 = vector.load %arg3[%c0_1, %c0_2] : memref<3x128xf32, #tpu.memory_space<vmem>>, vector<3x128xf32>
    %cst_3 = arith.constant dense<0.000000e+00> : vector<1024x128xf32>
    %4 = tpu.matmul %2, %3, %cst_3 {dimension_numbers = #tpu.dot_dimension_numbers<[1], [0], [0], [1], [0, 0, 1, 1], [], []>} : vector<1024x3xf32>, vector<3x128xf32>, vector<1024x128xf32> -> vector<1024x128xf32>
    %5 = arith.mulf %2, %2 : vector<1024x3xf32>
    %cst_4 = arith.constant dense<0.000000e+00> : vector<1024xf32>
    %6 = vector.multi_reduction <add>, %5, %cst_4 [1] : vector<1024x3xf32> to vector<1024xf32>
    %7 = vector.shape_cast %6 : vector<1024xf32> to vector<1024x1xf32>
    %8 = vector.broadcast %7 : vector<1024x1xf32> to vector<1024x128xf32>
    %9 = arith.subf %8, %4 : vector<1024x128xf32>
    %c0_5 = arith.constant 0 : index
    %c0_6 = arith.constant 0 : index
    %10 = vector.load %arg4[%c0_5, %c0_6] : memref<1x128xf32, #tpu.memory_space<vmem>>, vector<1x128xf32>
    %11 = vector.broadcast %10 : vector<1x128xf32> to vector<1024x128xf32>
    %12 = arith.addf %9, %11 : vector<1024x128xf32>
    %cst_7 = arith.constant 0.000000e+00 : f32
    %13 = vector.broadcast %cst_7 : f32 to vector<1024x128xf32>
    %14 = arith.maximumf %12, %13 : vector<1024x128xf32>
    %15 = math.sqrt %14 : vector<1024x128xf32>
    %c0_8 = arith.constant 0 : index
    %c0_9 = arith.constant 0 : index
    %16 = vector.load %arg5[%c0_8, %c0_9] : memref<1x128xf32, #tpu.memory_space<vmem>>, vector<1x128xf32>
    %17 = vector.broadcast %16 : vector<1x128xf32> to vector<1024x128xf32>
    %18 = arith.subf %15, %17 : vector<1024x128xf32>
    %c0_10 = arith.constant 0 : index
    %c0_11 = arith.constant 0 : index
    %19 = vector.load %arg2[%c0_10, %c0_11] : memref<1024x1xf32, #tpu.memory_space<vmem>>, vector<1024x1xf32>
    %cst_12 = arith.constant 9.99999997E-7 : f32
    %20 = vector.broadcast %cst_12 : f32 to vector<1024x1xf32>
    %21 = arith.maximumf %19, %20 : vector<1024x1xf32>
    %22 = tpu.reciprocal %21 {approx = true} : vector<1024x1xf32> -> vector<1024x1xf32>
    %cst_13 = arith.constant 5.000000e-01 : f32
    %23 = vector.broadcast %cst_13 : f32 to vector<1024x1xf32>
    %24 = arith.mulf %22, %23 : vector<1024x1xf32>
    %c0_14 = arith.constant 0 : index
    %c0_15 = arith.constant 0 : index
    %25 = vector.load %arg5[%c0_14, %c0_15] : memref<1x128xf32, #tpu.memory_space<vmem>>, vector<1x128xf32>
    %26 = vector.broadcast %24 : vector<1024x1xf32> to vector<1024x128xf32>
    %27 = vector.broadcast %25 : vector<1x128xf32> to vector<1024x128xf32>
    %28 = arith.mulf %26, %27 : vector<1024x128xf32>
    %29 = arith.mulf %18, %28 : vector<1024x128xf32>
    %cst_16 = arith.constant 5.000000e-01 : f32
    %30 = vector.broadcast %cst_16 : f32 to vector<1024x128xf32>
    %31 = arith.subf %30, %29 : vector<1024x128xf32>
    %cst_17 = arith.constant 0.000000e+00 : f32
    %cst_18 = arith.constant 1.000000e+00 : f32
    %32 = vector.broadcast %cst_17 : f32 to vector<1024x128xf32>
    %33 = arith.maximumf %32, %31 : vector<1024x128xf32>
    %34 = vector.broadcast %cst_18 : f32 to vector<1024x128xf32>
    %35 = arith.minimumf %34, %33 : vector<1024x128xf32>
    %cst_19 = arith.constant 0.999998986 : f32
    %36 = vector.broadcast %cst_19 : f32 to vector<1024x128xf32>
    %37 = arith.minimumf %35, %36 : vector<1024x128xf32>
    %cst_20 = arith.constant 1.000000e+00 : f32
    %38 = vector.broadcast %cst_20 : f32 to vector<1024x128xf32>
    %39 = arith.subf %38, %37 : vector<1024x128xf32>
    %40 = math.log %39 : vector<1024x128xf32>
    %41 = arith.truncf %40 : vector<1024x128xf32> to vector<1024x128xbf16>
    %c0_21 = arith.constant 0 : index
    %c0_22 = arith.constant 0 : index
    %42 = vector.load %arg7[%c0_21, %c0_22] : memref<128x128xbf16, #tpu.memory_space<vmem>>, vector<128x128xbf16>
    %cst_23 = arith.constant dense<0.000000e+00> : vector<1024x128xf32>
    %43 = tpu.matmul %41, %42, %cst_23 {dimension_numbers = #tpu.dot_dimension_numbers<[1], [0], [0], [1], [0, 0, 1, 1], [], []>} : vector<1024x128xbf16>, vector<128x128xbf16>, vector<1024x128xf32> -> vector<1024x128xf32>
    %44 = math.exp %43 : vector<1024x128xf32>
    %45 = arith.mulf %35, %44 : vector<1024x128xf32>
    %c0_24 = arith.constant 0 : index
    %c0_25 = arith.constant 0 : index
    %46 = vector.load %arg6[%c0_24, %c0_25] : memref<128x4xf32, #tpu.memory_space<vmem>>, vector<128x4xf32>
    %cst_26 = arith.constant dense<0.000000e+00> : vector<1024x4xf32>
    %47 = tpu.matmul %45, %46, %cst_26 {dimension_numbers = #tpu.dot_dimension_numbers<[1], [0], [0], [1], [0, 0, 1, 1], [], []>} : vector<1024x128xf32>, vector<128x4xf32>, vector<1024x4xf32> -> vector<1024x4xf32>
    %c0_27 = arith.constant 0 : index
    %c0_28 = arith.constant 0 : index
    %48 = vector.load %arg8[%c0_27, %c0_28] : memref<1024x4xf32, #tpu.memory_space<vmem>>, vector<1024x4xf32>
    tpu.vector_store %arg8[%c0_27, %c0_28], %47 {strides = array<i32>} : memref<1024x4xf32, #tpu.memory_space<vmem>>, vector<1024x4xf32>,
    return
  }
  func.func @transform_0(%arg0: i32) -> (i32, i32) {
    %c0_i32 = arith.constant 0 : i32
    %c0_i32_0 = arith.constant 0 : i32
    return %arg0, %c0_i32 : i32, i32
  }
  func.func @transform_1(%arg0: i32) -> (i32, i32) {
    %c0_i32 = arith.constant 0 : i32
    %c0_i32_0 = arith.constant 0 : i32
    return %arg0, %c0_i32 : i32, i32
  }
  func.func @transform_2(%arg0: i32) -> (i32, i32) {
    %c0_i32 = arith.constant 0 : i32
    %c0_i32_0 = arith.constant 0 : i32
    %c0_i32_1 = arith.constant 0 : i32
    return %c0_i32, %c0_i32_0 : i32, i32
  }
  func.func @transform_3(%arg0: i32) -> (i32, i32) {
    %c0_i32 = arith.constant 0 : i32
    %c0_i32_0 = arith.constant 0 : i32
    %c0_i32_1 = arith.constant 0 : i32
    return %c0_i32, %c0_i32_0 : i32, i32
  }
  func.func @transform_4(%arg0: i32) -> (i32, i32) {
    %c0_i32 = arith.constant 0 : i32
    %c0_i32_0 = arith.constant 0 : i32
    %c0_i32_1 = arith.constant 0 : i32
    return %c0_i32, %c0_i32_0 : i32, i32
  }
  func.func @transform_5(%arg0: i32) -> (i32, i32) {
    %c0_i32 = arith.constant 0 : i32
    %c0_i32_0 = arith.constant 0 : i32
    %c0_i32_1 = arith.constant 0 : i32
    return %c0_i32, %c0_i32_0 : i32, i32
  }
  func.func @transform_6(%arg0: i32) -> (i32, i32) {
    %c0_i32 = arith.constant 0 : i32
    %c0_i32_0 = arith.constant 0 : i32
    %c0_i32_1 = arith.constant 0 : i32
    return %c0_i32, %c0_i32_0 : i32, i32
  }
  func.func @transform_7(%arg0: i32) -> (i32, i32) {
    %c0_i32 = arith.constant 0 : i32
    %c0_i32_0 = arith.constant 0 : i32
    return %arg0, %c0_i32 : i32, i32
  }
}

</mosaic_0001>

<llo_original>
// kernel: tpu_custom_call.1
$region0: #{tpu_custom_call.1}
  #allocation0 [shape = 'u32[]', space=smem, size = 0x4, offset = 0x4, fixed_abs, tag = 'smem constant byte address 0x4 - core index']
  #allocation1 [shape = 'u32[72,128]{1,0:T(1,128)}', space=vmem, size = 0x9000, scoped, tag = 'internal scratch']
  %s0 = inlined_call_operand.vmem [shape: f32[2048,3], index: 0, kind: input, shape index: {}]
  %s1 = inlined_call_operand.vmem [shape: f32[2048,1], index: 1, kind: input, shape index: {}]
  %s2 = inlined_call_operand.vmem [shape: f32[3,128], index: 2, kind: input, shape index: {}]
  %s3 = inlined_call_operand.vmem [shape: f32[1,128], index: 3, kind: input, shape index: {}]
  %s4 = inlined_call_operand.vmem [shape: f32[1,128], index: 4, kind: input, shape index: {}]
  %s5 = inlined_call_operand.vmem [shape: f32[128,4], index: 5, kind: input, shape index: {}]
  %s6 = inlined_call_operand.vmem [shape: bf16[128,128], index: 6, kind: input, shape index: {}]
  %s7 = inlined_call_operand.vmem [shape: f32[2048,4], index: 7, kind: output, shape index: {}]
  %s8 = sld [smem:[#allocation0]]
  $region61: #{tpu_custom_call.1} parent=0
    _
  %s10 = ssub.s32 1, %s8
  %s11 = scalar_select 0, %s10, %s8
  loop: start=0, step=1, limit=4
  $region2: #{tpu_custom_call.1} parent=0 // loop_pre_header
    _
  $region3: #{tpu_custom_call.1} parent=0 // loop_header
    %s13 = sphi 0, %s17
    %p14 = scmp.ge.s32.totalorder %s13, 4
    %s23 = sphi 0, %s25
    %s26 = sphi 0, %s23
    %s27 = sphi 0, %s26
    %s43 = sphi 0, %s27
    %s49 = sphi 0, %s51
    %s52 = sphi 0, %s49
    %s53 = sphi 0, %s52
    %s69 = sphi 0, %s53
    %s73 = sphi 0, %s73
    %s75 = sphi 0, %s73
    %s76 = sphi 0, %s75
    %s90 = sphi 0, %s76
    %s94 = sphi 0, %s94
    %s96 = sphi 0, %s94
    %s97 = sphi 0, %s96
    %s111 = sphi 0, %s97
    %s115 = sphi 0, %s115
    %s117 = sphi 0, %s115
    %s118 = sphi 0, %s117
    %s132 = sphi 0, %s118
    %s136 = sphi 0, %s136
    %s138 = sphi 0, %s136
    %s139 = sphi 0, %s138
    %s153 = sphi 0, %s139
    %s157 = sphi 0, %s157
    %s159 = sphi 0, %s157
    %s160 = sphi 0, %s159
    %s174 = sphi 0, %s160
    %s180 = sphi 0, %s182
    %s183 = sphi 0, %s180
    %s184 = sphi 0, %s183
    %s200 = sphi 0, %s184
  $region4: #{tpu_custom_call.1} parent=0 // loop_header_branch
    %16 = sbr.rel (%p14) target = $region8
  $region5: #{tpu_custom_call.1} parent=0 // loop_body
    %s18 = ssub.s32 %s13, 1
    %s19 = ssub.s32 %s13, 2
    %s20 = sadd.s32 %s13, 1
    %s21 = ssub.s32 %s13, %s20
    %p22 = scmp.eq.s32.totalorder %s21, 0
    %s24 = sadd.s32 %s23, 1
    %s25 = scalar_select %p22, %s23, %s24
    %p28 = pneg %p22
    %p29 = scmp.eq.s32.totalorder %s13, 1
    %p30 = por %p28, %p29
    %p31 = scmp.ne.s32.totalorder %s23, %s26
    %p32 = scmp.eq.s32.totalorder %s13, 0
    %p33 = por %p31, %p32
    %p34 = scmp.ne.s32.totalorder %s23, %s26
    %p35 = scmp.eq.s32.totalorder %s18, 1
    %p36 = por %p34, %p35
    %p37 = scmp.ne.s32.totalorder %s26, %s27
    %p38 = scmp.eq.s32.totalorder %s18, 0
    %p39 = por %p37, %p38
    %p40 = scmp.ne.s32.totalorder %s26, %s27
    %p41 = scmp.eq.s32.totalorder %s19, 1
    %p42 = por %p40, %p41
    %p44 = scmp.ne.s32.totalorder %s27, %s43
    %p45 = scmp.eq.s32.totalorder %s19, 0
    %p46 = por %p44, %p45
    %s47 = ssub.s32 %s13, %s20
    %p48 = scmp.eq.s32.totalorder %s47, 0
    %s50 = sadd.s32 %s49, 1
    %s51 = scalar_select %p48, %s49, %s50
    %p54 = pneg %p48
    %p55 = scmp.eq.s32.totalorder %s13, 1
    %p56 = por %p54, %p55
    %p57 = scmp.ne.s32.totalorder %s49, %s52
    %p58 = scmp.eq.s32.totalorder %s13, 0
    %p59 = por %p57, %p58
    %p60 = scmp.ne.s32.totalorder %s49, %s52
    %p61 = scmp.eq.s32.totalorder %s18, 1
    %p62 = por %p60, %p61
    %p63 = scmp.ne.s32.totalorder %s52, %s53
    %p64 = scmp.eq.s32.totalorder %s18, 0
    %p65 = por %p63, %p64
    %p66 = scmp.ne.s32.totalorder %s52, %s53
    %p67 = scmp.eq.s32.totalorder %s19, 1
    %p68 = por %p66, %p67
    %p70 = scmp.ne.s32.totalorder %s53, %s69
    %p71 = scmp.eq.s32.totalorder %s19, 0
    %p72 = por %p70, %p71
    %s74 = sadd.s32 %s73, 1
    %p77 = scmp.eq.s32.totalorder %s13, 1
    %p78 = scmp.ne.s32.totalorder %s73, %s75
    %p79 = scmp.eq.s32.totalorder %s13, 0
    %p80 = por %p78, %p79
    %p81 = scmp.ne.s32.totalorder %s73, %s75
    %p82 = scmp.eq.s32.totalorder %s18, 1
    %p83 = por %p81, %p82
    %p84 = scmp.ne.s32.totalorder %s75, %s76
    %p85 = scmp.eq.s32.totalorder %s18, 0
    %p86 = por %p84, %p85
    %p87 = scmp.ne.s32.totalorder %s75, %s76
    %p88 = scmp.eq.s32.totalorder %s19, 1
    %p89 = por %p87, %p88
    %p91 = scmp.ne.s32.totalorder %s76, %s90
    %p92 = scmp.eq.s32.totalorder %s19, 0
    %p93 = por %p91, %p92
    %s95 = sadd.s32 %s94, 1
    %p98 = scmp.eq.s32.totalorder %s13, 1
    %p99 = scmp.ne.s32.totalorder %s94, %s96
    %p100 = scmp.eq.s32.totalorder %s13, 0
    %p101 = por %p99, %p100
    %p102 = scmp.ne.s32.totalorder %s94, %s96
    %p103 = scmp.eq.s32.totalorder %s18, 1
    %p104 = por %p102, %p103
    %p105 = scmp.ne.s32.totalorder %s96, %s97
    %p106 = scmp.eq.s32.totalorder %s18, 0
    %p107 = por %p105, %p106
    %p108 = scmp.ne.s32.totalorder %s96, %s97
    %p109 = scmp.eq.s32.totalorder %s19, 1
    %p110 = por %p108, %p109
    %p112 = scmp.ne.s32.totalorder %s97, %s111
    %p113 = scmp.eq.s32.totalorder %s19, 0
    %p114 = por %p112, %p113
    %s116 = sadd.s32 %s115, 1
    %p119 = scmp.eq.s32.totalorder %s13, 1
    %p120 = scmp.ne.s32.totalorder %s115, %s117
    %p121 = scmp.eq.s32.totalorder %s13, 0
    %p122 = por %p120, %p121
    %p123 = scmp.ne.s32.totalorder %s115, %s117
    %p124 = scmp.eq.s32.totalorder %s18, 1
    %p125 = por %p123, %p124
    %p126 = scmp.ne.s32.totalorder %s117, %s118
    %p127 = scmp.eq.s32.totalorder %s18, 0
    %p128 = por %p126, %p127
    %p129 = scmp.ne.s32.totalorder %s117, %s118
    %p130 = scmp.eq.s32.totalorder %s19, 1
    %p131 = por %p129, %p130
    %p133 = scmp.ne.s32.totalorder %s118, %s132
    %p134 = scmp.eq.s32.totalorder %s19, 0
    %p135 = por %p133, %p134
    %s137 = sadd.s32 %s136, 1
    %p140 = scmp.eq.s32.totalorder %s13, 1
    %p141 = scmp.ne.s32.totalorder %s136, %s138
    %p142 = scmp.eq.s32.totalorder %s13, 0
    %p143 = por %p141, %p142
    %p144 = scmp.ne.s32.totalorder %s136, %s138
    %p145 = scmp.eq.s32.totalorder %s18, 1
    %p146 = por %p144, %p145
    %p147 = scmp.ne.s32.totalorder %s138, %s139
    %p148 = scmp.eq.s32.totalorder %s18, 0
    %p149 = por %p147, %p148
    %p150 = scmp.ne.s32.totalorder %s138, %s139
    %p151 = scmp.eq.s32.totalorder %s19, 1
    %p152 = por %p150, %p151
    %p154 = scmp.ne.s32.totalorder %s139, %s153
    %p155 = scmp.eq.s32.totalorder %s19, 0
    %p156 = por %p154, %p155
    %s158 = sadd.s32 %s157, 1
    %p161 = scmp.eq.s32.totalorder %s13, 1
    %p162 = scmp.ne.s32.totalorder %s157, %s159
    %p163 = scmp.eq.s32.totalorder %s13, 0
    %p164 = por %p162, %p163
    %p165 = scmp.ne.s32.totalorder %s157, %s159
    %p166 = scmp.eq.s32.totalorder %s18, 1
    %p167 = por %p165, %p166
    %p168 = scmp.ne.s32.totalorder %s159, %s160
    %p169 = scmp.eq.s32.totalorder %s18, 0
    %p170 = por %p168, %p169
    %p171 = scmp.ne.s32.totalorder %s159, %s160
    %p172 = scmp.eq.s32.totalorder %s19, 1
    %p173 = por %p171, %p172
    %p175 = scmp.ne.s32.totalorder %s160, %s174
    %p176 = scmp.eq.s32.totalorder %s19, 0
    %p177 = por %p175, %p176
    %s178 = ssub.s32 %s13, %s20
    %p179 = scmp.eq.s32.totalorder %s178, 0
    %s181 = sadd.s32 %s180, 1
    %s182 = scalar_select %p179, %s180, %s181
    %p185 = pneg %p179
    %p186 = scmp.eq.s32.totalorder %s13, 1
    %p187 = por %p185, %p186
    %p188 = scmp.ne.s32.totalorder %s180, %s183
    %p189 = scmp.eq.s32.totalorder %s13, 0
    %p190 = por %p188, %p189
    %p191 = scmp.ne.s32.totalorder %s180, %s183
    %p192 = scmp.eq.s32.totalorder %s18, 1
    %p193 = por %p191, %p192
    %p194 = scmp.ne.s32.totalorder %s183, %s184
    %p195 = scmp.eq.s32.totalorder %s18, 0
    %p196 = por %p194, %p195
    %p197 = scmp.ne.s32.totalorder %s183, %s184
    %p198 = scmp.eq.s32.totalorder %s19, 1
    %p199 = por %p197, %p198
    %p201 = scmp.ne.s32.totalorder %s184, %s200
    %p202 = scmp.eq.s32.totalorder %s19, 0
    %p203 = por %p201, %p202
    %p204 = scmp.le.s32.totalorder 1, %s13
    %p205 = scmp.lt.s32.totalorder %s13, 3
    %p206 = pnand %p204, %p205
    %p207 = pneg %p206
    // Predicated region
    $region9: #{tpu_custom_call.1} parent=5 // pred_check
      _
    $region10: #{tpu_custom_call.1} parent=5 // pred_check_branch
      %209 = sbr.rel (%p206) target = $region12
    $region11: #{tpu_custom_call.1} parent=5 // pred_region
      %s210 = ssub.s32 %s13, 1
      // Predicated region
      $region13: #{tpu_custom_call.1} parent=11 // pred_check
        %p211 = pneg %p86
      $region14: #{tpu_custom_call.1} parent=11 // pred_check_branch
        %213 = sbr.rel (%p211) target = $region16
      $region15: #{tpu_custom_call.1} parent=11 // pred_region
        _
      $region16: #{tpu_custom_call.1} parent=11 // pred_fallthru
        _
      // Predicated region
      $region17: #{tpu_custom_call.1} parent=11 // pred_check
        %p214 = pneg %p107
      $region18: #{tpu_custom_call.1} parent=11 // pred_check_branch
        %216 = sbr.rel (%p214) target = $region20
      $region19: #{tpu_custom_call.1} parent=11 // pred_region
        _
      $region20: #{tpu_custom_call.1} parent=11 // pred_fallthru
        _
      // Predicated region
      $region21: #{tpu_custom_call.1} parent=11 // pred_check
        %p217 = pneg %p128
      $region22: #{tpu_custom_call.1} parent=11 // pred_check_branch
        %219 = sbr.rel (%p217) target = $region24
      $region23: #{tpu_custom_call.1} parent=11 // pred_region
        _
      $region24: #{tpu_custom_call.1} parent=11 // pred_fallthru
        _
      // Predicated region
      $region25: #{tpu_custom_call.1} parent=11 // pred_check
        %p220 = pneg %p149
      $region26: #{tpu_custom_call.1} parent=11 // pred_check_branch
        %222 = sbr.rel (%p220) target = $region28
      $region27: #{tpu_custom_call.1} parent=11 // pred_region
        _
      $region28: #{tpu_custom_call.1} parent=11 // pred_fallthru
        _
      // Predicated region
      $region29: #{tpu_custom_call.1} parent=11 // pred_check
        %p223 = pneg %p170
      $region30: #{tpu_custom_call.1} parent=11 // pred_check_branch
        %225 = sbr.rel (%p223) target = $region32
      $region31: #{tpu_custom_call.1} parent=11 // pred_region
        _
      $region32: #{tpu_custom_call.1} parent=11 // pred_fallthru
        _
    $region12: #{tpu_custom_call.1} parent=5 // pred_fallthru
      _
    %p226 = scmp.lt.s32.totalorder %s13, 2
    // Predicated region
    $region33: #{tpu_custom_call.1} parent=5 // pred_check
      %p227 = pneg %p226
    $region34: #{tpu_custom_call.1} parent=5 // pred_check_branch
      %229 = sbr.rel (%p227) target = $region36
    $region35: #{tpu_custom_call.1} parent=5 // pred_region
      // Predicated region
      $region37: #{tpu_custom_call.1} parent=35 // pred_check
        %p230 = pneg %p33
      $region38: #{tpu_custom_call.1} parent=35 // pred_check_branch
        %232 = sbr.rel (%p230) target = $region40
      $region39: #{tpu_custom_call.1} parent=35 // pred_region
        %s233 = smul.u32 128, %s13
        %p234 = scmp.lt.s32.totalorder %s233, 255
        %s235 = scalar_select %p234, %s233, 255
        %s236 = smul.addr %s235, 8
        %s237 = scalar_lea.vmem %s0, %s236
        %s238 = smul.u32 128, %s13
      $region40: #{tpu_custom_call.1} parent=35 // pred_fallthru
        _
      // Predicated region
      $region41: #{tpu_custom_call.1} parent=35 // pred_check
        %p239 = pneg %p59
      $region42: #{tpu_custom_call.1} parent=35 // pred_check_branch
        %241 = sbr.rel (%p239) target = $region44
      $region43: #{tpu_custom_call.1} parent=35 // pred_region
        %s242 = smul.u32 128, %s13
        %p243 = scmp.lt.s32.totalorder %s242, 255
        %s244 = scalar_select %p243, %s242, 255
        %s245 = smul.addr %s244, 8
        %s246 = scalar_lea.vmem %s1, %s245
        %s247 = smul.u32 128, %s13
      $region44: #{tpu_custom_call.1} parent=35 // pred_fallthru
        _
    $region36: #{tpu_custom_call.1} parent=5 // pred_fallthru
      _
    %p248 = scmp.le.s32.totalorder 1, %s13
    %p249 = scmp.lt.s32.totalorder %s13, 3
    %p250 = pnand %p248, %p249
    %p251 = pneg %p250
    // Predicated region
    $region45: #{tpu_custom_call.1} parent=5 // pred_check
      _
    $region46: #{tpu_custom_call.1} parent=5 // pred_check_branch
      %253 = sbr.rel (%p250) target = $region48
    $region47: #{tpu_custom_call.1} parent=5 // pred_region
      %s254 = ssub.s32 %s13, 1
      %s255 = smul.u32 128, %s18
      %p256 = scmp.lt.s32.totalorder %s255, 255
      %s257 = scalar_select %p256, %s255, 255
      %s258 = smul.addr %s257, 8
      %s259 = scalar_lea.vmem %s0, %s258
      %p260 = pneg %p39
      %p261 = pneg %p36
      %s262 = smul.u32 128, %s18
      %p263 = scmp.lt.s32.totalorder %s262, 255
      %s264 = scalar_select %p263, %s262, 255
      %s265 = smul.addr %s264, 8
      %s266 = scalar_lea.vmem %s1, %s265
      %p267 = pneg %p65
      %p268 = pneg %p62
      %p269 = pneg %p86
      %p270 = pneg %p83
      %p271 = pneg %p107
      %p272 = pneg %p104
      %p273 = pneg %p128
      %p274 = pneg %p125
      %p275 = pneg %p149
      %p276 = pneg %p146
      %p277 = pneg %p170
      %p278 = pneg %p167
      %p279 = pneg %p196
      %p280 = pneg %p193
      %s281 = smul.u32 128, %s18
      %p282 = scmp.lt.s32.totalorder %s281, 255
      %s283 = scalar_select %p282, %s281, 255
      %s284 = smul.addr %s283, 8
      %s285 = scalar_lea.vmem %s7, %s284
      %s286 = smul.u32 128, %s18
      %p287 = scmp.lt.s32.totalorder %s286, 255
      %s288 = scalar_select %p287, %s286, 255
      %s289 = smul.addr %s288, 8
      %s290 = scalar_lea.vmem %s0, %s289
      %s291 = smul.u32 128, %s18
      %s292 = smul.u32 128, %s18
      %p293 = scmp.lt.s32.totalorder %s292, 255
      %s294 = scalar_select %p293, %s292, 255
      %s295 = smul.addr %s294, 8
      %s296 = scalar_lea.vmem %s1, %s295
      %s297 = smul.u32 128, %s18
      %s298 = smul.u32 128, %s18
      %p299 = scmp.lt.s32.totalorder %s298, 255
      %s300 = scalar_select %p299, %s298, 255
      %s301 = smul.addr %s300, 8
      %s302 = scalar_lea.vmem %s7, %s301
      %s303 = smul.u32 128, %s18
      %v304 = vld [vmem:[%s290] sm:$0xff]
      %v305 = vld [vmem:[%s290 + $0x8] sm:$0xff]
      %v306 = vld [vmem:[%s290 + $0x10] sm:$0xff]
      %v307 = vld [vmem:[%s290 + $0x18] sm:$0xff]
      %v308 = vld [vmem:[%s290 + $0x20] sm:$0xff]
      %v309 = vld [vmem:[%s290 + $0x28] sm:$0xff]
      %v310 = vld [vmem:[%s290 + $0x30] sm:$0xff]
      %v311 = vld [vmem:[%s290 + $0x38] sm:$0xff]
      %v312 = vld [vmem:[%s290 + $0x40] sm:$0xff]
      %v313 = vld [vmem:[%s290 + $0x48] sm:$0xff]
      %v314 = vld [vmem:[%s290 + $0x50] sm:$0xff]
      %v315 = vld [vmem:[%s290 + $0x58] sm:$0xff]
      %v316 = vld [vmem:[%s290 + $0x60] sm:$0xff]
      %v317 = vld [vmem:[%s290 + $0x68] sm:$0xff]
      %v318 = vld [vmem:[%s290 + $0x70] sm:$0xff]
      %v319 = vld [vmem:[%s290 + $0x78] sm:$0xff]
      %v320 = vld [vmem:[%s290 + $0x80] sm:$0xff]
      %v321 = vld [vmem:[%s290 + $0x88] sm:$0xff]
      %v322 = vld [vmem:[%s290 + $0x90] sm:$0xff]
      %v323 = vld [vmem:[%s290 + $0x98] sm:$0xff]
      %v324 = vld [vmem:[%s290 + $0xa0] sm:$0xff]
      %v325 = vld [vmem:[%s290 + $0xa8] sm:$0xff]
      %v326 = vld [vmem:[%s290 + $0xb0] sm:$0xff]
      %v327 = vld [vmem:[%s290 + $0xb8] sm:$0xff]
      %v328 = vld [vmem:[%s290 + $0xc0] sm:$0xff]
      %v329 = vld [vmem:[%s290 + $0xc8] sm:$0xff]
      %v330 = vld [vmem:[%s290 + $0xd0] sm:$0xff]
      %v331 = vld [vmem:[%s290 + $0xd8] sm:$0xff]
      %v332 = vld [vmem:[%s290 + $0xe0] sm:$0xff]
      %v333 = vld [vmem:[%s290 + $0xe8] sm:$0xff]
      %v334 = vld [vmem:[%s290 + $0xf0] sm:$0xff]
      %v335 = vld [vmem:[%s290 + $0xf8] sm:$0xff]
      %v336 = vld [vmem:[%s290 + $0x100] sm:$0xff]
      %v337 = vld [vmem:[%s290 + $0x108] sm:$0xff]
      %v338 = vld [vmem:[%s290 + $0x110] sm:$0xff]
      %v339 = vld [vmem:[%s290 + $0x118] sm:$0xff]
      %v340 = vld [vmem:[%s290 + $0x120] sm:$0xff]
      %v341 = vld [vmem:[%s290 + $0x128] sm:$0xff]
      %v342 = vld [vmem:[%s290 + $0x130] sm:$0xff]
      %v343 = vld [vmem:[%s290 + $0x138] sm:$0xff]
      %v344 = vld [vmem:[%s290 + $0x140] sm:$0xff]
      %v345 = vld [vmem:[%s290 + $0x148] sm:$0xff]
      %v346 = vld [vmem:[%s290 + $0x150] sm:$0xff]
      %v347 = vld [vmem:[%s290 + $0x158] sm:$0xff]
      %v348 = vld [vmem:[%s290 + $0x160] sm:$0xff]
      %v349 = vld [vmem:[%s290 + $0x168] sm:$0xff]
      %v350 = vld [vmem:[%s290 + $0x170] sm:$0xff]
      %v351 = vld [vmem:[%s290 + $0x178] sm:$0xff]
      %v352 = vld [vmem:[%s290 + $0x180] sm:$0xff]
      %v353 = vld [vmem:[%s290 + $0x188] sm:$0xff]
      %v354 = vld [vmem:[%s290 + $0x190] sm:$0xff]
      %v355 = vld [vmem:[%s290 + $0x198] sm:$0xff]
      %v356 = vld [vmem:[%s290 + $0x1a0] sm:$0xff]
      %v357 = vld [vmem:[%s290 + $0x1a8] sm:$0xff]
      %v358 = vld [vmem:[%s290 + $0x1b0] sm:$0xff]
      %v359 = vld [vmem:[%s290 + $0x1b8] sm:$0xff]
      %v360 = vld [vmem:[%s290 + $0x1c0] sm:$0xff]
      %v361 = vld [vmem:[%s290 + $0x1c8] sm:$0xff]
      %v362 = vld [vmem:[%s290 + $0x1d0] sm:$0xff]
      %v363 = vld [vmem:[%s290 + $0x1d8] sm:$0xff]
      %v364 = vld [vmem:[%s290 + $0x1e0] sm:$0xff]
      %v365 = vld [vmem:[%s290 + $0x1e8] sm:$0xff]
      %v366 = vld [vmem:[%s290 + $0x1f0] sm:$0xff]
      %v367 = vld [vmem:[%s290 + $0x1f8] sm:$0xff]
      %v368 = vld [vmem:[%s290 + $0x200] sm:$0xff]
      %v369 = vld [vmem:[%s290 + $0x208] sm:$0xff]
      %v370 = vld [vmem:[%s290 + $0x210] sm:$0xff]
      %v371 = vld [vmem:[%s290 + $0x218] sm:$0xff]
      %v372 = vld [vmem:[%s290 + $0x220] sm:$0xff]
      %v373 = vld [vmem:[%s290 + $0x228] sm:$0xff]
      %v374 = vld [vmem:[%s290 + $0x230] sm:$0xff]
      %v375 = vld [vmem:[%s290 + $0x238] sm:$0xff]
      %v376 = vld [vmem:[%s290 + $0x240] sm:$0xff]
      %v377 = vld [vmem:[%s290 + $0x248] sm:$0xff]
      %v378 = vld [vmem:[%s290 + $0x250] sm:$0xff]
      %v379 = vld [vmem:[%s290 + $0x258] sm:$0xff]
      %v380 = vld [vmem:[%s290 + $0x260] sm:$0xff]
      %v381 = vld [vmem:[%s290 + $0x268] sm:$0xff]
      %v382 = vld [vmem:[%s290 + $0x270] sm:$0xff]
      %v383 = vld [vmem:[%s290 + $0x278] sm:$0xff]
      %v384 = vld [vmem:[%s290 + $0x280] sm:$0xff]
      %v385 = vld [vmem:[%s290 + $0x288] sm:$0xff]
      %v386 = vld [vmem:[%s290 + $0x290] sm:$0xff]
      %v387 = vld [vmem:[%s290 + $0x298] sm:$0xff]
      %v388 = vld [vmem:[%s290 + $0x2a0] sm:$0xff]
      %v389 = vld [vmem:[%s290 + $0x2a8] sm:$0xff]
      %v390 = vld [vmem:[%s290 + $0x2b0] sm:$0xff]
      %v391 = vld [vmem:[%s290 + $0x2b8] sm:$0xff]
      %v392 = vld [vmem:[%s290 + $0x2c0] sm:$0xff]
      %v393 = vld [vmem:[%s290 + $0x2c8] sm:$0xff]
      %v394 = vld [vmem:[%s290 + $0x2d0] sm:$0xff]
      %v395 = vld [vmem:[%s290 + $0x2d8] sm:$0xff]
      %v396 = vld [vmem:[%s290 + $0x2e0] sm:$0xff]
      %v397 = vld [vmem:[%s290 + $0x2e8] sm:$0xff]
      %v398 = vld [vmem:[%s290 + $0x2f0] sm:$0xff]
      %v399 = vld [vmem:[%s290 + $0x2f8] sm:$0xff]
      %v400 = vld [vmem:[%s290 + $0x300] sm:$0xff]
      %v401 = vld [vmem:[%s290 + $0x308] sm:$0xff]
      %v402 = vld [vmem:[%s290 + $0x310] sm:$0xff]
      %v403 = vld [vmem:[%s290 + $0x318] sm:$0xff]
      %v404 = vld [vmem:[%s290 + $0x320] sm:$0xff]
      %v405 = vld [vmem:[%s290 + $0x328] sm:$0xff]
      %v406 = vld [vmem:[%s290 + $0x330] sm:$0xff]
      %v407 = vld [vmem:[%s290 + $0x338] sm:$0xff]
      %v408 = vld [vmem:[%s290 + $0x340] sm:$0xff]
      %v409 = vld [vmem:[%s290 + $0x348] sm:$0xff]
      %v410 = vld [vmem:[%s290 + $0x350] sm:$0xff]
      %v411 = vld [vmem:[%s290 + $0x358] sm:$0xff]
      %v412 = vld [vmem:[%s290 + $0x360] sm:$0xff]
      %v413 = vld [vmem:[%s290 + $0x368] sm:$0xff]
      %v414 = vld [vmem:[%s290 + $0x370] sm:$0xff]
      %v415 = vld [vmem:[%s290 + $0x378] sm:$0xff]
      %v416 = vld [vmem:[%s290 + $0x380] sm:$0xff]
      %v417 = vld [vmem:[%s290 + $0x388] sm:$0xff]
      %v418 = vld [vmem:[%s290 + $0x390] sm:$0xff]
      %v419 = vld [vmem:[%s290 + $0x398] sm:$0xff]
      %v420 = vld [vmem:[%s290 + $0x3a0] sm:$0xff]
      %v421 = vld [vmem:[%s290 + $0x3a8] sm:$0xff]
      %v422 = vld [vmem:[%s290 + $0x3b0] sm:$0xff]
      %v423 = vld [vmem:[%s290 + $0x3b8] sm:$0xff]
      %v424 = vld [vmem:[%s290 + $0x3c0] sm:$0xff]
      %v425 = vld [vmem:[%s290 + $0x3c8] sm:$0xff]
      %v426 = vld [vmem:[%s290 + $0x3d0] sm:$0xff]
      %v427 = vld [vmem:[%s290 + $0x3d8] sm:$0xff]
      %v428 = vld [vmem:[%s290 + $0x3e0] sm:$0xff]
      %v429 = vld [vmem:[%s290 + $0x3e8] sm:$0xff]
      %v430 = vld [vmem:[%s290 + $0x3f0] sm:$0xff]
      %v431 = vld [vmem:[%s290 + $0x3f8] sm:$0xff]
      %v432 = vmul.f32 %v304, 0.5
      %v433 = vmul.f32 %v305, 0.5
      %v434 = vmul.f32 %v306, 0.5
      %v435 = vmul.f32 %v307, 0.5
      %v436 = vmul.f32 %v308, 0.5
      %v437 = vmul.f32 %v309, 0.5
      %v438 = vmul.f32 %v310, 0.5
      %v439 = vmul.f32 %v311, 0.5
      %v440 = vmul.f32 %v312, 0.5
      %v441 = vmul.f32 %v313, 0.5
      %v442 = vmul.f32 %v314, 0.5
      %v443 = vmul.f32 %v315, 0.5
      %v444 = vmul.f32 %v316, 0.5
      %v445 = vmul.f32 %v317, 0.5
      %v446 = vmul.f32 %v318, 0.5
      %v447 = vmul.f32 %v319, 0.5
      %v448 = vmul.f32 %v320, 0.5
      %v449 = vmul.f32 %v321, 0.5
      %v450 = vmul.f32 %v322, 0.5
      %v451 = vmul.f32 %v323, 0.5
      %v452 = vmul.f32 %v324, 0.5
      %v453 = vmul.f32 %v325, 0.5
      %v454 = vmul.f32 %v326, 0.5
      %v455 = vmul.f32 %v327, 0.5
      %v456 = vmul.f32 %v328, 0.5
      %v457 = vmul.f32 %v329, 0.5
      %v458 = vmul.f32 %v330, 0.5
      %v459 = vmul.f32 %v331, 0.5
      %v460 = vmul.f32 %v332, 0.5
      %v461 = vmul.f32 %v333, 0.5
      %v462 = vmul.f32 %v334, 0.5
      %v463 = vmul.f32 %v335, 0.5
      %v464 = vmul.f32 %v336, 0.5
      %v465 = vmul.f32 %v337, 0.5
      %v466 = vmul.f32 %v338, 0.5
      %v467 = vmul.f32 %v339, 0.5
      %v468 = vmul.f32 %v340, 0.5
      %v469 = vmul.f32 %v341, 0.5
      %v470 = vmul.f32 %v342, 0.5
      %v471 = vmul.f32 %v343, 0.5
      %v472 = vmul.f32 %v344, 0.5
      %v473 = vmul.f32 %v345, 0.5
      %v474 = vmul.f32 %v346, 0.5
      %v475 = vmul.f32 %v347, 0.5
      %v476 = vmul.f32 %v348, 0.5
      %v477 = vmul.f32 %v349, 0.5
      %v478 = vmul.f32 %v350, 0.5
      %v479 = vmul.f32 %v351, 0.5
      %v480 = vmul.f32 %v352, 0.5
      %v481 = vmul.f32 %v353, 0.5
      %v482 = vmul.f32 %v354, 0.5
      %v483 = vmul.f32 %v355, 0.5
      %v484 = vmul.f32 %v356, 0.5
      %v485 = vmul.f32 %v357, 0.5
      %v486 = vmul.f32 %v358, 0.5
      %v487 = vmul.f32 %v359, 0.5
      %v488 = vmul.f32 %v360, 0.5
      %v489 = vmul.f32 %v361, 0.5
      %v490 = vmul.f32 %v362, 0.5
      %v491 = vmul.f32 %v363, 0.5
      %v492 = vmul.f32 %v364, 0.5
      %v493 = vmul.f32 %v365, 0.5
      %v494 = vmul.f32 %v366, 0.5
      %v495 = vmul.f32 %v367, 0.5
      %v496 = vmul.f32 %v368, 0.5
      %v497 = vmul.f32 %v369, 0.5
      %v498 = vmul.f32 %v370, 0.5
      %v499 = vmul.f32 %v371, 0.5
      %v500 = vmul.f32 %v372, 0.5
      %v501 = vmul.f32 %v373, 0.5
      %v502 = vmul.f32 %v374, 0.5
      %v503 = vmul.f32 %v375, 0.5
      %v504 = vmul.f32 %v376, 0.5
      %v505 = vmul.f32 %v377, 0.5
      %v506 = vmul.f32 %v378, 0.5
      %v507 = vmul.f32 %v379, 0.5
      %v508 = vmul.f32 %v380, 0.5
      %v509 = vmul.f32 %v381, 0.5
      %v510 = vmul.f32 %v382, 0.5
      %v511 = vmul.f32 %v383, 0.5
      %v512 = vmul.f32 %v384, 0.5
      %v513 = vmul.f32 %v385, 0.5
      %v514 = vmul.f32 %v386, 0.5
      %v515 = vmul.f32 %v387, 0.5
      %v516 = vmul.f32 %v388, 0.5
      %v517 = vmul.f32 %v389, 0.5
      %v518 = vmul.f32 %v390, 0.5
      %v519 = vmul.f32 %v391, 0.5
      %v520 = vmul.f32 %v392, 0.5
      %v521 = vmul.f32 %v393, 0.5
      %v522 = vmul.f32 %v394, 0.5
      %v523 = vmul.f32 %v395, 0.5
      %v524 = vmul.f32 %v396, 0.5
      %v525 = vmul.f32 %v397, 0.5
      %v526 = vmul.f32 %v398, 0.5
      %v527 = vmul.f32 %v399, 0.5
      %v528 = vmul.f32 %v400, 0.5
      %v529 = vmul.f32 %v401, 0.5
      %v530 = vmul.f32 %v402, 0.5
      %v531 = vmul.f32 %v403, 0.5
      %v532 = vmul.f32 %v404, 0.5
      %v533 = vmul.f32 %v405, 0.5
      %v534 = vmul.f32 %v406, 0.5
      %v535 = vmul.f32 %v407, 0.5
      %v536 = vmul.f32 %v408, 0.5
      %v537 = vmul.f32 %v409, 0.5
      %v538 = vmul.f32 %v410, 0.5
      %v539 = vmul.f32 %v411, 0.5
      %v540 = vmul.f32 %v412, 0.5
      %v541 = vmul.f32 %v413, 0.5
      %v542 = vmul.f32 %v414, 0.5
      %v543 = vmul.f32 %v415, 0.5
      %v544 = vmul.f32 %v416, 0.5
      %v545 = vmul.f32 %v417, 0.5
      %v546 = vmul.f32 %v418, 0.5
      %v547 = vmul.f32 %v419, 0.5
      %v548 = vmul.f32 %v420, 0.5
      %v549 = vmul.f32 %v421, 0.5
      %v550 = vmul.f32 %v422, 0.5
      %v551 = vmul.f32 %v423, 0.5
      %v552 = vmul.f32 %v424, 0.5
      %v553 = vmul.f32 %v425, 0.5
      %v554 = vmul.f32 %v426, 0.5
      %v555 = vmul.f32 %v427, 0.5
      %v556 = vmul.f32 %v428, 0.5
      %v557 = vmul.f32 %v429, 0.5
      %v558 = vmul.f32 %v430, 0.5
      %v559 = vmul.f32 %v431, 0.5
      %v560 = vld [vmem:[%s2] sm:$0x7]
      %vm561 = vcmask 23552
      %v563 = vsel %vm561, %v432, 0
      %v566 = vsel %vm561, %v433, 0
      %v569 = vsel %vm561, %v434, 0
      %v572 = vsel %vm561, %v435, 0
      %v575 = vsel %vm561, %v436, 0
      %v578 = vsel %vm561, %v437, 0
      %v581 = vsel %vm561, %v438, 0
      %v584 = vsel %vm561, %v439, 0
      %v587 = vsel %vm561, %v440, 0
      %v590 = vsel %vm561, %v441, 0
      %v593 = vsel %vm561, %v442, 0
      %v596 = vsel %vm561, %v443, 0
      %v599 = vsel %vm561, %v444, 0
      %v602 = vsel %vm561, %v445, 0
      %v605 = vsel %vm561, %v446, 0
      %v608 = vsel %vm561, %v447, 0
      %v611 = vsel %vm561, %v448, 0
      %v614 = vsel %vm561, %v449, 0
      %v617 = vsel %vm561, %v450, 0
      %v620 = vsel %vm561, %v451, 0
      %v623 = vsel %vm561, %v452, 0
      %v626 = vsel %vm561, %v453, 0
      %v629 = vsel %vm561, %v454, 0
      %v632 = vsel %vm561, %v455, 0
      %v635 = vsel %vm561, %v456, 0
      %v638 = vsel %vm561, %v457, 0
      %v641 = vsel %vm561, %v458, 0
      %v644 = vsel %vm561, %v459, 0
      %v647 = vsel %vm561, %v460, 0
      %v650 = vsel %vm561, %v461, 0
      %v653 = vsel %vm561, %v462, 0
      %v656 = vsel %vm561, %v463, 0
      %v659 = vsel %vm561, %v464, 0
      %v662 = vsel %vm561, %v465, 0
      %v665 = vsel %vm561, %v466, 0
      %v668 = vsel %vm561, %v467, 0
      %v671 = vsel %vm561, %v468, 0
      %v674 = vsel %vm561, %v469, 0
      %v677 = vsel %vm561, %v470, 0
      %v680 = vsel %vm561, %v471, 0
      %v683 = vsel %vm561, %v472, 0
      %v686 = vsel %vm561, %v473, 0
      %v689 = vsel %vm561, %v474, 0
      %v692 = vsel %vm561, %v475, 0
      %v695 = vsel %vm561, %v476, 0
      %v698 = vsel %vm561, %v477, 0
      %v701 = vsel %vm561, %v478, 0
      %v704 = vsel %vm561, %v479, 0
      %v707 = vsel %vm561, %v480, 0
      %v710 = vsel %vm561, %v481, 0
      %v713 = vsel %vm561, %v482, 0
      %v716 = vsel %vm561, %v483, 0
      %v719 = vsel %vm561, %v484, 0
      %v722 = vsel %vm561, %v485, 0
      %v725 = vsel %vm561, %v486, 0
      %v728 = vsel %vm561, %v487, 0
      %v731 = vsel %vm561, %v488, 0
      %v734 = vsel %vm561, %v489, 0
      %v737 = vsel %vm561, %v490, 0
      %v740 = vsel %vm561, %v491, 0
      %v743 = vsel %vm561, %v492, 0
      %v746 = vsel %vm561, %v493, 0
      %v749 = vsel %vm561, %v494, 0
      %v752 = vsel %vm561, %v495, 0
      %v755 = vsel %vm561, %v496, 0
      %v758 = vsel %vm561, %v497, 0
      %v761 = vsel %vm561, %v498, 0
      %v764 = vsel %vm561, %v499, 0
      %v767 = vsel %vm561, %v500, 0
      %v770 = vsel %vm561, %v501, 0
      %v773 = vsel %vm561, %v502, 0
      %v776 = vsel %vm561, %v503, 0
      %v779 = vsel %vm561, %v504, 0
      %v782 = vsel %vm561, %v505, 0
      %v785 = vsel %vm561, %v506, 0
      %v788 = vsel %vm561, %v507, 0
      %v791 = vsel %vm561, %v508, 0
      %v794 = vsel %vm561, %v509, 0
      %v797 = vsel %vm561, %v510, 0
      %v800 = vsel %vm561, %v511, 0
      %v803 = vsel %vm561, %v512, 0
      %v806 = vsel %vm561, %v513, 0
      %v809 = vsel %vm561, %v514, 0
      %v812 = vsel %vm561, %v515, 0
      %v815 = vsel %vm561, %v516, 0
      %v818 = vsel %vm561, %v517, 0
      %v821 = vsel %vm561, %v518, 0
      %v824 = vsel %vm561, %v519, 0
      %v827 = vsel %vm561, %v520, 0
      %v830 = vsel %vm561, %v521, 0
      %v833 = vsel %vm561, %v522, 0
      %v836 = vsel %vm561, %v523, 0
      %v839 = vsel %vm561, %v524, 0
      %v842 = vsel %vm561, %v525, 0
      %v845 = vsel %vm561, %v526, 0
      %v848 = vsel %vm561, %v527, 0
      %v851 = vsel %vm561, %v528, 0
      %v854 = vsel %vm561, %v529, 0
      %v857 = vsel %vm561, %v530, 0
      %v860 = vsel %vm561, %v531, 0
      %v863 = vsel %vm561, %v532, 0
      %v866 = vsel %vm561, %v533, 0
      %v869 = vsel %vm561, %v534, 0
      %v872 = vsel %vm561, %v535, 0
      %v875 = vsel %vm561, %v536, 0
      %v878 = vsel %vm561, %v537, 0
      %v881 = vsel %vm561, %v538, 0
      %v884 = vsel %vm561, %v539, 0
      %v887 = vsel %vm561, %v540, 0
      %v890 = vsel %vm561, %v541, 0
      %v893 = vsel %vm561, %v542, 0
      %v896 = vsel %vm561, %v543, 0
      %v899 = vsel %vm561, %v544, 0
      %v902 = vsel %vm561, %v545, 0
      %v905 = vsel %vm561, %v546, 0
      %v908 = vsel %vm561, %v547, 0
      %v911 = vsel %vm561, %v548, 0
      %v914 = vsel %vm561, %v549, 0
      %v917 = vsel %vm561, %v550, 0
      %v920 = vsel %vm561, %v551, 0
      %v923 = vsel %vm561, %v552, 0
      %v926 = vsel %vm561, %v553, 0
      %v929 = vsel %vm561, %v554, 0
      %v932 = vsel %vm561, %v555, 0
      %v935 = vsel %vm561, %v556, 0
      %v938 = vsel %vm561, %v557, 0
      %v941 = vsel %vm561, %v558, 0
      %v944 = vsel %vm561, %v559, 0
      %vm946 = vcmask 1042432
      %v948 = vsel %vm946, %v560, 0
      %950 = vmatpush.msra.mxu0 0.0
      %951 = vmatpush.msra.mxu0 0.0
      %952 = vmatpush.msra.mxu0 0.0
      %953 = vmatpush.msra.mxu0 0.0
      %954 = vmatpush.msra.mxu0 0.0
      %955 = vmatpush.msra.mxu0 0.0
      %956 = vmatpush.msra.mxu0 0.0
      %957 = vmatpush.msra.mxu0 0.0
      %958 = vmatpush.msra.mxu0 0.0
      %959 = vmatpush.msra.mxu0 0.0
      %960 = vmatpush.msra.mxu0 0.0
      %961 = vmatpush.msra.mxu0 0.0
      %962 = vmatpush.msra.mxu0 0.0
      %963 = vmatpush.msra.mxu0 0.0
      %964 = vmatpush.msra.mxu0 0.0
      %965 = vmatpush.msra.mxu0 %v948
      %966 = vmatmul.f32.gmra.mxu0 %v563
      %v967 = vpop.f32.mrf.mxu0
      %v968 = vadd.f32 0.0, %v967
      %969 = vmatmul.f32.gmra.mxu0 %v566
      %v970 = vpop.f32.mrf.mxu0
      %v971 = vadd.f32 0.0, %v970
      %972 = vmatmul.f32.gmra.mxu0 %v569
      %v973 = vpop.f32.mrf.mxu0
      %v974 = vadd.f32 0.0, %v973
      %975 = vmatmul.f32.gmra.mxu0 %v572
      %v976 = vpop.f32.mrf.mxu0
      %v977 = vadd.f32 0.0, %v976
      %978 = vmatmul.f32.gmra.mxu0 %v575
      %v979 = vpop.f32.mrf.mxu0
      %v980 = vadd.f32 0.0, %v979
      %981 = vmatmul.f32.gmra.mxu0 %v578
      %v982 = vpop.f32.mrf.mxu0
      %v983 = vadd.f32 0.0, %v982
      %984 = vmatmul.f32.gmra.mxu0 %v581
      %v985 = vpop.f32.mrf.mxu0
      %v986 = vadd.f32 0.0, %v985
      %987 = vmatmul.f32.gmra.mxu0 %v584
      %v988 = vpop.f32.mrf.mxu0
      %v989 = vadd.f32 0.0, %v988
      %990 = vmatmul.f32.gmra.mxu0 %v587
      %v991 = vpop.f32.mrf.mxu0
      %v992 = vadd.f32 0.0, %v991
      %993 = vmatmul.f32.gmra.mxu0 %v590
      %v994 = vpop.f32.mrf.mxu0
      %v995 = vadd.f32 0.0, %v994
      %996 = vmatmul.f32.gmra.mxu0 %v593
      %v997 = vpop.f32.mrf.mxu0
      %v998 = vadd.f32 0.0, %v997
      %999 = vmatmul.f32.gmra.mxu0 %v596
      %v1000 = vpop.f32.mrf.mxu0
      %v1001 = vadd.f32 0.0, %v1000
      %1002 = vmatmul.f32.gmra.mxu0 %v599
      %v1003 = vpop.f32.mrf.mxu0
      %v1004 = vadd.f32 0.0, %v1003
      %1005 = vmatmul.f32.gmra.mxu0 %v602
      %v1006 = vpop.f32.mrf.mxu0
      %v1007 = vadd.f32 0.0, %v1006
      %1008 = vmatmul.f32.gmra.mxu0 %v605
      %v1009 = vpop.f32.mrf.mxu0
      %v1010 = vadd.f32 0.0, %v1009
      %1011 = vmatmul.f32.gmra.mxu0 %v608
      %v1012 = vpop.f32.mrf.mxu0
      %v1013 = vadd.f32 0.0, %v1012
      %1014 = vmatmul.f32.gmra.mxu0 %v611
      %v1015 = vpop.f32.mrf.mxu0
      %v1016 = vadd.f32 0.0, %v1015
      %1017 = vmatmul.f32.gmra.mxu0 %v614
      %v1018 = vpop.f32.mrf.mxu0
      %v1019 = vadd.f32 0.0, %v1018
      %1020 = vmatmul.f32.gmra.mxu0 %v617
      %v1021 = vpop.f32.mrf.mxu0
      %v1022 = vadd.f32 0.0, %v1021
      %1023 = vmatmul.f32.gmra.mxu0 %v620
      %v1024 = vpop.f32.mrf.mxu0
      %v1025 = vadd.f32 0.0, %v1024
      %1026 = vmatmul.f32.gmra.mxu0 %v623
      %v1027 = vpop.f32.mrf.mxu0
      %v1028 = vadd.f32 0.0, %v1027
      %1029 = vmatmul.f32.gmra.mxu0 %v626
      %v1030 = vpop.f32.mrf.mxu0
      %v1031 = vadd.f32 0.0, %v1030
      %1032 = vmatmul.f32.gmra.mxu0 %v629
      %v1033 = vpop.f32.mrf.mxu0
      %v1034 = vadd.f32 0.0, %v1033
      %1035 = vmatmul.f32.gmra.mxu0 %v632
      %v1036 = vpop.f32.mrf.mxu0
      %v1037 = vadd.f32 0.0, %v1036
      %1038 = vmatmul.f32.gmra.mxu0 %v635
      %v1039 = vpop.f32.mrf.mxu0
      %v1040 = vadd.f32 0.0, %v1039
      %1041 = vmatmul.f32.gmra.mxu0 %v638
      %v1042 = vpop.f32.mrf.mxu0
      %v1043 = vadd.f32 0.0, %v1042
      %1044 = vmatmul.f32.gmra.mxu0 %v641
      %v1045 = vpop.f32.mrf.mxu0
      %v1046 = vadd.f32 0.0, %v1045
      %1047 = vmatmul.f32.gmra.mxu0 %v644
      %v1048 = vpop.f32.mrf.mxu0
      %v1049 = vadd.f32 0.0, %v1048
      %1050 = vmatmul.f32.gmra.mxu0 %v647
      %v1051 = vpop.f32.mrf.mxu0
      %v1052 = vadd.f32 0.0, %v1051
      %1053 = vmatmul.f32.gmra.mxu0 %v650
      %v1054 = vpop.f32.mrf.mxu0
      %v1055 = vadd.f32 0.0, %v1054
      %1056 = vmatmul.f32.gmra.mxu0 %v653
      %v1057 = vpop.f32.mrf.mxu0
      %v1058 = vadd.f32 0.0, %v1057
      %1059 = vmatmul.f32.gmra.mxu0 %v656
      %v1060 = vpop.f32.mrf.mxu0
      %v1061 = vadd.f32 0.0, %v1060
      %1062 = vmatmul.f32.gmra.mxu0 %v659
      %v1063 = vpop.f32.mrf.mxu0
      %v1064 = vadd.f32 0.0, %v1063
      %1065 = vmatmul.f32.gmra.mxu0 %v662
      %v1066 = vpop.f32.mrf.mxu0
      %v1067 = vadd.f32 0.0, %v1066
      %1068 = vmatmul.f32.gmra.mxu0 %v665
      %v1069 = vpop.f32.mrf.mxu0
      %v1070 = vadd.f32 0.0, %v1069
      %1071 = vmatmul.f32.gmra.mxu0 %v668
      %v1072 = vpop.f32.mrf.mxu0
      %v1073 = vadd.f32 0.0, %v1072
      %1074 = vmatmul.f32.gmra.mxu0 %v671
      %v1075 = vpop.f32.mrf.mxu0
      %v1076 = vadd.f32 0.0, %v1075
      %1077 = vmatmul.f32.gmra.mxu0 %v674
      %v1078 = vpop.f32.mrf.mxu0
      %v1079 = vadd.f32 0.0, %v1078
      %1080 = vmatmul.f32.gmra.mxu0 %v677
      %v1081 = vpop.f32.mrf.mxu0
      %v1082 = vadd.f32 0.0, %v1081
      %1083 = vmatmul.f32.gmra.mxu0 %v680
      %v1084 = vpop.f32.mrf.mxu0
      %v1085 = vadd.f32 0.0, %v1084
      %1086 = vmatmul.f32.gmra.mxu0 %v683
      %v1087 = vpop.f32.mrf.mxu0
      %v1088 = vadd.f32 0.0, %v1087
      %1089 = vmatmul.f32.gmra.mxu0 %v686
      %v1090 = vpop.f32.mrf.mxu0
      %v1091 = vadd.f32 0.0, %v1090
      %1092 = vmatmul.f32.gmra.mxu0 %v689
      %v1093 = vpop.f32.mrf.mxu0
      %v1094 = vadd.f32 0.0, %v1093
      %1095 = vmatmul.f32.gmra.mxu0 %v692
      %v1096 = vpop.f32.mrf.mxu0
      %v1097 = vadd.f32 0.0, %v1096
      %1098 = vmatmul.f32.gmra.mxu0 %v695
      %v1099 = vpop.f32.mrf.mxu0
      %v1100 = vadd.f32 0.0, %v1099
      %1101 = vmatmul.f32.gmra.mxu0 %v698
      %v1102 = vpop.f32.mrf.mxu0
      %v1103 = vadd.f32 0.0, %v1102
      %1104 = vmatmul.f32.gmra.mxu0 %v701
      %v1105 = vpop.f32.mrf.mxu0
      %v1106 = vadd.f32 0.0, %v1105
      %1107 = vmatmul.f32.gmra.mxu0 %v704
      %v1108 = vpop.f32.mrf.mxu0
      %v1109 = vadd.f32 0.0, %v1108
      %1110 = vmatmul.f32.gmra.mxu0 %v707
      %v1111 = vpop.f32.mrf.mxu0
      %v1112 = vadd.f32 0.0, %v1111
      %1113 = vmatmul.f32.gmra.mxu0 %v710
      %v1114 = vpop.f32.mrf.mxu0
      %v1115 = vadd.f32 0.0, %v1114
      %1116 = vmatmul.f32.gmra.mxu0 %v713
      %v1117 = vpop.f32.mrf.mxu0
      %v1118 = vadd.f32 0.0, %v1117
      %1119 = vmatmul.f32.gmra.mxu0 %v716
      %v1120 = vpop.f32.mrf.mxu0
      %v1121 = vadd.f32 0.0, %v1120
      %1122 = vmatmul.f32.gmra.mxu0 %v719
      %v1123 = vpop.f32.mrf.mxu0
      %v1124 = vadd.f32 0.0, %v1123
      %1125 = vmatmul.f32.gmra.mxu0 %v722
      %v1126 = vpop.f32.mrf.mxu0
      %v1127 = vadd.f32 0.0, %v1126
      %1128 = vmatmul.f32.gmra.mxu0 %v725
      %v1129 = vpop.f32.mrf.mxu0
      %v1130 = vadd.f32 0.0, %v1129
      %1131 = vmatmul.f32.gmra.mxu0 %v728
      %v1132 = vpop.f32.mrf.mxu0
      %v1133 = vadd.f32 0.0, %v1132
      %1134 = vmatmul.f32.gmra.mxu0 %v731
      %v1135 = vpop.f32.mrf.mxu0
      %v1136 = vadd.f32 0.0, %v1135
      %1137 = vmatmul.f32.gmra.mxu0 %v734
      %v1138 = vpop.f32.mrf.mxu0
      %v1139 = vadd.f32 0.0, %v1138
      %1140 = vmatmul.f32.gmra.mxu0 %v737
      %v1141 = vpop.f32.mrf.mxu0
      %v1142 = vadd.f32 0.0, %v1141
      %1143 = vmatmul.f32.gmra.mxu0 %v740
      %v1144 = vpop.f32.mrf.mxu0
      %v1145 = vadd.f32 0.0, %v1144
      %1146 = vmatmul.f32.gmra.mxu0 %v743
      %v1147 = vpop.f32.mrf.mxu0
      %v1148 = vadd.f32 0.0, %v1147
      %1149 = vmatmul.f32.gmra.mxu0 %v746
      %v1150 = vpop.f32.mrf.mxu0
      %v1151 = vadd.f32 0.0, %v1150
      %1152 = vmatmul.f32.gmra.mxu0 %v749
      %v1153 = vpop.f32.mrf.mxu0
      %v1154 = vadd.f32 0.0, %v1153
      %1155 = vmatmul.f32.gmra.mxu0 %v752
      %v1156 = vpop.f32.mrf.mxu0
      %v1157 = vadd.f32 0.0, %v1156
      %1158 = vmatmul.f32.gmra.mxu0 %v755
      %v1159 = vpop.f32.mrf.mxu0
      %v1160 = vadd.f32 0.0, %v1159
      %1161 = vmatmul.f32.gmra.mxu0 %v758
      %v1162 = vpop.f32.mrf.mxu0
      %v1163 = vadd.f32 0.0, %v1162
      %1164 = vmatmul.f32.gmra.mxu0 %v761
      %v1165 = vpop.f32.mrf.mxu0
      %v1166 = vadd.f32 0.0, %v1165
      %1167 = vmatmul.f32.gmra.mxu0 %v764
      %v1168 = vpop.f32.mrf.mxu0
      %v1169 = vadd.f32 0.0, %v1168
      %1170 = vmatmul.f32.gmra.mxu0 %v767
      %v1171 = vpop.f32.mrf.mxu0
      %v1172 = vadd.f32 0.0, %v1171
      %1173 = vmatmul.f32.gmra.mxu0 %v770
      %v1174 = vpop.f32.mrf.mxu0
      %v1175 = vadd.f32 0.0, %v1174
      %1176 = vmatmul.f32.gmra.mxu0 %v773
      %v1177 = vpop.f32.mrf.mxu0
      %v1178 = vadd.f32 0.0, %v1177
      %1179 = vmatmul.f32.gmra.mxu0 %v776
      %v1180 = vpop.f32.mrf.mxu0
      %v1181 = vadd.f32 0.0, %v1180
      %1182 = vmatmul.f32.gmra.mxu0 %v779
      %v1183 = vpop.f32.mrf.mxu0
      %v1184 = vadd.f32 0.0, %v1183
      %1185 = vmatmul.f32.gmra.mxu0 %v782
      %v1186 = vpop.f32.mrf.mxu0
      %v1187 = vadd.f32 0.0, %v1186
      %1188 = vmatmul.f32.gmra.mxu0 %v785
      %v1189 = vpop.f32.mrf.mxu0
      %v1190 = vadd.f32 0.0, %v1189
      %1191 = vmatmul.f32.gmra.mxu0 %v788
      %v1192 = vpop.f32.mrf.mxu0
      %v1193 = vadd.f32 0.0, %v1192
      %1194 = vmatmul.f32.gmra.mxu0 %v791
      %v1195 = vpop.f32.mrf.mxu0
      %v1196 = vadd.f32 0.0, %v1195
      %1197 = vmatmul.f32.gmra.mxu0 %v794
      %v1198 = vpop.f32.mrf.mxu0
      %v1199 = vadd.f32 0.0, %v1198
      %1200 = vmatmul.f32.gmra.mxu0 %v797
      %v1201 = vpop.f32.mrf.mxu0
      %v1202 = vadd.f32 0.0, %v1201
      %1203 = vmatmul.f32.gmra.mxu0 %v800
      %v1204 = vpop.f32.mrf.mxu0
      %v1205 = vadd.f32 0.0, %v1204
      %1206 = vmatmul.f32.gmra.mxu0 %v803
      %v1207 = vpop.f32.mrf.mxu0
      %v1208 = vadd.f32 0.0, %v1207
      %1209 = vmatmul.f32.gmra.mxu0 %v806
      %v1210 = vpop.f32.mrf.mxu0
      %v1211 = vadd.f32 0.0, %v1210
      %1212 = vmatmul.f32.gmra.mxu0 %v809
      %v1213 = vpop.f32.mrf.mxu0
      %v1214 = vadd.f32 0.0, %v1213
      %1215 = vmatmul.f32.gmra.mxu0 %v812
      %v1216 = vpop.f32.mrf.mxu0
      %v1217 = vadd.f32 0.0, %v1216
      %1218 = vmatmul.f32.gmra.mxu0 %v815
      %v1219 = vpop.f32.mrf.mxu0
      %v1220 = vadd.f32 0.0, %v1219
      %1221 = vmatmul.f32.gmra.mxu0 %v818
      %v1222 = vpop.f32.mrf.mxu0
      %v1223 = vadd.f32 0.0, %v1222
      %1224 = vmatmul.f32.gmra.mxu0 %v821
      %v1225 = vpop.f32.mrf.mxu0
      %v1226 = vadd.f32 0.0, %v1225
      %1227 = vmatmul.f32.gmra.mxu0 %v824
      %v1228 = vpop.f32.mrf.mxu0
      %v1229 = vadd.f32 0.0, %v1228
      %1230 = vmatmul.f32.gmra.mxu0 %v827
      %v1231 = vpop.f32.mrf.mxu0
      %v1232 = vadd.f32 0.0, %v1231
      %1233 = vmatmul.f32.gmra.mxu0 %v830
      %v1234 = vpop.f32.mrf.mxu0
      %v1235 = vadd.f32 0.0, %v1234
      %1236 = vmatmul.f32.gmra.mxu0 %v833
      %v1237 = vpop.f32.mrf.mxu0
      %v1238 = vadd.f32 0.0, %v1237
      %1239 = vmatmul.f32.gmra.mxu0 %v836
      %v1240 = vpop.f32.mrf.mxu0
      %v1241 = vadd.f32 0.0, %v1240
      %1242 = vmatmul.f32.gmra.mxu0 %v839
      %v1243 = vpop.f32.mrf.mxu0
      %v1244 = vadd.f32 0.0, %v1243
      %1245 = vmatmul.f32.gmra.mxu0 %v842
      %v1246 = vpop.f32.mrf.mxu0
      %v1247 = vadd.f32 0.0, %v1246
      %1248 = vmatmul.f32.gmra.mxu0 %v845
      %v1249 = vpop.f32.mrf.mxu0
      %v1250 = vadd.f32 0.0, %v1249
      %1251 = vmatmul.f32.gmra.mxu0 %v848
      %v1252 = vpop.f32.mrf.mxu0
      %v1253 = vadd.f32 0.0, %v1252
      %1254 = vmatmul.f32.gmra.mxu0 %v851
      %v1255 = vpop.f32.mrf.mxu0
      %v1256 = vadd.f32 0.0, %v1255
      %1257 = vmatmul.f32.gmra.mxu0 %v854
      %v1258 = vpop.f32.mrf.mxu0
      %v1259 = vadd.f32 0.0, %v1258
      %1260 = vmatmul.f32.gmra.mxu0 %v857
      %v1261 = vpop.f32.mrf.mxu0
      %v1262 = vadd.f32 0.0, %v1261
      %1263 = vmatmul.f32.gmra.mxu0 %v860
      %v1264 = vpop.f32.mrf.mxu0
      %v1265 = vadd.f32 0.0, %v1264
      %1266 = vmatmul.f32.gmra.mxu0 %v863
      %v1267 = vpop.f32.mrf.mxu0
      %v1268 = vadd.f32 0.0, %v1267
      %1269 = vmatmul.f32.gmra.mxu0 %v866
      %v1270 = vpop.f32.mrf.mxu0
      %v1271 = vadd.f32 0.0, %v1270
      %1272 = vmatmul.f32.gmra.mxu0 %v869
      %v1273 = vpop.f32.mrf.mxu0
      %v1274 = vadd.f32 0.0, %v1273
      %1275 = vmatmul.f32.gmra.mxu0 %v872
      %v1276 = vpop.f32.mrf.mxu0
      %v1277 = vadd.f32 0.0, %v1276
      %1278 = vmatmul.f32.gmra.mxu0 %v875
      %v1279 = vpop.f32.mrf.mxu0
      %v1280 = vadd.f32 0.0, %v1279
      %1281 = vmatmul.f32.gmra.mxu0 %v878
      %v1282 = vpop.f32.mrf.mxu0
      %v1283 = vadd.f32 0.0, %v1282
      %1284 = vmatmul.f32.gmra.mxu0 %v881
      %v1285 = vpop.f32.mrf.mxu0
      %v1286 = vadd.f32 0.0, %v1285
      %1287 = vmatmul.f32.gmra.mxu0 %v884
      %v1288 = vpop.f32.mrf.mxu0
      %v1289 = vadd.f32 0.0, %v1288
      %1290 = vmatmul.f32.gmra.mxu0 %v887
      %v1291 = vpop.f32.mrf.mxu0
      %v1292 = vadd.f32 0.0, %v1291
      %1293 = vmatmul.f32.gmra.mxu0 %v890
      %v1294 = vpop.f32.mrf.mxu0
      %v1295 = vadd.f32 0.0, %v1294
      %1296 = vmatmul.f32.gmra.mxu0 %v893
      %v1297 = vpop.f32.mrf.mxu0
      %v1298 = vadd.f32 0.0, %v1297
      %1299 = vmatmul.f32.gmra.mxu0 %v896
      %v1300 = vpop.f32.mrf.mxu0
      %v1301 = vadd.f32 0.0, %v1300
      %1302 = vmatmul.f32.gmra.mxu0 %v899
      %v1303 = vpop.f32.mrf.mxu0
      %v1304 = vadd.f32 0.0, %v1303
      %1305 = vmatmul.f32.gmra.mxu0 %v902
      %v1306 = vpop.f32.mrf.mxu0
      %v1307 = vadd.f32 0.0, %v1306
      %1308 = vmatmul.f32.gmra.mxu0 %v905
      %v1309 = vpop.f32.mrf.mxu0
      %v1310 = vadd.f32 0.0, %v1309
      %1311 = vmatmul.f32.gmra.mxu0 %v908
      %v1312 = vpop.f32.mrf.mxu0
      %v1313 = vadd.f32 0.0, %v1312
      %1314 = vmatmul.f32.gmra.mxu0 %v911
      %v1315 = vpop.f32.mrf.mxu0
      %v1316 = vadd.f32 0.0, %v1315
      %1317 = vmatmul.f32.gmra.mxu0 %v914
      %v1318 = vpop.f32.mrf.mxu0
      %v1319 = vadd.f32 0.0, %v1318
      %1320 = vmatmul.f32.gmra.mxu0 %v917
      %v1321 = vpop.f32.mrf.mxu0
      %v1322 = vadd.f32 0.0, %v1321
      %1323 = vmatmul.f32.gmra.mxu0 %v920
      %v1324 = vpop.f32.mrf.mxu0
      %v1325 = vadd.f32 0.0, %v1324
      %1326 = vmatmul.f32.gmra.mxu0 %v923
      %v1327 = vpop.f32.mrf.mxu0
      %v1328 = vadd.f32 0.0, %v1327
      %1329 = vmatmul.f32.gmra.mxu0 %v926
      %v1330 = vpop.f32.mrf.mxu0
      %v1331 = vadd.f32 0.0, %v1330
      %1332 = vmatmul.f32.gmra.mxu0 %v929
      %v1333 = vpop.f32.mrf.mxu0
      %v1334 = vadd.f32 0.0, %v1333
      %1335 = vmatmul.f32.gmra.mxu0 %v932
      %v1336 = vpop.f32.mrf.mxu0
      %v1337 = vadd.f32 0.0, %v1336
      %1338 = vmatmul.f32.gmra.mxu0 %v935
      %v1339 = vpop.f32.mrf.mxu0
      %v1340 = vadd.f32 0.0, %v1339
      %1341 = vmatmul.f32.gmra.mxu0 %v938
      %v1342 = vpop.f32.mrf.mxu0
      %v1343 = vadd.f32 0.0, %v1342
      %1344 = vmatmul.f32.gmra.mxu0 %v941
      %v1345 = vpop.f32.mrf.mxu0
      %v1346 = vadd.f32 0.0, %v1345
      %1347 = vmatmul.f32.gmra.mxu0 %v944
      %v1348 = vpop.f32.mrf.mxu0
      %v1349 = vadd.f32 0.0, %v1348
      %1350 = vdwg.mxu0
      %v1351 = vmul.f32 %v432, %v432
      %v1352 = vmul.f32 %v433, %v433
      %v1353 = vmul.f32 %v434, %v434
      %v1354 = vmul.f32 %v435, %v435
      %v1355 = vmul.f32 %v436, %v436
      %v1356 = vmul.f32 %v437, %v437
      %v1357 = vmul.f32 %v438, %v438
      %v1358 = vmul.f32 %v439, %v439
      %v1359 = vmul.f32 %v440, %v440
      %v1360 = vmul.f32 %v441, %v441
      %v1361 = vmul.f32 %v442, %v442
      %v1362 = vmul.f32 %v443, %v443
      %v1363 = vmul.f32 %v444, %v444
      %v1364 = vmul.f32 %v445, %v445
      %v1365 = vmul.f32 %v446, %v446
      %v1366 = vmul.f32 %v447, %v447
      %v1367 = vmul.f32 %v448, %v448
      %v1368 = vmul.f32 %v449, %v449
      %v1369 = vmul.f32 %v450, %v450
      %v1370 = vmul.f32 %v451, %v451
      %v1371 = vmul.f32 %v452, %v452
      %v1372 = vmul.f32 %v453, %v453
      %v1373 = vmul.f32 %v454, %v454
      %v1374 = vmul.f32 %v455, %v455
      %v1375 = vmul.f32 %v456, %v456
      %v1376 = vmul.f32 %v457, %v457
      %v1377 = vmul.f32 %v458, %v458
      %v1378 = vmul.f32 %v459, %v459
      %v1379 = vmul.f32 %v460, %v460
      %v1380 = vmul.f32 %v461, %v461
      %v1381 = vmul.f32 %v462, %v462
      %v1382 = vmul.f32 %v463, %v463
      %v1383 = vmul.f32 %v464, %v464
      %v1384 = vmul.f32 %v465, %v465
      %v1385 = vmul.f32 %v466, %v466
      %v1386 = vmul.f32 %v467, %v467
      %v1387 = vmul.f32 %v468, %v468
      %v1388 = vmul.f32 %v469, %v469
      %v1389 = vmul.f32 %v470, %v470
      %v1390 = vmul.f32 %v471, %v471
      %v1391 = vmul.f32 %v472, %v472
      %v1392 = vmul.f32 %v473, %v473
      %v1393 = vmul.f32 %v474, %v474
      %v1394 = vmul.f32 %v475, %v475
      %v1395 = vmul.f32 %v476, %v476
      %v1396 = vmul.f32 %v477, %v477
      %v1397 = vmul.f32 %v478, %v478
      %v1398 = vmul.f32 %v479, %v479
      %v1399 = vmul.f32 %v480, %v480
      %v1400 = vmul.f32 %v481, %v481
      %v1401 = vmul.f32 %v482, %v482
      %v1402 = vmul.f32 %v483, %v483
      %v1403 = vmul.f32 %v484, %v484
      %v1404 = vmul.f32 %v485, %v485
      %v1405 = vmul.f32 %v486, %v486
      %v1406 = vmul.f32 %v487, %v487
      %v1407 = vmul.f32 %v488, %v488
      %v1408 = vmul.f32 %v489, %v489
      %v1409 = vmul.f32 %v490, %v490
      %v1410 = vmul.f32 %v491, %v491
      %v1411 = vmul.f32 %v492, %v492
      %v1412 = vmul.f32 %v493, %v493
      %v1413 = vmul.f32 %v494, %v494
      %v1414 = vmul.f32 %v495, %v495
      %v1415 = vmul.f32 %v496, %v496
      %v1416 = vmul.f32 %v497, %v497
      %v1417 = vmul.f32 %v498, %v498
      %v1418 = vmul.f32 %v499, %v499
      %v1419 = vmul.f32 %v500, %v500
      %v1420 = vmul.f32 %v501, %v501
      %v1421 = vmul.f32 %v502, %v502
      %v1422 = vmul.f32 %v503, %v503
      %v1423 = vmul.f32 %v504, %v504
      %v1424 = vmul.f32 %v505, %v505
      %v1425 = vmul.f32 %v506, %v506
      %v1426 = vmul.f32 %v507, %v507
      %v1427 = vmul.f32 %v508, %v508
      %v1428 = vmul.f32 %v509, %v509
      %v1429 = vmul.f32 %v510, %v510
      %v1430 = vmul.f32 %v511, %v511
      %v1431 = vmul.f32 %v512, %v512
      %v1432 = vmul.f32 %v513, %v513
      %v1433 = vmul.f32 %v514, %v514
      %v1434 = vmul.f32 %v515, %v515
      %v1435 = vmul.f32 %v516, %v516
      %v1436 = vmul.f32 %v517, %v517
      %v1437 = vmul.f32 %v518, %v518
      %v1438 = vmul.f32 %v519, %v519
      %v1439 = vmul.f32 %v520, %v520
      %v1440 = vmul.f32 %v521, %v521
      %v1441 = vmul.f32 %v522, %v522
      %v1442 = vmul.f32 %v523, %v523
      %v1443 = vmul.f32 %v524, %v524
      %v1444 = vmul.f32 %v525, %v525
      %v1445 = vmul.f32 %v526, %v526
      %v1446 = vmul.f32 %v527, %v527
      %v1447 = vmul.f32 %v528, %v528
      %v1448 = vmul.f32 %v529, %v529
      %v1449 = vmul.f32 %v530, %v530
      %v1450 = vmul.f32 %v531, %v531
      %v1451 = vmul.f32 %v532, %v532
      %v1452 = vmul.f32 %v533, %v533
      %v1453 = vmul.f32 %v534, %v534
      %v1454 = vmul.f32 %v535, %v535
      %v1455 = vmul.f32 %v536, %v536
      %v1456 = vmul.f32 %v537, %v537
      %v1457 = vmul.f32 %v538, %v538
      %v1458 = vmul.f32 %v539, %v539
      %v1459 = vmul.f32 %v540, %v540
      %v1460 = vmul.f32 %v541, %v541
      %v1461 = vmul.f32 %v542, %v542
      %v1462 = vmul.f32 %v543, %v543
      %v1463 = vmul.f32 %v544, %v544
      %v1464 = vmul.f32 %v545, %v545
      %v1465 = vmul.f32 %v546, %v546
      %v1466 = vmul.f32 %v547, %v547
      %v1467 = vmul.f32 %v548, %v548
      %v1468 = vmul.f32 %v549, %v549
      %v1469 = vmul.f32 %v550, %v550
      %v1470 = vmul.f32 %v551, %v551
      %v1471 = vmul.f32 %v552, %v552
      %v1472 = vmul.f32 %v553, %v553
      %v1473 = vmul.f32 %v554, %v554
      %v1474 = vmul.f32 %v555, %v555
      %v1475 = vmul.f32 %v556, %v556
      %v1476 = vmul.f32 %v557, %v557
      %v1477 = vmul.f32 %v558, %v558
      %v1478 = vmul.f32 %v559, %v559
      %v1479 = vsel %vm561, %v1351, 0.0
      %1480 = vadd.xlane.f32.xlu0 %v1479
      %v1481 = vpop.xlane.xlu0 %1480
      %v1482 = vsel %vm561, %v1352, 0.0
      %1483 = vadd.xlane.f32.xlu0 %v1482
      %v1484 = vpop.xlane.xlu0 %1483
      %v1485 = vsel %vm561, %v1353, 0.0
      %1486 = vadd.xlane.f32.xlu0 %v1485
      %v1487 = vpop.xlane.xlu0 %1486
      %v1488 = vsel %vm561, %v1354, 0.0
      %1489 = vadd.xlane.f32.xlu0 %v1488
      %v1490 = vpop.xlane.xlu0 %1489
      %v1491 = vsel %vm561, %v1355, 0.0
      %1492 = vadd.xlane.f32.xlu0 %v1491
      %v1493 = vpop.xlane.xlu0 %1492
      %v1494 = vsel %vm561, %v1356, 0.0
      %1495 = vadd.xlane.f32.xlu0 %v1494
      %v1496 = vpop.xlane.xlu0 %1495
      %v1497 = vsel %vm561, %v1357, 0.0
      %1498 = vadd.xlane.f32.xlu0 %v1497
      %v1499 = vpop.xlane.xlu0 %1498
      %v1500 = vsel %vm561, %v1358, 0.0
      %1501 = vadd.xlane.f32.xlu0 %v1500
      %v1502 = vpop.xlane.xlu0 %1501
      %v1503 = vsel %vm561, %v1359, 0.0
      %1504 = vadd.xlane.f32.xlu0 %v1503
      %v1505 = vpop.xlane.xlu0 %1504
      %v1506 = vsel %vm561, %v1360, 0.0
      %1507 = vadd.xlane.f32.xlu0 %v1506
      %v1508 = vpop.xlane.xlu0 %1507
      %v1509 = vsel %vm561, %v1361, 0.0
      %1510 = vadd.xlane.f32.xlu0 %v1509
      %v1511 = vpop.xlane.xlu0 %1510
      %v1512 = vsel %vm561, %v1362, 0.0
      %1513 = vadd.xlane.f32.xlu0 %v1512
      %v1514 = vpop.xlane.xlu0 %1513
      %v1515 = vsel %vm561, %v1363, 0.0
      %1516 = vadd.xlane.f32.xlu0 %v1515
      %v1517 = vpop.xlane.xlu0 %1516
      %v1518 = vsel %vm561, %v1364, 0.0
      %1519 = vadd.xlane.f32.xlu0 %v1518
      %v1520 = vpop.xlane.xlu0 %1519
      %v1521 = vsel %vm561, %v1365, 0.0
      %1522 = vadd.xlane.f32.xlu0 %v1521
      %v1523 = vpop.xlane.xlu0 %1522
      %v1524 = vsel %vm561, %v1366, 0.0
      %1525 = vadd.xlane.f32.xlu0 %v1524
      %v1526 = vpop.xlane.xlu0 %1525
      %v1527 = vsel %vm561, %v1367, 0.0
      %1528 = vadd.xlane.f32.xlu0 %v1527
      %v1529 = vpop.xlane.xlu0 %1528
      %v1530 = vsel %vm561, %v1368, 0.0
      %1531 = vadd.xlane.f32.xlu0 %v1530
      %v1532 = vpop.xlane.xlu0 %1531
      %v1533 = vsel %vm561, %v1369, 0.0
      %1534 = vadd.xlane.f32.xlu0 %v1533
      %v1535 = vpop.xlane.xlu0 %1534
      %v1536 = vsel %vm561, %v1370, 0.0
      %1537 = vadd.xlane.f32.xlu0 %v1536
      %v1538 = vpop.xlane.xlu0 %1537
      %v1539 = vsel %vm561, %v1371, 0.0
      %1540 = vadd.xlane.f32.xlu0 %v1539
      %v1541 = vpop.xlane.xlu0 %1540
      %v1542 = vsel %vm561, %v1372, 0.0
      %1543 = vadd.xlane.f32.xlu0 %v1542
      %v1544 = vpop.xlane.xlu0 %1543
      %v1545 = vsel %vm561, %v1373, 0.0
      %1546 = vadd.xlane.f32.xlu0 %v1545
      %v1547 = vpop.xlane.xlu0 %1546
      %v1548 = vsel %vm561, %v1374, 0.0
      %1549 = vadd.xlane.f32.xlu0 %v1548
      %v1550 = vpop.xlane.xlu0 %1549
      %v1551 = vsel %vm561, %v1375, 0.0
      %1552 = vadd.xlane.f32.xlu0 %v1551
      %v1553 = vpop.xlane.xlu0 %1552
      %v1554 = vsel %vm561, %v1376, 0.0
      %1555 = vadd.xlane.f32.xlu0 %v1554
      %v1556 = vpop.xlane.xlu0 %1555
      %v1557 = vsel %vm561, %v1377, 0.0
      %1558 = vadd.xlane.f32.xlu0 %v1557
      %v1559 = vpop.xlane.xlu0 %1558
      %v1560 = vsel %vm561, %v1378, 0.0
      %1561 = vadd.xlane.f32.xlu0 %v1560
      %v1562 = vpop.xlane.xlu0 %1561
      %v1563 = vsel %vm561, %v1379, 0.0
      %1564 = vadd.xlane.f32.xlu0 %v1563
      %v1565 = vpop.xlane.xlu0 %1564
      %v1566 = vsel %vm561, %v1380, 0.0
      %1567 = vadd.xlane.f32.xlu0 %v1566
      %v1568 = vpop.xlane.xlu0 %1567
      %v1569 = vsel %vm561, %v1381, 0.0
      %1570 = vadd.xlane.f32.xlu0 %v1569
      %v1571 = vpop.xlane.xlu0 %1570
      %v1572 = vsel %vm561, %v1382, 0.0
      %1573 = vadd.xlane.f32.xlu0 %v1572
      %v1574 = vpop.xlane.xlu0 %1573
      %v1575 = vsel %vm561, %v1383, 0.0
      %1576 = vadd.xlane.f32.xlu0 %v1575
      %v1577 = vpop.xlane.xlu0 %1576
      %v1578 = vsel %vm561, %v1384, 0.0
      %1579 = vadd.xlane.f32.xlu0 %v1578
      %v1580 = vpop.xlane.xlu0 %1579
      %v1581 = vsel %vm561, %v1385, 0.0
      %1582 = vadd.xlane.f32.xlu0 %v1581
      %v1583 = vpop.xlane.xlu0 %1582
      %v1584 = vsel %vm561, %v1386, 0.0
      %1585 = vadd.xlane.f32.xlu0 %v1584
      %v1586 = vpop.xlane.xlu0 %1585
      %v1587 = vsel %vm561, %v1387, 0.0
      %1588 = vadd.xlane.f32.xlu0 %v1587
      %v1589 = vpop.xlane.xlu0 %1588
      %v1590 = vsel %vm561, %v1388, 0.0
      %1591 = vadd.xlane.f32.xlu0 %v1590
      %v1592 = vpop.xlane.xlu0 %1591
      %v1593 = vsel %vm561, %v1389, 0.0
      %1594 = vadd.xlane.f32.xlu0 %v1593
      %v1595 = vpop.xlane.xlu0 %1594
      %v1596 = vsel %vm561, %v1390, 0.0
      %1597 = vadd.xlane.f32.xlu0 %v1596
      %v1598 = vpop.xlane.xlu0 %1597
      %v1599 = vsel %vm561, %v1391, 0.0
      %1600 = vadd.xlane.f32.xlu0 %v1599
      %v1601 = vpop.xlane.xlu0 %1600
      %v1602 = vsel %vm561, %v1392, 0.0
      %1603 = vadd.xlane.f32.xlu0 %v1602
      %v1604 = vpop.xlane.xlu0 %1603
      %v1605 = vsel %vm561, %v1393, 0.0
      %1606 = vadd.xlane.f32.xlu0 %v1605
      %v1607 = vpop.xlane.xlu0 %1606
      %v1608 = vsel %vm561, %v1394, 0.0
      %1609 = vadd.xlane.f32.xlu0 %v1608
      %v1610 = vpop.xlane.xlu0 %1609
      %v1611 = vsel %vm561, %v1395, 0.0
      %1612 = vadd.xlane.f32.xlu0 %v1611
      %v1613 = vpop.xlane.xlu0 %1612
      %v1614 = vsel %vm561, %v1396, 0.0
      %1615 = vadd.xlane.f32.xlu0 %v1614
      %v1616 = vpop.xlane.xlu0 %1615
      %v1617 = vsel %vm561, %v1397, 0.0
      %1618 = vadd.xlane.f32.xlu0 %v1617
      %v1619 = vpop.xlane.xlu0 %1618
      %v1620 = vsel %vm561, %v1398, 0.0
      %1621 = vadd.xlane.f32.xlu0 %v1620
      %v1622 = vpop.xlane.xlu0 %1621
      %v1623 = vsel %vm561, %v1399, 0.0
      %1624 = vadd.xlane.f32.xlu0 %v1623
      %v1625 = vpop.xlane.xlu0 %1624
      %v1626 = vsel %vm561, %v1400, 0.0
      %1627 = vadd.xlane.f32.xlu0 %v1626
      %v1628 = vpop.xlane.xlu0 %1627
      %v1629 = vsel %vm561, %v1401, 0.0
      %1630 = vadd.xlane.f32.xlu0 %v1629
      %v1631 = vpop.xlane.xlu0 %1630
      %v1632 = vsel %vm561, %v1402, 0.0
      %1633 = vadd.xlane.f32.xlu0 %v1632
      %v1634 = vpop.xlane.xlu0 %1633
      %v1635 = vsel %vm561, %v1403, 0.0
      %1636 = vadd.xlane.f32.xlu0 %v1635
      %v1637 = vpop.xlane.xlu0 %1636
      %v1638 = vsel %vm561, %v1404, 0.0
      %1639 = vadd.xlane.f32.xlu0 %v1638
      %v1640 = vpop.xlane.xlu0 %1639
      %v1641 = vsel %vm561, %v1405, 0.0
      %1642 = vadd.xlane.f32.xlu0 %v1641
      %v1643 = vpop.xlane.xlu0 %1642
      %v1644 = vsel %vm561, %v1406, 0.0
      %1645 = vadd.xlane.f32.xlu0 %v1644
      %v1646 = vpop.xlane.xlu0 %1645
      %v1647 = vsel %vm561, %v1407, 0.0
      %1648 = vadd.xlane.f32.xlu0 %v1647
      %v1649 = vpop.xlane.xlu0 %1648
      %v1650 = vsel %vm561, %v1408, 0.0
      %1651 = vadd.xlane.f32.xlu0 %v1650
      %v1652 = vpop.xlane.xlu0 %1651
      %v1653 = vsel %vm561, %v1409, 0.0
      %1654 = vadd.xlane.f32.xlu0 %v1653
      %v1655 = vpop.xlane.xlu0 %1654
      %v1656 = vsel %vm561, %v1410, 0.0
      %1657 = vadd.xlane.f32.xlu0 %v1656
      %v1658 = vpop.xlane.xlu0 %1657
      %v1659 = vsel %vm561, %v1411, 0.0
      %1660 = vadd.xlane.f32.xlu0 %v1659
      %v1661 = vpop.xlane.xlu0 %1660
      %v1662 = vsel %vm561, %v1412, 0.0
      %1663 = vadd.xlane.f32.xlu0 %v1662
      %v1664 = vpop.xlane.xlu0 %1663
      %v1665 = vsel %vm561, %v1413, 0.0
      %1666 = vadd.xlane.f32.xlu0 %v1665
      %v1667 = vpop.xlane.xlu0 %1666
      %v1668 = vsel %vm561, %v1414, 0.0
      %1669 = vadd.xlane.f32.xlu0 %v1668
      %v1670 = vpop.xlane.xlu0 %1669
      %v1671 = vsel %vm561, %v1415, 0.0
      %1672 = vadd.xlane.f32.xlu0 %v1671
      %v1673 = vpop.xlane.xlu0 %1672
      %v1674 = vsel %vm561, %v1416, 0.0
      %1675 = vadd.xlane.f32.xlu0 %v1674
      %v1676 = vpop.xlane.xlu0 %1675
      %v1677 = vsel %vm561, %v1417, 0.0
      %1678 = vadd.xlane.f32.xlu0 %v1677
      %v1679 = vpop.xlane.xlu0 %1678
      %v1680 = vsel %vm561, %v1418, 0.0
      %1681 = vadd.xlane.f32.xlu0 %v1680
      %v1682 = vpop.xlane.xlu0 %1681
      %v1683 = vsel %vm561, %v1419, 0.0
      %1684 = vadd.xlane.f32.xlu0 %v1683
      %v1685 = vpop.xlane.xlu0 %1684
      %v1686 = vsel %vm561, %v1420, 0.0
      %1687 = vadd.xlane.f32.xlu0 %v1686
      %v1688 = vpop.xlane.xlu0 %1687
      %v1689 = vsel %vm561, %v1421, 0.0
      %1690 = vadd.xlane.f32.xlu0 %v1689
      %v1691 = vpop.xlane.xlu0 %1690
      %v1692 = vsel %vm561, %v1422, 0.0
      %1693 = vadd.xlane.f32.xlu0 %v1692
      %v1694 = vpop.xlane.xlu0 %1693
      %v1695 = vsel %vm561, %v1423, 0.0
      %1696 = vadd.xlane.f32.xlu0 %v1695
      %v1697 = vpop.xlane.xlu0 %1696
      %v1698 = vsel %vm561, %v1424, 0.0
      %1699 = vadd.xlane.f32.xlu0 %v1698
      %v1700 = vpop.xlane.xlu0 %1699
      %v1701 = vsel %vm561, %v1425, 0.0
      %1702 = vadd.xlane.f32.xlu0 %v1701
      %v1703 = vpop.xlane.xlu0 %1702
      %v1704 = vsel %vm561, %v1426, 0.0
      %1705 = vadd.xlane.f32.xlu0 %v1704
      %v1706 = vpop.xlane.xlu0 %1705
      %v1707 = vsel %vm561, %v1427, 0.0
      %1708 = vadd.xlane.f32.xlu0 %v1707
      %v1709 = vpop.xlane.xlu0 %1708
      %v1710 = vsel %vm561, %v1428, 0.0
      %1711 = vadd.xlane.f32.xlu0 %v1710
      %v1712 = vpop.xlane.xlu0 %1711
      %v1713 = vsel %vm561, %v1429, 0.0
      %1714 = vadd.xlane.f32.xlu0 %v1713
      %v1715 = vpop.xlane.xlu0 %1714
      %v1716 = vsel %vm561, %v1430, 0.0
      %1717 = vadd.xlane.f32.xlu0 %v1716
      %v1718 = vpop.xlane.xlu0 %1717
      %v1719 = vsel %vm561, %v1431, 0.0
      %1720 = vadd.xlane.f32.xlu0 %v1719
      %v1721 = vpop.xlane.xlu0 %1720
      %v1722 = vsel %vm561, %v1432, 0.0
      %1723 = vadd.xlane.f32.xlu0 %v1722
      %v1724 = vpop.xlane.xlu0 %1723
      %v1725 = vsel %vm561, %v1433, 0.0
      %1726 = vadd.xlane.f32.xlu0 %v1725
      %v1727 = vpop.xlane.xlu0 %1726
      %v1728 = vsel %vm561, %v1434, 0.0
      %1729 = vadd.xlane.f32.xlu0 %v1728
      %v1730 = vpop.xlane.xlu0 %1729
      %v1731 = vsel %vm561, %v1435, 0.0
      %1732 = vadd.xlane.f32.xlu0 %v1731
      %v1733 = vpop.xlane.xlu0 %1732
      %v1734 = vsel %vm561, %v1436, 0.0
      %1735 = vadd.xlane.f32.xlu0 %v1734
      %v1736 = vpop.xlane.xlu0 %1735
      %v1737 = vsel %vm561, %v1437, 0.0
      %1738 = vadd.xlane.f32.xlu0 %v1737
      %v1739 = vpop.xlane.xlu0 %1738
      %v1740 = vsel %vm561, %v1438, 0.0
      %1741 = vadd.xlane.f32.xlu0 %v1740
      %v1742 = vpop.xlane.xlu0 %1741
      %v1743 = vsel %vm561, %v1439, 0.0
      %1744 = vadd.xlane.f32.xlu0 %v1743
      %v1745 = vpop.xlane.xlu0 %1744
      %v1746 = vsel %vm561, %v1440, 0.0
      %1747 = vadd.xlane.f32.xlu0 %v1746
      %v1748 = vpop.xlane.xlu0 %1747
      %v1749 = vsel %vm561, %v1441, 0.0
      %1750 = vadd.xlane.f32.xlu0 %v1749
      %v1751 = vpop.xlane.xlu0 %1750
      %v1752 = vsel %vm561, %v1442, 0.0
      %1753 = vadd.xlane.f32.xlu0 %v1752
      %v1754 = vpop.xlane.xlu0 %1753
      %v1755 = vsel %vm561, %v1443, 0.0
      %1756 = vadd.xlane.f32.xlu0 %v1755
      %v1757 = vpop.xlane.xlu0 %1756
      %v1758 = vsel %vm561, %v1444, 0.0
      %1759 = vadd.xlane.f32.xlu0 %v1758
      %v1760 = vpop.xlane.xlu0 %1759
      %v1761 = vsel %vm561, %v1445, 0.0
      %1762 = vadd.xlane.f32.xlu0 %v1761
      %v1763 = vpop.xlane.xlu0 %1762
      %v1764 = vsel %vm561, %v1446, 0.0
      %1765 = vadd.xlane.f32.xlu0 %v1764
      %v1766 = vpop.xlane.xlu0 %1765
      %v1767 = vsel %vm561, %v1447, 0.0
      %1768 = vadd.xlane.f32.xlu0 %v1767
      %v1769 = vpop.xlane.xlu0 %1768
      %v1770 = vsel %vm561, %v1448, 0.0
      %1771 = vadd.xlane.f32.xlu0 %v1770
      %v1772 = vpop.xlane.xlu0 %1771
      %v1773 = vsel %vm561, %v1449, 0.0
      %1774 = vadd.xlane.f32.xlu0 %v1773
      %v1775 = vpop.xlane.xlu0 %1774
      %v1776 = vsel %vm561, %v1450, 0.0
      %1777 = vadd.xlane.f32.xlu0 %v1776
      %v1778 = vpop.xlane.xlu0 %1777
      %v1779 = vsel %vm561, %v1451, 0.0
      %1780 = vadd.xlane.f32.xlu0 %v1779
      %v1781 = vpop.xlane.xlu0 %1780
      %v1782 = vsel %vm561, %v1452, 0.0
      %1783 = vadd.xlane.f32.xlu0 %v1782
      %v1784 = vpop.xlane.xlu0 %1783
      %v1785 = vsel %vm561, %v1453, 0.0
      %1786 = vadd.xlane.f32.xlu0 %v1785
      %v1787 = vpop.xlane.xlu0 %1786
      %v1788 = vsel %vm561, %v1454, 0.0
      %1789 = vadd.xlane.f32.xlu0 %v1788
      %v1790 = vpop.xlane.xlu0 %1789
      %v1791 = vsel %vm561, %v1455, 0.0
      %1792 = vadd.xlane.f32.xlu0 %v1791
      %v1793 = vpop.xlane.xlu0 %1792
      %v1794 = vsel %vm561, %v1456, 0.0
      %1795 = vadd.xlane.f32.xlu0 %v1794
      %v1796 = vpop.xlane.xlu0 %1795
      %v1797 = vsel %vm561, %v1457, 0.0
      %1798 = vadd.xlane.f32.xlu0 %v1797
      %v1799 = vpop.xlane.xlu0 %1798
      %v1800 = vsel %vm561, %v1458, 0.0
      %1801 = vadd.xlane.f32.xlu0 %v1800
      %v1802 = vpop.xlane.xlu0 %1801
      %v1803 = vsel %vm561, %v1459, 0.0
      %1804 = vadd.xlane.f32.xlu0 %v1803
      %v1805 = vpop.xlane.xlu0 %1804
      %v1806 = vsel %vm561, %v1460, 0.0
      %1807 = vadd.xlane.f32.xlu0 %v1806
      %v1808 = vpop.xlane.xlu0 %1807
      %v1809 = vsel %vm561, %v1461, 0.0
      %1810 = vadd.xlane.f32.xlu0 %v1809
      %v1811 = vpop.xlane.xlu0 %1810
      %v1812 = vsel %vm561, %v1462, 0.0
      %1813 = vadd.xlane.f32.xlu0 %v1812
      %v1814 = vpop.xlane.xlu0 %1813
      %v1815 = vsel %vm561, %v1463, 0.0
      %1816 = vadd.xlane.f32.xlu0 %v1815
      %v1817 = vpop.xlane.xlu0 %1816
      %v1818 = vsel %vm561, %v1464, 0.0
      %1819 = vadd.xlane.f32.xlu0 %v1818
      %v1820 = vpop.xlane.xlu0 %1819
      %v1821 = vsel %vm561, %v1465, 0.0
      %1822 = vadd.xlane.f32.xlu0 %v1821
      %v1823 = vpop.xlane.xlu0 %1822
      %v1824 = vsel %vm561, %v1466, 0.0
      %1825 = vadd.xlane.f32.xlu0 %v1824
      %v1826 = vpop.xlane.xlu0 %1825
      %v1827 = vsel %vm561, %v1467, 0.0
      %1828 = vadd.xlane.f32.xlu0 %v1827
      %v1829 = vpop.xlane.xlu0 %1828
      %v1830 = vsel %vm561, %v1468, 0.0
      %1831 = vadd.xlane.f32.xlu0 %v1830
      %v1832 = vpop.xlane.xlu0 %1831
      %v1833 = vsel %vm561, %v1469, 0.0
      %1834 = vadd.xlane.f32.xlu0 %v1833
      %v1835 = vpop.xlane.xlu0 %1834
      %v1836 = vsel %vm561, %v1470, 0.0
      %1837 = vadd.xlane.f32.xlu0 %v1836
      %v1838 = vpop.xlane.xlu0 %1837
      %v1839 = vsel %vm561, %v1471, 0.0
      %1840 = vadd.xlane.f32.xlu0 %v1839
      %v1841 = vpop.xlane.xlu0 %1840
      %v1842 = vsel %vm561, %v1472, 0.0
      %1843 = vadd.xlane.f32.xlu0 %v1842
      %v1844 = vpop.xlane.xlu0 %1843
      %v1845 = vsel %vm561, %v1473, 0.0
      %1846 = vadd.xlane.f32.xlu0 %v1845
      %v1847 = vpop.xlane.xlu0 %1846
      %v1848 = vsel %vm561, %v1474, 0.0
      %1849 = vadd.xlane.f32.xlu0 %v1848
      %v1850 = vpop.xlane.xlu0 %1849
      %v1851 = vsel %vm561, %v1475, 0.0
      %1852 = vadd.xlane.f32.xlu0 %v1851
      %v1853 = vpop.xlane.xlu0 %1852
      %v1854 = vsel %vm561, %v1476, 0.0
      %1855 = vadd.xlane.f32.xlu0 %v1854
      %v1856 = vpop.xlane.xlu0 %1855
      %v1857 = vsel %vm561, %v1477, 0.0
      %1858 = vadd.xlane.f32.xlu0 %v1857
      %v1859 = vpop.xlane.xlu0 %1858
      %v1860 = vsel %vm561, %v1478, 0.0
      %1861 = vadd.xlane.f32.xlu0 %v1860
      %v1862 = vpop.xlane.xlu0 %1861
      %v1863 = vsub.f32 %v1481, %v968
      %v1864 = vsub.f32 %v1484, %v971
      %v1865 = vsub.f32 %v1487, %v974
      %v1866 = vsub.f32 %v1490, %v977
      %v1867 = vsub.f32 %v1493, %v980
      %v1868 = vsub.f32 %v1496, %v983
      %v1869 = vsub.f32 %v1499, %v986
      %v1870 = vsub.f32 %v1502, %v989
      %v1871 = vsub.f32 %v1505, %v992
      %v1872 = vsub.f32 %v1508, %v995
      %v1873 = vsub.f32 %v1511, %v998
      %v1874 = vsub.f32 %v1514, %v1001
      %v1875 = vsub.f32 %v1517, %v1004
      %v1876 = vsub.f32 %v1520, %v1007
      %v1877 = vsub.f32 %v1523, %v1010
      %v1878 = vsub.f32 %v1526, %v1013
      %v1879 = vsub.f32 %v1529, %v1016
      %v1880 = vsub.f32 %v1532, %v1019
      %v1881 = vsub.f32 %v1535, %v1022
      %v1882 = vsub.f32 %v1538, %v1025
      %v1883 = vsub.f32 %v1541, %v1028
      %v1884 = vsub.f32 %v1544, %v1031
      %v1885 = vsub.f32 %v1547, %v1034
      %v1886 = vsub.f32 %v1550, %v1037
      %v1887 = vsub.f32 %v1553, %v1040
      %v1888 = vsub.f32 %v1556, %v1043
      %v1889 = vsub.f32 %v1559, %v1046
      %v1890 = vsub.f32 %v1562, %v1049
      %v1891 = vsub.f32 %v1565, %v1052
      %v1892 = vsub.f32 %v1568, %v1055
      %v1893 = vsub.f32 %v1571, %v1058
      %v1894 = vsub.f32 %v1574, %v1061
      %v1895 = vsub.f32 %v1577, %v1064
      %v1896 = vsub.f32 %v1580, %v1067
      %v1897 = vsub.f32 %v1583, %v1070
      %v1898 = vsub.f32 %v1586, %v1073
      %v1899 = vsub.f32 %v1589, %v1076
      %v1900 = vsub.f32 %v1592, %v1079
      %v1901 = vsub.f32 %v1595, %v1082
      %v1902 = vsub.f32 %v1598, %v1085
      %v1903 = vsub.f32 %v1601, %v1088
      %v1904 = vsub.f32 %v1604, %v1091
      %v1905 = vsub.f32 %v1607, %v1094
      %v1906 = vsub.f32 %v1610, %v1097
      %v1907 = vsub.f32 %v1613, %v1100
      %v1908 = vsub.f32 %v1616, %v1103
      %v1909 = vsub.f32 %v1619, %v1106
      %v1910 = vsub.f32 %v1622, %v1109
      %v1911 = vsub.f32 %v1625, %v1112
      %v1912 = vsub.f32 %v1628, %v1115
      %v1913 = vsub.f32 %v1631, %v1118
      %v1914 = vsub.f32 %v1634, %v1121
      %v1915 = vsub.f32 %v1637, %v1124
      %v1916 = vsub.f32 %v1640, %v1127
      %v1917 = vsub.f32 %v1643, %v1130
      %v1918 = vsub.f32 %v1646, %v1133
      %v1919 = vsub.f32 %v1649, %v1136
      %v1920 = vsub.f32 %v1652, %v1139
      %v1921 = vsub.f32 %v1655, %v1142
      %v1922 = vsub.f32 %v1658, %v1145
      %v1923 = vsub.f32 %v1661, %v1148
      %v1924 = vsub.f32 %v1664, %v1151
      %v1925 = vsub.f32 %v1667, %v1154
      %v1926 = vsub.f32 %v1670, %v1157
      %v1927 = vsub.f32 %v1673, %v1160
      %v1928 = vsub.f32 %v1676, %v1163
      %v1929 = vsub.f32 %v1679, %v1166
      %v1930 = vsub.f32 %v1682, %v1169
      %v1931 = vsub.f32 %v1685, %v1172
      %v1932 = vsub.f32 %v1688, %v1175
      %v1933 = vsub.f32 %v1691, %v1178
      %v1934 = vsub.f32 %v1694, %v1181
      %v1935 = vsub.f32 %v1697, %v1184
      %v1936 = vsub.f32 %v1700, %v1187
      %v1937 = vsub.f32 %v1703, %v1190
      %v1938 = vsub.f32 %v1706, %v1193
      %v1939 = vsub.f32 %v1709, %v1196
      %v1940 = vsub.f32 %v1712, %v1199
      %v1941 = vsub.f32 %v1715, %v1202
      %v1942 = vsub.f32 %v1718, %v1205
      %v1943 = vsub.f32 %v1721, %v1208
      %v1944 = vsub.f32 %v1724, %v1211
      %v1945 = vsub.f32 %v1727, %v1214
      %v1946 = vsub.f32 %v1730, %v1217
      %v1947 = vsub.f32 %v1733, %v1220
      %v1948 = vsub.f32 %v1736, %v1223
      %v1949 = vsub.f32 %v1739, %v1226
      %v1950 = vsub.f32 %v1742, %v1229
      %v1951 = vsub.f32 %v1745, %v1232
      %v1952 = vsub.f32 %v1748, %v1235
      %v1953 = vsub.f32 %v1751, %v1238
      %v1954 = vsub.f32 %v1754, %v1241
      %v1955 = vsub.f32 %v1757, %v1244
      %v1956 = vsub.f32 %v1760, %v1247
      %v1957 = vsub.f32 %v1763, %v1250
      %v1958 = vsub.f32 %v1766, %v1253
      %v1959 = vsub.f32 %v1769, %v1256
      %v1960 = vsub.f32 %v1772, %v1259
      %v1961 = vsub.f32 %v1775, %v1262
      %v1962 = vsub.f32 %v1778, %v1265
      %v1963 = vsub.f32 %v1781, %v1268
      %v1964 = vsub.f32 %v1784, %v1271
      %v1965 = vsub.f32 %v1787, %v1274
      %v1966 = vsub.f32 %v1790, %v1277
      %v1967 = vsub.f32 %v1793, %v1280
      %v1968 = vsub.f32 %v1796, %v1283
      %v1969 = vsub.f32 %v1799, %v1286
      %v1970 = vsub.f32 %v1802, %v1289
      %v1971 = vsub.f32 %v1805, %v1292
      %v1972 = vsub.f32 %v1808, %v1295
      %v1973 = vsub.f32 %v1811, %v1298
      %v1974 = vsub.f32 %v1814, %v1301
      %v1975 = vsub.f32 %v1817, %v1304
      %v1976 = vsub.f32 %v1820, %v1307
      %v1977 = vsub.f32 %v1823, %v1310
      %v1978 = vsub.f32 %v1826, %v1313
      %v1979 = vsub.f32 %v1829, %v1316
      %v1980 = vsub.f32 %v1832, %v1319
      %v1981 = vsub.f32 %v1835, %v1322
      %v1982 = vsub.f32 %v1838, %v1325
      %v1983 = vsub.f32 %v1841, %v1328
      %v1984 = vsub.f32 %v1844, %v1331
      %v1985 = vsub.f32 %v1847, %v1334
      %v1986 = vsub.f32 %v1850, %v1337
      %v1987 = vsub.f32 %v1853, %v1340
      %v1988 = vsub.f32 %v1856, %v1343
      %v1989 = vsub.f32 %v1859, %v1346
      %v1990 = vsub.f32 %v1862, %v1349
      %v1991 = vld [vmem:[%s3] sm:$0x1]
      %v1993 = vperm.slane %v1991, 0
      %v1995 = vadd.f32 %v1863, %v1993
      %v1996 = vadd.f32 %v1864, %v1993
      %v1997 = vadd.f32 %v1865, %v1993
      %v1998 = vadd.f32 %v1866, %v1993
      %v1999 = vadd.f32 %v1867, %v1993
      %v2000 = vadd.f32 %v1868, %v1993
      %v2001 = vadd.f32 %v1869, %v1993
      %v2002 = vadd.f32 %v1870, %v1993
      %v2003 = vadd.f32 %v1871, %v1993
      %v2004 = vadd.f32 %v1872, %v1993
      %v2005 = vadd.f32 %v1873, %v1993
      %v2006 = vadd.f32 %v1874, %v1993
      %v2007 = vadd.f32 %v1875, %v1993
      %v2008 = vadd.f32 %v1876, %v1993
      %v2009 = vadd.f32 %v1877, %v1993
      %v2010 = vadd.f32 %v1878, %v1993
      %v2011 = vadd.f32 %v1879, %v1993
      %v2012 = vadd.f32 %v1880, %v1993
      %v2013 = vadd.f32 %v1881, %v1993
      %v2014 = vadd.f32 %v1882, %v1993
      %v2015 = vadd.f32 %v1883, %v1993
      %v2016 = vadd.f32 %v1884, %v1993
      %v2017 = vadd.f32 %v1885, %v1993
      %v2018 = vadd.f32 %v1886, %v1993
      %v2019 = vadd.f32 %v1887, %v1993
      %v2020 = vadd.f32 %v1888, %v1993
      %v2021 = vadd.f32 %v1889, %v1993
      %v2022 = vadd.f32 %v1890, %v1993
      %v2023 = vadd.f32 %v1891, %v1993
      %v2024 = vadd.f32 %v1892, %v1993
      %v2025 = vadd.f32 %v1893, %v1993
      %v2026 = vadd.f32 %v1894, %v1993
      %v2027 = vadd.f32 %v1895, %v1993
      %v2028 = vadd.f32 %v1896, %v1993
      %v2029 = vadd.f32 %v1897, %v1993
      %v2030 = vadd.f32 %v1898, %v1993
      %v2031 = vadd.f32 %v1899, %v1993
      %v2032 = vadd.f32 %v1900, %v1993
      %v2033 = vadd.f32 %v1901, %v1993
      %v2034 = vadd.f32 %v1902, %v1993
      %v2035 = vadd.f32 %v1903, %v1993
      %v2036 = vadd.f32 %v1904, %v1993
      %v2037 = vadd.f32 %v1905, %v1993
      %v2038 = vadd.f32 %v1906, %v1993
      %v2039 = vadd.f32 %v1907, %v1993
      %v2040 = vadd.f32 %v1908, %v1993
      %v2041 = vadd.f32 %v1909, %v1993
      %v2042 = vadd.f32 %v1910, %v1993
      %v2043 = vadd.f32 %v1911, %v1993
      %v2044 = vadd.f32 %v1912, %v1993
      %v2045 = vadd.f32 %v1913, %v1993
      %v2046 = vadd.f32 %v1914, %v1993
      %v2047 = vadd.f32 %v1915, %v1993
      %v2048 = vadd.f32 %v1916, %v1993
      %v2049 = vadd.f32 %v1917, %v1993
      %v2050 = vadd.f32 %v1918, %v1993
      %v2051 = vadd.f32 %v1919, %v1993
      %v2052 = vadd.f32 %v1920, %v1993
      %v2053 = vadd.f32 %v1921, %v1993
      %v2054 = vadd.f32 %v1922, %v1993
      %v2055 = vadd.f32 %v1923, %v1993
      %v2056 = vadd.f32 %v1924, %v1993
      %v2057 = vadd.f32 %v1925, %v1993
      %v2058 = vadd.f32 %v1926, %v1993
      %v2059 = vadd.f32 %v1927, %v1993
      %v2060 = vadd.f32 %v1928, %v1993
      %v2061 = vadd.f32 %v1929, %v1993
      %v2062 = vadd.f32 %v1930, %v1993
      %v2063 = vadd.f32 %v1931, %v1993
      %v2064 = vadd.f32 %v1932, %v1993
      %v2065 = vadd.f32 %v1933, %v1993
      %v2066 = vadd.f32 %v1934, %v1993
      %v2067 = vadd.f32 %v1935, %v1993
      %v2068 = vadd.f32 %v1936, %v1993
      %v2069 = vadd.f32 %v1937, %v1993
      %v2070 = vadd.f32 %v1938, %v1993
      %v2071 = vadd.f32 %v1939, %v1993
      %v2072 = vadd.f32 %v1940, %v1993
      %v2073 = vadd.f32 %v1941, %v1993
      %v2074 = vadd.f32 %v1942, %v1993
      %v2075 = vadd.f32 %v1943, %v1993
      %v2076 = vadd.f32 %v1944, %v1993
      %v2077 = vadd.f32 %v1945, %v1993
      %v2078 = vadd.f32 %v1946, %v1993
      %v2079 = vadd.f32 %v1947, %v1993
      %v2080 = vadd.f32 %v1948, %v1993
      %v2081 = vadd.f32 %v1949, %v1993
      %v2082 = vadd.f32 %v1950, %v1993
      %v2083 = vadd.f32 %v1951, %v1993
      %v2084 = vadd.f32 %v1952, %v1993
      %v2085 = vadd.f32 %v1953, %v1993
      %v2086 = vadd.f32 %v1954, %v1993
      %v2087 = vadd.f32 %v1955, %v1993
      %v2088 = vadd.f32 %v1956, %v1993
      %v2089 = vadd.f32 %v1957, %v1993
      %v2090 = vadd.f32 %v1958, %v1993
      %v2091 = vadd.f32 %v1959, %v1993
      %v2092 = vadd.f32 %v1960, %v1993
      %v2093 = vadd.f32 %v1961, %v1993
      %v2094 = vadd.f32 %v1962, %v1993
      %v2095 = vadd.f32 %v1963, %v1993
      %v2096 = vadd.f32 %v1964, %v1993
      %v2097 = vadd.f32 %v1965, %v1993
      %v2098 = vadd.f32 %v1966, %v1993
      %v2099 = vadd.f32 %v1967, %v1993
      %v2100 = vadd.f32 %v1968, %v1993
      %v2101 = vadd.f32 %v1969, %v1993
      %v2102 = vadd.f32 %v1970, %v1993
      %v2103 = vadd.f32 %v1971, %v1993
      %v2104 = vadd.f32 %v1972, %v1993
      %v2105 = vadd.f32 %v1973, %v1993
      %v2106 = vadd.f32 %v1974, %v1993
      %v2107 = vadd.f32 %v1975, %v1993
      %v2108 = vadd.f32 %v1976, %v1993
      %v2109 = vadd.f32 %v1977, %v1993
      %v2110 = vadd.f32 %v1978, %v1993
      %v2111 = vadd.f32 %v1979, %v1993
      %v2112 = vadd.f32 %v1980, %v1993
      %v2113 = vadd.f32 %v1981, %v1993
      %v2114 = vadd.f32 %v1982, %v1993
      %v2115 = vadd.f32 %v1983, %v1993
      %v2116 = vadd.f32 %v1984, %v1993
      %v2117 = vadd.f32 %v1985, %v1993
      %v2118 = vadd.f32 %v1986, %v1993
      %v2119 = vadd.f32 %v1987, %v1993
      %v2120 = vadd.f32 %v1988, %v1993
      %v2121 = vadd.f32 %v1989, %v1993
      %v2122 = vadd.f32 %v1990, %v1993
      %v2123 = vmax.f32 %v1995, 0.0
      %v2124 = vmax.f32 %v1996, 0.0
      %v2125 = vmax.f32 %v1997, 0.0
      %v2126 = vmax.f32 %v1998, 0.0
      %v2127 = vmax.f32 %v1999, 0.0
      %v2128 = vmax.f32 %v2000, 0.0
      %v2129 = vmax.f32 %v2001, 0.0
      %v2130 = vmax.f32 %v2002, 0.0
      %v2131 = vmax.f32 %v2003, 0.0
      %v2132 = vmax.f32 %v2004, 0.0
      %v2133 = vmax.f32 %v2005, 0.0
      %v2134 = vmax.f32 %v2006, 0.0
      %v2135 = vmax.f32 %v2007, 0.0
      %v2136 = vmax.f32 %v2008, 0.0
      %v2137 = vmax.f32 %v2009, 0.0
      %v2138 = vmax.f32 %v2010, 0.0
      %v2139 = vmax.f32 %v2011, 0.0
      %v2140 = vmax.f32 %v2012, 0.0
      %v2141 = vmax.f32 %v2013, 0.0
      %v2142 = vmax.f32 %v2014, 0.0
      %v2143 = vmax.f32 %v2015, 0.0
      %v2144 = vmax.f32 %v2016, 0.0
      %v2145 = vmax.f32 %v2017, 0.0
      %v2146 = vmax.f32 %v2018, 0.0
      %v2147 = vmax.f32 %v2019, 0.0
      %v2148 = vmax.f32 %v2020, 0.0
      %v2149 = vmax.f32 %v2021, 0.0
      %v2150 = vmax.f32 %v2022, 0.0
      %v2151 = vmax.f32 %v2023, 0.0
      %v2152 = vmax.f32 %v2024, 0.0
      %v2153 = vmax.f32 %v2025, 0.0
      %v2154 = vmax.f32 %v2026, 0.0
      %v2155 = vmax.f32 %v2027, 0.0
      %v2156 = vmax.f32 %v2028, 0.0
      %v2157 = vmax.f32 %v2029, 0.0
      %v2158 = vmax.f32 %v2030, 0.0
      %v2159 = vmax.f32 %v2031, 0.0
      %v2160 = vmax.f32 %v2032, 0.0
      %v2161 = vmax.f32 %v2033, 0.0
      %v2162 = vmax.f32 %v2034, 0.0
      %v2163 = vmax.f32 %v2035, 0.0
      %v2164 = vmax.f32 %v2036, 0.0
      %v2165 = vmax.f32 %v2037, 0.0
      %v2166 = vmax.f32 %v2038, 0.0
      %v2167 = vmax.f32 %v2039, 0.0
      %v2168 = vmax.f32 %v2040, 0.0
      %v2169 = vmax.f32 %v2041, 0.0
      %v2170 = vmax.f32 %v2042, 0.0
      %v2171 = vmax.f32 %v2043, 0.0
      %v2172 = vmax.f32 %v2044, 0.0
      %v2173 = vmax.f32 %v2045, 0.0
      %v2174 = vmax.f32 %v2046, 0.0
      %v2175 = vmax.f32 %v2047, 0.0
      %v2176 = vmax.f32 %v2048, 0.0
      %v2177 = vmax.f32 %v2049, 0.0
      %v2178 = vmax.f32 %v2050, 0.0
      %v2179 = vmax.f32 %v2051, 0.0
      %v2180 = vmax.f32 %v2052, 0.0
      %v2181 = vmax.f32 %v2053, 0.0
      %v2182 = vmax.f32 %v2054, 0.0
      %v2183 = vmax.f32 %v2055, 0.0
      %v2184 = vmax.f32 %v2056, 0.0
      %v2185 = vmax.f32 %v2057, 0.0
      %v2186 = vmax.f32 %v2058, 0.0
      %v2187 = vmax.f32 %v2059, 0.0
      %v2188 = vmax.f32 %v2060, 0.0
      %v2189 = vmax.f32 %v2061, 0.0
      %v2190 = vmax.f32 %v2062, 0.0
      %v2191 = vmax.f32 %v2063, 0.0
      %v2192 = vmax.f32 %v2064, 0.0
      %v2193 = vmax.f32 %v2065, 0.0
      %v2194 = vmax.f32 %v2066, 0.0
      %v2195 = vmax.f32 %v2067, 0.0
      %v2196 = vmax.f32 %v2068, 0.0
      %v2197 = vmax.f32 %v2069, 0.0
      %v2198 = vmax.f32 %v2070, 0.0
      %v2199 = vmax.f32 %v2071, 0.0
      %v2200 = vmax.f32 %v2072, 0.0
      %v2201 = vmax.f32 %v2073, 0.0
      %v2202 = vmax.f32 %v2074, 0.0
      %v2203 = vmax.f32 %v2075, 0.0
      %v2204 = vmax.f32 %v2076, 0.0
      %v2205 = vmax.f32 %v2077, 0.0
      %v2206 = vmax.f32 %v2078, 0.0
      %v2207 = vmax.f32 %v2079, 0.0
      %v2208 = vmax.f32 %v2080, 0.0
      %v2209 = vmax.f32 %v2081, 0.0
      %v2210 = vmax.f32 %v2082, 0.0
      %v2211 = vmax.f32 %v2083, 0.0
      %v2212 = vmax.f32 %v2084, 0.0
      %v2213 = vmax.f32 %v2085, 0.0
      %v2214 = vmax.f32 %v2086, 0.0
      %v2215 = vmax.f32 %v2087, 0.0
      %v2216 = vmax.f32 %v2088, 0.0
      %v2217 = vmax.f32 %v2089, 0.0
      %v2218 = vmax.f32 %v2090, 0.0
      %v2219 = vmax.f32 %v2091, 0.0
      %v2220 = vmax.f32 %v2092, 0.0
      %v2221 = vmax.f32 %v2093, 0.0
      %v2222 = vmax.f32 %v2094, 0.0
      %v2223 = vmax.f32 %v2095, 0.0
      %v2224 = vmax.f32 %v2096, 0.0
      %v2225 = vmax.f32 %v2097, 0.0
      %v2226 = vmax.f32 %v2098, 0.0
      %v2227 = vmax.f32 %v2099, 0.0
      %v2228 = vmax.f32 %v2100, 0.0
      %v2229 = vmax.f32 %v2101, 0.0
      %v2230 = vmax.f32 %v2102, 0.0
      %v2231 = vmax.f32 %v2103, 0.0
      %v2232 = vmax.f32 %v2104, 0.0
      %v2233 = vmax.f32 %v2105, 0.0
      %v2234 = vmax.f32 %v2106, 0.0
      %v2235 = vmax.f32 %v2107, 0.0
      %v2236 = vmax.f32 %v2108, 0.0
      %v2237 = vmax.f32 %v2109, 0.0
      %v2238 = vmax.f32 %v2110, 0.0
      %v2239 = vmax.f32 %v2111, 0.0
      %v2240 = vmax.f32 %v2112, 0.0
      %v2241 = vmax.f32 %v2113, 0.0
      %v2242 = vmax.f32 %v2114, 0.0
      %v2243 = vmax.f32 %v2115, 0.0
      %v2244 = vmax.f32 %v2116, 0.0
      %v2245 = vmax.f32 %v2117, 0.0
      %v2246 = vmax.f32 %v2118, 0.0
      %v2247 = vmax.f32 %v2119, 0.0
      %v2248 = vmax.f32 %v2120, 0.0
      %v2249 = vmax.f32 %v2121, 0.0
      %v2250 = vmax.f32 %v2122, 0.0
      %v2251 = vrsqrt.pop %v2123
      %v2252 = vmul.f32 %v2251, %v2123
      %v2253 = vmul.f32 %v2252, %v2251
      %v2254 = vmul.f32 0.5, %v2253
      %v2255 = vsub.f32 1.5, %v2254
      %v2256 = vmul.f32 %v2251, %v2255
      %v2257 = vmul.f32 %v2123, %v2256
      %vm2258 = vcmp.eq.f32.partialorder %v2123, inf
      %v2259 = vsel %vm2258, %v2123, %v2257
      %vm2260 = vcmp.eq.f32.partialorder %v2123, 0.0
      %v2261 = vand.u32 %v2123, 2147483648
      %v2262 = vsel %vm2260, %v2261, %v2259
      %v2263 = vrsqrt.pop %v2124
      %v2264 = vmul.f32 %v2263, %v2124
      %v2265 = vmul.f32 %v2264, %v2263
      %v2266 = vmul.f32 0.5, %v2265
      %v2267 = vsub.f32 1.5, %v2266
      %v2268 = vmul.f32 %v2263, %v2267
      %v2269 = vmul.f32 %v2124, %v2268
      %vm2270 = vcmp.eq.f32.partialorder %v2124, inf
      %v2271 = vsel %vm2270, %v2124, %v2269
      %vm2272 = vcmp.eq.f32.partialorder %v2124, 0.0
      %v2273 = vand.u32 %v2124, 2147483648
      %v2274 = vsel %vm2272, %v2273, %v2271
      %v2275 = vrsqrt.pop %v2125
      %v2276 = vmul.f32 %v2275, %v2125
      %v2277 = vmul.f32 %v2276, %v2275
      %v2278 = vmul.f32 0.5, %v2277
      %v2279 = vsub.f32 1.5, %v2278
      %v2280 = vmul.f32 %v2275, %v2279
      %v2281 = vmul.f32 %v2125, %v2280
      %vm2282 = vcmp.eq.f32.partialorder %v2125, inf
      %v2283 = vsel %vm2282, %v2125, %v2281
      %vm2284 = vcmp.eq.f32.partialorder %v2125, 0.0
      %v2285 = vand.u32 %v2125, 2147483648
      %v2286 = vsel %vm2284, %v2285, %v2283
      %v2287 = vrsqrt.pop %v2126
      %v2288 = vmul.f32 %v2287, %v2126
      %v2289 = vmul.f32 %v2288, %v2287
      %v2290 = vmul.f32 0.5, %v2289
      %v2291 = vsub.f32 1.5, %v2290
      %v2292 = vmul.f32 %v2287, %v2291
      %v2293 = vmul.f32 %v2126, %v2292
      %vm2294 = vcmp.eq.f32.partialorder %v2126, inf
      %v2295 = vsel %vm2294, %v2126, %v2293
      %vm2296 = vcmp.eq.f32.partialorder %v2126, 0.0
      %v2297 = vand.u32 %v2126, 2147483648
      %v2298 = vsel %vm2296, %v2297, %v2295
      %v2299 = vrsqrt.pop %v2127
      %v2300 = vmul.f32 %v2299, %v2127
      %v2301 = vmul.f32 %v2300, %v2299
      %v2302 = vmul.f32 0.5, %v2301
      %v2303 = vsub.f32 1.5, %v2302
      %v2304 = vmul.f32 %v2299, %v2303
      %v2305 = vmul.f32 %v2127, %v2304
      %vm2306 = vcmp.eq.f32.partialorder %v2127, inf
      %v2307 = vsel %vm2306, %v2127, %v2305
      %vm2308 = vcmp.eq.f32.partialorder %v2127, 0.0
      %v2309 = vand.u32 %v2127, 2147483648
      %v2310 = vsel %vm2308, %v2309, %v2307
      %v2311 = vrsqrt.pop %v2128
      %v2312 = vmul.f32 %v2311, %v2128
      %v2313 = vmul.f32 %v2312, %v2311
      %v2314 = vmul.f32 0.5, %v2313
      %v2315 = vsub.f32 1.5, %v2314
      %v2316 = vmul.f32 %v2311, %v2315
      %v2317 = vmul.f32 %v2128, %v2316
      %vm2318 = vcmp.eq.f32.partialorder %v2128, inf
      %v2319 = vsel %vm2318, %v2128, %v2317
      %vm2320 = vcmp.eq.f32.partialorder %v2128, 0.0
      %v2321 = vand.u32 %v2128, 2147483648
      %v2322 = vsel %vm2320, %v2321, %v2319
      %v2323 = vrsqrt.pop %v2129
      %v2324 = vmul.f32 %v2323, %v2129
      %v2325 = vmul.f32 %v2324, %v2323
      %v2326 = vmul.f32 0.5, %v2325
      %v2327 = vsub.f32 1.5, %v2326
      %v2328 = vmul.f32 %v2323, %v2327
      %v2329 = vmul.f32 %v2129, %v2328
      %vm2330 = vcmp.eq.f32.partialorder %v2129, inf
      %v2331 = vsel %vm2330, %v2129, %v2329
      %vm2332 = vcmp.eq.f32.partialorder %v2129, 0.0
      %v2333 = vand.u32 %v2129, 2147483648
      %v2334 = vsel %vm2332, %v2333, %v2331
      %v2335 = vrsqrt.pop %v2130
      %v2336 = vmul.f32 %v2335, %v2130
      %v2337 = vmul.f32 %v2336, %v2335
      %v2338 = vmul.f32 0.5, %v2337
      %v2339 = vsub.f32 1.5, %v2338
      %v2340 = vmul.f32 %v2335, %v2339
      %v2341 = vmul.f32 %v2130, %v2340
      %vm2342 = vcmp.eq.f32.partialorder %v2130, inf
      %v2343 = vsel %vm2342, %v2130, %v2341
      %vm2344 = vcmp.eq.f32.partialorder %v2130, 0.0
      %v2345 = vand.u32 %v2130, 2147483648
      %v2346 = vsel %vm2344, %v2345, %v2343
      %v2347 = vrsqrt.pop %v2131
      %v2348 = vmul.f32 %v2347, %v2131
      %v2349 = vmul.f32 %v2348, %v2347
      %v2350 = vmul.f32 0.5, %v2349
      %v2351 = vsub.f32 1.5, %v2350
      %v2352 = vmul.f32 %v2347, %v2351
      %v2353 = vmul.f32 %v2131, %v2352
      %vm2354 = vcmp.eq.f32.partialorder %v2131, inf
      %v2355 = vsel %vm2354, %v2131, %v2353
      %vm2356 = vcmp.eq.f32.partialorder %v2131, 0.0
      %v2357 = vand.u32 %v2131, 2147483648
      %v2358 = vsel %vm2356, %v2357, %v2355
      %v2359 = vrsqrt.pop %v2132
      %v2360 = vmul.f32 %v2359, %v2132
      %v2361 = vmul.f32 %v2360, %v2359
      %v2362 = vmul.f32 0.5, %v2361
      %v2363 = vsub.f32 1.5, %v2362
      %v2364 = vmul.f32 %v2359, %v2363
      %v2365 = vmul.f32 %v2132, %v2364
      %vm2366 = vcmp.eq.f32.partialorder %v2132, inf
      %v2367 = vsel %vm2366, %v2132, %v2365
      %vm2368 = vcmp.eq.f32.partialorder %v2132, 0.0
      %v2369 = vand.u32 %v2132, 2147483648
      %v2370 = vsel %vm2368, %v2369, %v2367
      %v2371 = vrsqrt.pop %v2133
      %v2372 = vmul.f32 %v2371, %v2133
      %v2373 = vmul.f32 %v2372, %v2371
      %v2374 = vmul.f32 0.5, %v2373
      %v2375 = vsub.f32 1.5, %v2374
      %v2376 = vmul.f32 %v2371, %v2375
      %v2377 = vmul.f32 %v2133, %v2376
      %vm2378 = vcmp.eq.f32.partialorder %v2133, inf
      %v2379 = vsel %vm2378, %v2133, %v2377
      %vm2380 = vcmp.eq.f32.partialorder %v2133, 0.0
      %v2381 = vand.u32 %v2133, 2147483648
      %v2382 = vsel %vm2380, %v2381, %v2379
      %v2383 = vrsqrt.pop %v2134
      %v2384 = vmul.f32 %v2383, %v2134
      %v2385 = vmul.f32 %v2384, %v2383
      %v2386 = vmul.f32 0.5, %v2385
      %v2387 = vsub.f32 1.5, %v2386
      %v2388 = vmul.f32 %v2383, %v2387
      %v2389 = vmul.f32 %v2134, %v2388
      %vm2390 = vcmp.eq.f32.partialorder %v2134, inf
      %v2391 = vsel %vm2390, %v2134, %v2389
      %vm2392 = vcmp.eq.f32.partialorder %v2134, 0.0
      %v2393 = vand.u32 %v2134, 2147483648
      %v2394 = vsel %vm2392, %v2393, %v2391
      %v2395 = vrsqrt.pop %v2135
      %v2396 = vmul.f32 %v2395, %v2135
      %v2397 = vmul.f32 %v2396, %v2395
      %v2398 = vmul.f32 0.5, %v2397
      %v2399 = vsub.f32 1.5, %v2398
      %v2400 = vmul.f32 %v2395, %v2399
      %v2401 = vmul.f32 %v2135, %v2400
      %vm2402 = vcmp.eq.f32.partialorder %v2135, inf
      %v2403 = vsel %vm2402, %v2135, %v2401
      %vm2404 = vcmp.eq.f32.partialorder %v2135, 0.0
      %v2405 = vand.u32 %v2135, 2147483648
      %v2406 = vsel %vm2404, %v2405, %v2403
      %v2407 = vrsqrt.pop %v2136
      %v2408 = vmul.f32 %v2407, %v2136
      %v2409 = vmul.f32 %v2408, %v2407
      %v2410 = vmul.f32 0.5, %v2409
      %v2411 = vsub.f32 1.5, %v2410
      %v2412 = vmul.f32 %v2407, %v2411
      %v2413 = vmul.f32 %v2136, %v2412
      %vm2414 = vcmp.eq.f32.partialorder %v2136, inf
      %v2415 = vsel %vm2414, %v2136, %v2413
      %vm2416 = vcmp.eq.f32.partialorder %v2136, 0.0
      %v2417 = vand.u32 %v2136, 2147483648
      %v2418 = vsel %vm2416, %v2417, %v2415
      %v2419 = vrsqrt.pop %v2137
      %v2420 = vmul.f32 %v2419, %v2137
      %v2421 = vmul.f32 %v2420, %v2419
      %v2422 = vmul.f32 0.5, %v2421
      %v2423 = vsub.f32 1.5, %v2422
      %v2424 = vmul.f32 %v2419, %v2423
      %v2425 = vmul.f32 %v2137, %v2424
      %vm2426 = vcmp.eq.f32.partialorder %v2137, inf
      %v2427 = vsel %vm2426, %v2137, %v2425
      %vm2428 = vcmp.eq.f32.partialorder %v2137, 0.0
      %v2429 = vand.u32 %v2137, 2147483648
      %v2430 = vsel %vm2428, %v2429, %v2427
      %v2431 = vrsqrt.pop %v2138
      %v2432 = vmul.f32 %v2431, %v2138
      %v2433 = vmul.f32 %v2432, %v2431
      %v2434 = vmul.f32 0.5, %v2433
      %v2435 = vsub.f32 1.5, %v2434
      %v2436 = vmul.f32 %v2431, %v2435
      %v2437 = vmul.f32 %v2138, %v2436
      %vm2438 = vcmp.eq.f32.partialorder %v2138, inf
      %v2439 = vsel %vm2438, %v2138, %v2437
      %vm2440 = vcmp.eq.f32.partialorder %v2138, 0.0
      %v2441 = vand.u32 %v2138, 2147483648
      %v2442 = vsel %vm2440, %v2441, %v2439
      %v2443 = vrsqrt.pop %v2139
      %v2444 = vmul.f32 %v2443, %v2139
      %v2445 = vmul.f32 %v2444, %v2443
      %v2446 = vmul.f32 0.5, %v2445
      %v2447 = vsub.f32 1.5, %v2446
      %v2448 = vmul.f32 %v2443, %v2447
      %v2449 = vmul.f32 %v2139, %v2448
      %vm2450 = vcmp.eq.f32.partialorder %v2139, inf
      %v2451 = vsel %vm2450, %v2139, %v2449
      %vm2452 = vcmp.eq.f32.partialorder %v2139, 0.0
      %v2453 = vand.u32 %v2139, 2147483648
      %v2454 = vsel %vm2452, %v2453, %v2451
      %v2455 = vrsqrt.pop %v2140
      %v2456 = vmul.f32 %v2455, %v2140
      %v2457 = vmul.f32 %v2456, %v2455
      %v2458 = vmul.f32 0.5, %v2457
      %v2459 = vsub.f32 1.5, %v2458
      %v2460 = vmul.f32 %v2455, %v2459
      %v2461 = vmul.f32 %v2140, %v2460
      %vm2462 = vcmp.eq.f32.partialorder %v2140, inf
      %v2463 = vsel %vm2462, %v2140, %v2461
      %vm2464 = vcmp.eq.f32.partialorder %v2140, 0.0
      %v2465 = vand.u32 %v2140, 2147483648
      %v2466 = vsel %vm2464, %v2465, %v2463
      %v2467 = vrsqrt.pop %v2141
      %v2468 = vmul.f32 %v2467, %v2141
      %v2469 = vmul.f32 %v2468, %v2467
      %v2470 = vmul.f32 0.5, %v2469
      %v2471 = vsub.f32 1.5, %v2470
      %v2472 = vmul.f32 %v2467, %v2471
      %v2473 = vmul.f32 %v2141, %v2472
      %vm2474 = vcmp.eq.f32.partialorder %v2141, inf
      %v2475 = vsel %vm2474, %v2141, %v2473
      %vm2476 = vcmp.eq.f32.partialorder %v2141, 0.0
      %v2477 = vand.u32 %v2141, 2147483648
      %v2478 = vsel %vm2476, %v2477, %v2475
      %v2479 = vrsqrt.pop %v2142
      %v2480 = vmul.f32 %v2479, %v2142
      %v2481 = vmul.f32 %v2480, %v2479
      %v2482 = vmul.f32 0.5, %v2481
      %v2483 = vsub.f32 1.5, %v2482
      %v2484 = vmul.f32 %v2479, %v2483
      %v2485 = vmul.f32 %v2142, %v2484
      %vm2486 = vcmp.eq.f32.partialorder %v2142, inf
      %v2487 = vsel %vm2486, %v2142, %v2485
      %vm2488 = vcmp.eq.f32.partialorder %v2142, 0.0
      %v2489 = vand.u32 %v2142, 2147483648
      %v2490 = vsel %vm2488, %v2489, %v2487
      %v2491 = vrsqrt.pop %v2143
      %v2492 = vmul.f32 %v2491, %v2143
      %v2493 = vmul.f32 %v2492, %v2491
      %v2494 = vmul.f32 0.5, %v2493
      %v2495 = vsub.f32 1.5, %v2494
      %v2496 = vmul.f32 %v2491, %v2495
      %v2497 = vmul.f32 %v2143, %v2496
      %vm2498 = vcmp.eq.f32.partialorder %v2143, inf
      %v2499 = vsel %vm2498, %v2143, %v2497
      %vm2500 = vcmp.eq.f32.partialorder %v2143, 0.0
      %v2501 = vand.u32 %v2143, 2147483648
      %v2502 = vsel %vm2500, %v2501, %v2499
      %v2503 = vrsqrt.pop %v2144
      %v2504 = vmul.f32 %v2503, %v2144
      %v2505 = vmul.f32 %v2504, %v2503
      %v2506 = vmul.f32 0.5, %v2505
      %v2507 = vsub.f32 1.5, %v2506
      %v2508 = vmul.f32 %v2503, %v2507
      %v2509 = vmul.f32 %v2144, %v2508
      %vm2510 = vcmp.eq.f32.partialorder %v2144, inf
      %v2511 = vsel %vm2510, %v2144, %v2509
      %vm2512 = vcmp.eq.f32.partialorder %v2144, 0.0
      %v2513 = vand.u32 %v2144, 2147483648
      %v2514 = vsel %vm2512, %v2513, %v2511
      %v2515 = vrsqrt.pop %v2145
      %v2516 = vmul.f32 %v2515, %v2145
      %v2517 = vmul.f32 %v2516, %v2515
      %v2518 = vmul.f32 0.5, %v2517
      %v2519 = vsub.f32 1.5, %v2518
      %v2520 = vmul.f32 %v2515, %v2519
      %v2521 = vmul.f32 %v2145, %v2520
      %vm2522 = vcmp.eq.f32.partialorder %v2145, inf
      %v2523 = vsel %vm2522, %v2145, %v2521
      %vm2524 = vcmp.eq.f32.partialorder %v2145, 0.0
      %v2525 = vand.u32 %v2145, 2147483648
      %v2526 = vsel %vm2524, %v2525, %v2523
      %v2527 = vrsqrt.pop %v2146
      %v2528 = vmul.f32 %v2527, %v2146
      %v2529 = vmul.f32 %v2528, %v2527
      %v2530 = vmul.f32 0.5, %v2529
      %v2531 = vsub.f32 1.5, %v2530
      %v2532 = vmul.f32 %v2527, %v2531
      %v2533 = vmul.f32 %v2146, %v2532
      %vm2534 = vcmp.eq.f32.partialorder %v2146, inf
      %v2535 = vsel %vm2534, %v2146, %v2533
      %vm2536 = vcmp.eq.f32.partialorder %v2146, 0.0
      %v2537 = vand.u32 %v2146, 2147483648
      %v2538 = vsel %vm2536, %v2537, %v2535
      %v2539 = vrsqrt.pop %v2147
      %v2540 = vmul.f32 %v2539, %v2147
      %v2541 = vmul.f32 %v2540, %v2539
      %v2542 = vmul.f32 0.5, %v2541
      %v2543 = vsub.f32 1.5, %v2542
      %v2544 = vmul.f32 %v2539, %v2543
      %v2545 = vmul.f32 %v2147, %v2544
      %vm2546 = vcmp.eq.f32.partialorder %v2147, inf
      %v2547 = vsel %vm2546, %v2147, %v2545
      %vm2548 = vcmp.eq.f32.partialorder %v2147, 0.0
      %v2549 = vand.u32 %v2147, 2147483648
      %v2550 = vsel %vm2548, %v2549, %v2547
      %v2551 = vrsqrt.pop %v2148
      %v2552 = vmul.f32 %v2551, %v2148
      %v2553 = vmul.f32 %v2552, %v2551
      %v2554 = vmul.f32 0.5, %v2553
      %v2555 = vsub.f32 1.5, %v2554
      %v2556 = vmul.f32 %v2551, %v2555
      %v2557 = vmul.f32 %v2148, %v2556
      %vm2558 = vcmp.eq.f32.partialorder %v2148, inf
      %v2559 = vsel %vm2558, %v2148, %v2557
      %vm2560 = vcmp.eq.f32.partialorder %v2148, 0.0
      %v2561 = vand.u32 %v2148, 2147483648
      %v2562 = vsel %vm2560, %v2561, %v2559
      %v2563 = vrsqrt.pop %v2149
      %v2564 = vmul.f32 %v2563, %v2149
      %v2565 = vmul.f32 %v2564, %v2563
      %v2566 = vmul.f32 0.5, %v2565
      %v2567 = vsub.f32 1.5, %v2566
      %v2568 = vmul.f32 %v2563, %v2567
      %v2569 = vmul.f32 %v2149, %v2568
      %vm2570 = vcmp.eq.f32.partialorder %v2149, inf
      %v2571 = vsel %vm2570, %v2149, %v2569
      %vm2572 = vcmp.eq.f32.partialorder %v2149, 0.0
      %v2573 = vand.u32 %v2149, 2147483648
      %v2574 = vsel %vm2572, %v2573, %v2571
      %v2575 = vrsqrt.pop %v2150
      %v2576 = vmul.f32 %v2575, %v2150
      %v2577 = vmul.f32 %v2576, %v2575
      %v2578 = vmul.f32 0.5, %v2577
      %v2579 = vsub.f32 1.5, %v2578
      %v2580 = vmul.f32 %v2575, %v2579
      %v2581 = vmul.f32 %v2150, %v2580
      %vm2582 = vcmp.eq.f32.partialorder %v2150, inf
      %v2583 = vsel %vm2582, %v2150, %v2581
      %vm2584 = vcmp.eq.f32.partialorder %v2150, 0.0
      %v2585 = vand.u32 %v2150, 2147483648
      %v2586 = vsel %vm2584, %v2585, %v2583
      %v2587 = vrsqrt.pop %v2151
      %v2588 = vmul.f32 %v2587, %v2151
      %v2589 = vmul.f32 %v2588, %v2587
      %v2590 = vmul.f32 0.5, %v2589
      %v2591 = vsub.f32 1.5, %v2590
      %v2592 = vmul.f32 %v2587, %v2591
      %v2593 = vmul.f32 %v2151, %v2592
      %vm2594 = vcmp.eq.f32.partialorder %v2151, inf
      %v2595 = vsel %vm2594, %v2151, %v2593
      %vm2596 = vcmp.eq.f32.partialorder %v2151, 0.0
      %v2597 = vand.u32 %v2151, 2147483648
      %v2598 = vsel %vm2596, %v2597, %v2595
      %v2599 = vrsqrt.pop %v2152
      %v2600 = vmul.f32 %v2599, %v2152
      %v2601 = vmul.f32 %v2600, %v2599
      %v2602 = vmul.f32 0.5, %v2601
      %v2603 = vsub.f32 1.5, %v2602
      %v2604 = vmul.f32 %v2599, %v2603
      %v2605 = vmul.f32 %v2152, %v2604
      %vm2606 = vcmp.eq.f32.partialorder %v2152, inf
      %v2607 = vsel %vm2606, %v2152, %v2605
      %vm2608 = vcmp.eq.f32.partialorder %v2152, 0.0
      %v2609 = vand.u32 %v2152, 2147483648
      %v2610 = vsel %vm2608, %v2609, %v2607
      %v2611 = vrsqrt.pop %v2153
      %v2612 = vmul.f32 %v2611, %v2153
      %v2613 = vmul.f32 %v2612, %v2611
      %v2614 = vmul.f32 0.5, %v2613
      %v2615 = vsub.f32 1.5, %v2614
      %v2616 = vmul.f32 %v2611, %v2615
      %v2617 = vmul.f32 %v2153, %v2616
      %vm2618 = vcmp.eq.f32.partialorder %v2153, inf
      %v2619 = vsel %vm2618, %v2153, %v2617
      %vm2620 = vcmp.eq.f32.partialorder %v2153, 0.0
      %v2621 = vand.u32 %v2153, 2147483648
      %v2622 = vsel %vm2620, %v2621, %v2619
      %v2623 = vrsqrt.pop %v2154
      %v2624 = vmul.f32 %v2623, %v2154
      %v2625 = vmul.f32 %v2624, %v2623
      %v2626 = vmul.f32 0.5, %v2625
      %v2627 = vsub.f32 1.5, %v2626
      %v2628 = vmul.f32 %v2623, %v2627
      %v2629 = vmul.f32 %v2154, %v2628
      %vm2630 = vcmp.eq.f32.partialorder %v2154, inf
      %v2631 = vsel %vm2630, %v2154, %v2629
      %vm2632 = vcmp.eq.f32.partialorder %v2154, 0.0
      %v2633 = vand.u32 %v2154, 2147483648
      %v2634 = vsel %vm2632, %v2633, %v2631
      %v2635 = vrsqrt.pop %v2155
      %v2636 = vmul.f32 %v2635, %v2155
      %v2637 = vmul.f32 %v2636, %v2635
      %v2638 = vmul.f32 0.5, %v2637
      %v2639 = vsub.f32 1.5, %v2638
      %v2640 = vmul.f32 %v2635, %v2639
      %v2641 = vmul.f32 %v2155, %v2640
      %vm2642 = vcmp.eq.f32.partialorder %v2155, inf
      %v2643 = vsel %vm2642, %v2155, %v2641
      %vm2644 = vcmp.eq.f32.partialorder %v2155, 0.0
      %v2645 = vand.u32 %v2155, 2147483648
      %v2646 = vsel %vm2644, %v2645, %v2643
      %v2647 = vrsqrt.pop %v2156
      %v2648 = vmul.f32 %v2647, %v2156
      %v2649 = vmul.f32 %v2648, %v2647
      %v2650 = vmul.f32 0.5, %v2649
      %v2651 = vsub.f32 1.5, %v2650
      %v2652 = vmul.f32 %v2647, %v2651
      %v2653 = vmul.f32 %v2156, %v2652
      %vm2654 = vcmp.eq.f32.partialorder %v2156, inf
      %v2655 = vsel %vm2654, %v2156, %v2653
      %vm2656 = vcmp.eq.f32.partialorder %v2156, 0.0
      %v2657 = vand.u32 %v2156, 2147483648
      %v2658 = vsel %vm2656, %v2657, %v2655
      %v2659 = vrsqrt.pop %v2157
      %v2660 = vmul.f32 %v2659, %v2157
      %v2661 = vmul.f32 %v2660, %v2659
      %v2662 = vmul.f32 0.5, %v2661
      %v2663 = vsub.f32 1.5, %v2662
      %v2664 = vmul.f32 %v2659, %v2663
      %v2665 = vmul.f32 %v2157, %v2664
      %vm2666 = vcmp.eq.f32.partialorder %v2157, inf
      %v2667 = vsel %vm2666, %v2157, %v2665
      %vm2668 = vcmp.eq.f32.partialorder %v2157, 0.0
      %v2669 = vand.u32 %v2157, 2147483648
      %v2670 = vsel %vm2668, %v2669, %v2667
      %v2671 = vrsqrt.pop %v2158
      %v2672 = vmul.f32 %v2671, %v2158
      %v2673 = vmul.f32 %v2672, %v2671
      %v2674 = vmul.f32 0.5, %v2673
      %v2675 = vsub.f32 1.5, %v2674
      %v2676 = vmul.f32 %v2671, %v2675
      %v2677 = vmul.f32 %v2158, %v2676
      %vm2678 = vcmp.eq.f32.partialorder %v2158, inf
      %v2679 = vsel %vm2678, %v2158, %v2677
      %vm2680 = vcmp.eq.f32.partialorder %v2158, 0.0
      %v2681 = vand.u32 %v2158, 2147483648
      %v2682 = vsel %vm2680, %v2681, %v2679
      %v2683 = vrsqrt.pop %v2159
      %v2684 = vmul.f32 %v2683, %v2159
      %v2685 = vmul.f32 %v2684, %v2683
      %v2686 = vmul.f32 0.5, %v2685
      %v2687 = vsub.f32 1.5, %v2686
      %v2688 = vmul.f32 %v2683, %v2687
      %v2689 = vmul.f32 %v2159, %v2688
      %vm2690 = vcmp.eq.f32.partialorder %v2159, inf
      %v2691 = vsel %vm2690, %v2159, %v2689
      %vm2692 = vcmp.eq.f32.partialorder %v2159, 0.0
      %v2693 = vand.u32 %v2159, 2147483648
      %v2694 = vsel %vm2692, %v2693, %v2691
      %v2695 = vrsqrt.pop %v2160
      %v2696 = vmul.f32 %v2695, %v2160
      %v2697 = vmul.f32 %v2696, %v2695
      %v2698 = vmul.f32 0.5, %v2697
      %v2699 = vsub.f32 1.5, %v2698
      %v2700 = vmul.f32 %v2695, %v2699
      %v2701 = vmul.f32 %v2160, %v2700
      %vm2702 = vcmp.eq.f32.partialorder %v2160, inf
      %v2703 = vsel %vm2702, %v2160, %v2701
      %vm2704 = vcmp.eq.f32.partialorder %v2160, 0.0
      %v2705 = vand.u32 %v2160, 2147483648
      %v2706 = vsel %vm2704, %v2705, %v2703
      %v2707 = vrsqrt.pop %v2161
      %v2708 = vmul.f32 %v2707, %v2161
      %v2709 = vmul.f32 %v2708, %v2707
      %v2710 = vmul.f32 0.5, %v2709
      %v2711 = vsub.f32 1.5, %v2710
      %v2712 = vmul.f32 %v2707, %v2711
      %v2713 = vmul.f32 %v2161, %v2712
      %vm2714 = vcmp.eq.f32.partialorder %v2161, inf
      %v2715 = vsel %vm2714, %v2161, %v2713
      %vm2716 = vcmp.eq.f32.partialorder %v2161, 0.0
      %v2717 = vand.u32 %v2161, 2147483648
      %v2718 = vsel %vm2716, %v2717, %v2715
      %v2719 = vrsqrt.pop %v2162
      %v2720 = vmul.f32 %v2719, %v2162
      %v2721 = vmul.f32 %v2720, %v2719
      %v2722 = vmul.f32 0.5, %v2721
      %v2723 = vsub.f32 1.5, %v2722
      %v2724 = vmul.f32 %v2719, %v2723
      %v2725 = vmul.f32 %v2162, %v2724
      %vm2726 = vcmp.eq.f32.partialorder %v2162, inf
      %v2727 = vsel %vm2726, %v2162, %v2725
      %vm2728 = vcmp.eq.f32.partialorder %v2162, 0.0
      %v2729 = vand.u32 %v2162, 2147483648
      %v2730 = vsel %vm2728, %v2729, %v2727
      %v2731 = vrsqrt.pop %v2163
      %v2732 = vmul.f32 %v2731, %v2163
      %v2733 = vmul.f32 %v2732, %v2731
      %v2734 = vmul.f32 0.5, %v2733
      %v2735 = vsub.f32 1.5, %v2734
      %v2736 = vmul.f32 %v2731, %v2735
      %v2737 = vmul.f32 %v2163, %v2736
      %vm2738 = vcmp.eq.f32.partialorder %v2163, inf
      %v2739 = vsel %vm2738, %v2163, %v2737
      %vm2740 = vcmp.eq.f32.partialorder %v2163, 0.0
      %v2741 = vand.u32 %v2163, 2147483648
      %v2742 = vsel %vm2740, %v2741, %v2739
      %v2743 = vrsqrt.pop %v2164
      %v2744 = vmul.f32 %v2743, %v2164
      %v2745 = vmul.f32 %v2744, %v2743
      %v2746 = vmul.f32 0.5, %v2745
      %v2747 = vsub.f32 1.5, %v2746
      %v2748 = vmul.f32 %v2743, %v2747
      %v2749 = vmul.f32 %v2164, %v2748
      %vm2750 = vcmp.eq.f32.partialorder %v2164, inf
      %v2751 = vsel %vm2750, %v2164, %v2749
      %vm2752 = vcmp.eq.f32.partialorder %v2164, 0.0
      %v2753 = vand.u32 %v2164, 2147483648
      %v2754 = vsel %vm2752, %v2753, %v2751
      %v2755 = vrsqrt.pop %v2165
      %v2756 = vmul.f32 %v2755, %v2165
      %v2757 = vmul.f32 %v2756, %v2755
      %v2758 = vmul.f32 0.5, %v2757
      %v2759 = vsub.f32 1.5, %v2758
      %v2760 = vmul.f32 %v2755, %v2759
      %v2761 = vmul.f32 %v2165, %v2760
      %vm2762 = vcmp.eq.f32.partialorder %v2165, inf
      %v2763 = vsel %vm2762, %v2165, %v2761
      %vm2764 = vcmp.eq.f32.partialorder %v2165, 0.0
      %v2765 = vand.u32 %v2165, 2147483648
      %v2766 = vsel %vm2764, %v2765, %v2763
      %v2767 = vrsqrt.pop %v2166
      %v2768 = vmul.f32 %v2767, %v2166
      %v2769 = vmul.f32 %v2768, %v2767
      %v2770 = vmul.f32 0.5, %v2769
      %v2771 = vsub.f32 1.5, %v2770
      %v2772 = vmul.f32 %v2767, %v2771
      %v2773 = vmul.f32 %v2166, %v2772
      %vm2774 = vcmp.eq.f32.partialorder %v2166, inf
      %v2775 = vsel %vm2774, %v2166, %v2773
      %vm2776 = vcmp.eq.f32.partialorder %v2166, 0.0
      %v2777 = vand.u32 %v2166, 2147483648
      %v2778 = vsel %vm2776, %v2777, %v2775
      %v2779 = vrsqrt.pop %v2167
      %v2780 = vmul.f32 %v2779, %v2167
      %v2781 = vmul.f32 %v2780, %v2779
      %v2782 = vmul.f32 0.5, %v2781
      %v2783 = vsub.f32 1.5, %v2782
      %v2784 = vmul.f32 %v2779, %v2783
      %v2785 = vmul.f32 %v2167, %v2784
      %vm2786 = vcmp.eq.f32.partialorder %v2167, inf
      %v2787 = vsel %vm2786, %v2167, %v2785
      %vm2788 = vcmp.eq.f32.partialorder %v2167, 0.0
      %v2789 = vand.u32 %v2167, 2147483648
      %v2790 = vsel %vm2788, %v2789, %v2787
      %v2791 = vrsqrt.pop %v2168
      %v2792 = vmul.f32 %v2791, %v2168
      %v2793 = vmul.f32 %v2792, %v2791
      %v2794 = vmul.f32 0.5, %v2793
      %v2795 = vsub.f32 1.5, %v2794
      %v2796 = vmul.f32 %v2791, %v2795
      %v2797 = vmul.f32 %v2168, %v2796
      %vm2798 = vcmp.eq.f32.partialorder %v2168, inf
      %v2799 = vsel %vm2798, %v2168, %v2797
      %vm2800 = vcmp.eq.f32.partialorder %v2168, 0.0
      %v2801 = vand.u32 %v2168, 2147483648
      %v2802 = vsel %vm2800, %v2801, %v2799
      %v2803 = vrsqrt.pop %v2169
      %v2804 = vmul.f32 %v2803, %v2169
      %v2805 = vmul.f32 %v2804, %v2803
      %v2806 = vmul.f32 0.5, %v2805
      %v2807 = vsub.f32 1.5, %v2806
      %v2808 = vmul.f32 %v2803, %v2807
      %v2809 = vmul.f32 %v2169, %v2808
      %vm2810 = vcmp.eq.f32.partialorder %v2169, inf
      %v2811 = vsel %vm2810, %v2169, %v2809
      %vm2812 = vcmp.eq.f32.partialorder %v2169, 0.0
      %v2813 = vand.u32 %v2169, 2147483648
      %v2814 = vsel %vm2812, %v2813, %v2811
      %v2815 = vrsqrt.pop %v2170
      %v2816 = vmul.f32 %v2815, %v2170
      %v2817 = vmul.f32 %v2816, %v2815
      %v2818 = vmul.f32 0.5, %v2817
      %v2819 = vsub.f32 1.5, %v2818
      %v2820 = vmul.f32 %v2815, %v2819
      %v2821 = vmul.f32 %v2170, %v2820
      %vm2822 = vcmp.eq.f32.partialorder %v2170, inf
      %v2823 = vsel %vm2822, %v2170, %v2821
      %vm2824 = vcmp.eq.f32.partialorder %v2170, 0.0
      %v2825 = vand.u32 %v2170, 2147483648
      %v2826 = vsel %vm2824, %v2825, %v2823
      %v2827 = vrsqrt.pop %v2171
      %v2828 = vmul.f32 %v2827, %v2171
      %v2829 = vmul.f32 %v2828, %v2827
      %v2830 = vmul.f32 0.5, %v2829
      %v2831 = vsub.f32 1.5, %v2830
      %v2832 = vmul.f32 %v2827, %v2831
      %v2833 = vmul.f32 %v2171, %v2832
      %vm2834 = vcmp.eq.f32.partialorder %v2171, inf
      %v2835 = vsel %vm2834, %v2171, %v2833
      %vm2836 = vcmp.eq.f32.partialorder %v2171, 0.0
      %v2837 = vand.u32 %v2171, 2147483648
      %v2838 = vsel %vm2836, %v2837, %v2835
      %v2839 = vrsqrt.pop %v2172
      %v2840 = vmul.f32 %v2839, %v2172
      %v2841 = vmul.f32 %v2840, %v2839
      %v2842 = vmul.f32 0.5, %v2841
      %v2843 = vsub.f32 1.5, %v2842
      %v2844 = vmul.f32 %v2839, %v2843
      %v2845 = vmul.f32 %v2172, %v2844
      %vm2846 = vcmp.eq.f32.partialorder %v2172, inf
      %v2847 = vsel %vm2846, %v2172, %v2845
      %vm2848 = vcmp.eq.f32.partialorder %v2172, 0.0
      %v2849 = vand.u32 %v2172, 2147483648
      %v2850 = vsel %vm2848, %v2849, %v2847
      %v2851 = vrsqrt.pop %v2173
      %v2852 = vmul.f32 %v2851, %v2173
      %v2853 = vmul.f32 %v2852, %v2851
      %v2854 = vmul.f32 0.5, %v2853
      %v2855 = vsub.f32 1.5, %v2854
      %v2856 = vmul.f32 %v2851, %v2855
      %v2857 = vmul.f32 %v2173, %v2856
      %vm2858 = vcmp.eq.f32.partialorder %v2173, inf
      %v2859 = vsel %vm2858, %v2173, %v2857
      %vm2860 = vcmp.eq.f32.partialorder %v2173, 0.0
      %v2861 = vand.u32 %v2173, 2147483648
      %v2862 = vsel %vm2860, %v2861, %v2859
      %v2863 = vrsqrt.pop %v2174
      %v2864 = vmul.f32 %v2863, %v2174
      %v2865 = vmul.f32 %v2864, %v2863
      %v2866 = vmul.f32 0.5, %v2865
      %v2867 = vsub.f32 1.5, %v2866
      %v2868 = vmul.f32 %v2863, %v2867
      %v2869 = vmul.f32 %v2174, %v2868
      %vm2870 = vcmp.eq.f32.partialorder %v2174, inf
      %v2871 = vsel %vm2870, %v2174, %v2869
      %vm2872 = vcmp.eq.f32.partialorder %v2174, 0.0
      %v2873 = vand.u32 %v2174, 2147483648
      %v2874 = vsel %vm2872, %v2873, %v2871
      %v2875 = vrsqrt.pop %v2175
      %v2876 = vmul.f32 %v2875, %v2175
      %v2877 = vmul.f32 %v2876, %v2875
      %v2878 = vmul.f32 0.5, %v2877
      %v2879 = vsub.f32 1.5, %v2878
      %v2880 = vmul.f32 %v2875, %v2879
      %v2881 = vmul.f32 %v2175, %v2880
      %vm2882 = vcmp.eq.f32.partialorder %v2175, inf
      %v2883 = vsel %vm2882, %v2175, %v2881
      %vm2884 = vcmp.eq.f32.partialorder %v2175, 0.0
      %v2885 = vand.u32 %v2175, 2147483648
      %v2886 = vsel %vm2884, %v2885, %v2883
      %v2887 = vrsqrt.pop %v2176
      %v2888 = vmul.f32 %v2887, %v2176
      %v2889 = vmul.f32 %v2888, %v2887
      %v2890 = vmul.f32 0.5, %v2889
      %v2891 = vsub.f32 1.5, %v2890
      %v2892 = vmul.f32 %v2887, %v2891
      %v2893 = vmul.f32 %v2176, %v2892
      %vm2894 = vcmp.eq.f32.partialorder %v2176, inf
      %v2895 = vsel %vm2894, %v2176, %v2893
      %vm2896 = vcmp.eq.f32.partialorder %v2176, 0.0
      %v2897 = vand.u32 %v2176, 2147483648
      %v2898 = vsel %vm2896, %v2897, %v2895
      %v2899 = vrsqrt.pop %v2177
      %v2900 = vmul.f32 %v2899, %v2177
      %v2901 = vmul.f32 %v2900, %v2899
      %v2902 = vmul.f32 0.5, %v2901
      %v2903 = vsub.f32 1.5, %v2902
      %v2904 = vmul.f32 %v2899, %v2903
      %v2905 = vmul.f32 %v2177, %v2904
      %vm2906 = vcmp.eq.f32.partialorder %v2177, inf
      %v2907 = vsel %vm2906, %v2177, %v2905
      %vm2908 = vcmp.eq.f32.partialorder %v2177, 0.0
      %v2909 = vand.u32 %v2177, 2147483648
      %v2910 = vsel %vm2908, %v2909, %v2907
      %v2911 = vrsqrt.pop %v2178
      %v2912 = vmul.f32 %v2911, %v2178
      %v2913 = vmul.f32 %v2912, %v2911
      %v2914 = vmul.f32 0.5, %v2913
      %v2915 = vsub.f32 1.5, %v2914
      %v2916 = vmul.f32 %v2911, %v2915
      %v2917 = vmul.f32 %v2178, %v2916
      %vm2918 = vcmp.eq.f32.partialorder %v2178, inf
      %v2919 = vsel %vm2918, %v2178, %v2917
      %vm2920 = vcmp.eq.f32.partialorder %v2178, 0.0
      %v2921 = vand.u32 %v2178, 2147483648
      %v2922 = vsel %vm2920, %v2921, %v2919
      %v2923 = vrsqrt.pop %v2179
      %v2924 = vmul.f32 %v2923, %v2179
      %v2925 = vmul.f32 %v2924, %v2923
      %v2926 = vmul.f32 0.5, %v2925
      %v2927 = vsub.f32 1.5, %v2926
      %v2928 = vmul.f32 %v2923, %v2927
      %v2929 = vmul.f32 %v2179, %v2928
      %vm2930 = vcmp.eq.f32.partialorder %v2179, inf
      %v2931 = vsel %vm2930, %v2179, %v2929
      %vm2932 = vcmp.eq.f32.partialorder %v2179, 0.0
      %v2933 = vand.u32 %v2179, 2147483648
      %v2934 = vsel %vm2932, %v2933, %v2931
      %v2935 = vrsqrt.pop %v2180
      %v2936 = vmul.f32 %v2935, %v2180
      %v2937 = vmul.f32 %v2936, %v2935
      %v2938 = vmul.f32 0.5, %v2937
      %v2939 = vsub.f32 1.5, %v2938
      %v2940 = vmul.f32 %v2935, %v2939
      %v2941 = vmul.f32 %v2180, %v2940
      %vm2942 = vcmp.eq.f32.partialorder %v2180, inf
      %v2943 = vsel %vm2942, %v2180, %v2941
      %vm2944 = vcmp.eq.f32.partialorder %v2180, 0.0
      %v2945 = vand.u32 %v2180, 2147483648
      %v2946 = vsel %vm2944, %v2945, %v2943
      %v2947 = vrsqrt.pop %v2181
      %v2948 = vmul.f32 %v2947, %v2181
      %v2949 = vmul.f32 %v2948, %v2947
      %v2950 = vmul.f32 0.5, %v2949
      %v2951 = vsub.f32 1.5, %v2950
      %v2952 = vmul.f32 %v2947, %v2951
      %v2953 = vmul.f32 %v2181, %v2952
      %vm2954 = vcmp.eq.f32.partialorder %v2181, inf
      %v2955 = vsel %vm2954, %v2181, %v2953
      %vm2956 = vcmp.eq.f32.partialorder %v2181, 0.0
      %v2957 = vand.u32 %v2181, 2147483648
      %v2958 = vsel %vm2956, %v2957, %v2955
      %v2959 = vrsqrt.pop %v2182
      %v2960 = vmul.f32 %v2959, %v2182
      %v2961 = vmul.f32 %v2960, %v2959
      %v2962 = vmul.f32 0.5, %v2961
      %v2963 = vsub.f32 1.5, %v2962
      %v2964 = vmul.f32 %v2959, %v2963
      %v2965 = vmul.f32 %v2182, %v2964
      %vm2966 = vcmp.eq.f32.partialorder %v2182, inf
      %v2967 = vsel %vm2966, %v2182, %v2965
      %vm2968 = vcmp.eq.f32.partialorder %v2182, 0.0
      %v2969 = vand.u32 %v2182, 2147483648
      %v2970 = vsel %vm2968, %v2969, %v2967
      %v2971 = vrsqrt.pop %v2183
      %v2972 = vmul.f32 %v2971, %v2183
      %v2973 = vmul.f32 %v2972, %v2971
      %v2974 = vmul.f32 0.5, %v2973
      %v2975 = vsub.f32 1.5, %v2974
      %v2976 = vmul.f32 %v2971, %v2975
      %v2977 = vmul.f32 %v2183, %v2976
      %vm2978 = vcmp.eq.f32.partialorder %v2183, inf
      %v2979 = vsel %vm2978, %v2183, %v2977
      %vm2980 = vcmp.eq.f32.partialorder %v2183, 0.0
      %v2981 = vand.u32 %v2183, 2147483648
      %v2982 = vsel %vm2980, %v2981, %v2979
      %v2983 = vrsqrt.pop %v2184
      %v2984 = vmul.f32 %v2983, %v2184
      %v2985 = vmul.f32 %v2984, %v2983
      %v2986 = vmul.f32 0.5, %v2985
      %v2987 = vsub.f32 1.5, %v2986
      %v2988 = vmul.f32 %v2983, %v2987
      %v2989 = vmul.f32 %v2184, %v2988
      %vm2990 = vcmp.eq.f32.partialorder %v2184, inf
      %v2991 = vsel %vm2990, %v2184, %v2989
      %vm2992 = vcmp.eq.f32.partialorder %v2184, 0.0
      %v2993 = vand.u32 %v2184, 2147483648
      %v2994 = vsel %vm2992, %v2993, %v2991
      %v2995 = vrsqrt.pop %v2185
      %v2996 = vmul.f32 %v2995, %v2185
      %v2997 = vmul.f32 %v2996, %v2995
      %v2998 = vmul.f32 0.5, %v2997
      %v2999 = vsub.f32 1.5, %v2998
      %v3000 = vmul.f32 %v2995, %v2999
      %v3001 = vmul.f32 %v2185, %v3000
      %vm3002 = vcmp.eq.f32.partialorder %v2185, inf
      %v3003 = vsel %vm3002, %v2185, %v3001
      %vm3004 = vcmp.eq.f32.partialorder %v2185, 0.0
      %v3005 = vand.u32 %v2185, 2147483648
      %v3006 = vsel %vm3004, %v3005, %v3003
      %v3007 = vrsqrt.pop %v2186
      %v3008 = vmul.f32 %v3007, %v2186
      %v3009 = vmul.f32 %v3008, %v3007
      %v3010 = vmul.f32 0.5, %v3009
      %v3011 = vsub.f32 1.5, %v3010
      %v3012 = vmul.f32 %v3007, %v3011
      %v3013 = vmul.f32 %v2186, %v3012
      %vm3014 = vcmp.eq.f32.partialorder %v2186, inf
      %v3015 = vsel %vm3014, %v2186, %v3013
      %vm3016 = vcmp.eq.f32.partialorder %v2186, 0.0
      %v3017 = vand.u32 %v2186, 2147483648
      %v3018 = vsel %vm3016, %v3017, %v3015
      %v3019 = vrsqrt.pop %v2187
      %v3020 = vmul.f32 %v3019, %v2187
      %v3021 = vmul.f32 %v3020, %v3019
      %v3022 = vmul.f32 0.5, %v3021
      %v3023 = vsub.f32 1.5, %v3022
      %v3024 = vmul.f32 %v3019, %v3023
      %v3025 = vmul.f32 %v2187, %v3024
      %vm3026 = vcmp.eq.f32.partialorder %v2187, inf
      %v3027 = vsel %vm3026, %v2187, %v3025
      %vm3028 = vcmp.eq.f32.partialorder %v2187, 0.0
      %v3029 = vand.u32 %v2187, 2147483648
      %v3030 = vsel %vm3028, %v3029, %v3027
      %v3031 = vrsqrt.pop %v2188
      %v3032 = vmul.f32 %v3031, %v2188
      %v3033 = vmul.f32 %v3032, %v3031
      %v3034 = vmul.f32 0.5, %v3033
      %v3035 = vsub.f32 1.5, %v3034
      %v3036 = vmul.f32 %v3031, %v3035
      %v3037 = vmul.f32 %v2188, %v3036
      %vm3038 = vcmp.eq.f32.partialorder %v2188, inf
      %v3039 = vsel %vm3038, %v2188, %v3037
      %vm3040 = vcmp.eq.f32.partialorder %v2188, 0.0
      %v3041 = vand.u32 %v2188, 2147483648
      %v3042 = vsel %vm3040, %v3041, %v3039
      %v3043 = vrsqrt.pop %v2189
      %v3044 = vmul.f32 %v3043, %v2189
      %v3045 = vmul.f32 %v3044, %v3043
      %v3046 = vmul.f32 0.5, %v3045
      %v3047 = vsub.f32 1.5, %v3046
      %v3048 = vmul.f32 %v3043, %v3047
      %v3049 = vmul.f32 %v2189, %v3048
      %vm3050 = vcmp.eq.f32.partialorder %v2189, inf
      %v3051 = vsel %vm3050, %v2189, %v3049
      %vm3052 = vcmp.eq.f32.partialorder %v2189, 0.0
      %v3053 = vand.u32 %v2189, 2147483648
      %v3054 = vsel %vm3052, %v3053, %v3051
      %v3055 = vrsqrt.pop %v2190
      %v3056 = vmul.f32 %v3055, %v2190
      %v3057 = vmul.f32 %v3056, %v3055
      %v3058 = vmul.f32 0.5, %v3057
      %v3059 = vsub.f32 1.5, %v3058
      %v3060 = vmul.f32 %v3055, %v3059
      %v3061 = vmul.f32 %v2190, %v3060
      %vm3062 = vcmp.eq.f32.partialorder %v2190, inf
      %v3063 = vsel %vm3062, %v2190, %v3061
      %vm3064 = vcmp.eq.f32.partialorder %v2190, 0.0
      %v3065 = vand.u32 %v2190, 2147483648
      %v3066 = vsel %vm3064, %v3065, %v3063
      %v3067 = vrsqrt.pop %v2191
      %v3068 = vmul.f32 %v3067, %v2191
      %v3069 = vmul.f32 %v3068, %v3067
      %v3070 = vmul.f32 0.5, %v3069
      %v3071 = vsub.f32 1.5, %v3070
      %v3072 = vmul.f32 %v3067, %v3071
      %v3073 = vmul.f32 %v2191, %v3072
      %vm3074 = vcmp.eq.f32.partialorder %v2191, inf
      %v3075 = vsel %vm3074, %v2191, %v3073
      %vm3076 = vcmp.eq.f32.partialorder %v2191, 0.0
      %v3077 = vand.u32 %v2191, 2147483648
      %v3078 = vsel %vm3076, %v3077, %v3075
      %v3079 = vrsqrt.pop %v2192
      %v3080 = vmul.f32 %v3079, %v2192
      %v3081 = vmul.f32 %v3080, %v3079
      %v3082 = vmul.f32 0.5, %v3081
      %v3083 = vsub.f32 1.5, %v3082
      %v3084 = vmul.f32 %v3079, %v3083
      %v3085 = vmul.f32 %v2192, %v3084
      %vm3086 = vcmp.eq.f32.partialorder %v2192, inf
      %v3087 = vsel %vm3086, %v2192, %v3085
      %vm3088 = vcmp.eq.f32.partialorder %v2192, 0.0
      %v3089 = vand.u32 %v2192, 2147483648
      %v3090 = vsel %vm3088, %v3089, %v3087
      %v3091 = vrsqrt.pop %v2193
      %v3092 = vmul.f32 %v3091, %v2193
      %v3093 = vmul.f32 %v3092, %v3091
      %v3094 = vmul.f32 0.5, %v3093
      %v3095 = vsub.f32 1.5, %v3094
      %v3096 = vmul.f32 %v3091, %v3095
      %v3097 = vmul.f32 %v2193, %v3096
      %vm3098 = vcmp.eq.f32.partialorder %v2193, inf
      %v3099 = vsel %vm3098, %v2193, %v3097
      %vm3100 = vcmp.eq.f32.partialorder %v2193, 0.0
      %v3101 = vand.u32 %v2193, 2147483648
      %v3102 = vsel %vm3100, %v3101, %v3099
      %v3103 = vrsqrt.pop %v2194
      %v3104 = vmul.f32 %v3103, %v2194
      %v3105 = vmul.f32 %v3104, %v3103
      %v3106 = vmul.f32 0.5, %v3105
      %v3107 = vsub.f32 1.5, %v3106
      %v3108 = vmul.f32 %v3103, %v3107
      %v3109 = vmul.f32 %v2194, %v3108
      %vm3110 = vcmp.eq.f32.partialorder %v2194, inf
      %v3111 = vsel %vm3110, %v2194, %v3109
      %vm3112 = vcmp.eq.f32.partialorder %v2194, 0.0
      %v3113 = vand.u32 %v2194, 2147483648
      %v3114 = vsel %vm3112, %v3113, %v3111
      %v3115 = vrsqrt.pop %v2195
      %v3116 = vmul.f32 %v3115, %v2195
      %v3117 = vmul.f32 %v3116, %v3115
      %v3118 = vmul.f32 0.5, %v3117
      %v3119 = vsub.f32 1.5, %v3118
      %v3120 = vmul.f32 %v3115, %v3119
      %v3121 = vmul.f32 %v2195, %v3120
      %vm3122 = vcmp.eq.f32.partialorder %v2195, inf
      %v3123 = vsel %vm3122, %v2195, %v3121
      %vm3124 = vcmp.eq.f32.partialorder %v2195, 0.0
      %v3125 = vand.u32 %v2195, 2147483648
      %v3126 = vsel %vm3124, %v3125, %v3123
      %v3127 = vrsqrt.pop %v2196
      %v3128 = vmul.f32 %v3127, %v2196
      %v3129 = vmul.f32 %v3128, %v3127
      %v3130 = vmul.f32 0.5, %v3129
      %v3131 = vsub.f32 1.5, %v3130
      %v3132 = vmul.f32 %v3127, %v3131
      %v3133 = vmul.f32 %v2196, %v3132
      %vm3134 = vcmp.eq.f32.partialorder %v2196, inf
      %v3135 = vsel %vm3134, %v2196, %v3133
      %vm3136 = vcmp.eq.f32.partialorder %v2196, 0.0
      %v3137 = vand.u32 %v2196, 2147483648
      %v3138 = vsel %vm3136, %v3137, %v3135
      %v3139 = vrsqrt.pop %v2197
      %v3140 = vmul.f32 %v3139, %v2197
      %v3141 = vmul.f32 %v3140, %v3139
      %v3142 = vmul.f32 0.5, %v3141
      %v3143 = vsub.f32 1.5, %v3142
      %v3144 = vmul.f32 %v3139, %v3143
      %v3145 = vmul.f32 %v2197, %v3144
      %vm3146 = vcmp.eq.f32.partialorder %v2197, inf
      %v3147 = vsel %vm3146, %v2197, %v3145
      %vm3148 = vcmp.eq.f32.partialorder %v2197, 0.0
      %v3149 = vand.u32 %v2197, 2147483648
      %v3150 = vsel %vm3148, %v3149, %v3147
      %v3151 = vrsqrt.pop %v2198
      %v3152 = vmul.f32 %v3151, %v2198
      %v3153 = vmul.f32 %v3152, %v3151
      %v3154 = vmul.f32 0.5, %v3153
      %v3155 = vsub.f32 1.5, %v3154
      %v3156 = vmul.f32 %v3151, %v3155
      %v3157 = vmul.f32 %v2198, %v3156
      %vm3158 = vcmp.eq.f32.partialorder %v2198, inf
      %v3159 = vsel %vm3158, %v2198, %v3157
      %vm3160 = vcmp.eq.f32.partialorder %v2198, 0.0
      %v3161 = vand.u32 %v2198, 2147483648
      %v3162 = vsel %vm3160, %v3161, %v3159
      %v3163 = vrsqrt.pop %v2199
      %v3164 = vmul.f32 %v3163, %v2199
      %v3165 = vmul.f32 %v3164, %v3163
      %v3166 = vmul.f32 0.5, %v3165
      %v3167 = vsub.f32 1.5, %v3166
      %v3168 = vmul.f32 %v3163, %v3167
      %v3169 = vmul.f32 %v2199, %v3168
      %vm3170 = vcmp.eq.f32.partialorder %v2199, inf
      %v3171 = vsel %vm3170, %v2199, %v3169
      %vm3172 = vcmp.eq.f32.partialorder %v2199, 0.0
      %v3173 = vand.u32 %v2199, 2147483648
      %v3174 = vsel %vm3172, %v3173, %v3171
      %v3175 = vrsqrt.pop %v2200
      %v3176 = vmul.f32 %v3175, %v2200
      %v3177 = vmul.f32 %v3176, %v3175
      %v3178 = vmul.f32 0.5, %v3177
      %v3179 = vsub.f32 1.5, %v3178
      %v3180 = vmul.f32 %v3175, %v3179
      %v3181 = vmul.f32 %v2200, %v3180
      %vm3182 = vcmp.eq.f32.partialorder %v2200, inf
      %v3183 = vsel %vm3182, %v2200, %v3181
      %vm3184 = vcmp.eq.f32.partialorder %v2200, 0.0
      %v3185 = vand.u32 %v2200, 2147483648
      %v3186 = vsel %vm3184, %v3185, %v3183
      %v3187 = vrsqrt.pop %v2201
      %v3188 = vmul.f32 %v3187, %v2201
      %v3189 = vmul.f32 %v3188, %v3187
      %v3190 = vmul.f32 0.5, %v3189
      %v3191 = vsub.f32 1.5, %v3190
      %v3192 = vmul.f32 %v3187, %v3191
      %v3193 = vmul.f32 %v2201, %v3192
      %vm3194 = vcmp.eq.f32.partialorder %v2201, inf
      %v3195 = vsel %vm3194, %v2201, %v3193
      %vm3196 = vcmp.eq.f32.partialorder %v2201, 0.0
      %v3197 = vand.u32 %v2201, 2147483648
      %v3198 = vsel %vm3196, %v3197, %v3195
      %v3199 = vrsqrt.pop %v2202
      %v3200 = vmul.f32 %v3199, %v2202
      %v3201 = vmul.f32 %v3200, %v3199
      %v3202 = vmul.f32 0.5, %v3201
      %v3203 = vsub.f32 1.5, %v3202
      %v3204 = vmul.f32 %v3199, %v3203
      %v3205 = vmul.f32 %v2202, %v3204
      %vm3206 = vcmp.eq.f32.partialorder %v2202, inf
      %v3207 = vsel %vm3206, %v2202, %v3205
      %vm3208 = vcmp.eq.f32.partialorder %v2202, 0.0
      %v3209 = vand.u32 %v2202, 2147483648
      %v3210 = vsel %vm3208, %v3209, %v3207
      %v3211 = vrsqrt.pop %v2203
      %v3212 = vmul.f32 %v3211, %v2203
      %v3213 = vmul.f32 %v3212, %v3211
      %v3214 = vmul.f32 0.5, %v3213
      %v3215 = vsub.f32 1.5, %v3214
      %v3216 = vmul.f32 %v3211, %v3215
      %v3217 = vmul.f32 %v2203, %v3216
      %vm3218 = vcmp.eq.f32.partialorder %v2203, inf
      %v3219 = vsel %vm3218, %v2203, %v3217
      %vm3220 = vcmp.eq.f32.partialorder %v2203, 0.0
      %v3221 = vand.u32 %v2203, 2147483648
      %v3222 = vsel %vm3220, %v3221, %v3219
      %v3223 = vrsqrt.pop %v2204
      %v3224 = vmul.f32 %v3223, %v2204
      %v3225 = vmul.f32 %v3224, %v3223
      %v3226 = vmul.f32 0.5, %v3225
      %v3227 = vsub.f32 1.5, %v3226
      %v3228 = vmul.f32 %v3223, %v3227
      %v3229 = vmul.f32 %v2204, %v3228
      %vm3230 = vcmp.eq.f32.partialorder %v2204, inf
      %v3231 = vsel %vm3230, %v2204, %v3229
      %vm3232 = vcmp.eq.f32.partialorder %v2204, 0.0
      %v3233 = vand.u32 %v2204, 2147483648
      %v3234 = vsel %vm3232, %v3233, %v3231
      %v3235 = vrsqrt.pop %v2205
      %v3236 = vmul.f32 %v3235, %v2205
      %v3237 = vmul.f32 %v3236, %v3235
      %v3238 = vmul.f32 0.5, %v3237
      %v3239 = vsub.f32 1.5, %v3238
      %v3240 = vmul.f32 %v3235, %v3239
      %v3241 = vmul.f32 %v2205, %v3240
      %vm3242 = vcmp.eq.f32.partialorder %v2205, inf
      %v3243 = vsel %vm3242, %v2205, %v3241
      %vm3244 = vcmp.eq.f32.partialorder %v2205, 0.0
      %v3245 = vand.u32 %v2205, 2147483648
      %v3246 = vsel %vm3244, %v3245, %v3243
      %v3247 = vrsqrt.pop %v2206
      %v3248 = vmul.f32 %v3247, %v2206
      %v3249 = vmul.f32 %v3248, %v3247
      %v3250 = vmul.f32 0.5, %v3249
      %v3251 = vsub.f32 1.5, %v3250
      %v3252 = vmul.f32 %v3247, %v3251
      %v3253 = vmul.f32 %v2206, %v3252
      %vm3254 = vcmp.eq.f32.partialorder %v2206, inf
      %v3255 = vsel %vm3254, %v2206, %v3253
      %vm3256 = vcmp.eq.f32.partialorder %v2206, 0.0
      %v3257 = vand.u32 %v2206, 2147483648
      %v3258 = vsel %vm3256, %v3257, %v3255
      %v3259 = vrsqrt.pop %v2207
      %v3260 = vmul.f32 %v3259, %v2207
      %v3261 = vmul.f32 %v3260, %v3259
      %v3262 = vmul.f32 0.5, %v3261
      %v3263 = vsub.f32 1.5, %v3262
      %v3264 = vmul.f32 %v3259, %v3263
      %v3265 = vmul.f32 %v2207, %v3264
      %vm3266 = vcmp.eq.f32.partialorder %v2207, inf
      %v3267 = vsel %vm3266, %v2207, %v3265
      %vm3268 = vcmp.eq.f32.partialorder %v2207, 0.0
      %v3269 = vand.u32 %v2207, 2147483648
      %v3270 = vsel %vm3268, %v3269, %v3267
      %v3271 = vrsqrt.pop %v2208
      %v3272 = vmul.f32 %v3271, %v2208
      %v3273 = vmul.f32 %v3272, %v3271
      %v3274 = vmul.f32 0.5, %v3273
      %v3275 = vsub.f32 1.5, %v3274
      %v3276 = vmul.f32 %v3271, %v3275
      %v3277 = vmul.f32 %v2208, %v3276
      %vm3278 = vcmp.eq.f32.partialorder %v2208, inf
      %v3279 = vsel %vm3278, %v2208, %v3277
      %vm3280 = vcmp.eq.f32.partialorder %v2208, 0.0
      %v3281 = vand.u32 %v2208, 2147483648
      %v3282 = vsel %vm3280, %v3281, %v3279
      %v3283 = vrsqrt.pop %v2209
      %v3284 = vmul.f32 %v3283, %v2209
      %v3285 = vmul.f32 %v3284, %v3283
      %v3286 = vmul.f32 0.5, %v3285
      %v3287 = vsub.f32 1.5, %v3286
      %v3288 = vmul.f32 %v3283, %v3287
      %v3289 = vmul.f32 %v2209, %v3288
      %vm3290 = vcmp.eq.f32.partialorder %v2209, inf
      %v3291 = vsel %vm3290, %v2209, %v3289
      %vm3292 = vcmp.eq.f32.partialorder %v2209, 0.0
      %v3293 = vand.u32 %v2209, 2147483648
      %v3294 = vsel %vm3292, %v3293, %v3291
      %v3295 = vrsqrt.pop %v2210
      %v3296 = vmul.f32 %v3295, %v2210
      %v3297 = vmul.f32 %v3296, %v3295
      %v3298 = vmul.f32 0.5, %v3297
      %v3299 = vsub.f32 1.5, %v3298
      %v3300 = vmul.f32 %v3295, %v3299
      %v3301 = vmul.f32 %v2210, %v3300
      %vm3302 = vcmp.eq.f32.partialorder %v2210, inf
      %v3303 = vsel %vm3302, %v2210, %v3301
      %vm3304 = vcmp.eq.f32.partialorder %v2210, 0.0
      %v3305 = vand.u32 %v2210, 2147483648
      %v3306 = vsel %vm3304, %v3305, %v3303
      %v3307 = vrsqrt.pop %v2211
      %v3308 = vmul.f32 %v3307, %v2211
      %v3309 = vmul.f32 %v3308, %v3307
      %v3310 = vmul.f32 0.5, %v3309
      %v3311 = vsub.f32 1.5, %v3310
      %v3312 = vmul.f32 %v3307, %v3311
      %v3313 = vmul.f32 %v2211, %v3312
      %vm3314 = vcmp.eq.f32.partialorder %v2211, inf
      %v3315 = vsel %vm3314, %v2211, %v3313
      %vm3316 = vcmp.eq.f32.partialorder %v2211, 0.0
      %v3317 = vand.u32 %v2211, 2147483648
      %v3318 = vsel %vm3316, %v3317, %v3315
      %v3319 = vrsqrt.pop %v2212
      %v3320 = vmul.f32 %v3319, %v2212
      %v3321 = vmul.f32 %v3320, %v3319
      %v3322 = vmul.f32 0.5, %v3321
      %v3323 = vsub.f32 1.5, %v3322
      %v3324 = vmul.f32 %v3319, %v3323
      %v3325 = vmul.f32 %v2212, %v3324
      %vm3326 = vcmp.eq.f32.partialorder %v2212, inf
      %v3327 = vsel %vm3326, %v2212, %v3325
      %vm3328 = vcmp.eq.f32.partialorder %v2212, 0.0
      %v3329 = vand.u32 %v2212, 2147483648
      %v3330 = vsel %vm3328, %v3329, %v3327
      %v3331 = vrsqrt.pop %v2213
      %v3332 = vmul.f32 %v3331, %v2213
      %v3333 = vmul.f32 %v3332, %v3331
      %v3334 = vmul.f32 0.5, %v3333
      %v3335 = vsub.f32 1.5, %v3334
      %v3336 = vmul.f32 %v3331, %v3335
      %v3337 = vmul.f32 %v2213, %v3336
      %vm3338 = vcmp.eq.f32.partialorder %v2213, inf
      %v3339 = vsel %vm3338, %v2213, %v3337
      %vm3340 = vcmp.eq.f32.partialorder %v2213, 0.0
      %v3341 = vand.u32 %v2213, 2147483648
      %v3342 = vsel %vm3340, %v3341, %v3339
      %v3343 = vrsqrt.pop %v2214
      %v3344 = vmul.f32 %v3343, %v2214
      %v3345 = vmul.f32 %v3344, %v3343
      %v3346 = vmul.f32 0.5, %v3345
      %v3347 = vsub.f32 1.5, %v3346
      %v3348 = vmul.f32 %v3343, %v3347
      %v3349 = vmul.f32 %v2214, %v3348
      %vm3350 = vcmp.eq.f32.partialorder %v2214, inf
      %v3351 = vsel %vm3350, %v2214, %v3349
      %vm3352 = vcmp.eq.f32.partialorder %v2214, 0.0
      %v3353 = vand.u32 %v2214, 2147483648
      %v3354 = vsel %vm3352, %v3353, %v3351
      %v3355 = vrsqrt.pop %v2215
      %v3356 = vmul.f32 %v3355, %v2215
      %v3357 = vmul.f32 %v3356, %v3355
      %v3358 = vmul.f32 0.5, %v3357
      %v3359 = vsub.f32 1.5, %v3358
      %v3360 = vmul.f32 %v3355, %v3359
      %v3361 = vmul.f32 %v2215, %v3360
      %vm3362 = vcmp.eq.f32.partialorder %v2215, inf
      %v3363 = vsel %vm3362, %v2215, %v3361
      %vm3364 = vcmp.eq.f32.partialorder %v2215, 0.0
      %v3365 = vand.u32 %v2215, 2147483648
      %v3366 = vsel %vm3364, %v3365, %v3363
      %v3367 = vrsqrt.pop %v2216
      %v3368 = vmul.f32 %v3367, %v2216
      %v3369 = vmul.f32 %v3368, %v3367
      %v3370 = vmul.f32 0.5, %v3369
      %v3371 = vsub.f32 1.5, %v3370
      %v3372 = vmul.f32 %v3367, %v3371
      %v3373 = vmul.f32 %v2216, %v3372
      %vm3374 = vcmp.eq.f32.partialorder %v2216, inf
      %v3375 = vsel %vm3374, %v2216, %v3373
      %vm3376 = vcmp.eq.f32.partialorder %v2216, 0.0
      %v3377 = vand.u32 %v2216, 2147483648
      %v3378 = vsel %vm3376, %v3377, %v3375
      %v3379 = vrsqrt.pop %v2217
      %v3380 = vmul.f32 %v3379, %v2217
      %v3381 = vmul.f32 %v3380, %v3379
      %v3382 = vmul.f32 0.5, %v3381
      %v3383 = vsub.f32 1.5, %v3382
      %v3384 = vmul.f32 %v3379, %v3383
      %v3385 = vmul.f32 %v2217, %v3384
      %vm3386 = vcmp.eq.f32.partialorder %v2217, inf
      %v3387 = vsel %vm3386, %v2217, %v3385
      %vm3388 = vcmp.eq.f32.partialorder %v2217, 0.0
      %v3389 = vand.u32 %v2217, 2147483648
      %v3390 = vsel %vm3388, %v3389, %v3387
      %v3391 = vrsqrt.pop %v2218
      %v3392 = vmul.f32 %v3391, %v2218
      %v3393 = vmul.f32 %v3392, %v3391
      %v3394 = vmul.f32 0.5, %v3393
      %v3395 = vsub.f32 1.5, %v3394
      %v3396 = vmul.f32 %v3391, %v3395
      %v3397 = vmul.f32 %v2218, %v3396
      %vm3398 = vcmp.eq.f32.partialorder %v2218, inf
      %v3399 = vsel %vm3398, %v2218, %v3397
      %vm3400 = vcmp.eq.f32.partialorder %v2218, 0.0
      %v3401 = vand.u32 %v2218, 2147483648
      %v3402 = vsel %vm3400, %v3401, %v3399
      %v3403 = vrsqrt.pop %v2219
      %v3404 = vmul.f32 %v3403, %v2219
      %v3405 = vmul.f32 %v3404, %v3403
      %v3406 = vmul.f32 0.5, %v3405
      %v3407 = vsub.f32 1.5, %v3406
      %v3408 = vmul.f32 %v3403, %v3407
      %v3409 = vmul.f32 %v2219, %v3408
      %vm3410 = vcmp.eq.f32.partialorder %v2219, inf
      %v3411 = vsel %vm3410, %v2219, %v3409
      %vm3412 = vcmp.eq.f32.partialorder %v2219, 0.0
      %v3413 = vand.u32 %v2219, 2147483648
      %v3414 = vsel %vm3412, %v3413, %v3411
      %v3415 = vrsqrt.pop %v2220
      %v3416 = vmul.f32 %v3415, %v2220
      %v3417 = vmul.f32 %v3416, %v3415
      %v3418 = vmul.f32 0.5, %v3417
      %v3419 = vsub.f32 1.5, %v3418
      %v3420 = vmul.f32 %v3415, %v3419
      %v3421 = vmul.f32 %v2220, %v3420
      %vm3422 = vcmp.eq.f32.partialorder %v2220, inf
      %v3423 = vsel %vm3422, %v2220, %v3421
      %vm3424 = vcmp.eq.f32.partialorder %v2220, 0.0
      %v3425 = vand.u32 %v2220, 2147483648
      %v3426 = vsel %vm3424, %v3425, %v3423
      %v3427 = vrsqrt.pop %v2221
      %v3428 = vmul.f32 %v3427, %v2221
      %v3429 = vmul.f32 %v3428, %v3427
      %v3430 = vmul.f32 0.5, %v3429
      %v3431 = vsub.f32 1.5, %v3430
      %v3432 = vmul.f32 %v3427, %v3431
      %v3433 = vmul.f32 %v2221, %v3432
      %vm3434 = vcmp.eq.f32.partialorder %v2221, inf
      %v3435 = vsel %vm3434, %v2221, %v3433
      %vm3436 = vcmp.eq.f32.partialorder %v2221, 0.0
      %v3437 = vand.u32 %v2221, 2147483648
      %v3438 = vsel %vm3436, %v3437, %v3435
      %v3439 = vrsqrt.pop %v2222
      %v3440 = vmul.f32 %v3439, %v2222
      %v3441 = vmul.f32 %v3440, %v3439
      %v3442 = vmul.f32 0.5, %v3441
      %v3443 = vsub.f32 1.5, %v3442
      %v3444 = vmul.f32 %v3439, %v3443
      %v3445 = vmul.f32 %v2222, %v3444
      %vm3446 = vcmp.eq.f32.partialorder %v2222, inf
      %v3447 = vsel %vm3446, %v2222, %v3445
      %vm3448 = vcmp.eq.f32.partialorder %v2222, 0.0
      %v3449 = vand.u32 %v2222, 2147483648
      %v3450 = vsel %vm3448, %v3449, %v3447
      %v3451 = vrsqrt.pop %v2223
      %v3452 = vmul.f32 %v3451, %v2223
      %v3453 = vmul.f32 %v3452, %v3451
      %v3454 = vmul.f32 0.5, %v3453
      %v3455 = vsub.f32 1.5, %v3454
      %v3456 = vmul.f32 %v3451, %v3455
      %v3457 = vmul.f32 %v2223, %v3456
      %vm3458 = vcmp.eq.f32.partialorder %v2223, inf
      %v3459 = vsel %vm3458, %v2223, %v3457
      %vm3460 = vcmp.eq.f32.partialorder %v2223, 0.0
      %v3461 = vand.u32 %v2223, 2147483648
      %v3462 = vsel %vm3460, %v3461, %v3459
      %v3463 = vrsqrt.pop %v2224
      %v3464 = vmul.f32 %v3463, %v2224
      %v3465 = vmul.f32 %v3464, %v3463
      %v3466 = vmul.f32 0.5, %v3465
      %v3467 = vsub.f32 1.5, %v3466
      %v3468 = vmul.f32 %v3463, %v3467
      %v3469 = vmul.f32 %v2224, %v3468
      %vm3470 = vcmp.eq.f32.partialorder %v2224, inf
      %v3471 = vsel %vm3470, %v2224, %v3469
      %vm3472 = vcmp.eq.f32.partialorder %v2224, 0.0
      %v3473 = vand.u32 %v2224, 2147483648
      %v3474 = vsel %vm3472, %v3473, %v3471
      %v3475 = vrsqrt.pop %v2225
      %v3476 = vmul.f32 %v3475, %v2225
      %v3477 = vmul.f32 %v3476, %v3475
      %v3478 = vmul.f32 0.5, %v3477
      %v3479 = vsub.f32 1.5, %v3478
      %v3480 = vmul.f32 %v3475, %v3479
      %v3481 = vmul.f32 %v2225, %v3480
      %vm3482 = vcmp.eq.f32.partialorder %v2225, inf
      %v3483 = vsel %vm3482, %v2225, %v3481
      %vm3484 = vcmp.eq.f32.partialorder %v2225, 0.0
      %v3485 = vand.u32 %v2225, 2147483648
      %v3486 = vsel %vm3484, %v3485, %v3483
      %v3487 = vrsqrt.pop %v2226
      %v3488 = vmul.f32 %v3487, %v2226
      %v3489 = vmul.f32 %v3488, %v3487
      %v3490 = vmul.f32 0.5, %v3489
      %v3491 = vsub.f32 1.5, %v3490
      %v3492 = vmul.f32 %v3487, %v3491
      %v3493 = vmul.f32 %v2226, %v3492
      %vm3494 = vcmp.eq.f32.partialorder %v2226, inf
      %v3495 = vsel %vm3494, %v2226, %v3493
      %vm3496 = vcmp.eq.f32.partialorder %v2226, 0.0
      %v3497 = vand.u32 %v2226, 2147483648
      %v3498 = vsel %vm3496, %v3497, %v3495
      %v3499 = vrsqrt.pop %v2227
      %v3500 = vmul.f32 %v3499, %v2227
      %v3501 = vmul.f32 %v3500, %v3499
      %v3502 = vmul.f32 0.5, %v3501
      %v3503 = vsub.f32 1.5, %v3502
      %v3504 = vmul.f32 %v3499, %v3503
      %v3505 = vmul.f32 %v2227, %v3504
      %vm3506 = vcmp.eq.f32.partialorder %v2227, inf
      %v3507 = vsel %vm3506, %v2227, %v3505
      %vm3508 = vcmp.eq.f32.partialorder %v2227, 0.0
      %v3509 = vand.u32 %v2227, 2147483648
      %v3510 = vsel %vm3508, %v3509, %v3507
      %v3511 = vrsqrt.pop %v2228
      %v3512 = vmul.f32 %v3511, %v2228
      %v3513 = vmul.f32 %v3512, %v3511
      %v3514 = vmul.f32 0.5, %v3513
      %v3515 = vsub.f32 1.5, %v3514
      %v3516 = vmul.f32 %v3511, %v3515
      %v3517 = vmul.f32 %v2228, %v3516
      %vm3518 = vcmp.eq.f32.partialorder %v2228, inf
      %v3519 = vsel %vm3518, %v2228, %v3517
      %vm3520 = vcmp.eq.f32.partialorder %v2228, 0.0
      %v3521 = vand.u32 %v2228, 2147483648
      %v3522 = vsel %vm3520, %v3521, %v3519
      %v3523 = vrsqrt.pop %v2229
      %v3524 = vmul.f32 %v3523, %v2229
      %v3525 = vmul.f32 %v3524, %v3523
      %v3526 = vmul.f32 0.5, %v3525
      %v3527 = vsub.f32 1.5, %v3526
      %v3528 = vmul.f32 %v3523, %v3527
      %v3529 = vmul.f32 %v2229, %v3528
      %vm3530 = vcmp.eq.f32.partialorder %v2229, inf
      %v3531 = vsel %vm3530, %v2229, %v3529
      %vm3532 = vcmp.eq.f32.partialorder %v2229, 0.0
      %v3533 = vand.u32 %v2229, 2147483648
      %v3534 = vsel %vm3532, %v3533, %v3531
      %v3535 = vrsqrt.pop %v2230
      %v3536 = vmul.f32 %v3535, %v2230
      %v3537 = vmul.f32 %v3536, %v3535
      %v3538 = vmul.f32 0.5, %v3537
      %v3539 = vsub.f32 1.5, %v3538
      %v3540 = vmul.f32 %v3535, %v3539
      %v3541 = vmul.f32 %v2230, %v3540
      %vm3542 = vcmp.eq.f32.partialorder %v2230, inf
      %v3543 = vsel %vm3542, %v2230, %v3541
      %vm3544 = vcmp.eq.f32.partialorder %v2230, 0.0
      %v3545 = vand.u32 %v2230, 2147483648
      %v3546 = vsel %vm3544, %v3545, %v3543
      %v3547 = vrsqrt.pop %v2231
      %v3548 = vmul.f32 %v3547, %v2231
      %v3549 = vmul.f32 %v3548, %v3547
      %v3550 = vmul.f32 0.5, %v3549
      %v3551 = vsub.f32 1.5, %v3550
      %v3552 = vmul.f32 %v3547, %v3551
      %v3553 = vmul.f32 %v2231, %v3552
      %vm3554 = vcmp.eq.f32.partialorder %v2231, inf
      %v3555 = vsel %vm3554, %v2231, %v3553
      %vm3556 = vcmp.eq.f32.partialorder %v2231, 0.0
      %v3557 = vand.u32 %v2231, 2147483648
      %v3558 = vsel %vm3556, %v3557, %v3555
      %v3559 = vrsqrt.pop %v2232
      %v3560 = vmul.f32 %v3559, %v2232
      %v3561 = vmul.f32 %v3560, %v3559
      %v3562 = vmul.f32 0.5, %v3561
      %v3563 = vsub.f32 1.5, %v3562
      %v3564 = vmul.f32 %v3559, %v3563
      %v3565 = vmul.f32 %v2232, %v3564
      %vm3566 = vcmp.eq.f32.partialorder %v2232, inf
      %v3567 = vsel %vm3566, %v2232, %v3565
      %vm3568 = vcmp.eq.f32.partialorder %v2232, 0.0
      %v3569 = vand.u32 %v2232, 2147483648
      %v3570 = vsel %vm3568, %v3569, %v3567
      %v3571 = vrsqrt.pop %v2233
      %v3572 = vmul.f32 %v3571, %v2233
      %v3573 = vmul.f32 %v3572, %v3571
      %v3574 = vmul.f32 0.5, %v3573
      %v3575 = vsub.f32 1.5, %v3574
      %v3576 = vmul.f32 %v3571, %v3575
      %v3577 = vmul.f32 %v2233, %v3576
      %vm3578 = vcmp.eq.f32.partialorder %v2233, inf
      %v3579 = vsel %vm3578, %v2233, %v3577
      %vm3580 = vcmp.eq.f32.partialorder %v2233, 0.0
      %v3581 = vand.u32 %v2233, 2147483648
      %v3582 = vsel %vm3580, %v3581, %v3579
      %v3583 = vrsqrt.pop %v2234
      %v3584 = vmul.f32 %v3583, %v2234
      %v3585 = vmul.f32 %v3584, %v3583
      %v3586 = vmul.f32 0.5, %v3585
      %v3587 = vsub.f32 1.5, %v3586
      %v3588 = vmul.f32 %v3583, %v3587
      %v3589 = vmul.f32 %v2234, %v3588
      %vm3590 = vcmp.eq.f32.partialorder %v2234, inf
      %v3591 = vsel %vm3590, %v2234, %v3589
      %vm3592 = vcmp.eq.f32.partialorder %v2234, 0.0
      %v3593 = vand.u32 %v2234, 2147483648
      %v3594 = vsel %vm3592, %v3593, %v3591
      %v3595 = vrsqrt.pop %v2235
      %v3596 = vmul.f32 %v3595, %v2235
      %v3597 = vmul.f32 %v3596, %v3595
      %v3598 = vmul.f32 0.5, %v3597
      %v3599 = vsub.f32 1.5, %v3598
      %v3600 = vmul.f32 %v3595, %v3599
      %v3601 = vmul.f32 %v2235, %v3600
      %vm3602 = vcmp.eq.f32.partialorder %v2235, inf
      %v3603 = vsel %vm3602, %v2235, %v3601
      %vm3604 = vcmp.eq.f32.partialorder %v2235, 0.0
      %v3605 = vand.u32 %v2235, 2147483648
      %v3606 = vsel %vm3604, %v3605, %v3603
      %v3607 = vrsqrt.pop %v2236
      %v3608 = vmul.f32 %v3607, %v2236
      %v3609 = vmul.f32 %v3608, %v3607
      %v3610 = vmul.f32 0.5, %v3609
      %v3611 = vsub.f32 1.5, %v3610
      %v3612 = vmul.f32 %v3607, %v3611
      %v3613 = vmul.f32 %v2236, %v3612
      %vm3614 = vcmp.eq.f32.partialorder %v2236, inf
      %v3615 = vsel %vm3614, %v2236, %v3613
      %vm3616 = vcmp.eq.f32.partialorder %v2236, 0.0
      %v3617 = vand.u32 %v2236, 2147483648
      %v3618 = vsel %vm3616, %v3617, %v3615
      %v3619 = vrsqrt.pop %v2237
      %v3620 = vmul.f32 %v3619, %v2237
      %v3621 = vmul.f32 %v3620, %v3619
      %v3622 = vmul.f32 0.5, %v3621
      %v3623 = vsub.f32 1.5, %v3622
      %v3624 = vmul.f32 %v3619, %v3623
      %v3625 = vmul.f32 %v2237, %v3624
      %vm3626 = vcmp.eq.f32.partialorder %v2237, inf
      %v3627 = vsel %vm3626, %v2237, %v3625
      %vm3628 = vcmp.eq.f32.partialorder %v2237, 0.0
      %v3629 = vand.u32 %v2237, 2147483648
      %v3630 = vsel %vm3628, %v3629, %v3627
      %v3631 = vrsqrt.pop %v2238
      %v3632 = vmul.f32 %v3631, %v2238
      %v3633 = vmul.f32 %v3632, %v3631
      %v3634 = vmul.f32 0.5, %v3633
      %v3635 = vsub.f32 1.5, %v3634
      %v3636 = vmul.f32 %v3631, %v3635
      %v3637 = vmul.f32 %v2238, %v3636
      %vm3638 = vcmp.eq.f32.partialorder %v2238, inf
      %v3639 = vsel %vm3638, %v2238, %v3637
      %vm3640 = vcmp.eq.f32.partialorder %v2238, 0.0
      %v3641 = vand.u32 %v2238, 2147483648
      %v3642 = vsel %vm3640, %v3641, %v3639
      %v3643 = vrsqrt.pop %v2239
      %v3644 = vmul.f32 %v3643, %v2239
      %v3645 = vmul.f32 %v3644, %v3643
      %v3646 = vmul.f32 0.5, %v3645
      %v3647 = vsub.f32 1.5, %v3646
      %v3648 = vmul.f32 %v3643, %v3647
      %v3649 = vmul.f32 %v2239, %v3648
      %vm3650 = vcmp.eq.f32.partialorder %v2239, inf
      %v3651 = vsel %vm3650, %v2239, %v3649
      %vm3652 = vcmp.eq.f32.partialorder %v2239, 0.0
      %v3653 = vand.u32 %v2239, 2147483648
      %v3654 = vsel %vm3652, %v3653, %v3651
      %v3655 = vrsqrt.pop %v2240
      %v3656 = vmul.f32 %v3655, %v2240
      %v3657 = vmul.f32 %v3656, %v3655
      %v3658 = vmul.f32 0.5, %v3657
      %v3659 = vsub.f32 1.5, %v3658
      %v3660 = vmul.f32 %v3655, %v3659
      %v3661 = vmul.f32 %v2240, %v3660
      %vm3662 = vcmp.eq.f32.partialorder %v2240, inf
      %v3663 = vsel %vm3662, %v2240, %v3661
      %vm3664 = vcmp.eq.f32.partialorder %v2240, 0.0
      %v3665 = vand.u32 %v2240, 2147483648
      %v3666 = vsel %vm3664, %v3665, %v3663
      %v3667 = vrsqrt.pop %v2241
      %v3668 = vmul.f32 %v3667, %v2241
      %v3669 = vmul.f32 %v3668, %v3667
      %v3670 = vmul.f32 0.5, %v3669
      %v3671 = vsub.f32 1.5, %v3670
      %v3672 = vmul.f32 %v3667, %v3671
      %v3673 = vmul.f32 %v2241, %v3672
      %vm3674 = vcmp.eq.f32.partialorder %v2241, inf
      %v3675 = vsel %vm3674, %v2241, %v3673
      %vm3676 = vcmp.eq.f32.partialorder %v2241, 0.0
      %v3677 = vand.u32 %v2241, 2147483648
      %v3678 = vsel %vm3676, %v3677, %v3675
      %v3679 = vrsqrt.pop %v2242
      %v3680 = vmul.f32 %v3679, %v2242
      %v3681 = vmul.f32 %v3680, %v3679
      %v3682 = vmul.f32 0.5, %v3681
      %v3683 = vsub.f32 1.5, %v3682
      %v3684 = vmul.f32 %v3679, %v3683
      %v3685 = vmul.f32 %v2242, %v3684
      %vm3686 = vcmp.eq.f32.partialorder %v2242, inf
      %v3687 = vsel %vm3686, %v2242, %v3685
      %vm3688 = vcmp.eq.f32.partialorder %v2242, 0.0
      %v3689 = vand.u32 %v2242, 2147483648
      %v3690 = vsel %vm3688, %v3689, %v3687
      %v3691 = vrsqrt.pop %v2243
      %v3692 = vmul.f32 %v3691, %v2243
      %v3693 = vmul.f32 %v3692, %v3691
      %v3694 = vmul.f32 0.5, %v3693
      %v3695 = vsub.f32 1.5, %v3694
      %v3696 = vmul.f32 %v3691, %v3695
      %v3697 = vmul.f32 %v2243, %v3696
      %vm3698 = vcmp.eq.f32.partialorder %v2243, inf
      %v3699 = vsel %vm3698, %v2243, %v3697
      %vm3700 = vcmp.eq.f32.partialorder %v2243, 0.0
      %v3701 = vand.u32 %v2243, 2147483648
      %v3702 = vsel %vm3700, %v3701, %v3699
      %v3703 = vrsqrt.pop %v2244
      %v3704 = vmul.f32 %v3703, %v2244
      %v3705 = vmul.f32 %v3704, %v3703
      %v3706 = vmul.f32 0.5, %v3705
      %v3707 = vsub.f32 1.5, %v3706
      %v3708 = vmul.f32 %v3703, %v3707
      %v3709 = vmul.f32 %v2244, %v3708
      %vm3710 = vcmp.eq.f32.partialorder %v2244, inf
      %v3711 = vsel %vm3710, %v2244, %v3709
      %vm3712 = vcmp.eq.f32.partialorder %v2244, 0.0
      %v3713 = vand.u32 %v2244, 2147483648
      %v3714 = vsel %vm3712, %v3713, %v3711
      %v3715 = vrsqrt.pop %v2245
      %v3716 = vmul.f32 %v3715, %v2245
      %v3717 = vmul.f32 %v3716, %v3715
      %v3718 = vmul.f32 0.5, %v3717
      %v3719 = vsub.f32 1.5, %v3718
      %v3720 = vmul.f32 %v3715, %v3719
      %v3721 = vmul.f32 %v2245, %v3720
      %vm3722 = vcmp.eq.f32.partialorder %v2245, inf
      %v3723 = vsel %vm3722, %v2245, %v3721
      %vm3724 = vcmp.eq.f32.partialorder %v2245, 0.0
      %v3725 = vand.u32 %v2245, 2147483648
      %v3726 = vsel %vm3724, %v3725, %v3723
      %v3727 = vrsqrt.pop %v2246
      %v3728 = vmul.f32 %v3727, %v2246
      %v3729 = vmul.f32 %v3728, %v3727
      %v3730 = vmul.f32 0.5, %v3729
      %v3731 = vsub.f32 1.5, %v3730
      %v3732 = vmul.f32 %v3727, %v3731
      %v3733 = vmul.f32 %v2246, %v3732
      %vm3734 = vcmp.eq.f32.partialorder %v2246, inf
      %v3735 = vsel %vm3734, %v2246, %v3733
      %vm3736 = vcmp.eq.f32.partialorder %v2246, 0.0
      %v3737 = vand.u32 %v2246, 2147483648
      %v3738 = vsel %vm3736, %v3737, %v3735
      %v3739 = vrsqrt.pop %v2247
      %v3740 = vmul.f32 %v3739, %v2247
      %v3741 = vmul.f32 %v3740, %v3739
      %v3742 = vmul.f32 0.5, %v3741
      %v3743 = vsub.f32 1.5, %v3742
      %v3744 = vmul.f32 %v3739, %v3743
      %v3745 = vmul.f32 %v2247, %v3744
      %vm3746 = vcmp.eq.f32.partialorder %v2247, inf
      %v3747 = vsel %vm3746, %v2247, %v3745
      %vm3748 = vcmp.eq.f32.partialorder %v2247, 0.0
      %v3749 = vand.u32 %v2247, 2147483648
      %v3750 = vsel %vm3748, %v3749, %v3747
      %v3751 = vrsqrt.pop %v2248
      %v3752 = vmul.f32 %v3751, %v2248
      %v3753 = vmul.f32 %v3752, %v3751
      %v3754 = vmul.f32 0.5, %v3753
      %v3755 = vsub.f32 1.5, %v3754
      %v3756 = vmul.f32 %v3751, %v3755
      %v3757 = vmul.f32 %v2248, %v3756
      %vm3758 = vcmp.eq.f32.partialorder %v2248, inf
      %v3759 = vsel %vm3758, %v2248, %v3757
      %vm3760 = vcmp.eq.f32.partialorder %v2248, 0.0
      %v3761 = vand.u32 %v2248, 2147483648
      %v3762 = vsel %vm3760, %v3761, %v3759
      %v3763 = vrsqrt.pop %v2249
      %v3764 = vmul.f32 %v3763, %v2249
      %v3765 = vmul.f32 %v3764, %v3763
      %v3766 = vmul.f32 0.5, %v3765
      %v3767 = vsub.f32 1.5, %v3766
      %v3768 = vmul.f32 %v3763, %v3767
      %v3769 = vmul.f32 %v2249, %v3768
      %vm3770 = vcmp.eq.f32.partialorder %v2249, inf
      %v3771 = vsel %vm3770, %v2249, %v3769
      %vm3772 = vcmp.eq.f32.partialorder %v2249, 0.0
      %v3773 = vand.u32 %v2249, 2147483648
      %v3774 = vsel %vm3772, %v3773, %v3771
      %v3775 = vrsqrt.pop %v2250
      %v3776 = vmul.f32 %v3775, %v2250
      %v3777 = vmul.f32 %v3776, %v3775
      %v3778 = vmul.f32 0.5, %v3777
      %v3779 = vsub.f32 1.5, %v3778
      %v3780 = vmul.f32 %v3775, %v3779
      %v3781 = vmul.f32 %v2250, %v3780
      %vm3782 = vcmp.eq.f32.partialorder %v2250, inf
      %v3783 = vsel %vm3782, %v2250, %v3781
      %vm3784 = vcmp.eq.f32.partialorder %v2250, 0.0
      %v3785 = vand.u32 %v2250, 2147483648
      %v3786 = vsel %vm3784, %v3785, %v3783
      %v3787 = vld [vmem:[%s4] sm:$0x1]
      %v3789 = vperm.slane %v3787, 0
      %v3791 = vsub.f32 %v2262, %v3789
      %v3792 = vsub.f32 %v2274, %v3789
      %v3793 = vsub.f32 %v2286, %v3789
      %v3794 = vsub.f32 %v2298, %v3789
      %v3795 = vsub.f32 %v2310, %v3789
      %v3796 = vsub.f32 %v2322, %v3789
      %v3797 = vsub.f32 %v2334, %v3789
      %v3798 = vsub.f32 %v2346, %v3789
      %v3799 = vsub.f32 %v2358, %v3789
      %v3800 = vsub.f32 %v2370, %v3789
      %v3801 = vsub.f32 %v2382, %v3789
      %v3802 = vsub.f32 %v2394, %v3789
      %v3803 = vsub.f32 %v2406, %v3789
      %v3804 = vsub.f32 %v2418, %v3789
      %v3805 = vsub.f32 %v2430, %v3789
      %v3806 = vsub.f32 %v2442, %v3789
      %v3807 = vsub.f32 %v2454, %v3789
      %v3808 = vsub.f32 %v2466, %v3789
      %v3809 = vsub.f32 %v2478, %v3789
      %v3810 = vsub.f32 %v2490, %v3789
      %v3811 = vsub.f32 %v2502, %v3789
      %v3812 = vsub.f32 %v2514, %v3789
      %v3813 = vsub.f32 %v2526, %v3789
      %v3814 = vsub.f32 %v2538, %v3789
      %v3815 = vsub.f32 %v2550, %v3789
      %v3816 = vsub.f32 %v2562, %v3789
      %v3817 = vsub.f32 %v2574, %v3789
      %v3818 = vsub.f32 %v2586, %v3789
      %v3819 = vsub.f32 %v2598, %v3789
      %v3820 = vsub.f32 %v2610, %v3789
      %v3821 = vsub.f32 %v2622, %v3789
      %v3822 = vsub.f32 %v2634, %v3789
      %v3823 = vsub.f32 %v2646, %v3789
      %v3824 = vsub.f32 %v2658, %v3789
      %v3825 = vsub.f32 %v2670, %v3789
      %v3826 = vsub.f32 %v2682, %v3789
      %v3827 = vsub.f32 %v2694, %v3789
      %v3828 = vsub.f32 %v2706, %v3789
      %v3829 = vsub.f32 %v2718, %v3789
      %v3830 = vsub.f32 %v2730, %v3789
      %v3831 = vsub.f32 %v2742, %v3789
      %v3832 = vsub.f32 %v2754, %v3789
      %v3833 = vsub.f32 %v2766, %v3789
      %v3834 = vsub.f32 %v2778, %v3789
      %v3835 = vsub.f32 %v2790, %v3789
      %v3836 = vsub.f32 %v2802, %v3789
      %v3837 = vsub.f32 %v2814, %v3789
      %v3838 = vsub.f32 %v2826, %v3789
      %v3839 = vsub.f32 %v2838, %v3789
      %v3840 = vsub.f32 %v2850, %v3789
      %v3841 = vsub.f32 %v2862, %v3789
      %v3842 = vsub.f32 %v2874, %v3789
      %v3843 = vsub.f32 %v2886, %v3789
      %v3844 = vsub.f32 %v2898, %v3789
      %v3845 = vsub.f32 %v2910, %v3789
      %v3846 = vsub.f32 %v2922, %v3789
      %v3847 = vsub.f32 %v2934, %v3789
      %v3848 = vsub.f32 %v2946, %v3789
      %v3849 = vsub.f32 %v2958, %v3789
      %v3850 = vsub.f32 %v2970, %v3789
      %v3851 = vsub.f32 %v2982, %v3789
      %v3852 = vsub.f32 %v2994, %v3789
      %v3853 = vsub.f32 %v3006, %v3789
      %v3854 = vsub.f32 %v3018, %v3789
      %v3855 = vsub.f32 %v3030, %v3789
      %v3856 = vsub.f32 %v3042, %v3789
      %v3857 = vsub.f32 %v3054, %v3789
      %v3858 = vsub.f32 %v3066, %v3789
      %v3859 = vsub.f32 %v3078, %v3789
      %v3860 = vsub.f32 %v3090, %v3789
      %v3861 = vsub.f32 %v3102, %v3789
      %v3862 = vsub.f32 %v3114, %v3789
      %v3863 = vsub.f32 %v3126, %v3789
      %v3864 = vsub.f32 %v3138, %v3789
      %v3865 = vsub.f32 %v3150, %v3789
      %v3866 = vsub.f32 %v3162, %v3789
      %v3867 = vsub.f32 %v3174, %v3789
      %v3868 = vsub.f32 %v3186, %v3789
      %v3869 = vsub.f32 %v3198, %v3789
      %v3870 = vsub.f32 %v3210, %v3789
      %v3871 = vsub.f32 %v3222, %v3789
      %v3872 = vsub.f32 %v3234, %v3789
      %v3873 = vsub.f32 %v3246, %v3789
      %v3874 = vsub.f32 %v3258, %v3789
      %v3875 = vsub.f32 %v3270, %v3789
      %v3876 = vsub.f32 %v3282, %v3789
      %v3877 = vsub.f32 %v3294, %v3789
      %v3878 = vsub.f32 %v3306, %v3789
      %v3879 = vsub.f32 %v3318, %v3789
      %v3880 = vsub.f32 %v3330, %v3789
      %v3881 = vsub.f32 %v3342, %v3789
      %v3882 = vsub.f32 %v3354, %v3789
      %v3883 = vsub.f32 %v3366, %v3789
      %v3884 = vsub.f32 %v3378, %v3789
      %v3885 = vsub.f32 %v3390, %v3789
      %v3886 = vsub.f32 %v3402, %v3789
      %v3887 = vsub.f32 %v3414, %v3789
      %v3888 = vsub.f32 %v3426, %v3789
      %v3889 = vsub.f32 %v3438, %v3789
      %v3890 = vsub.f32 %v3450, %v3789
      %v3891 = vsub.f32 %v3462, %v3789
      %v3892 = vsub.f32 %v3474, %v3789
      %v3893 = vsub.f32 %v3486, %v3789
      %v3894 = vsub.f32 %v3498, %v3789
      %v3895 = vsub.f32 %v3510, %v3789
      %v3896 = vsub.f32 %v3522, %v3789
      %v3897 = vsub.f32 %v3534, %v3789
      %v3898 = vsub.f32 %v3546, %v3789
      %v3899 = vsub.f32 %v3558, %v3789
      %v3900 = vsub.f32 %v3570, %v3789
      %v3901 = vsub.f32 %v3582, %v3789
      %v3902 = vsub.f32 %v3594, %v3789
      %v3903 = vsub.f32 %v3606, %v3789
      %v3904 = vsub.f32 %v3618, %v3789
      %v3905 = vsub.f32 %v3630, %v3789
      %v3906 = vsub.f32 %v3642, %v3789
      %v3907 = vsub.f32 %v3654, %v3789
      %v3908 = vsub.f32 %v3666, %v3789
      %v3909 = vsub.f32 %v3678, %v3789
      %v3910 = vsub.f32 %v3690, %v3789
      %v3911 = vsub.f32 %v3702, %v3789
      %v3912 = vsub.f32 %v3714, %v3789
      %v3913 = vsub.f32 %v3726, %v3789
      %v3914 = vsub.f32 %v3738, %v3789
      %v3915 = vsub.f32 %v3750, %v3789
      %v3916 = vsub.f32 %v3762, %v3789
      %v3917 = vsub.f32 %v3774, %v3789
      %v3918 = vsub.f32 %v3786, %v3789
      %v3919 = vld [vmem:[%s296] sm:$0xff]
      %v3920 = vld [vmem:[%s296 + $0x8] sm:$0xff]
      %v3921 = vld [vmem:[%s296 + $0x10] sm:$0xff]
      %v3922 = vld [vmem:[%s296 + $0x18] sm:$0xff]
      %v3923 = vld [vmem:[%s296 + $0x20] sm:$0xff]
      %v3924 = vld [vmem:[%s296 + $0x28] sm:$0xff]
      %v3925 = vld [vmem:[%s296 + $0x30] sm:$0xff]
      %v3926 = vld [vmem:[%s296 + $0x38] sm:$0xff]
      %v3927 = vld [vmem:[%s296 + $0x40] sm:$0xff]
      %v3928 = vld [vmem:[%s296 + $0x48] sm:$0xff]
      %v3929 = vld [vmem:[%s296 + $0x50] sm:$0xff]
      %v3930 = vld [vmem:[%s296 + $0x58] sm:$0xff]
      %v3931 = vld [vmem:[%s296 + $0x60] sm:$0xff]
      %v3932 = vld [vmem:[%s296 + $0x68] sm:$0xff]
      %v3933 = vld [vmem:[%s296 + $0x70] sm:$0xff]
      %v3934 = vld [vmem:[%s296 + $0x78] sm:$0xff]
      %v3935 = vld [vmem:[%s296 + $0x80] sm:$0xff]
      %v3936 = vld [vmem:[%s296 + $0x88] sm:$0xff]
      %v3937 = vld [vmem:[%s296 + $0x90] sm:$0xff]
      %v3938 = vld [vmem:[%s296 + $0x98] sm:$0xff]
      %v3939 = vld [vmem:[%s296 + $0xa0] sm:$0xff]
      %v3940 = vld [vmem:[%s296 + $0xa8] sm:$0xff]
      %v3941 = vld [vmem:[%s296 + $0xb0] sm:$0xff]
      %v3942 = vld [vmem:[%s296 + $0xb8] sm:$0xff]
      %v3943 = vld [vmem:[%s296 + $0xc0] sm:$0xff]
      %v3944 = vld [vmem:[%s296 + $0xc8] sm:$0xff]
      %v3945 = vld [vmem:[%s296 + $0xd0] sm:$0xff]
      %v3946 = vld [vmem:[%s296 + $0xd8] sm:$0xff]
      %v3947 = vld [vmem:[%s296 + $0xe0] sm:$0xff]
      %v3948 = vld [vmem:[%s296 + $0xe8] sm:$0xff]
      %v3949 = vld [vmem:[%s296 + $0xf0] sm:$0xff]
      %v3950 = vld [vmem:[%s296 + $0xf8] sm:$0xff]
      %v3951 = vld [vmem:[%s296 + $0x100] sm:$0xff]
      %v3952 = vld [vmem:[%s296 + $0x108] sm:$0xff]
      %v3953 = vld [vmem:[%s296 + $0x110] sm:$0xff]
      %v3954 = vld [vmem:[%s296 + $0x118] sm:$0xff]
      %v3955 = vld [vmem:[%s296 + $0x120] sm:$0xff]
      %v3956 = vld [vmem:[%s296 + $0x128] sm:$0xff]
      %v3957 = vld [vmem:[%s296 + $0x130] sm:$0xff]
      %v3958 = vld [vmem:[%s296 + $0x138] sm:$0xff]
      %v3959 = vld [vmem:[%s296 + $0x140] sm:$0xff]
      %v3960 = vld [vmem:[%s296 + $0x148] sm:$0xff]
      %v3961 = vld [vmem:[%s296 + $0x150] sm:$0xff]
      %v3962 = vld [vmem:[%s296 + $0x158] sm:$0xff]
      %v3963 = vld [vmem:[%s296 + $0x160] sm:$0xff]
      %v3964 = vld [vmem:[%s296 + $0x168] sm:$0xff]
      %v3965 = vld [vmem:[%s296 + $0x170] sm:$0xff]
      %v3966 = vld [vmem:[%s296 + $0x178] sm:$0xff]
      %v3967 = vld [vmem:[%s296 + $0x180] sm:$0xff]
      %v3968 = vld [vmem:[%s296 + $0x188] sm:$0xff]
      %v3969 = vld [vmem:[%s296 + $0x190] sm:$0xff]
      %v3970 = vld [vmem:[%s296 + $0x198] sm:$0xff]
      %v3971 = vld [vmem:[%s296 + $0x1a0] sm:$0xff]
      %v3972 = vld [vmem:[%s296 + $0x1a8] sm:$0xff]
      %v3973 = vld [vmem:[%s296 + $0x1b0] sm:$0xff]
      %v3974 = vld [vmem:[%s296 + $0x1b8] sm:$0xff]
      %v3975 = vld [vmem:[%s296 + $0x1c0] sm:$0xff]
      %v3976 = vld [vmem:[%s296 + $0x1c8] sm:$0xff]
      %v3977 = vld [vmem:[%s296 + $0x1d0] sm:$0xff]
      %v3978 = vld [vmem:[%s296 + $0x1d8] sm:$0xff]
      %v3979 = vld [vmem:[%s296 + $0x1e0] sm:$0xff]
      %v3980 = vld [vmem:[%s296 + $0x1e8] sm:$0xff]
      %v3981 = vld [vmem:[%s296 + $0x1f0] sm:$0xff]
      %v3982 = vld [vmem:[%s296 + $0x1f8] sm:$0xff]
      %v3983 = vld [vmem:[%s296 + $0x200] sm:$0xff]
      %v3984 = vld [vmem:[%s296 + $0x208] sm:$0xff]
      %v3985 = vld [vmem:[%s296 + $0x210] sm:$0xff]
      %v3986 = vld [vmem:[%s296 + $0x218] sm:$0xff]
      %v3987 = vld [vmem:[%s296 + $0x220] sm:$0xff]
      %v3988 = vld [vmem:[%s296 + $0x228] sm:$0xff]
      %v3989 = vld [vmem:[%s296 + $0x230] sm:$0xff]
      %v3990 = vld [vmem:[%s296 + $0x238] sm:$0xff]
      %v3991 = vld [vmem:[%s296 + $0x240] sm:$0xff]
      %v3992 = vld [vmem:[%s296 + $0x248] sm:$0xff]
      %v3993 = vld [vmem:[%s296 + $0x250] sm:$0xff]
      %v3994 = vld [vmem:[%s296 + $0x258] sm:$0xff]
      %v3995 = vld [vmem:[%s296 + $0x260] sm:$0xff]
      %v3996 = vld [vmem:[%s296 + $0x268] sm:$0xff]
      %v3997 = vld [vmem:[%s296 + $0x270] sm:$0xff]
      %v3998 = vld [vmem:[%s296 + $0x278] sm:$0xff]
      %v3999 = vld [vmem:[%s296 + $0x280] sm:$0xff]
      %v4000 = vld [vmem:[%s296 + $0x288] sm:$0xff]
      %v4001 = vld [vmem:[%s296 + $0x290] sm:$0xff]
      %v4002 = vld [vmem:[%s296 + $0x298] sm:$0xff]
      %v4003 = vld [vmem:[%s296 + $0x2a0] sm:$0xff]
      %v4004 = vld [vmem:[%s296 + $0x2a8] sm:$0xff]
      %v4005 = vld [vmem:[%s296 + $0x2b0] sm:$0xff]
      %v4006 = vld [vmem:[%s296 + $0x2b8] sm:$0xff]
      %v4007 = vld [vmem:[%s296 + $0x2c0] sm:$0xff]
      %v4008 = vld [vmem:[%s296 + $0x2c8] sm:$0xff]
      %v4009 = vld [vmem:[%s296 + $0x2d0] sm:$0xff]
      %v4010 = vld [vmem:[%s296 + $0x2d8] sm:$0xff]
      %v4011 = vld [vmem:[%s296 + $0x2e0] sm:$0xff]
      %v4012 = vld [vmem:[%s296 + $0x2e8] sm:$0xff]
      %v4013 = vld [vmem:[%s296 + $0x2f0] sm:$0xff]
      %v4014 = vld [vmem:[%s296 + $0x2f8] sm:$0xff]
      %v4015 = vld [vmem:[%s296 + $0x300] sm:$0xff]
      %v4016 = vld [vmem:[%s296 + $0x308] sm:$0xff]
      %v4017 = vld [vmem:[%s296 + $0x310] sm:$0xff]
      %v4018 = vld [vmem:[%s296 + $0x318] sm:$0xff]
      %v4019 = vld [vmem:[%s296 + $0x320] sm:$0xff]
      %v4020 = vld [vmem:[%s296 + $0x328] sm:$0xff]
      %v4021 = vld [vmem:[%s296 + $0x330] sm:$0xff]
      %v4022 = vld [vmem:[%s296 + $0x338] sm:$0xff]
      %v4023 = vld [vmem:[%s296 + $0x340] sm:$0xff]
      %v4024 = vld [vmem:[%s296 + $0x348] sm:$0xff]
      %v4025 = vld [vmem:[%s296 + $0x350] sm:$0xff]
      %v4026 = vld [vmem:[%s296 + $0x358] sm:$0xff]
      %v4027 = vld [vmem:[%s296 + $0x360] sm:$0xff]
      %v4028 = vld [vmem:[%s296 + $0x368] sm:$0xff]
      %v4029 = vld [vmem:[%s296 + $0x370] sm:$0xff]
      %v4030 = vld [vmem:[%s296 + $0x378] sm:$0xff]
      %v4031 = vld [vmem:[%s296 + $0x380] sm:$0xff]
      %v4032 = vld [vmem:[%s296 + $0x388] sm:$0xff]
      %v4033 = vld [vmem:[%s296 + $0x390] sm:$0xff]
      %v4034 = vld [vmem:[%s296 + $0x398] sm:$0xff]
      %v4035 = vld [vmem:[%s296 + $0x3a0] sm:$0xff]
      %v4036 = vld [vmem:[%s296 + $0x3a8] sm:$0xff]
      %v4037 = vld [vmem:[%s296 + $0x3b0] sm:$0xff]
      %v4038 = vld [vmem:[%s296 + $0x3b8] sm:$0xff]
      %v4039 = vld [vmem:[%s296 + $0x3c0] sm:$0xff]
      %v4040 = vld [vmem:[%s296 + $0x3c8] sm:$0xff]
      %v4041 = vld [vmem:[%s296 + $0x3d0] sm:$0xff]
      %v4042 = vld [vmem:[%s296 + $0x3d8] sm:$0xff]
      %v4043 = vld [vmem:[%s296 + $0x3e0] sm:$0xff]
      %v4044 = vld [vmem:[%s296 + $0x3e8] sm:$0xff]
      %v4045 = vld [vmem:[%s296 + $0x3f0] sm:$0xff]
      %v4046 = vld [vmem:[%s296 + $0x3f8] sm:$0xff]
      %v4047 = vmax.f32 %v3919, 1e-06
      %v4048 = vmax.f32 %v3920, 1e-06
      %v4049 = vmax.f32 %v3921, 1e-06
      %v4050 = vmax.f32 %v3922, 1e-06
      %v4051 = vmax.f32 %v3923, 1e-06
      %v4052 = vmax.f32 %v3924, 1e-06
      %v4053 = vmax.f32 %v3925, 1e-06
      %v4054 = vmax.f32 %v3926, 1e-06
      %v4055 = vmax.f32 %v3927, 1e-06
      %v4056 = vmax.f32 %v3928, 1e-06
      %v4057 = vmax.f32 %v3929, 1e-06
      %v4058 = vmax.f32 %v3930, 1e-06
      %v4059 = vmax.f32 %v3931, 1e-06
      %v4060 = vmax.f32 %v3932, 1e-06
      %v4061 = vmax.f32 %v3933, 1e-06
      %v4062 = vmax.f32 %v3934, 1e-06
      %v4063 = vmax.f32 %v3935, 1e-06
      %v4064 = vmax.f32 %v3936, 1e-06
      %v4065 = vmax.f32 %v3937, 1e-06
      %v4066 = vmax.f32 %v3938, 1e-06
      %v4067 = vmax.f32 %v3939, 1e-06
      %v4068 = vmax.f32 %v3940, 1e-06
      %v4069 = vmax.f32 %v3941, 1e-06
      %v4070 = vmax.f32 %v3942, 1e-06
      %v4071 = vmax.f32 %v3943, 1e-06
      %v4072 = vmax.f32 %v3944, 1e-06
      %v4073 = vmax.f32 %v3945, 1e-06
      %v4074 = vmax.f32 %v3946, 1e-06
      %v4075 = vmax.f32 %v3947, 1e-06
      %v4076 = vmax.f32 %v3948, 1e-06
      %v4077 = vmax.f32 %v3949, 1e-06
      %v4078 = vmax.f32 %v3950, 1e-06
      %v4079 = vmax.f32 %v3951, 1e-06
      %v4080 = vmax.f32 %v3952, 1e-06
      %v4081 = vmax.f32 %v3953, 1e-06
      %v4082 = vmax.f32 %v3954, 1e-06
      %v4083 = vmax.f32 %v3955, 1e-06
      %v4084 = vmax.f32 %v3956, 1e-06
      %v4085 = vmax.f32 %v3957, 1e-06
      %v4086 = vmax.f32 %v3958, 1e-06
      %v4087 = vmax.f32 %v3959, 1e-06
      %v4088 = vmax.f32 %v3960, 1e-06
      %v4089 = vmax.f32 %v3961, 1e-06
      %v4090 = vmax.f32 %v3962, 1e-06
      %v4091 = vmax.f32 %v3963, 1e-06
      %v4092 = vmax.f32 %v3964, 1e-06
      %v4093 = vmax.f32 %v3965, 1e-06
      %v4094 = vmax.f32 %v3966, 1e-06
      %v4095 = vmax.f32 %v3967, 1e-06
      %v4096 = vmax.f32 %v3968, 1e-06
      %v4097 = vmax.f32 %v3969, 1e-06
      %v4098 = vmax.f32 %v3970, 1e-06
      %v4099 = vmax.f32 %v3971, 1e-06
      %v4100 = vmax.f32 %v3972, 1e-06
      %v4101 = vmax.f32 %v3973, 1e-06
      %v4102 = vmax.f32 %v3974, 1e-06
      %v4103 = vmax.f32 %v3975, 1e-06
      %v4104 = vmax.f32 %v3976, 1e-06
      %v4105 = vmax.f32 %v3977, 1e-06
      %v4106 = vmax.f32 %v3978, 1e-06
      %v4107 = vmax.f32 %v3979, 1e-06
      %v4108 = vmax.f32 %v3980, 1e-06
      %v4109 = vmax.f32 %v3981, 1e-06
      %v4110 = vmax.f32 %v3982, 1e-06
      %v4111 = vmax.f32 %v3983, 1e-06
      %v4112 = vmax.f32 %v3984, 1e-06
      %v4113 = vmax.f32 %v3985, 1e-06
      %v4114 = vmax.f32 %v3986, 1e-06
      %v4115 = vmax.f32 %v3987, 1e-06
      %v4116 = vmax.f32 %v3988, 1e-06
      %v4117 = vmax.f32 %v3989, 1e-06
      %v4118 = vmax.f32 %v3990, 1e-06
      %v4119 = vmax.f32 %v3991, 1e-06
      %v4120 = vmax.f32 %v3992, 1e-06
      %v4121 = vmax.f32 %v3993, 1e-06
      %v4122 = vmax.f32 %v3994, 1e-06
      %v4123 = vmax.f32 %v3995, 1e-06
      %v4124 = vmax.f32 %v3996, 1e-06
      %v4125 = vmax.f32 %v3997, 1e-06
      %v4126 = vmax.f32 %v3998, 1e-06
      %v4127 = vmax.f32 %v3999, 1e-06
      %v4128 = vmax.f32 %v4000, 1e-06
      %v4129 = vmax.f32 %v4001, 1e-06
      %v4130 = vmax.f32 %v4002, 1e-06
      %v4131 = vmax.f32 %v4003, 1e-06
      %v4132 = vmax.f32 %v4004, 1e-06
      %v4133 = vmax.f32 %v4005, 1e-06
      %v4134 = vmax.f32 %v4006, 1e-06
      %v4135 = vmax.f32 %v4007, 1e-06
      %v4136 = vmax.f32 %v4008, 1e-06
      %v4137 = vmax.f32 %v4009, 1e-06
      %v4138 = vmax.f32 %v4010, 1e-06
      %v4139 = vmax.f32 %v4011, 1e-06
      %v4140 = vmax.f32 %v4012, 1e-06
      %v4141 = vmax.f32 %v4013, 1e-06
      %v4142 = vmax.f32 %v4014, 1e-06
      %v4143 = vmax.f32 %v4015, 1e-06
      %v4144 = vmax.f32 %v4016, 1e-06
      %v4145 = vmax.f32 %v4017, 1e-06
      %v4146 = vmax.f32 %v4018, 1e-06
      %v4147 = vmax.f32 %v4019, 1e-06
      %v4148 = vmax.f32 %v4020, 1e-06
      %v4149 = vmax.f32 %v4021, 1e-06
      %v4150 = vmax.f32 %v4022, 1e-06
      %v4151 = vmax.f32 %v4023, 1e-06
      %v4152 = vmax.f32 %v4024, 1e-06
      %v4153 = vmax.f32 %v4025, 1e-06
      %v4154 = vmax.f32 %v4026, 1e-06
      %v4155 = vmax.f32 %v4027, 1e-06
      %v4156 = vmax.f32 %v4028, 1e-06
      %v4157 = vmax.f32 %v4029, 1e-06
      %v4158 = vmax.f32 %v4030, 1e-06
      %v4159 = vmax.f32 %v4031, 1e-06
      %v4160 = vmax.f32 %v4032, 1e-06
      %v4161 = vmax.f32 %v4033, 1e-06
      %v4162 = vmax.f32 %v4034, 1e-06
      %v4163 = vmax.f32 %v4035, 1e-06
      %v4164 = vmax.f32 %v4036, 1e-06
      %v4165 = vmax.f32 %v4037, 1e-06
      %v4166 = vmax.f32 %v4038, 1e-06
      %v4167 = vmax.f32 %v4039, 1e-06
      %v4168 = vmax.f32 %v4040, 1e-06
      %v4169 = vmax.f32 %v4041, 1e-06
      %v4170 = vmax.f32 %v4042, 1e-06
      %v4171 = vmax.f32 %v4043, 1e-06
      %v4172 = vmax.f32 %v4044, 1e-06
      %v4173 = vmax.f32 %v4045, 1e-06
      %v4174 = vmax.f32 %v4046, 1e-06
      %v4175 = vrcp.pop %v4047
      %v4176 = vrcp.pop %v4048
      %v4177 = vrcp.pop %v4049
      %v4178 = vrcp.pop %v4050
      %v4179 = vrcp.pop %v4051
      %v4180 = vrcp.pop %v4052
      %v4181 = vrcp.pop %v4053
      %v4182 = vrcp.pop %v4054
      %v4183 = vrcp.pop %v4055
      %v4184 = vrcp.pop %v4056
      %v4185 = vrcp.pop %v4057
      %v4186 = vrcp.pop %v4058
      %v4187 = vrcp.pop %v4059
      %v4188 = vrcp.pop %v4060
      %v4189 = vrcp.pop %v4061
      %v4190 = vrcp.pop %v4062
      %v4191 = vrcp.pop %v4063
      %v4192 = vrcp.pop %v4064
      %v4193 = vrcp.pop %v4065
      %v4194 = vrcp.pop %v4066
      %v4195 = vrcp.pop %v4067
      %v4196 = vrcp.pop %v4068
      %v4197 = vrcp.pop %v4069
      %v4198 = vrcp.pop %v4070
      %v4199 = vrcp.pop %v4071
      %v4200 = vrcp.pop %v4072
      %v4201 = vrcp.pop %v4073
      %v4202 = vrcp.pop %v4074
      %v4203 = vrcp.pop %v4075
      %v4204 = vrcp.pop %v4076
      %v4205 = vrcp.pop %v4077
      %v4206 = vrcp.pop %v4078
      %v4207 = vrcp.pop %v4079
      %v4208 = vrcp.pop %v4080
      %v4209 = vrcp.pop %v4081
      %v4210 = vrcp.pop %v4082
      %v4211 = vrcp.pop %v4083
      %v4212 = vrcp.pop %v4084
      %v4213 = vrcp.pop %v4085
      %v4214 = vrcp.pop %v4086
      %v4215 = vrcp.pop %v4087
      %v4216 = vrcp.pop %v4088
      %v4217 = vrcp.pop %v4089
      %v4218 = vrcp.pop %v4090
      %v4219 = vrcp.pop %v4091
      %v4220 = vrcp.pop %v4092
      %v4221 = vrcp.pop %v4093
      %v4222 = vrcp.pop %v4094
      %v4223 = vrcp.pop %v4095
      %v4224 = vrcp.pop %v4096
      %v4225 = vrcp.pop %v4097
      %v4226 = vrcp.pop %v4098
      %v4227 = vrcp.pop %v4099
      %v4228 = vrcp.pop %v4100
      %v4229 = vrcp.pop %v4101
      %v4230 = vrcp.pop %v4102
      %v4231 = vrcp.pop %v4103
      %v4232 = vrcp.pop %v4104
      %v4233 = vrcp.pop %v4105
      %v4234 = vrcp.pop %v4106
      %v4235 = vrcp.pop %v4107
      %v4236 = vrcp.pop %v4108
      %v4237 = vrcp.pop %v4109
      %v4238 = vrcp.pop %v4110
      %v4239 = vrcp.pop %v4111
      %v4240 = vrcp.pop %v4112
      %v4241 = vrcp.pop %v4113
      %v4242 = vrcp.pop %v4114
      %v4243 = vrcp.pop %v4115
      %v4244 = vrcp.pop %v4116
      %v4245 = vrcp.pop %v4117
      %v4246 = vrcp.pop %v4118
      %v4247 = vrcp.pop %v4119
      %v4248 = vrcp.pop %v4120
      %v4249 = vrcp.pop %v4121
      %v4250 = vrcp.pop %v4122
      %v4251 = vrcp.pop %v4123
      %v4252 = vrcp.pop %v4124
      %v4253 = vrcp.pop %v4125
      %v4254 = vrcp.pop %v4126
      %v4255 = vrcp.pop %v4127
      %v4256 = vrcp.pop %v4128
      %v4257 = vrcp.pop %v4129
      %v4258 = vrcp.pop %v4130
      %v4259 = vrcp.pop %v4131
      %v4260 = vrcp.pop %v4132
      %v4261 = vrcp.pop %v4133
      %v4262 = vrcp.pop %v4134
      %v4263 = vrcp.pop %v4135
      %v4264 = vrcp.pop %v4136
      %v4265 = vrcp.pop %v4137
      %v4266 = vrcp.pop %v4138
      %v4267 = vrcp.pop %v4139
      %v4268 = vrcp.pop %v4140
      %v4269 = vrcp.pop %v4141
      %v4270 = vrcp.pop %v4142
      %v4271 = vrcp.pop %v4143
      %v4272 = vrcp.pop %v4144
      %v4273 = vrcp.pop %v4145
      %v4274 = vrcp.pop %v4146
      %v4275 = vrcp.pop %v4147
      %v4276 = vrcp.pop %v4148
      %v4277 = vrcp.pop %v4149
      %v4278 = vrcp.pop %v4150
      %v4279 = vrcp.pop %v4151
      %v4280 = vrcp.pop %v4152
      %v4281 = vrcp.pop %v4153
      %v4282 = vrcp.pop %v4154
      %v4283 = vrcp.pop %v4155
      %v4284 = vrcp.pop %v4156
      %v4285 = vrcp.pop %v4157
      %v4286 = vrcp.pop %v4158
      %v4287 = vrcp.pop %v4159
      %v4288 = vrcp.pop %v4160
      %v4289 = vrcp.pop %v4161
      %v4290 = vrcp.pop %v4162
      %v4291 = vrcp.pop %v4163
      %v4292 = vrcp.pop %v4164
      %v4293 = vrcp.pop %v4165
      %v4294 = vrcp.pop %v4166
      %v4295 = vrcp.pop %v4167
      %v4296 = vrcp.pop %v4168
      %v4297 = vrcp.pop %v4169
      %v4298 = vrcp.pop %v4170
      %v4299 = vrcp.pop %v4171
      %v4300 = vrcp.pop %v4172
      %v4301 = vrcp.pop %v4173
      %v4302 = vrcp.pop %v4174
      %v4303 = vmul.f32 %v4175, 0.5
      %v4304 = vmul.f32 %v4176, 0.5
      %v4305 = vmul.f32 %v4177, 0.5
      %v4306 = vmul.f32 %v4178, 0.5
      %v4307 = vmul.f32 %v4179, 0.5
      %v4308 = vmul.f32 %v4180, 0.5
      %v4309 = vmul.f32 %v4181, 0.5
      %v4310 = vmul.f32 %v4182, 0.5
      %v4311 = vmul.f32 %v4183, 0.5
      %v4312 = vmul.f32 %v4184, 0.5
      %v4313 = vmul.f32 %v4185, 0.5
      %v4314 = vmul.f32 %v4186, 0.5
      %v4315 = vmul.f32 %v4187, 0.5
      %v4316 = vmul.f32 %v4188, 0.5
      %v4317 = vmul.f32 %v4189, 0.5
      %v4318 = vmul.f32 %v4190, 0.5
      %v4319 = vmul.f32 %v4191, 0.5
      %v4320 = vmul.f32 %v4192, 0.5
      %v4321 = vmul.f32 %v4193, 0.5
      %v4322 = vmul.f32 %v4194, 0.5
      %v4323 = vmul.f32 %v4195, 0.5
      %v4324 = vmul.f32 %v4196, 0.5
      %v4325 = vmul.f32 %v4197, 0.5
      %v4326 = vmul.f32 %v4198, 0.5
      %v4327 = vmul.f32 %v4199, 0.5
      %v4328 = vmul.f32 %v4200, 0.5
      %v4329 = vmul.f32 %v4201, 0.5
      %v4330 = vmul.f32 %v4202, 0.5
      %v4331 = vmul.f32 %v4203, 0.5
      %v4332 = vmul.f32 %v4204, 0.5
      %v4333 = vmul.f32 %v4205, 0.5
      %v4334 = vmul.f32 %v4206, 0.5
      %v4335 = vmul.f32 %v4207, 0.5
      %v4336 = vmul.f32 %v4208, 0.5
      %v4337 = vmul.f32 %v4209, 0.5
      %v4338 = vmul.f32 %v4210, 0.5
      %v4339 = vmul.f32 %v4211, 0.5
      %v4340 = vmul.f32 %v4212, 0.5
      %v4341 = vmul.f32 %v4213, 0.5
      %v4342 = vmul.f32 %v4214, 0.5
      %v4343 = vmul.f32 %v4215, 0.5
      %v4344 = vmul.f32 %v4216, 0.5
      %v4345 = vmul.f32 %v4217, 0.5
      %v4346 = vmul.f32 %v4218, 0.5
      %v4347 = vmul.f32 %v4219, 0.5
      %v4348 = vmul.f32 %v4220, 0.5
      %v4349 = vmul.f32 %v4221, 0.5
      %v4350 = vmul.f32 %v4222, 0.5
      %v4351 = vmul.f32 %v4223, 0.5
      %v4352 = vmul.f32 %v4224, 0.5
      %v4353 = vmul.f32 %v4225, 0.5
      %v4354 = vmul.f32 %v4226, 0.5
      %v4355 = vmul.f32 %v4227, 0.5
      %v4356 = vmul.f32 %v4228, 0.5
      %v4357 = vmul.f32 %v4229, 0.5
      %v4358 = vmul.f32 %v4230, 0.5
      %v4359 = vmul.f32 %v4231, 0.5
      %v4360 = vmul.f32 %v4232, 0.5
      %v4361 = vmul.f32 %v4233, 0.5
      %v4362 = vmul.f32 %v4234, 0.5
      %v4363 = vmul.f32 %v4235, 0.5
      %v4364 = vmul.f32 %v4236, 0.5
      %v4365 = vmul.f32 %v4237, 0.5
      %v4366 = vmul.f32 %v4238, 0.5
      %v4367 = vmul.f32 %v4239, 0.5
      %v4368 = vmul.f32 %v4240, 0.5
      %v4369 = vmul.f32 %v4241, 0.5
      %v4370 = vmul.f32 %v4242, 0.5
      %v4371 = vmul.f32 %v4243, 0.5
      %v4372 = vmul.f32 %v4244, 0.5
      %v4373 = vmul.f32 %v4245, 0.5
      %v4374 = vmul.f32 %v4246, 0.5
      %v4375 = vmul.f32 %v4247, 0.5
      %v4376 = vmul.f32 %v4248, 0.5
      %v4377 = vmul.f32 %v4249, 0.5
      %v4378 = vmul.f32 %v4250, 0.5
      %v4379 = vmul.f32 %v4251, 0.5
      %v4380 = vmul.f32 %v4252, 0.5
      %v4381 = vmul.f32 %v4253, 0.5
      %v4382 = vmul.f32 %v4254, 0.5
      %v4383 = vmul.f32 %v4255, 0.5
      %v4384 = vmul.f32 %v4256, 0.5
      %v4385 = vmul.f32 %v4257, 0.5
      %v4386 = vmul.f32 %v4258, 0.5
      %v4387 = vmul.f32 %v4259, 0.5
      %v4388 = vmul.f32 %v4260, 0.5
      %v4389 = vmul.f32 %v4261, 0.5
      %v4390 = vmul.f32 %v4262, 0.5
      %v4391 = vmul.f32 %v4263, 0.5
      %v4392 = vmul.f32 %v4264, 0.5
      %v4393 = vmul.f32 %v4265, 0.5
      %v4394 = vmul.f32 %v4266, 0.5
      %v4395 = vmul.f32 %v4267, 0.5
      %v4396 = vmul.f32 %v4268, 0.5
      %v4397 = vmul.f32 %v4269, 0.5
      %v4398 = vmul.f32 %v4270, 0.5
      %v4399 = vmul.f32 %v4271, 0.5
      %v4400 = vmul.f32 %v4272, 0.5
      %v4401 = vmul.f32 %v4273, 0.5
      %v4402 = vmul.f32 %v4274, 0.5
      %v4403 = vmul.f32 %v4275, 0.5
      %v4404 = vmul.f32 %v4276, 0.5
      %v4405 = vmul.f32 %v4277, 0.5
      %v4406 = vmul.f32 %v4278, 0.5
      %v4407 = vmul.f32 %v4279, 0.5
      %v4408 = vmul.f32 %v4280, 0.5
      %v4409 = vmul.f32 %v4281, 0.5
      %v4410 = vmul.f32 %v4282, 0.5
      %v4411 = vmul.f32 %v4283, 0.5
      %v4412 = vmul.f32 %v4284, 0.5
      %v4413 = vmul.f32 %v4285, 0.5
      %v4414 = vmul.f32 %v4286, 0.5
      %v4415 = vmul.f32 %v4287, 0.5
      %v4416 = vmul.f32 %v4288, 0.5
      %v4417 = vmul.f32 %v4289, 0.5
      %v4418 = vmul.f32 %v4290, 0.5
      %v4419 = vmul.f32 %v4291, 0.5
      %v4420 = vmul.f32 %v4292, 0.5
      %v4421 = vmul.f32 %v4293, 0.5
      %v4422 = vmul.f32 %v4294, 0.5
      %v4423 = vmul.f32 %v4295, 0.5
      %v4424 = vmul.f32 %v4296, 0.5
      %v4425 = vmul.f32 %v4297, 0.5
      %v4426 = vmul.f32 %v4298, 0.5
      %v4427 = vmul.f32 %v4299, 0.5
      %v4428 = vmul.f32 %v4300, 0.5
      %v4429 = vmul.f32 %v4301, 0.5
      %v4430 = vmul.f32 %v4302, 0.5
      %4432 = vset.pattern.permute.xlu0 0
      %4433 = vperm.xlu0 %4432, %v4303
      %v4434 = vpop.permute.xlu0 %4433
      %4437 = vset.pattern.permute.xlu0 0
      %4438 = vperm.xlu0 %4437, %v4304
      %v4439 = vpop.permute.xlu0 %4438
      %4442 = vset.pattern.permute.xlu0 0
      %4443 = vperm.xlu0 %4442, %v4305
      %v4444 = vpop.permute.xlu0 %4443
      %4447 = vset.pattern.permute.xlu0 0
      %4448 = vperm.xlu0 %4447, %v4306
      %v4449 = vpop.permute.xlu0 %4448
      %4452 = vset.pattern.permute.xlu0 0
      %4453 = vperm.xlu0 %4452, %v4307
      %v4454 = vpop.permute.xlu0 %4453
      %4457 = vset.pattern.permute.xlu0 0
      %4458 = vperm.xlu0 %4457, %v4308
      %v4459 = vpop.permute.xlu0 %4458
      %4462 = vset.pattern.permute.xlu0 0
      %4463 = vperm.xlu0 %4462, %v4309
      %v4464 = vpop.permute.xlu0 %4463
      %4467 = vset.pattern.permute.xlu0 0
      %4468 = vperm.xlu0 %4467, %v4310
      %v4469 = vpop.permute.xlu0 %4468
      %4472 = vset.pattern.permute.xlu0 0
      %4473 = vperm.xlu0 %4472, %v4311
      %v4474 = vpop.permute.xlu0 %4473
      %4477 = vset.pattern.permute.xlu0 0
      %4478 = vperm.xlu0 %4477, %v4312
      %v4479 = vpop.permute.xlu0 %4478
      %4482 = vset.pattern.permute.xlu0 0
      %4483 = vperm.xlu0 %4482, %v4313
      %v4484 = vpop.permute.xlu0 %4483
      %4487 = vset.pattern.permute.xlu0 0
      %4488 = vperm.xlu0 %4487, %v4314
      %v4489 = vpop.permute.xlu0 %4488
      %4492 = vset.pattern.permute.xlu0 0
      %4493 = vperm.xlu0 %4492, %v4315
      %v4494 = vpop.permute.xlu0 %4493
      %4497 = vset.pattern.permute.xlu0 0
      %4498 = vperm.xlu0 %4497, %v4316
      %v4499 = vpop.permute.xlu0 %4498
      %4502 = vset.pattern.permute.xlu0 0
      %4503 = vperm.xlu0 %4502, %v4317
      %v4504 = vpop.permute.xlu0 %4503
      %4507 = vset.pattern.permute.xlu0 0
      %4508 = vperm.xlu0 %4507, %v4318
      %v4509 = vpop.permute.xlu0 %4508
      %4512 = vset.pattern.permute.xlu0 0
      %4513 = vperm.xlu0 %4512, %v4319
      %v4514 = vpop.permute.xlu0 %4513
      %4517 = vset.pattern.permute.xlu0 0
      %4518 = vperm.xlu0 %4517, %v4320
      %v4519 = vpop.permute.xlu0 %4518
      %4522 = vset.pattern.permute.xlu0 0
      %4523 = vperm.xlu0 %4522, %v4321
      %v4524 = vpop.permute.xlu0 %4523
      %4527 = vset.pattern.permute.xlu0 0
      %4528 = vperm.xlu0 %4527, %v4322
      %v4529 = vpop.permute.xlu0 %4528
      %4532 = vset.pattern.permute.xlu0 0
      %4533 = vperm.xlu0 %4532, %v4323
      %v4534 = vpop.permute.xlu0 %4533
      %4537 = vset.pattern.permute.xlu0 0
      %4538 = vperm.xlu0 %4537, %v4324
      %v4539 = vpop.permute.xlu0 %4538
      %4542 = vset.pattern.permute.xlu0 0
      %4543 = vperm.xlu0 %4542, %v4325
      %v4544 = vpop.permute.xlu0 %4543
      %4547 = vset.pattern.permute.xlu0 0
      %4548 = vperm.xlu0 %4547, %v4326
      %v4549 = vpop.permute.xlu0 %4548
      %4552 = vset.pattern.permute.xlu0 0
      %4553 = vperm.xlu0 %4552, %v4327
      %v4554 = vpop.permute.xlu0 %4553
      %4557 = vset.pattern.permute.xlu0 0
      %4558 = vperm.xlu0 %4557, %v4328
      %v4559 = vpop.permute.xlu0 %4558
      %4562 = vset.pattern.permute.xlu0 0
      %4563 = vperm.xlu0 %4562, %v4329
      %v4564 = vpop.permute.xlu0 %4563
      %4567 = vset.pattern.permute.xlu0 0
      %4568 = vperm.xlu0 %4567, %v4330
      %v4569 = vpop.permute.xlu0 %4568
      %4572 = vset.pattern.permute.xlu0 0
      %4573 = vperm.xlu0 %4572, %v4331
      %v4574 = vpop.permute.xlu0 %4573
      %4577 = vset.pattern.permute.xlu0 0
      %4578 = vperm.xlu0 %4577, %v4332
      %v4579 = vpop.permute.xlu0 %4578
      %4582 = vset.pattern.permute.xlu0 0
      %4583 = vperm.xlu0 %4582, %v4333
      %v4584 = vpop.permute.xlu0 %4583
      %4587 = vset.pattern.permute.xlu0 0
      %4588 = vperm.xlu0 %4587, %v4334
      %v4589 = vpop.permute.xlu0 %4588
      %4592 = vset.pattern.permute.xlu0 0
      %4593 = vperm.xlu0 %4592, %v4335
      %v4594 = vpop.permute.xlu0 %4593
      %4597 = vset.pattern.permute.xlu0 0
      %4598 = vperm.xlu0 %4597, %v4336
      %v4599 = vpop.permute.xlu0 %4598
      %4602 = vset.pattern.permute.xlu0 0
      %4603 = vperm.xlu0 %4602, %v4337
      %v4604 = vpop.permute.xlu0 %4603
      %4607 = vset.pattern.permute.xlu0 0
      %4608 = vperm.xlu0 %4607, %v4338
      %v4609 = vpop.permute.xlu0 %4608
      %4612 = vset.pattern.permute.xlu0 0
      %4613 = vperm.xlu0 %4612, %v4339
      %v4614 = vpop.permute.xlu0 %4613
      %4617 = vset.pattern.permute.xlu0 0
      %4618 = vperm.xlu0 %4617, %v4340
      %v4619 = vpop.permute.xlu0 %4618
      %4622 = vset.pattern.permute.xlu0 0
      %4623 = vperm.xlu0 %4622, %v4341
      %v4624 = vpop.permute.xlu0 %4623
      %4627 = vset.pattern.permute.xlu0 0
      %4628 = vperm.xlu0 %4627, %v4342
      %v4629 = vpop.permute.xlu0 %4628
      %4632 = vset.pattern.permute.xlu0 0
      %4633 = vperm.xlu0 %4632, %v4343
      %v4634 = vpop.permute.xlu0 %4633
      %4637 = vset.pattern.permute.xlu0 0
      %4638 = vperm.xlu0 %4637, %v4344
      %v4639 = vpop.permute.xlu0 %4638
      %4642 = vset.pattern.permute.xlu0 0
      %4643 = vperm.xlu0 %4642, %v4345
      %v4644 = vpop.permute.xlu0 %4643
      %4647 = vset.pattern.permute.xlu0 0
      %4648 = vperm.xlu0 %4647, %v4346
      %v4649 = vpop.permute.xlu0 %4648
      %4652 = vset.pattern.permute.xlu0 0
      %4653 = vperm.xlu0 %4652, %v4347
      %v4654 = vpop.permute.xlu0 %4653
      %4657 = vset.pattern.permute.xlu0 0
      %4658 = vperm.xlu0 %4657, %v4348
      %v4659 = vpop.permute.xlu0 %4658
      %4662 = vset.pattern.permute.xlu0 0
      %4663 = vperm.xlu0 %4662, %v4349
      %v4664 = vpop.permute.xlu0 %4663
      %4667 = vset.pattern.permute.xlu0 0
      %4668 = vperm.xlu0 %4667, %v4350
      %v4669 = vpop.permute.xlu0 %4668
      %4672 = vset.pattern.permute.xlu0 0
      %4673 = vperm.xlu0 %4672, %v4351
      %v4674 = vpop.permute.xlu0 %4673
      %4677 = vset.pattern.permute.xlu0 0
      %4678 = vperm.xlu0 %4677, %v4352
      %v4679 = vpop.permute.xlu0 %4678
      %4682 = vset.pattern.permute.xlu0 0
      %4683 = vperm.xlu0 %4682, %v4353
      %v4684 = vpop.permute.xlu0 %4683
      %4687 = vset.pattern.permute.xlu0 0
      %4688 = vperm.xlu0 %4687, %v4354
      %v4689 = vpop.permute.xlu0 %4688
      %4692 = vset.pattern.permute.xlu0 0
      %4693 = vperm.xlu0 %4692, %v4355
      %v4694 = vpop.permute.xlu0 %4693
      %4697 = vset.pattern.permute.xlu0 0
      %4698 = vperm.xlu0 %4697, %v4356
      %v4699 = vpop.permute.xlu0 %4698
      %4702 = vset.pattern.permute.xlu0 0
      %4703 = vperm.xlu0 %4702, %v4357
      %v4704 = vpop.permute.xlu0 %4703
      %4707 = vset.pattern.permute.xlu0 0
      %4708 = vperm.xlu0 %4707, %v4358
      %v4709 = vpop.permute.xlu0 %4708
      %4712 = vset.pattern.permute.xlu0 0
      %4713 = vperm.xlu0 %4712, %v4359
      %v4714 = vpop.permute.xlu0 %4713
      %4717 = vset.pattern.permute.xlu0 0
      %4718 = vperm.xlu0 %4717, %v4360
      %v4719 = vpop.permute.xlu0 %4718
      %4722 = vset.pattern.permute.xlu0 0
      %4723 = vperm.xlu0 %4722, %v4361
      %v4724 = vpop.permute.xlu0 %4723
      %4727 = vset.pattern.permute.xlu0 0
      %4728 = vperm.xlu0 %4727, %v4362
      %v4729 = vpop.permute.xlu0 %4728
      %4732 = vset.pattern.permute.xlu0 0
      %4733 = vperm.xlu0 %4732, %v4363
      %v4734 = vpop.permute.xlu0 %4733
      %4737 = vset.pattern.permute.xlu0 0
      %4738 = vperm.xlu0 %4737, %v4364
      %v4739 = vpop.permute.xlu0 %4738
      %4742 = vset.pattern.permute.xlu0 0
      %4743 = vperm.xlu0 %4742, %v4365
      %v4744 = vpop.permute.xlu0 %4743
      %4747 = vset.pattern.permute.xlu0 0
      %4748 = vperm.xlu0 %4747, %v4366
      %v4749 = vpop.permute.xlu0 %4748
      %4752 = vset.pattern.permute.xlu0 0
      %4753 = vperm.xlu0 %4752, %v4367
      %v4754 = vpop.permute.xlu0 %4753
      %4757 = vset.pattern.permute.xlu0 0
      %4758 = vperm.xlu0 %4757, %v4368
      %v4759 = vpop.permute.xlu0 %4758
      %4762 = vset.pattern.permute.xlu0 0
      %4763 = vperm.xlu0 %4762, %v4369
      %v4764 = vpop.permute.xlu0 %4763
      %4767 = vset.pattern.permute.xlu0 0
      %4768 = vperm.xlu0 %4767, %v4370
      %v4769 = vpop.permute.xlu0 %4768
      %4772 = vset.pattern.permute.xlu0 0
      %4773 = vperm.xlu0 %4772, %v4371
      %v4774 = vpop.permute.xlu0 %4773
      %4777 = vset.pattern.permute.xlu0 0
      %4778 = vperm.xlu0 %4777, %v4372
      %v4779 = vpop.permute.xlu0 %4778
      %4782 = vset.pattern.permute.xlu0 0
      %4783 = vperm.xlu0 %4782, %v4373
      %v4784 = vpop.permute.xlu0 %4783
      %4787 = vset.pattern.permute.xlu0 0
      %4788 = vperm.xlu0 %4787, %v4374
      %v4789 = vpop.permute.xlu0 %4788
      %4792 = vset.pattern.permute.xlu0 0
      %4793 = vperm.xlu0 %4792, %v4375
      %v4794 = vpop.permute.xlu0 %4793
      %4797 = vset.pattern.permute.xlu0 0
      %4798 = vperm.xlu0 %4797, %v4376
      %v4799 = vpop.permute.xlu0 %4798
      %4802 = vset.pattern.permute.xlu0 0
      %4803 = vperm.xlu0 %4802, %v4377
      %v4804 = vpop.permute.xlu0 %4803
      %4807 = vset.pattern.permute.xlu0 0
      %4808 = vperm.xlu0 %4807, %v4378
      %v4809 = vpop.permute.xlu0 %4808
      %4812 = vset.pattern.permute.xlu0 0
      %4813 = vperm.xlu0 %4812, %v4379
      %v4814 = vpop.permute.xlu0 %4813
      %4817 = vset.pattern.permute.xlu0 0
      %4818 = vperm.xlu0 %4817, %v4380
      %v4819 = vpop.permute.xlu0 %4818
      %4822 = vset.pattern.permute.xlu0 0
      %4823 = vperm.xlu0 %4822, %v4381
      %v4824 = vpop.permute.xlu0 %4823
      %4827 = vset.pattern.permute.xlu0 0
      %4828 = vperm.xlu0 %4827, %v4382
      %v4829 = vpop.permute.xlu0 %4828
      %4832 = vset.pattern.permute.xlu0 0
      %4833 = vperm.xlu0 %4832, %v4383
      %v4834 = vpop.permute.xlu0 %4833
      %4837 = vset.pattern.permute.xlu0 0
      %4838 = vperm.xlu0 %4837, %v4384
      %v4839 = vpop.permute.xlu0 %4838
      %4842 = vset.pattern.permute.xlu0 0
      %4843 = vperm.xlu0 %4842, %v4385
      %v4844 = vpop.permute.xlu0 %4843
      %4847 = vset.pattern.permute.xlu0 0
      %4848 = vperm.xlu0 %4847, %v4386
      %v4849 = vpop.permute.xlu0 %4848
      %4852 = vset.pattern.permute.xlu0 0
      %4853 = vperm.xlu0 %4852, %v4387
      %v4854 = vpop.permute.xlu0 %4853
      %4857 = vset.pattern.permute.xlu0 0
      %4858 = vperm.xlu0 %4857, %v4388
      %v4859 = vpop.permute.xlu0 %4858
      %4862 = vset.pattern.permute.xlu0 0
      %4863 = vperm.xlu0 %4862, %v4389
      %v4864 = vpop.permute.xlu0 %4863
      %4867 = vset.pattern.permute.xlu0 0
      %4868 = vperm.xlu0 %4867, %v4390
      %v4869 = vpop.permute.xlu0 %4868
      %4872 = vset.pattern.permute.xlu0 0
      %4873 = vperm.xlu0 %4872, %v4391
      %v4874 = vpop.permute.xlu0 %4873
      %4877 = vset.pattern.permute.xlu0 0
      %4878 = vperm.xlu0 %4877, %v4392
      %v4879 = vpop.permute.xlu0 %4878
      %4882 = vset.pattern.permute.xlu0 0
      %4883 = vperm.xlu0 %4882, %v4393
      %v4884 = vpop.permute.xlu0 %4883
      %4887 = vset.pattern.permute.xlu0 0
      %4888 = vperm.xlu0 %4887, %v4394
      %v4889 = vpop.permute.xlu0 %4888
      %4892 = vset.pattern.permute.xlu0 0
      %4893 = vperm.xlu0 %4892, %v4395
      %v4894 = vpop.permute.xlu0 %4893
      %4897 = vset.pattern.permute.xlu0 0
      %4898 = vperm.xlu0 %4897, %v4396
      %v4899 = vpop.permute.xlu0 %4898
      %4902 = vset.pattern.permute.xlu0 0
      %4903 = vperm.xlu0 %4902, %v4397
      %v4904 = vpop.permute.xlu0 %4903
      %4907 = vset.pattern.permute.xlu0 0
      %4908 = vperm.xlu0 %4907, %v4398
      %v4909 = vpop.permute.xlu0 %4908
      %4912 = vset.pattern.permute.xlu0 0
      %4913 = vperm.xlu0 %4912, %v4399
      %v4914 = vpop.permute.xlu0 %4913
      %4917 = vset.pattern.permute.xlu0 0
      %4918 = vperm.xlu0 %4917, %v4400
      %v4919 = vpop.permute.xlu0 %4918
      %4922 = vset.pattern.permute.xlu0 0
      %4923 = vperm.xlu0 %4922, %v4401
      %v4924 = vpop.permute.xlu0 %4923
      %4927 = vset.pattern.permute.xlu0 0
      %4928 = vperm.xlu0 %4927, %v4402
      %v4929 = vpop.permute.xlu0 %4928
      %4932 = vset.pattern.permute.xlu0 0
      %4933 = vperm.xlu0 %4932, %v4403
      %v4934 = vpop.permute.xlu0 %4933
      %4937 = vset.pattern.permute.xlu0 0
      %4938 = vperm.xlu0 %4937, %v4404
      %v4939 = vpop.permute.xlu0 %4938
      %4942 = vset.pattern.permute.xlu0 0
      %4943 = vperm.xlu0 %4942, %v4405
      %v4944 = vpop.permute.xlu0 %4943
      %4947 = vset.pattern.permute.xlu0 0
      %4948 = vperm.xlu0 %4947, %v4406
      %v4949 = vpop.permute.xlu0 %4948
      %4952 = vset.pattern.permute.xlu0 0
      %4953 = vperm.xlu0 %4952, %v4407
      %v4954 = vpop.permute.xlu0 %4953
      %4957 = vset.pattern.permute.xlu0 0
      %4958 = vperm.xlu0 %4957, %v4408
      %v4959 = vpop.permute.xlu0 %4958
      %4962 = vset.pattern.permute.xlu0 0
      %4963 = vperm.xlu0 %4962, %v4409
      %v4964 = vpop.permute.xlu0 %4963
      %4967 = vset.pattern.permute.xlu0 0
      %4968 = vperm.xlu0 %4967, %v4410
      %v4969 = vpop.permute.xlu0 %4968
      %4972 = vset.pattern.permute.xlu0 0
      %4973 = vperm.xlu0 %4972, %v4411
      %v4974 = vpop.permute.xlu0 %4973
      %4977 = vset.pattern.permute.xlu0 0
      %4978 = vperm.xlu0 %4977, %v4412
      %v4979 = vpop.permute.xlu0 %4978
      %4982 = vset.pattern.permute.xlu0 0
      %4983 = vperm.xlu0 %4982, %v4413
      %v4984 = vpop.permute.xlu0 %4983
      %4987 = vset.pattern.permute.xlu0 0
      %4988 = vperm.xlu0 %4987, %v4414
      %v4989 = vpop.permute.xlu0 %4988
      %4992 = vset.pattern.permute.xlu0 0
      %4993 = vperm.xlu0 %4992, %v4415
      %v4994 = vpop.permute.xlu0 %4993
      %4997 = vset.pattern.permute.xlu0 0
      %4998 = vperm.xlu0 %4997, %v4416
      %v4999 = vpop.permute.xlu0 %4998
      %5002 = vset.pattern.permute.xlu0 0
      %5003 = vperm.xlu0 %5002, %v4417
      %v5004 = vpop.permute.xlu0 %5003
      %5007 = vset.pattern.permute.xlu0 0
      %5008 = vperm.xlu0 %5007, %v4418
      %v5009 = vpop.permute.xlu0 %5008
      %5012 = vset.pattern.permute.xlu0 0
      %5013 = vperm.xlu0 %5012, %v4419
      %v5014 = vpop.permute.xlu0 %5013
      %5017 = vset.pattern.permute.xlu0 0
      %5018 = vperm.xlu0 %5017, %v4420
      %v5019 = vpop.permute.xlu0 %5018
      %5022 = vset.pattern.permute.xlu0 0
      %5023 = vperm.xlu0 %5022, %v4421
      %v5024 = vpop.permute.xlu0 %5023
      %5027 = vset.pattern.permute.xlu0 0
      %5028 = vperm.xlu0 %5027, %v4422
      %v5029 = vpop.permute.xlu0 %5028
      %5032 = vset.pattern.permute.xlu0 0
      %5033 = vperm.xlu0 %5032, %v4423
      %v5034 = vpop.permute.xlu0 %5033
      %5037 = vset.pattern.permute.xlu0 0
      %5038 = vperm.xlu0 %5037, %v4424
      %v5039 = vpop.permute.xlu0 %5038
      %5042 = vset.pattern.permute.xlu0 0
      %5043 = vperm.xlu0 %5042, %v4425
      %v5044 = vpop.permute.xlu0 %5043
      %5047 = vset.pattern.permute.xlu0 0
      %5048 = vperm.xlu0 %5047, %v4426
      %v5049 = vpop.permute.xlu0 %5048
      %5052 = vset.pattern.permute.xlu0 0
      %5053 = vperm.xlu0 %5052, %v4427
      %v5054 = vpop.permute.xlu0 %5053
      %5057 = vset.pattern.permute.xlu0 0
      %5058 = vperm.xlu0 %5057, %v4428
      %v5059 = vpop.permute.xlu0 %5058
      %5062 = vset.pattern.permute.xlu0 0
      %5063 = vperm.xlu0 %5062, %v4429
      %v5064 = vpop.permute.xlu0 %5063
      %5067 = vset.pattern.permute.xlu0 0
      %5068 = vperm.xlu0 %5067, %v4430
      %v5069 = vpop.permute.xlu0 %5068
      %v5071 = vmul.f32 %v4434, %v3789
      %v5072 = vmul.f32 %v4439, %v3789
      %v5073 = vmul.f32 %v4444, %v3789
      %v5074 = vmul.f32 %v4449, %v3789
      %v5075 = vmul.f32 %v4454, %v3789
      %v5076 = vmul.f32 %v4459, %v3789
      %v5077 = vmul.f32 %v4464, %v3789
      %v5078 = vmul.f32 %v4469, %v3789
      %v5079 = vmul.f32 %v4474, %v3789
      %v5080 = vmul.f32 %v4479, %v3789
      %v5081 = vmul.f32 %v4484, %v3789
      %v5082 = vmul.f32 %v4489, %v3789
      %v5083 = vmul.f32 %v4494, %v3789
      %v5084 = vmul.f32 %v4499, %v3789
      %v5085 = vmul.f32 %v4504, %v3789
      %v5086 = vmul.f32 %v4509, %v3789
      %v5087 = vmul.f32 %v4514, %v3789
      %v5088 = vmul.f32 %v4519, %v3789
      %v5089 = vmul.f32 %v4524, %v3789
      %v5090 = vmul.f32 %v4529, %v3789
      %v5091 = vmul.f32 %v4534, %v3789
      %v5092 = vmul.f32 %v4539, %v3789
      %v5093 = vmul.f32 %v4544, %v3789
      %v5094 = vmul.f32 %v4549, %v3789
      %v5095 = vmul.f32 %v4554, %v3789
      %v5096 = vmul.f32 %v4559, %v3789
      %v5097 = vmul.f32 %v4564, %v3789
      %v5098 = vmul.f32 %v4569, %v3789
      %v5099 = vmul.f32 %v4574, %v3789
      %v5100 = vmul.f32 %v4579, %v3789
      %v5101 = vmul.f32 %v4584, %v3789
      %v5102 = vmul.f32 %v4589, %v3789
      %v5103 = vmul.f32 %v4594, %v3789
      %v5104 = vmul.f32 %v4599, %v3789
      %v5105 = vmul.f32 %v4604, %v3789
      %v5106 = vmul.f32 %v4609, %v3789
      %v5107 = vmul.f32 %v4614, %v3789
      %v5108 = vmul.f32 %v4619, %v3789
      %v5109 = vmul.f32 %v4624, %v3789
      %v5110 = vmul.f32 %v4629, %v3789
      %v5111 = vmul.f32 %v4634, %v3789
      %v5112 = vmul.f32 %v4639, %v3789
      %v5113 = vmul.f32 %v4644, %v3789
      %v5114 = vmul.f32 %v4649, %v3789
      %v5115 = vmul.f32 %v4654, %v3789
      %v5116 = vmul.f32 %v4659, %v3789
      %v5117 = vmul.f32 %v4664, %v3789
      %v5118 = vmul.f32 %v4669, %v3789
      %v5119 = vmul.f32 %v4674, %v3789
      %v5120 = vmul.f32 %v4679, %v3789
      %v5121 = vmul.f32 %v4684, %v3789
      %v5122 = vmul.f32 %v4689, %v3789
      %v5123 = vmul.f32 %v4694, %v3789
      %v5124 = vmul.f32 %v4699, %v3789
      %v5125 = vmul.f32 %v4704, %v3789
      %v5126 = vmul.f32 %v4709, %v3789
      %v5127 = vmul.f32 %v4714, %v3789
      %v5128 = vmul.f32 %v4719, %v3789
      %v5129 = vmul.f32 %v4724, %v3789
      %v5130 = vmul.f32 %v4729, %v3789
      %v5131 = vmul.f32 %v4734, %v3789
      %v5132 = vmul.f32 %v4739, %v3789
      %v5133 = vmul.f32 %v4744, %v3789
      %v5134 = vmul.f32 %v4749, %v3789
      %v5135 = vmul.f32 %v4754, %v3789
      %v5136 = vmul.f32 %v4759, %v3789
      %v5137 = vmul.f32 %v4764, %v3789
      %v5138 = vmul.f32 %v4769, %v3789
      %v5139 = vmul.f32 %v4774, %v3789
      %v5140 = vmul.f32 %v4779, %v3789
      %v5141 = vmul.f32 %v4784, %v3789
      %v5142 = vmul.f32 %v4789, %v3789
      %v5143 = vmul.f32 %v4794, %v3789
      %v5144 = vmul.f32 %v4799, %v3789
      %v5145 = vmul.f32 %v4804, %v3789
      %v5146 = vmul.f32 %v4809, %v3789
      %v5147 = vmul.f32 %v4814, %v3789
      %v5148 = vmul.f32 %v4819, %v3789
      %v5149 = vmul.f32 %v4824, %v3789
      %v5150 = vmul.f32 %v4829, %v3789
      %v5151 = vmul.f32 %v4834, %v3789
      %v5152 = vmul.f32 %v4839, %v3789
      %v5153 = vmul.f32 %v4844, %v3789
      %v5154 = vmul.f32 %v4849, %v3789
      %v5155 = vmul.f32 %v4854, %v3789
      %v5156 = vmul.f32 %v4859, %v3789
      %v5157 = vmul.f32 %v4864, %v3789
      %v5158 = vmul.f32 %v4869, %v3789
      %v5159 = vmul.f32 %v4874, %v3789
      %v5160 = vmul.f32 %v4879, %v3789
      %v5161 = vmul.f32 %v4884, %v3789
      %v5162 = vmul.f32 %v4889, %v3789
      %v5163 = vmul.f32 %v4894, %v3789
      %v5164 = vmul.f32 %v4899, %v3789
      %v5165 = vmul.f32 %v4904, %v3789
      %v5166 = vmul.f32 %v4909, %v3789
      %v5167 = vmul.f32 %v4914, %v3789
      %v5168 = vmul.f32 %v4919, %v3789
      %v5169 = vmul.f32 %v4924, %v3789
      %v5170 = vmul.f32 %v4929, %v3789
      %v5171 = vmul.f32 %v4934, %v3789
      %v5172 = vmul.f32 %v4939, %v3789
      %v5173 = vmul.f32 %v4944, %v3789
      %v5174 = vmul.f32 %v4949, %v3789
      %v5175 = vmul.f32 %v4954, %v3789
      %v5176 = vmul.f32 %v4959, %v3789
      %v5177 = vmul.f32 %v4964, %v3789
      %v5178 = vmul.f32 %v4969, %v3789
      %v5179 = vmul.f32 %v4974, %v3789
      %v5180 = vmul.f32 %v4979, %v3789
      %v5181 = vmul.f32 %v4984, %v3789
      %v5182 = vmul.f32 %v4989, %v3789
      %v5183 = vmul.f32 %v4994, %v3789
      %v5184 = vmul.f32 %v4999, %v3789
      %v5185 = vmul.f32 %v5004, %v3789
      %v5186 = vmul.f32 %v5009, %v3789
      %v5187 = vmul.f32 %v5014, %v3789
      %v5188 = vmul.f32 %v5019, %v3789
      %v5189 = vmul.f32 %v5024, %v3789
      %v5190 = vmul.f32 %v5029, %v3789
      %v5191 = vmul.f32 %v5034, %v3789
      %v5192 = vmul.f32 %v5039, %v3789
      %v5193 = vmul.f32 %v5044, %v3789
      %v5194 = vmul.f32 %v5049, %v3789
      %v5195 = vmul.f32 %v5054, %v3789
      %v5196 = vmul.f32 %v5059, %v3789
      %v5197 = vmul.f32 %v5064, %v3789
      %v5198 = vmul.f32 %v5069, %v3789
      %v5199 = vmul.f32 %v3791, %v5071
      %v5200 = vmul.f32 %v3792, %v5072
      %v5201 = vmul.f32 %v3793, %v5073
      %v5202 = vmul.f32 %v3794, %v5074
      %v5203 = vmul.f32 %v3795, %v5075
      %v5204 = vmul.f32 %v3796, %v5076
      %v5205 = vmul.f32 %v3797, %v5077
      %v5206 = vmul.f32 %v3798, %v5078
      %v5207 = vmul.f32 %v3799, %v5079
      %v5208 = vmul.f32 %v3800, %v5080
      %v5209 = vmul.f32 %v3801, %v5081
      %v5210 = vmul.f32 %v3802, %v5082
      %v5211 = vmul.f32 %v3803, %v5083
      %v5212 = vmul.f32 %v3804, %v5084
      %v5213 = vmul.f32 %v3805, %v5085
      %v5214 = vmul.f32 %v3806, %v5086
      %v5215 = vmul.f32 %v3807, %v5087
      %v5216 = vmul.f32 %v3808, %v5088
      %v5217 = vmul.f32 %v3809, %v5089
      %v5218 = vmul.f32 %v3810, %v5090
      %v5219 = vmul.f32 %v3811, %v5091
      %v5220 = vmul.f32 %v3812, %v5092
      %v5221 = vmul.f32 %v3813, %v5093
      %v5222 = vmul.f32 %v3814, %v5094
      %v5223 = vmul.f32 %v3815, %v5095
      %v5224 = vmul.f32 %v3816, %v5096
      %v5225 = vmul.f32 %v3817, %v5097
      %v5226 = vmul.f32 %v3818, %v5098
      %v5227 = vmul.f32 %v3819, %v5099
      %v5228 = vmul.f32 %v3820, %v5100
      %v5229 = vmul.f32 %v3821, %v5101
      %v5230 = vmul.f32 %v3822, %v5102
      %v5231 = vmul.f32 %v3823, %v5103
      %v5232 = vmul.f32 %v3824, %v5104
      %v5233 = vmul.f32 %v3825, %v5105
      %v5234 = vmul.f32 %v3826, %v5106
      %v5235 = vmul.f32 %v3827, %v5107
      %v5236 = vmul.f32 %v3828, %v5108
      %v5237 = vmul.f32 %v3829, %v5109
      %v5238 = vmul.f32 %v3830, %v5110
      %v5239 = vmul.f32 %v3831, %v5111
      %v5240 = vmul.f32 %v3832, %v5112
      %v5241 = vmul.f32 %v3833, %v5113
      %v5242 = vmul.f32 %v3834, %v5114
      %v5243 = vmul.f32 %v3835, %v5115
      %v5244 = vmul.f32 %v3836, %v5116
      %v5245 = vmul.f32 %v3837, %v5117
      %v5246 = vmul.f32 %v3838, %v5118
      %v5247 = vmul.f32 %v3839, %v5119
      %v5248 = vmul.f32 %v3840, %v5120
      %v5249 = vmul.f32 %v3841, %v5121
      %v5250 = vmul.f32 %v3842, %v5122
      %v5251 = vmul.f32 %v3843, %v5123
      %v5252 = vmul.f32 %v3844, %v5124
      %v5253 = vmul.f32 %v3845, %v5125
      %v5254 = vmul.f32 %v3846, %v5126
      %v5255 = vmul.f32 %v3847, %v5127
      %v5256 = vmul.f32 %v3848, %v5128
      %v5257 = vmul.f32 %v3849, %v5129
      %v5258 = vmul.f32 %v3850, %v5130
      %v5259 = vmul.f32 %v3851, %v5131
      %v5260 = vmul.f32 %v3852, %v5132
      %v5261 = vmul.f32 %v3853, %v5133
      %v5262 = vmul.f32 %v3854, %v5134
      %v5263 = vmul.f32 %v3855, %v5135
      %v5264 = vmul.f32 %v3856, %v5136
      %v5265 = vmul.f32 %v3857, %v5137
      %v5266 = vmul.f32 %v3858, %v5138
      %v5267 = vmul.f32 %v3859, %v5139
      %v5268 = vmul.f32 %v3860, %v5140
      %v5269 = vmul.f32 %v3861, %v5141
      %v5270 = vmul.f32 %v3862, %v5142
      %v5271 = vmul.f32 %v3863, %v5143
      %v5272 = vmul.f32 %v3864, %v5144
      %v5273 = vmul.f32 %v3865, %v5145
      %v5274 = vmul.f32 %v3866, %v5146
      %v5275 = vmul.f32 %v3867, %v5147
      %v5276 = vmul.f32 %v3868, %v5148
      %v5277 = vmul.f32 %v3869, %v5149
      %v5278 = vmul.f32 %v3870, %v5150
      %v5279 = vmul.f32 %v3871, %v5151
      %v5280 = vmul.f32 %v3872, %v5152
      %v5281 = vmul.f32 %v3873, %v5153
      %v5282 = vmul.f32 %v3874, %v5154
      %v5283 = vmul.f32 %v3875, %v5155
      %v5284 = vmul.f32 %v3876, %v5156
      %v5285 = vmul.f32 %v3877, %v5157
      %v5286 = vmul.f32 %v3878, %v5158
      %v5287 = vmul.f32 %v3879, %v5159
      %v5288 = vmul.f32 %v3880, %v5160
      %v5289 = vmul.f32 %v3881, %v5161
      %v5290 = vmul.f32 %v3882, %v5162
      %v5291 = vmul.f32 %v3883, %v5163
      %v5292 = vmul.f32 %v3884, %v5164
      %v5293 = vmul.f32 %v3885, %v5165
      %v5294 = vmul.f32 %v3886, %v5166
      %v5295 = vmul.f32 %v3887, %v5167
      %v5296 = vmul.f32 %v3888, %v5168
      %v5297 = vmul.f32 %v3889, %v5169
      %v5298 = vmul.f32 %v3890, %v5170
      %v5299 = vmul.f32 %v3891, %v5171
      %v5300 = vmul.f32 %v3892, %v5172
      %v5301 = vmul.f32 %v3893, %v5173
      %v5302 = vmul.f32 %v3894, %v5174
      %v5303 = vmul.f32 %v3895, %v5175
      %v5304 = vmul.f32 %v3896, %v5176
      %v5305 = vmul.f32 %v3897, %v5177
      %v5306 = vmul.f32 %v3898, %v5178
      %v5307 = vmul.f32 %v3899, %v5179
      %v5308 = vmul.f32 %v3900, %v5180
      %v5309 = vmul.f32 %v3901, %v5181
      %v5310 = vmul.f32 %v3902, %v5182
      %v5311 = vmul.f32 %v3903, %v5183
      %v5312 = vmul.f32 %v3904, %v5184
      %v5313 = vmul.f32 %v3905, %v5185
      %v5314 = vmul.f32 %v3906, %v5186
      %v5315 = vmul.f32 %v3907, %v5187
      %v5316 = vmul.f32 %v3908, %v5188
      %v5317 = vmul.f32 %v3909, %v5189
      %v5318 = vmul.f32 %v3910, %v5190
      %v5319 = vmul.f32 %v3911, %v5191
      %v5320 = vmul.f32 %v3912, %v5192
      %v5321 = vmul.f32 %v3913, %v5193
      %v5322 = vmul.f32 %v3914, %v5194
      %v5323 = vmul.f32 %v3915, %v5195
      %v5324 = vmul.f32 %v3916, %v5196
      %v5325 = vmul.f32 %v3917, %v5197
      %v5326 = vmul.f32 %v3918, %v5198
      %v5327 = vsub.f32 0.5, %v5199
      %v5328 = vsub.f32 0.5, %v5200
      %v5329 = vsub.f32 0.5, %v5201
      %v5330 = vsub.f32 0.5, %v5202
      %v5331 = vsub.f32 0.5, %v5203
      %v5332 = vsub.f32 0.5, %v5204
      %v5333 = vsub.f32 0.5, %v5205
      %v5334 = vsub.f32 0.5, %v5206
      %v5335 = vsub.f32 0.5, %v5207
      %v5336 = vsub.f32 0.5, %v5208
      %v5337 = vsub.f32 0.5, %v5209
      %v5338 = vsub.f32 0.5, %v5210
      %v5339 = vsub.f32 0.5, %v5211
      %v5340 = vsub.f32 0.5, %v5212
      %v5341 = vsub.f32 0.5, %v5213
      %v5342 = vsub.f32 0.5, %v5214
      %v5343 = vsub.f32 0.5, %v5215
      %v5344 = vsub.f32 0.5, %v5216
      %v5345 = vsub.f32 0.5, %v5217
      %v5346 = vsub.f32 0.5, %v5218
      %v5347 = vsub.f32 0.5, %v5219
      %v5348 = vsub.f32 0.5, %v5220
      %v5349 = vsub.f32 0.5, %v5221
      %v5350 = vsub.f32 0.5, %v5222
      %v5351 = vsub.f32 0.5, %v5223
      %v5352 = vsub.f32 0.5, %v5224
      %v5353 = vsub.f32 0.5, %v5225
      %v5354 = vsub.f32 0.5, %v5226
      %v5355 = vsub.f32 0.5, %v5227
      %v5356 = vsub.f32 0.5, %v5228
      %v5357 = vsub.f32 0.5, %v5229
      %v5358 = vsub.f32 0.5, %v5230
      %v5359 = vsub.f32 0.5, %v5231
      %v5360 = vsub.f32 0.5, %v5232
      %v5361 = vsub.f32 0.5, %v5233
      %v5362 = vsub.f32 0.5, %v5234
      %v5363 = vsub.f32 0.5, %v5235
      %v5364 = vsub.f32 0.5, %v5236
      %v5365 = vsub.f32 0.5, %v5237
      %v5366 = vsub.f32 0.5, %v5238
      %v5367 = vsub.f32 0.5, %v5239
      %v5368 = vsub.f32 0.5, %v5240
      %v5369 = vsub.f32 0.5, %v5241
      %v5370 = vsub.f32 0.5, %v5242
      %v5371 = vsub.f32 0.5, %v5243
      %v5372 = vsub.f32 0.5, %v5244
      %v5373 = vsub.f32 0.5, %v5245
      %v5374 = vsub.f32 0.5, %v5246
      %v5375 = vsub.f32 0.5, %v5247
      %v5376 = vsub.f32 0.5, %v5248
      %v5377 = vsub.f32 0.5, %v5249
      %v5378 = vsub.f32 0.5, %v5250
      %v5379 = vsub.f32 0.5, %v5251
      %v5380 = vsub.f32 0.5, %v5252
      %v5381 = vsub.f32 0.5, %v5253
      %v5382 = vsub.f32 0.5, %v5254
      %v5383 = vsub.f32 0.5, %v5255
      %v5384 = vsub.f32 0.5, %v5256
      %v5385 = vsub.f32 0.5, %v5257
      %v5386 = vsub.f32 0.5, %v5258
      %v5387 = vsub.f32 0.5, %v5259
      %v5388 = vsub.f32 0.5, %v5260
      %v5389 = vsub.f32 0.5, %v5261
      %v5390 = vsub.f32 0.5, %v5262
      %v5391 = vsub.f32 0.5, %v5263
      %v5392 = vsub.f32 0.5, %v5264
      %v5393 = vsub.f32 0.5, %v5265
      %v5394 = vsub.f32 0.5, %v5266
      %v5395 = vsub.f32 0.5, %v5267
      %v5396 = vsub.f32 0.5, %v5268
      %v5397 = vsub.f32 0.5, %v5269
      %v5398 = vsub.f32 0.5, %v5270
      %v5399 = vsub.f32 0.5, %v5271
      %v5400 = vsub.f32 0.5, %v5272
      %v5401 = vsub.f32 0.5, %v5273
      %v5402 = vsub.f32 0.5, %v5274
      %v5403 = vsub.f32 0.5, %v5275
      %v5404 = vsub.f32 0.5, %v5276
      %v5405 = vsub.f32 0.5, %v5277
      %v5406 = vsub.f32 0.5, %v5278
      %v5407 = vsub.f32 0.5, %v5279
      %v5408 = vsub.f32 0.5, %v5280
      %v5409 = vsub.f32 0.5, %v5281
      %v5410 = vsub.f32 0.5, %v5282
      %v5411 = vsub.f32 0.5, %v5283
      %v5412 = vsub.f32 0.5, %v5284
      %v5413 = vsub.f32 0.5, %v5285
      %v5414 = vsub.f32 0.5, %v5286
      %v5415 = vsub.f32 0.5, %v5287
      %v5416 = vsub.f32 0.5, %v5288
      %v5417 = vsub.f32 0.5, %v5289
      %v5418 = vsub.f32 0.5, %v5290
      %v5419 = vsub.f32 0.5, %v5291
      %v5420 = vsub.f32 0.5, %v5292
      %v5421 = vsub.f32 0.5, %v5293
      %v5422 = vsub.f32 0.5, %v5294
      %v5423 = vsub.f32 0.5, %v5295
      %v5424 = vsub.f32 0.5, %v5296
      %v5425 = vsub.f32 0.5, %v5297
      %v5426 = vsub.f32 0.5, %v5298
      %v5427 = vsub.f32 0.5, %v5299
      %v5428 = vsub.f32 0.5, %v5300
      %v5429 = vsub.f32 0.5, %v5301
      %v5430 = vsub.f32 0.5, %v5302
      %v5431 = vsub.f32 0.5, %v5303
      %v5432 = vsub.f32 0.5, %v5304
      %v5433 = vsub.f32 0.5, %v5305
      %v5434 = vsub.f32 0.5, %v5306
      %v5435 = vsub.f32 0.5, %v5307
      %v5436 = vsub.f32 0.5, %v5308
      %v5437 = vsub.f32 0.5, %v5309
      %v5438 = vsub.f32 0.5, %v5310
      %v5439 = vsub.f32 0.5, %v5311
      %v5440 = vsub.f32 0.5, %v5312
      %v5441 = vsub.f32 0.5, %v5313
      %v5442 = vsub.f32 0.5, %v5314
      %v5443 = vsub.f32 0.5, %v5315
      %v5444 = vsub.f32 0.5, %v5316
      %v5445 = vsub.f32 0.5, %v5317
      %v5446 = vsub.f32 0.5, %v5318
      %v5447 = vsub.f32 0.5, %v5319
      %v5448 = vsub.f32 0.5, %v5320
      %v5449 = vsub.f32 0.5, %v5321
      %v5450 = vsub.f32 0.5, %v5322
      %v5451 = vsub.f32 0.5, %v5323
      %v5452 = vsub.f32 0.5, %v5324
      %v5453 = vsub.f32 0.5, %v5325
      %v5454 = vsub.f32 0.5, %v5326
      %v5455 = vmax.f32 %v5327, 0.0
      %v5456 = vmax.f32 %v5328, 0.0
      %v5457 = vmax.f32 %v5329, 0.0
      %v5458 = vmax.f32 %v5330, 0.0
      %v5459 = vmax.f32 %v5331, 0.0
      %v5460 = vmax.f32 %v5332, 0.0
      %v5461 = vmax.f32 %v5333, 0.0
      %v5462 = vmax.f32 %v5334, 0.0
      %v5463 = vmax.f32 %v5335, 0.0
      %v5464 = vmax.f32 %v5336, 0.0
      %v5465 = vmax.f32 %v5337, 0.0
      %v5466 = vmax.f32 %v5338, 0.0
      %v5467 = vmax.f32 %v5339, 0.0
      %v5468 = vmax.f32 %v5340, 0.0
      %v5469 = vmax.f32 %v5341, 0.0
      %v5470 = vmax.f32 %v5342, 0.0
      %v5471 = vmax.f32 %v5343, 0.0
      %v5472 = vmax.f32 %v5344, 0.0
      %v5473 = vmax.f32 %v5345, 0.0
      %v5474 = vmax.f32 %v5346, 0.0
      %v5475 = vmax.f32 %v5347, 0.0
      %v5476 = vmax.f32 %v5348, 0.0
      %v5477 = vmax.f32 %v5349, 0.0
      %v5478 = vmax.f32 %v5350, 0.0
      %v5479 = vmax.f32 %v5351, 0.0
      %v5480 = vmax.f32 %v5352, 0.0
      %v5481 = vmax.f32 %v5353, 0.0
      %v5482 = vmax.f32 %v5354, 0.0
      %v5483 = vmax.f32 %v5355, 0.0
      %v5484 = vmax.f32 %v5356, 0.0
      %v5485 = vmax.f32 %v5357, 0.0
      %v5486 = vmax.f32 %v5358, 0.0
      %v5487 = vmax.f32 %v5359, 0.0
      %v5488 = vmax.f32 %v5360, 0.0
      %v5489 = vmax.f32 %v5361, 0.0
      %v5490 = vmax.f32 %v5362, 0.0
      %v5491 = vmax.f32 %v5363, 0.0
      %v5492 = vmax.f32 %v5364, 0.0
      %v5493 = vmax.f32 %v5365, 0.0
      %v5494 = vmax.f32 %v5366, 0.0
      %v5495 = vmax.f32 %v5367, 0.0
      %v5496 = vmax.f32 %v5368, 0.0
      %v5497 = vmax.f32 %v5369, 0.0
      %v5498 = vmax.f32 %v5370, 0.0
      %v5499 = vmax.f32 %v5371, 0.0
      %v5500 = vmax.f32 %v5372, 0.0
      %v5501 = vmax.f32 %v5373, 0.0
      %v5502 = vmax.f32 %v5374, 0.0
      %v5503 = vmax.f32 %v5375, 0.0
      %v5504 = vmax.f32 %v5376, 0.0
      %v5505 = vmax.f32 %v5377, 0.0
      %v5506 = vmax.f32 %v5378, 0.0
      %v5507 = vmax.f32 %v5379, 0.0
      %v5508 = vmax.f32 %v5380, 0.0
      %v5509 = vmax.f32 %v5381, 0.0
      %v5510 = vmax.f32 %v5382, 0.0
      %v5511 = vmax.f32 %v5383, 0.0
      %v5512 = vmax.f32 %v5384, 0.0
      %v5513 = vmax.f32 %v5385, 0.0
      %v5514 = vmax.f32 %v5386, 0.0
      %v5515 = vmax.f32 %v5387, 0.0
      %v5516 = vmax.f32 %v5388, 0.0
      %v5517 = vmax.f32 %v5389, 0.0
      %v5518 = vmax.f32 %v5390, 0.0
      %v5519 = vmax.f32 %v5391, 0.0
      %v5520 = vmax.f32 %v5392, 0.0
      %v5521 = vmax.f32 %v5393, 0.0
      %v5522 = vmax.f32 %v5394, 0.0
      %v5523 = vmax.f32 %v5395, 0.0
      %v5524 = vmax.f32 %v5396, 0.0
      %v5525 = vmax.f32 %v5397, 0.0
      %v5526 = vmax.f32 %v5398, 0.0
      %v5527 = vmax.f32 %v5399, 0.0
      %v5528 = vmax.f32 %v5400, 0.0
      %v5529 = vmax.f32 %v5401, 0.0
      %v5530 = vmax.f32 %v5402, 0.0
      %v5531 = vmax.f32 %v5403, 0.0
      %v5532 = vmax.f32 %v5404, 0.0
      %v5533 = vmax.f32 %v5405, 0.0
      %v5534 = vmax.f32 %v5406, 0.0
      %v5535 = vmax.f32 %v5407, 0.0
      %v5536 = vmax.f32 %v5408, 0.0
      %v5537 = vmax.f32 %v5409, 0.0
      %v5538 = vmax.f32 %v5410, 0.0
      %v5539 = vmax.f32 %v5411, 0.0
      %v5540 = vmax.f32 %v5412, 0.0
      %v5541 = vmax.f32 %v5413, 0.0
      %v5542 = vmax.f32 %v5414, 0.0
      %v5543 = vmax.f32 %v5415, 0.0
      %v5544 = vmax.f32 %v5416, 0.0
      %v5545 = vmax.f32 %v5417, 0.0
      %v5546 = vmax.f32 %v5418, 0.0
      %v5547 = vmax.f32 %v5419, 0.0
      %v5548 = vmax.f32 %v5420, 0.0
      %v5549 = vmax.f32 %v5421, 0.0
      %v5550 = vmax.f32 %v5422, 0.0
      %v5551 = vmax.f32 %v5423, 0.0
      %v5552 = vmax.f32 %v5424, 0.0
      %v5553 = vmax.f32 %v5425, 0.0
      %v5554 = vmax.f32 %v5426, 0.0
      %v5555 = vmax.f32 %v5427, 0.0
      %v5556 = vmax.f32 %v5428, 0.0
      %v5557 = vmax.f32 %v5429, 0.0
      %v5558 = vmax.f32 %v5430, 0.0
      %v5559 = vmax.f32 %v5431, 0.0
      %v5560 = vmax.f32 %v5432, 0.0
      %v5561 = vmax.f32 %v5433, 0.0
      %v5562 = vmax.f32 %v5434, 0.0
      %v5563 = vmax.f32 %v5435, 0.0
      %v5564 = vmax.f32 %v5436, 0.0
      %v5565 = vmax.f32 %v5437, 0.0
      %v5566 = vmax.f32 %v5438, 0.0
      %v5567 = vmax.f32 %v5439, 0.0
      %v5568 = vmax.f32 %v5440, 0.0
      %v5569 = vmax.f32 %v5441, 0.0
      %v5570 = vmax.f32 %v5442, 0.0
      %v5571 = vmax.f32 %v5443, 0.0
      %v5572 = vmax.f32 %v5444, 0.0
      %v5573 = vmax.f32 %v5445, 0.0
      %v5574 = vmax.f32 %v5446, 0.0
      %v5575 = vmax.f32 %v5447, 0.0
      %v5576 = vmax.f32 %v5448, 0.0
      %v5577 = vmax.f32 %v5449, 0.0
      %v5578 = vmax.f32 %v5450, 0.0
      %v5579 = vmax.f32 %v5451, 0.0
      %v5580 = vmax.f32 %v5452, 0.0
      %v5581 = vmax.f32 %v5453, 0.0
      %v5582 = vmax.f32 %v5454, 0.0
      %v5583 = vmin.f32 %v5455, 1.0
      %v5584 = vmin.f32 %v5456, 1.0
      %v5585 = vmin.f32 %v5457, 1.0
      %v5586 = vmin.f32 %v5458, 1.0
      %v5587 = vmin.f32 %v5459, 1.0
      %v5588 = vmin.f32 %v5460, 1.0
      %v5589 = vmin.f32 %v5461, 1.0
      %v5590 = vmin.f32 %v5462, 1.0
      %v5591 = vmin.f32 %v5463, 1.0
      %v5592 = vmin.f32 %v5464, 1.0
      %v5593 = vmin.f32 %v5465, 1.0
      %v5594 = vmin.f32 %v5466, 1.0
      %v5595 = vmin.f32 %v5467, 1.0
      %v5596 = vmin.f32 %v5468, 1.0
      %v5597 = vmin.f32 %v5469, 1.0
      %v5598 = vmin.f32 %v5470, 1.0
      %v5599 = vmin.f32 %v5471, 1.0
      %v5600 = vmin.f32 %v5472, 1.0
      %v5601 = vmin.f32 %v5473, 1.0
      %v5602 = vmin.f32 %v5474, 1.0
      %v5603 = vmin.f32 %v5475, 1.0
      %v5604 = vmin.f32 %v5476, 1.0
      %v5605 = vmin.f32 %v5477, 1.0
      %v5606 = vmin.f32 %v5478, 1.0
      %v5607 = vmin.f32 %v5479, 1.0
      %v5608 = vmin.f32 %v5480, 1.0
      %v5609 = vmin.f32 %v5481, 1.0
      %v5610 = vmin.f32 %v5482, 1.0
      %v5611 = vmin.f32 %v5483, 1.0
      %v5612 = vmin.f32 %v5484, 1.0
      %v5613 = vmin.f32 %v5485, 1.0
      %v5614 = vmin.f32 %v5486, 1.0
      %v5615 = vmin.f32 %v5487, 1.0
      %v5616 = vmin.f32 %v5488, 1.0
      %v5617 = vmin.f32 %v5489, 1.0
      %v5618 = vmin.f32 %v5490, 1.0
      %v5619 = vmin.f32 %v5491, 1.0
      %v5620 = vmin.f32 %v5492, 1.0
      %v5621 = vmin.f32 %v5493, 1.0
      %v5622 = vmin.f32 %v5494, 1.0
      %v5623 = vmin.f32 %v5495, 1.0
      %v5624 = vmin.f32 %v5496, 1.0
      %v5625 = vmin.f32 %v5497, 1.0
      %v5626 = vmin.f32 %v5498, 1.0
      %v5627 = vmin.f32 %v5499, 1.0
      %v5628 = vmin.f32 %v5500, 1.0
      %v5629 = vmin.f32 %v5501, 1.0
      %v5630 = vmin.f32 %v5502, 1.0
      %v5631 = vmin.f32 %v5503, 1.0
      %v5632 = vmin.f32 %v5504, 1.0
      %v5633 = vmin.f32 %v5505, 1.0
      %v5634 = vmin.f32 %v5506, 1.0
      %v5635 = vmin.f32 %v5507, 1.0
      %v5636 = vmin.f32 %v5508, 1.0
      %v5637 = vmin.f32 %v5509, 1.0
      %v5638 = vmin.f32 %v5510, 1.0
      %v5639 = vmin.f32 %v5511, 1.0
      %v5640 = vmin.f32 %v5512, 1.0
      %v5641 = vmin.f32 %v5513, 1.0
      %v5642 = vmin.f32 %v5514, 1.0
      %v5643 = vmin.f32 %v5515, 1.0
      %v5644 = vmin.f32 %v5516, 1.0
      %v5645 = vmin.f32 %v5517, 1.0
      %v5646 = vmin.f32 %v5518, 1.0
      %v5647 = vmin.f32 %v5519, 1.0
      %v5648 = vmin.f32 %v5520, 1.0
      %v5649 = vmin.f32 %v5521, 1.0
      %v5650 = vmin.f32 %v5522, 1.0
      %v5651 = vmin.f32 %v5523, 1.0
      %v5652 = vmin.f32 %v5524, 1.0
      %v5653 = vmin.f32 %v5525, 1.0
      %v5654 = vmin.f32 %v5526, 1.0
      %v5655 = vmin.f32 %v5527, 1.0
      %v5656 = vmin.f32 %v5528, 1.0
      %v5657 = vmin.f32 %v5529, 1.0
      %v5658 = vmin.f32 %v5530, 1.0
      %v5659 = vmin.f32 %v5531, 1.0
      %v5660 = vmin.f32 %v5532, 1.0
      %v5661 = vmin.f32 %v5533, 1.0
      %v5662 = vmin.f32 %v5534, 1.0
      %v5663 = vmin.f32 %v5535, 1.0
      %v5664 = vmin.f32 %v5536, 1.0
      %v5665 = vmin.f32 %v5537, 1.0
      %v5666 = vmin.f32 %v5538, 1.0
      %v5667 = vmin.f32 %v5539, 1.0
      %v5668 = vmin.f32 %v5540, 1.0
      %v5669 = vmin.f32 %v5541, 1.0
      %v5670 = vmin.f32 %v5542, 1.0
      %v5671 = vmin.f32 %v5543, 1.0
      %v5672 = vmin.f32 %v5544, 1.0
      %v5673 = vmin.f32 %v5545, 1.0
      %v5674 = vmin.f32 %v5546, 1.0
      %v5675 = vmin.f32 %v5547, 1.0
      %v5676 = vmin.f32 %v5548, 1.0
      %v5677 = vmin.f32 %v5549, 1.0
      %v5678 = vmin.f32 %v5550, 1.0
      %v5679 = vmin.f32 %v5551, 1.0
      %v5680 = vmin.f32 %v5552, 1.0
      %v5681 = vmin.f32 %v5553, 1.0
      %v5682 = vmin.f32 %v5554, 1.0
      %v5683 = vmin.f32 %v5555, 1.0
      %v5684 = vmin.f32 %v5556, 1.0
      %v5685 = vmin.f32 %v5557, 1.0
      %v5686 = vmin.f32 %v5558, 1.0
      %v5687 = vmin.f32 %v5559, 1.0
      %v5688 = vmin.f32 %v5560, 1.0
      %v5689 = vmin.f32 %v5561, 1.0
      %v5690 = vmin.f32 %v5562, 1.0
      %v5691 = vmin.f32 %v5563, 1.0
      %v5692 = vmin.f32 %v5564, 1.0
      %v5693 = vmin.f32 %v5565, 1.0
      %v5694 = vmin.f32 %v5566, 1.0
      %v5695 = vmin.f32 %v5567, 1.0
      %v5696 = vmin.f32 %v5568, 1.0
      %v5697 = vmin.f32 %v5569, 1.0
      %v5698 = vmin.f32 %v5570, 1.0
      %v5699 = vmin.f32 %v5571, 1.0
      %v5700 = vmin.f32 %v5572, 1.0
      %v5701 = vmin.f32 %v5573, 1.0
      %v5702 = vmin.f32 %v5574, 1.0
      %v5703 = vmin.f32 %v5575, 1.0
      %v5704 = vmin.f32 %v5576, 1.0
      %v5705 = vmin.f32 %v5577, 1.0
      %v5706 = vmin.f32 %v5578, 1.0
      %v5707 = vmin.f32 %v5579, 1.0
      %v5708 = vmin.f32 %v5580, 1.0
      %v5709 = vmin.f32 %v5581, 1.0
      %v5710 = vmin.f32 %v5582, 1.0
      %v5711 = vmin.f32 %v5583, 0.999999
      %v5712 = vmin.f32 %v5584, 0.999999
      %v5713 = vmin.f32 %v5585, 0.999999
      %v5714 = vmin.f32 %v5586, 0.999999
      %v5715 = vmin.f32 %v5587, 0.999999
      %v5716 = vmin.f32 %v5588, 0.999999
      %v5717 = vmin.f32 %v5589, 0.999999
      %v5718 = vmin.f32 %v5590, 0.999999
      %v5719 = vmin.f32 %v5591, 0.999999
      %v5720 = vmin.f32 %v5592, 0.999999
      %v5721 = vmin.f32 %v5593, 0.999999
      %v5722 = vmin.f32 %v5594, 0.999999
      %v5723 = vmin.f32 %v5595, 0.999999
      %v5724 = vmin.f32 %v5596, 0.999999
      %v5725 = vmin.f32 %v5597, 0.999999
      %v5726 = vmin.f32 %v5598, 0.999999
      %v5727 = vmin.f32 %v5599, 0.999999
      %v5728 = vmin.f32 %v5600, 0.999999
      %v5729 = vmin.f32 %v5601, 0.999999
      %v5730 = vmin.f32 %v5602, 0.999999
      %v5731 = vmin.f32 %v5603, 0.999999
      %v5732 = vmin.f32 %v5604, 0.999999
      %v5733 = vmin.f32 %v5605, 0.999999
      %v5734 = vmin.f32 %v5606, 0.999999
      %v5735 = vmin.f32 %v5607, 0.999999
      %v5736 = vmin.f32 %v5608, 0.999999
      %v5737 = vmin.f32 %v5609, 0.999999
      %v5738 = vmin.f32 %v5610, 0.999999
      %v5739 = vmin.f32 %v5611, 0.999999
      %v5740 = vmin.f32 %v5612, 0.999999
      %v5741 = vmin.f32 %v5613, 0.999999
      %v5742 = vmin.f32 %v5614, 0.999999
      %v5743 = vmin.f32 %v5615, 0.999999
      %v5744 = vmin.f32 %v5616, 0.999999
      %v5745 = vmin.f32 %v5617, 0.999999
      %v5746 = vmin.f32 %v5618, 0.999999
      %v5747 = vmin.f32 %v5619, 0.999999
      %v5748 = vmin.f32 %v5620, 0.999999
      %v5749 = vmin.f32 %v5621, 0.999999
      %v5750 = vmin.f32 %v5622, 0.999999
      %v5751 = vmin.f32 %v5623, 0.999999
      %v5752 = vmin.f32 %v5624, 0.999999
      %v5753 = vmin.f32 %v5625, 0.999999
      %v5754 = vmin.f32 %v5626, 0.999999
      %v5755 = vmin.f32 %v5627, 0.999999
      %v5756 = vmin.f32 %v5628, 0.999999
      %v5757 = vmin.f32 %v5629, 0.999999
      %v5758 = vmin.f32 %v5630, 0.999999
      %v5759 = vmin.f32 %v5631, 0.999999
      %v5760 = vmin.f32 %v5632, 0.999999
      %v5761 = vmin.f32 %v5633, 0.999999
      %v5762 = vmin.f32 %v5634, 0.999999
      %v5763 = vmin.f32 %v5635, 0.999999
      %v5764 = vmin.f32 %v5636, 0.999999
      %v5765 = vmin.f32 %v5637, 0.999999
      %v5766 = vmin.f32 %v5638, 0.999999
      %v5767 = vmin.f32 %v5639, 0.999999
      %v5768 = vmin.f32 %v5640, 0.999999
      %v5769 = vmin.f32 %v5641, 0.999999
      %v5770 = vmin.f32 %v5642, 0.999999
      %v5771 = vmin.f32 %v5643, 0.999999
      %v5772 = vmin.f32 %v5644, 0.999999
      %v5773 = vmin.f32 %v5645, 0.999999
      %v5774 = vmin.f32 %v5646, 0.999999
      %v5775 = vmin.f32 %v5647, 0.999999
      %v5776 = vmin.f32 %v5648, 0.999999
      %v5777 = vmin.f32 %v5649, 0.999999
      %v5778 = vmin.f32 %v5650, 0.999999
      %v5779 = vmin.f32 %v5651, 0.999999
      %v5780 = vmin.f32 %v5652, 0.999999
      %v5781 = vmin.f32 %v5653, 0.999999
      %v5782 = vmin.f32 %v5654, 0.999999
      %v5783 = vmin.f32 %v5655, 0.999999
      %v5784 = vmin.f32 %v5656, 0.999999
      %v5785 = vmin.f32 %v5657, 0.999999
      %v5786 = vmin.f32 %v5658, 0.999999
      %v5787 = vmin.f32 %v5659, 0.999999
      %v5788 = vmin.f32 %v5660, 0.999999
      %v5789 = vmin.f32 %v5661, 0.999999
      %v5790 = vmin.f32 %v5662, 0.999999
      %v5791 = vmin.f32 %v5663, 0.999999
      %v5792 = vmin.f32 %v5664, 0.999999
      %v5793 = vmin.f32 %v5665, 0.999999
      %v5794 = vmin.f32 %v5666, 0.999999
      %v5795 = vmin.f32 %v5667, 0.999999
      %v5796 = vmin.f32 %v5668, 0.999999
      %v5797 = vmin.f32 %v5669, 0.999999
      %v5798 = vmin.f32 %v5670, 0.999999
      %v5799 = vmin.f32 %v5671, 0.999999
      %v5800 = vmin.f32 %v5672, 0.999999
      %v5801 = vmin.f32 %v5673, 0.999999
      %v5802 = vmin.f32 %v5674, 0.999999
      %v5803 = vmin.f32 %v5675, 0.999999
      %v5804 = vmin.f32 %v5676, 0.999999
      %v5805 = vmin.f32 %v5677, 0.999999
      %v5806 = vmin.f32 %v5678, 0.999999
      %v5807 = vmin.f32 %v5679, 0.999999
      %v5808 = vmin.f32 %v5680, 0.999999
      %v5809 = vmin.f32 %v5681, 0.999999
      %v5810 = vmin.f32 %v5682, 0.999999
      %v5811 = vmin.f32 %v5683, 0.999999
      %v5812 = vmin.f32 %v5684, 0.999999
      %v5813 = vmin.f32 %v5685, 0.999999
      %v5814 = vmin.f32 %v5686, 0.999999
      %v5815 = vmin.f32 %v5687, 0.999999
      %v5816 = vmin.f32 %v5688, 0.999999
      %v5817 = vmin.f32 %v5689, 0.999999
      %v5818 = vmin.f32 %v5690, 0.999999
      %v5819 = vmin.f32 %v5691, 0.999999
      %v5820 = vmin.f32 %v5692, 0.999999
      %v5821 = vmin.f32 %v5693, 0.999999
      %v5822 = vmin.f32 %v5694, 0.999999
      %v5823 = vmin.f32 %v5695, 0.999999
      %v5824 = vmin.f32 %v5696, 0.999999
      %v5825 = vmin.f32 %v5697, 0.999999
      %v5826 = vmin.f32 %v5698, 0.999999
      %v5827 = vmin.f32 %v5699, 0.999999
      %v5828 = vmin.f32 %v5700, 0.999999
      %v5829 = vmin.f32 %v5701, 0.999999
      %v5830 = vmin.f32 %v5702, 0.999999
      %v5831 = vmin.f32 %v5703, 0.999999
      %v5832 = vmin.f32 %v5704, 0.999999
      %v5833 = vmin.f32 %v5705, 0.999999
      %v5834 = vmin.f32 %v5706, 0.999999
      %v5835 = vmin.f32 %v5707, 0.999999
      %v5836 = vmin.f32 %v5708, 0.999999
      %v5837 = vmin.f32 %v5709, 0.999999
      %v5838 = vmin.f32 %v5710, 0.999999
      %v5839 = vsub.f32 1.0, %v5711
      %v5840 = vsub.f32 1.0, %v5712
      %v5841 = vsub.f32 1.0, %v5713
      %v5842 = vsub.f32 1.0, %v5714
      %v5843 = vsub.f32 1.0, %v5715
      %v5844 = vsub.f32 1.0, %v5716
      %v5845 = vsub.f32 1.0, %v5717
      %v5846 = vsub.f32 1.0, %v5718
      %v5847 = vsub.f32 1.0, %v5719
      %v5848 = vsub.f32 1.0, %v5720
      %v5849 = vsub.f32 1.0, %v5721
      %v5850 = vsub.f32 1.0, %v5722
      %v5851 = vsub.f32 1.0, %v5723
      %v5852 = vsub.f32 1.0, %v5724
      %v5853 = vsub.f32 1.0, %v5725
      %v5854 = vsub.f32 1.0, %v5726
      %v5855 = vsub.f32 1.0, %v5727
      %v5856 = vsub.f32 1.0, %v5728
      %v5857 = vsub.f32 1.0, %v5729
      %v5858 = vsub.f32 1.0, %v5730
      %v5859 = vsub.f32 1.0, %v5731
      %v5860 = vsub.f32 1.0, %v5732
      %v5861 = vsub.f32 1.0, %v5733
      %v5862 = vsub.f32 1.0, %v5734
      %v5863 = vsub.f32 1.0, %v5735
      %v5864 = vsub.f32 1.0, %v5736
      %v5865 = vsub.f32 1.0, %v5737
      %v5866 = vsub.f32 1.0, %v5738
      %v5867 = vsub.f32 1.0, %v5739
      %v5868 = vsub.f32 1.0, %v5740
      %v5869 = vsub.f32 1.0, %v5741
      %v5870 = vsub.f32 1.0, %v5742
      %v5871 = vsub.f32 1.0, %v5743
      %v5872 = vsub.f32 1.0, %v5744
      %v5873 = vsub.f32 1.0, %v5745
      %v5874 = vsub.f32 1.0, %v5746
      %v5875 = vsub.f32 1.0, %v5747
      %v5876 = vsub.f32 1.0, %v5748
      %v5877 = vsub.f32 1.0, %v5749
      %v5878 = vsub.f32 1.0, %v5750
      %v5879 = vsub.f32 1.0, %v5751
      %v5880 = vsub.f32 1.0, %v5752
      %v5881 = vsub.f32 1.0, %v5753
      %v5882 = vsub.f32 1.0, %v5754
      %v5883 = vsub.f32 1.0, %v5755
      %v5884 = vsub.f32 1.0, %v5756
      %v5885 = vsub.f32 1.0, %v5757
      %v5886 = vsub.f32 1.0, %v5758
      %v5887 = vsub.f32 1.0, %v5759
      %v5888 = vsub.f32 1.0, %v5760
      %v5889 = vsub.f32 1.0, %v5761
      %v5890 = vsub.f32 1.0, %v5762
      %v5891 = vsub.f32 1.0, %v5763
      %v5892 = vsub.f32 1.0, %v5764
      %v5893 = vsub.f32 1.0, %v5765
      %v5894 = vsub.f32 1.0, %v5766
      %v5895 = vsub.f32 1.0, %v5767
      %v5896 = vsub.f32 1.0, %v5768
      %v5897 = vsub.f32 1.0, %v5769
      %v5898 = vsub.f32 1.0, %v5770
      %v5899 = vsub.f32 1.0, %v5771
      %v5900 = vsub.f32 1.0, %v5772
      %v5901 = vsub.f32 1.0, %v5773
      %v5902 = vsub.f32 1.0, %v5774
      %v5903 = vsub.f32 1.0, %v5775
      %v5904 = vsub.f32 1.0, %v5776
      %v5905 = vsub.f32 1.0, %v5777
      %v5906 = vsub.f32 1.0, %v5778
      %v5907 = vsub.f32 1.0, %v5779
      %v5908 = vsub.f32 1.0, %v5780
      %v5909 = vsub.f32 1.0, %v5781
      %v5910 = vsub.f32 1.0, %v5782
      %v5911 = vsub.f32 1.0, %v5783
      %v5912 = vsub.f32 1.0, %v5784
      %v5913 = vsub.f32 1.0, %v5785
      %v5914 = vsub.f32 1.0, %v5786
      %v5915 = vsub.f32 1.0, %v5787
      %v5916 = vsub.f32 1.0, %v5788
      %v5917 = vsub.f32 1.0, %v5789
      %v5918 = vsub.f32 1.0, %v5790
      %v5919 = vsub.f32 1.0, %v5791
      %v5920 = vsub.f32 1.0, %v5792
      %v5921 = vsub.f32 1.0, %v5793
      %v5922 = vsub.f32 1.0, %v5794
      %v5923 = vsub.f32 1.0, %v5795
      %v5924 = vsub.f32 1.0, %v5796
      %v5925 = vsub.f32 1.0, %v5797
      %v5926 = vsub.f32 1.0, %v5798
      %v5927 = vsub.f32 1.0, %v5799
      %v5928 = vsub.f32 1.0, %v5800
      %v5929 = vsub.f32 1.0, %v5801
      %v5930 = vsub.f32 1.0, %v5802
      %v5931 = vsub.f32 1.0, %v5803
      %v5932 = vsub.f32 1.0, %v5804
      %v5933 = vsub.f32 1.0, %v5805
      %v5934 = vsub.f32 1.0, %v5806
      %v5935 = vsub.f32 1.0, %v5807
      %v5936 = vsub.f32 1.0, %v5808
      %v5937 = vsub.f32 1.0, %v5809
      %v5938 = vsub.f32 1.0, %v5810
      %v5939 = vsub.f32 1.0, %v5811
      %v5940 = vsub.f32 1.0, %v5812
      %v5941 = vsub.f32 1.0, %v5813
      %v5942 = vsub.f32 1.0, %v5814
      %v5943 = vsub.f32 1.0, %v5815
      %v5944 = vsub.f32 1.0, %v5816
      %v5945 = vsub.f32 1.0, %v5817
      %v5946 = vsub.f32 1.0, %v5818
      %v5947 = vsub.f32 1.0, %v5819
      %v5948 = vsub.f32 1.0, %v5820
      %v5949 = vsub.f32 1.0, %v5821
      %v5950 = vsub.f32 1.0, %v5822
      %v5951 = vsub.f32 1.0, %v5823
      %v5952 = vsub.f32 1.0, %v5824
      %v5953 = vsub.f32 1.0, %v5825
      %v5954 = vsub.f32 1.0, %v5826
      %v5955 = vsub.f32 1.0, %v5827
      %v5956 = vsub.f32 1.0, %v5828
      %v5957 = vsub.f32 1.0, %v5829
      %v5958 = vsub.f32 1.0, %v5830
      %v5959 = vsub.f32 1.0, %v5831
      %v5960 = vsub.f32 1.0, %v5832
      %v5961 = vsub.f32 1.0, %v5833
      %v5962 = vsub.f32 1.0, %v5834
      %v5963 = vsub.f32 1.0, %v5835
      %v5964 = vsub.f32 1.0, %v5836
      %v5965 = vsub.f32 1.0, %v5837
      %v5966 = vsub.f32 1.0, %v5838
      %v5967 = vlog2.pop %v5839
      %v5968 = vmul.f32 %v5967, 0.6931472
      %v5969 = vlog2.pop %v5840
      %v5970 = vmul.f32 %v5969, 0.6931472
      %v5971 = vlog2.pop %v5841
      %v5972 = vmul.f32 %v5971, 0.6931472
      %v5973 = vlog2.pop %v5842
      %v5974 = vmul.f32 %v5973, 0.6931472
      %v5975 = vlog2.pop %v5843
      %v5976 = vmul.f32 %v5975, 0.6931472
      %v5977 = vlog2.pop %v5844
      %v5978 = vmul.f32 %v5977, 0.6931472
      %v5979 = vlog2.pop %v5845
      %v5980 = vmul.f32 %v5979, 0.6931472
      %v5981 = vlog2.pop %v5846
      %v5982 = vmul.f32 %v5981, 0.6931472
      %v5983 = vlog2.pop %v5847
      %v5984 = vmul.f32 %v5983, 0.6931472
      %v5985 = vlog2.pop %v5848
      %v5986 = vmul.f32 %v5985, 0.6931472
      %v5987 = vlog2.pop %v5849
      %v5988 = vmul.f32 %v5987, 0.6931472
      %v5989 = vlog2.pop %v5850
      %v5990 = vmul.f32 %v5989, 0.6931472
      %v5991 = vlog2.pop %v5851
      %v5992 = vmul.f32 %v5991, 0.6931472
      %v5993 = vlog2.pop %v5852
      %v5994 = vmul.f32 %v5993, 0.6931472
      %v5995 = vlog2.pop %v5853
      %v5996 = vmul.f32 %v5995, 0.6931472
      %v5997 = vlog2.pop %v5854
      %v5998 = vmul.f32 %v5997, 0.6931472
      %v5999 = vlog2.pop %v5855
      %v6000 = vmul.f32 %v5999, 0.6931472
      %v6001 = vlog2.pop %v5856
      %v6002 = vmul.f32 %v6001, 0.6931472
      %v6003 = vlog2.pop %v5857
      %v6004 = vmul.f32 %v6003, 0.6931472
      %v6005 = vlog2.pop %v5858
      %v6006 = vmul.f32 %v6005, 0.6931472
      %v6007 = vlog2.pop %v5859
      %v6008 = vmul.f32 %v6007, 0.6931472
      %v6009 = vlog2.pop %v5860
      %v6010 = vmul.f32 %v6009, 0.6931472
      %v6011 = vlog2.pop %v5861
      %v6012 = vmul.f32 %v6011, 0.6931472
      %v6013 = vlog2.pop %v5862
      %v6014 = vmul.f32 %v6013, 0.6931472
      %v6015 = vlog2.pop %v5863
      %v6016 = vmul.f32 %v6015, 0.6931472
      %v6017 = vlog2.pop %v5864
      %v6018 = vmul.f32 %v6017, 0.6931472
      %v6019 = vlog2.pop %v5865
      %v6020 = vmul.f32 %v6019, 0.6931472
      %v6021 = vlog2.pop %v5866
      %v6022 = vmul.f32 %v6021, 0.6931472
      %v6023 = vlog2.pop %v5867
      %v6024 = vmul.f32 %v6023, 0.6931472
      %v6025 = vlog2.pop %v5868
      %v6026 = vmul.f32 %v6025, 0.6931472
      %v6027 = vlog2.pop %v5869
      %v6028 = vmul.f32 %v6027, 0.6931472
      %v6029 = vlog2.pop %v5870
      %v6030 = vmul.f32 %v6029, 0.6931472
      %v6031 = vlog2.pop %v5871
      %v6032 = vmul.f32 %v6031, 0.6931472
      %v6033 = vlog2.pop %v5872
      %v6034 = vmul.f32 %v6033, 0.6931472
      %v6035 = vlog2.pop %v5873
      %v6036 = vmul.f32 %v6035, 0.6931472
      %v6037 = vlog2.pop %v5874
      %v6038 = vmul.f32 %v6037, 0.6931472
      %v6039 = vlog2.pop %v5875
      %v6040 = vmul.f32 %v6039, 0.6931472
      %v6041 = vlog2.pop %v5876
      %v6042 = vmul.f32 %v6041, 0.6931472
      %v6043 = vlog2.pop %v5877
      %v6044 = vmul.f32 %v6043, 0.6931472
      %v6045 = vlog2.pop %v5878
      %v6046 = vmul.f32 %v6045, 0.6931472
      %v6047 = vlog2.pop %v5879
      %v6048 = vmul.f32 %v6047, 0.6931472
      %v6049 = vlog2.pop %v5880
      %v6050 = vmul.f32 %v6049, 0.6931472
      %v6051 = vlog2.pop %v5881
      %v6052 = vmul.f32 %v6051, 0.6931472
      %v6053 = vlog2.pop %v5882
      %v6054 = vmul.f32 %v6053, 0.6931472
      %v6055 = vlog2.pop %v5883
      %v6056 = vmul.f32 %v6055, 0.6931472
      %v6057 = vlog2.pop %v5884
      %v6058 = vmul.f32 %v6057, 0.6931472
      %v6059 = vlog2.pop %v5885
      %v6060 = vmul.f32 %v6059, 0.6931472
      %v6061 = vlog2.pop %v5886
      %v6062 = vmul.f32 %v6061, 0.6931472
      %v6063 = vlog2.pop %v5887
      %v6064 = vmul.f32 %v6063, 0.6931472
      %v6065 = vlog2.pop %v5888
      %v6066 = vmul.f32 %v6065, 0.6931472
      %v6067 = vlog2.pop %v5889
      %v6068 = vmul.f32 %v6067, 0.6931472
      %v6069 = vlog2.pop %v5890
      %v6070 = vmul.f32 %v6069, 0.6931472
      %v6071 = vlog2.pop %v5891
      %v6072 = vmul.f32 %v6071, 0.6931472
      %v6073 = vlog2.pop %v5892
      %v6074 = vmul.f32 %v6073, 0.6931472
      %v6075 = vlog2.pop %v5893
      %v6076 = vmul.f32 %v6075, 0.6931472
      %v6077 = vlog2.pop %v5894
      %v6078 = vmul.f32 %v6077, 0.6931472
      %v6079 = vlog2.pop %v5895
      %v6080 = vmul.f32 %v6079, 0.6931472
      %v6081 = vlog2.pop %v5896
      %v6082 = vmul.f32 %v6081, 0.6931472
      %v6083 = vlog2.pop %v5897
      %v6084 = vmul.f32 %v6083, 0.6931472
      %v6085 = vlog2.pop %v5898
      %v6086 = vmul.f32 %v6085, 0.6931472
      %v6087 = vlog2.pop %v5899
      %v6088 = vmul.f32 %v6087, 0.6931472
      %v6089 = vlog2.pop %v5900
      %v6090 = vmul.f32 %v6089, 0.6931472
      %v6091 = vlog2.pop %v5901
      %v6092 = vmul.f32 %v6091, 0.6931472
      %v6093 = vlog2.pop %v5902
      %v6094 = vmul.f32 %v6093, 0.6931472
      %v6095 = vlog2.pop %v5903
      %v6096 = vmul.f32 %v6095, 0.6931472
      %v6097 = vlog2.pop %v5904
      %v6098 = vmul.f32 %v6097, 0.6931472
      %v6099 = vlog2.pop %v5905
      %v6100 = vmul.f32 %v6099, 0.6931472
      %v6101 = vlog2.pop %v5906
      %v6102 = vmul.f32 %v6101, 0.6931472
      %v6103 = vlog2.pop %v5907
      %v6104 = vmul.f32 %v6103, 0.6931472
      %v6105 = vlog2.pop %v5908
      %v6106 = vmul.f32 %v6105, 0.6931472
      %v6107 = vlog2.pop %v5909
      %v6108 = vmul.f32 %v6107, 0.6931472
      %v6109 = vlog2.pop %v5910
      %v6110 = vmul.f32 %v6109, 0.6931472
      %v6111 = vlog2.pop %v5911
      %v6112 = vmul.f32 %v6111, 0.6931472
      %v6113 = vlog2.pop %v5912
      %v6114 = vmul.f32 %v6113, 0.6931472
      %v6115 = vlog2.pop %v5913
      %v6116 = vmul.f32 %v6115, 0.6931472
      %v6117 = vlog2.pop %v5914
      %v6118 = vmul.f32 %v6117, 0.6931472
      %v6119 = vlog2.pop %v5915
      %v6120 = vmul.f32 %v6119, 0.6931472
      %v6121 = vlog2.pop %v5916
      %v6122 = vmul.f32 %v6121, 0.6931472
      %v6123 = vlog2.pop %v5917
      %v6124 = vmul.f32 %v6123, 0.6931472
      %v6125 = vlog2.pop %v5918
      %v6126 = vmul.f32 %v6125, 0.6931472
      %v6127 = vlog2.pop %v5919
      %v6128 = vmul.f32 %v6127, 0.6931472
      %v6129 = vlog2.pop %v5920
      %v6130 = vmul.f32 %v6129, 0.6931472
      %v6131 = vlog2.pop %v5921
      %v6132 = vmul.f32 %v6131, 0.6931472
      %v6133 = vlog2.pop %v5922
      %v6134 = vmul.f32 %v6133, 0.6931472
      %v6135 = vlog2.pop %v5923
      %v6136 = vmul.f32 %v6135, 0.6931472
      %v6137 = vlog2.pop %v5924
      %v6138 = vmul.f32 %v6137, 0.6931472
      %v6139 = vlog2.pop %v5925
      %v6140 = vmul.f32 %v6139, 0.6931472
      %v6141 = vlog2.pop %v5926
      %v6142 = vmul.f32 %v6141, 0.6931472
      %v6143 = vlog2.pop %v5927
      %v6144 = vmul.f32 %v6143, 0.6931472
      %v6145 = vlog2.pop %v5928
      %v6146 = vmul.f32 %v6145, 0.6931472
      %v6147 = vlog2.pop %v5929
      %v6148 = vmul.f32 %v6147, 0.6931472
      %v6149 = vlog2.pop %v5930
      %v6150 = vmul.f32 %v6149, 0.6931472
      %v6151 = vlog2.pop %v5931
      %v6152 = vmul.f32 %v6151, 0.6931472
      %v6153 = vlog2.pop %v5932
      %v6154 = vmul.f32 %v6153, 0.6931472
      %v6155 = vlog2.pop %v5933
      %v6156 = vmul.f32 %v6155, 0.6931472
      %v6157 = vlog2.pop %v5934
      %v6158 = vmul.f32 %v6157, 0.6931472
      %v6159 = vlog2.pop %v5935
      %v6160 = vmul.f32 %v6159, 0.6931472
      %v6161 = vlog2.pop %v5936
      %v6162 = vmul.f32 %v6161, 0.6931472
      %v6163 = vlog2.pop %v5937
      %v6164 = vmul.f32 %v6163, 0.6931472
      %v6165 = vlog2.pop %v5938
      %v6166 = vmul.f32 %v6165, 0.6931472
      %v6167 = vlog2.pop %v5939
      %v6168 = vmul.f32 %v6167, 0.6931472
      %v6169 = vlog2.pop %v5940
      %v6170 = vmul.f32 %v6169, 0.6931472
      %v6171 = vlog2.pop %v5941
      %v6172 = vmul.f32 %v6171, 0.6931472
      %v6173 = vlog2.pop %v5942
      %v6174 = vmul.f32 %v6173, 0.6931472
      %v6175 = vlog2.pop %v5943
      %v6176 = vmul.f32 %v6175, 0.6931472
      %v6177 = vlog2.pop %v5944
      %v6178 = vmul.f32 %v6177, 0.6931472
      %v6179 = vlog2.pop %v5945
      %v6180 = vmul.f32 %v6179, 0.6931472
      %v6181 = vlog2.pop %v5946
      %v6182 = vmul.f32 %v6181, 0.6931472
      %v6183 = vlog2.pop %v5947
      %v6184 = vmul.f32 %v6183, 0.6931472
      %v6185 = vlog2.pop %v5948
      %v6186 = vmul.f32 %v6185, 0.6931472
      %v6187 = vlog2.pop %v5949
      %v6188 = vmul.f32 %v6187, 0.6931472
      %v6189 = vlog2.pop %v5950
      %v6190 = vmul.f32 %v6189, 0.6931472
      %v6191 = vlog2.pop %v5951
      %v6192 = vmul.f32 %v6191, 0.6931472
      %v6193 = vlog2.pop %v5952
      %v6194 = vmul.f32 %v6193, 0.6931472
      %v6195 = vlog2.pop %v5953
      %v6196 = vmul.f32 %v6195, 0.6931472
      %v6197 = vlog2.pop %v5954
      %v6198 = vmul.f32 %v6197, 0.6931472
      %v6199 = vlog2.pop %v5955
      %v6200 = vmul.f32 %v6199, 0.6931472
      %v6201 = vlog2.pop %v5956
      %v6202 = vmul.f32 %v6201, 0.6931472
      %v6203 = vlog2.pop %v5957
      %v6204 = vmul.f32 %v6203, 0.6931472
      %v6205 = vlog2.pop %v5958
      %v6206 = vmul.f32 %v6205, 0.6931472
      %v6207 = vlog2.pop %v5959
      %v6208 = vmul.f32 %v6207, 0.6931472
      %v6209 = vlog2.pop %v5960
      %v6210 = vmul.f32 %v6209, 0.6931472
      %v6211 = vlog2.pop %v5961
      %v6212 = vmul.f32 %v6211, 0.6931472
      %v6213 = vlog2.pop %v5962
      %v6214 = vmul.f32 %v6213, 0.6931472
      %v6215 = vlog2.pop %v5963
      %v6216 = vmul.f32 %v6215, 0.6931472
      %v6217 = vlog2.pop %v5964
      %v6218 = vmul.f32 %v6217, 0.6931472
      %v6219 = vlog2.pop %v5965
      %v6220 = vmul.f32 %v6219, 0.6931472
      %v6221 = vlog2.pop %v5966
      %v6222 = vmul.f32 %v6221, 0.6931472
      %v6223 = vpack.c.bf16 %v5970, %v5968
      %v6224 = vpack.c.bf16 %v5974, %v5972
      %v6225 = vpack.c.bf16 %v5978, %v5976
      %v6226 = vpack.c.bf16 %v5982, %v5980
      %v6227 = vpack.c.bf16 %v5986, %v5984
      %v6228 = vpack.c.bf16 %v5990, %v5988
      %v6229 = vpack.c.bf16 %v5994, %v5992
      %v6230 = vpack.c.bf16 %v5998, %v5996
      %v6231 = vpack.c.bf16 %v6002, %v6000
      %v6232 = vpack.c.bf16 %v6006, %v6004
      %v6233 = vpack.c.bf16 %v6010, %v6008
      %v6234 = vpack.c.bf16 %v6014, %v6012
      %v6235 = vpack.c.bf16 %v6018, %v6016
      %v6236 = vpack.c.bf16 %v6022, %v6020
      %v6237 = vpack.c.bf16 %v6026, %v6024
      %v6238 = vpack.c.bf16 %v6030, %v6028
      %v6239 = vpack.c.bf16 %v6034, %v6032
      %v6240 = vpack.c.bf16 %v6038, %v6036
      %v6241 = vpack.c.bf16 %v6042, %v6040
      %v6242 = vpack.c.bf16 %v6046, %v6044
      %v6243 = vpack.c.bf16 %v6050, %v6048
      %v6244 = vpack.c.bf16 %v6054, %v6052
      %v6245 = vpack.c.bf16 %v6058, %v6056
      %v6246 = vpack.c.bf16 %v6062, %v6060
      %v6247 = vpack.c.bf16 %v6066, %v6064
      %v6248 = vpack.c.bf16 %v6070, %v6068
      %v6249 = vpack.c.bf16 %v6074, %v6072
      %v6250 = vpack.c.bf16 %v6078, %v6076
      %v6251 = vpack.c.bf16 %v6082, %v6080
      %v6252 = vpack.c.bf16 %v6086, %v6084
      %v6253 = vpack.c.bf16 %v6090, %v6088
      %v6254 = vpack.c.bf16 %v6094, %v6092
      %v6255 = vpack.c.bf16 %v6098, %v6096
      %v6256 = vpack.c.bf16 %v6102, %v6100
      %v6257 = vpack.c.bf16 %v6106, %v6104
      %v6258 = vpack.c.bf16 %v6110, %v6108
      %v6259 = vpack.c.bf16 %v6114, %v6112
      %v6260 = vpack.c.bf16 %v6118, %v6116
      %v6261 = vpack.c.bf16 %v6122, %v6120
      %v6262 = vpack.c.bf16 %v6126, %v6124
      %v6263 = vpack.c.bf16 %v6130, %v6128
      %v6264 = vpack.c.bf16 %v6134, %v6132
      %v6265 = vpack.c.bf16 %v6138, %v6136
      %v6266 = vpack.c.bf16 %v6142, %v6140
      %v6267 = vpack.c.bf16 %v6146, %v6144
      %v6268 = vpack.c.bf16 %v6150, %v6148
      %v6269 = vpack.c.bf16 %v6154, %v6152
      %v6270 = vpack.c.bf16 %v6158, %v6156
      %v6271 = vpack.c.bf16 %v6162, %v6160
      %v6272 = vpack.c.bf16 %v6166, %v6164
      %v6273 = vpack.c.bf16 %v6170, %v6168
      %v6274 = vpack.c.bf16 %v6174, %v6172
      %v6275 = vpack.c.bf16 %v6178, %v6176
      %v6276 = vpack.c.bf16 %v6182, %v6180
      %v6277 = vpack.c.bf16 %v6186, %v6184
      %v6278 = vpack.c.bf16 %v6190, %v6188
      %v6279 = vpack.c.bf16 %v6194, %v6192
      %v6280 = vpack.c.bf16 %v6198, %v6196
      %v6281 = vpack.c.bf16 %v6202, %v6200
      %v6282 = vpack.c.bf16 %v6206, %v6204
      %v6283 = vpack.c.bf16 %v6210, %v6208
      %v6284 = vpack.c.bf16 %v6214, %v6212
      %v6285 = vpack.c.bf16 %v6218, %v6216
      %v6286 = vpack.c.bf16 %v6222, %v6220
      %v6287 = vld [vmem:[%s6] sm:$0xf]
      %v6288 = vld [vmem:[%s6 + $0x4] sm:$0xf]
      %v6289 = vld [vmem:[%s6 + $0x8] sm:$0xf]
      %v6290 = vld [vmem:[%s6 + $0xc] sm:$0xf]
      %v6291 = vld [vmem:[%s6 + $0x10] sm:$0xf]
      %v6292 = vld [vmem:[%s6 + $0x14] sm:$0xf]
      %v6293 = vld [vmem:[%s6 + $0x18] sm:$0xf]
      %v6294 = vld [vmem:[%s6 + $0x1c] sm:$0xf]
      %v6295 = vld [vmem:[%s6 + $0x20] sm:$0xf]
      %v6296 = vld [vmem:[%s6 + $0x24] sm:$0xf]
      %v6297 = vld [vmem:[%s6 + $0x28] sm:$0xf]
      %v6298 = vld [vmem:[%s6 + $0x2c] sm:$0xf]
      %v6299 = vld [vmem:[%s6 + $0x30] sm:$0xf]
      %v6300 = vld [vmem:[%s6 + $0x34] sm:$0xf]
      %v6301 = vld [vmem:[%s6 + $0x38] sm:$0xf]
      %v6302 = vld [vmem:[%s6 + $0x3c] sm:$0xf]
      %v6319 = vunpack.c.l.b16 %v6287
      %v6320 = vunpack.c.l.b16 %v6288
      %v6321 = vunpack.c.l.b16 %v6289
      %v6322 = vunpack.c.l.b16 %v6290
      %v6323 = vunpack.c.l.b16 %v6291
      %v6324 = vunpack.c.l.b16 %v6292
      %v6325 = vunpack.c.l.b16 %v6293
      %v6326 = vunpack.c.l.b16 %v6294
      %v6327 = vunpack.c.l.b16 %v6295
      %v6328 = vunpack.c.l.b16 %v6296
      %v6329 = vunpack.c.l.b16 %v6297
      %v6330 = vunpack.c.l.b16 %v6298
      %v6331 = vunpack.c.l.b16 %v6299
      %v6332 = vunpack.c.l.b16 %v6300
      %v6333 = vunpack.c.l.b16 %v6301
      %v6334 = vunpack.c.l.b16 %v6302
      %v6335 = vpack.c.b16 %v6320, %v6319
      %v6336 = vpack.c.b16 %v6322, %v6321
      %v6337 = vpack.c.b16 %v6324, %v6323
      %v6338 = vpack.c.b16 %v6326, %v6325
      %v6339 = vpack.c.b16 %v6328, %v6327
      %v6340 = vpack.c.b16 %v6330, %v6329
      %v6341 = vpack.c.b16 %v6332, %v6331
      %v6342 = vpack.c.b16 %v6334, %v6333
      %6351 = vmatpush.bf16.msra.mxu0 %v6342
      %6352 = vmatpush.bf16.msra.mxu0 %v6341
      %6353 = vmatpush.bf16.msra.mxu0 %v6340
      %6354 = vmatpush.bf16.msra.mxu0 %v6339
      %6355 = vmatpush.bf16.msra.mxu0 %v6338
      %6356 = vmatpush.bf16.msra.mxu0 %v6337
      %6357 = vmatpush.bf16.msra.mxu0 %v6336
      %6358 = vmatpush.bf16.msra.mxu0 %v6335
      %6359 = vmatmul.bf16.gmra.mxu0 %v6223
      %v6360 = vpop.f32.mrf.mxu0
      %v6361 = vadd.f32 0.0, %v6360
      %v6362 = vpop.f32.mrf.mxu0
      %v6363 = vadd.f32 0.0, %v6362
      %6364 = vmatmul.bf16.gmra.mxu0 %v6224
      %v6365 = vpop.f32.mrf.mxu0
      %v6366 = vadd.f32 0.0, %v6365
      %v6367 = vpop.f32.mrf.mxu0
      %v6368 = vadd.f32 0.0, %v6367
      %6369 = vmatmul.bf16.gmra.mxu0 %v6225
      %v6370 = vpop.f32.mrf.mxu0
      %v6371 = vadd.f32 0.0, %v6370
      %v6372 = vpop.f32.mrf.mxu0
      %v6373 = vadd.f32 0.0, %v6372
      %6374 = vmatmul.bf16.gmra.mxu0 %v6226
      %v6375 = vpop.f32.mrf.mxu0
      %v6376 = vadd.f32 0.0, %v6375
      %v6377 = vpop.f32.mrf.mxu0
      %v6378 = vadd.f32 0.0, %v6377
      %6379 = vmatmul.bf16.gmra.mxu0 %v6227
      %v6380 = vpop.f32.mrf.mxu0
      %v6381 = vadd.f32 0.0, %v6380
      %v6382 = vpop.f32.mrf.mxu0
      %v6383 = vadd.f32 0.0, %v6382
      %6384 = vmatmul.bf16.gmra.mxu0 %v6228
      %v6385 = vpop.f32.mrf.mxu0
      %v6386 = vadd.f32 0.0, %v6385
      %v6387 = vpop.f32.mrf.mxu0
      %v6388 = vadd.f32 0.0, %v6387
      %6389 = vmatmul.bf16.gmra.mxu0 %v6229
      %v6390 = vpop.f32.mrf.mxu0
      %v6391 = vadd.f32 0.0, %v6390
      %v6392 = vpop.f32.mrf.mxu0
      %v6393 = vadd.f32 0.0, %v6392
      %6394 = vmatmul.bf16.gmra.mxu0 %v6230
      %v6395 = vpop.f32.mrf.mxu0
      %v6396 = vadd.f32 0.0, %v6395
      %v6397 = vpop.f32.mrf.mxu0
      %v6398 = vadd.f32 0.0, %v6397
      %6399 = vmatmul.bf16.gmra.mxu0 %v6231
      %v6400 = vpop.f32.mrf.mxu0
      %v6401 = vadd.f32 0.0, %v6400
      %v6402 = vpop.f32.mrf.mxu0
      %v6403 = vadd.f32 0.0, %v6402
      %6404 = vmatmul.bf16.gmra.mxu0 %v6232
      %v6405 = vpop.f32.mrf.mxu0
      %v6406 = vadd.f32 0.0, %v6405
      %v6407 = vpop.f32.mrf.mxu0
      %v6408 = vadd.f32 0.0, %v6407
      %6409 = vmatmul.bf16.gmra.mxu0 %v6233
      %v6410 = vpop.f32.mrf.mxu0
      %v6411 = vadd.f32 0.0, %v6410
      %v6412 = vpop.f32.mrf.mxu0
      %v6413 = vadd.f32 0.0, %v6412
      %6414 = vmatmul.bf16.gmra.mxu0 %v6234
      %v6415 = vpop.f32.mrf.mxu0
      %v6416 = vadd.f32 0.0, %v6415
      %v6417 = vpop.f32.mrf.mxu0
      %v6418 = vadd.f32 0.0, %v6417
      %6419 = vmatmul.bf16.gmra.mxu0 %v6235
      %v6420 = vpop.f32.mrf.mxu0
      %v6421 = vadd.f32 0.0, %v6420
      %v6422 = vpop.f32.mrf.mxu0
      %v6423 = vadd.f32 0.0, %v6422
      %6424 = vmatmul.bf16.gmra.mxu0 %v6236
      %v6425 = vpop.f32.mrf.mxu0
      %v6426 = vadd.f32 0.0, %v6425
      %v6427 = vpop.f32.mrf.mxu0
      %v6428 = vadd.f32 0.0, %v6427
      %6429 = vmatmul.bf16.gmra.mxu0 %v6237
      %v6430 = vpop.f32.mrf.mxu0
      %v6431 = vadd.f32 0.0, %v6430
      %v6432 = vpop.f32.mrf.mxu0
      %v6433 = vadd.f32 0.0, %v6432
      %6434 = vmatmul.bf16.gmra.mxu0 %v6238
      %v6435 = vpop.f32.mrf.mxu0
      %v6436 = vadd.f32 0.0, %v6435
      %v6437 = vpop.f32.mrf.mxu0
      %v6438 = vadd.f32 0.0, %v6437
      %6439 = vmatmul.bf16.gmra.mxu0 %v6239
      %v6440 = vpop.f32.mrf.mxu0
      %v6441 = vadd.f32 0.0, %v6440
      %v6442 = vpop.f32.mrf.mxu0
      %v6443 = vadd.f32 0.0, %v6442
      %6444 = vmatmul.bf16.gmra.mxu0 %v6240
      %v6445 = vpop.f32.mrf.mxu0
      %v6446 = vadd.f32 0.0, %v6445
      %v6447 = vpop.f32.mrf.mxu0
      %v6448 = vadd.f32 0.0, %v6447
      %6449 = vmatmul.bf16.gmra.mxu0 %v6241
      %v6450 = vpop.f32.mrf.mxu0
      %v6451 = vadd.f32 0.0, %v6450
      %v6452 = vpop.f32.mrf.mxu0
      %v6453 = vadd.f32 0.0, %v6452
      %6454 = vmatmul.bf16.gmra.mxu0 %v6242
      %v6455 = vpop.f32.mrf.mxu0
      %v6456 = vadd.f32 0.0, %v6455
      %v6457 = vpop.f32.mrf.mxu0
      %v6458 = vadd.f32 0.0, %v6457
      %6459 = vmatmul.bf16.gmra.mxu0 %v6243
      %v6460 = vpop.f32.mrf.mxu0
      %v6461 = vadd.f32 0.0, %v6460
      %v6462 = vpop.f32.mrf.mxu0
      %v6463 = vadd.f32 0.0, %v6462
      %6464 = vmatmul.bf16.gmra.mxu0 %v6244
      %v6465 = vpop.f32.mrf.mxu0
      %v6466 = vadd.f32 0.0, %v6465
      %v6467 = vpop.f32.mrf.mxu0
      %v6468 = vadd.f32 0.0, %v6467
      %6469 = vmatmul.bf16.gmra.mxu0 %v6245
      %v6470 = vpop.f32.mrf.mxu0
      %v6471 = vadd.f32 0.0, %v6470
      %v6472 = vpop.f32.mrf.mxu0
      %v6473 = vadd.f32 0.0, %v6472
      %6474 = vmatmul.bf16.gmra.mxu0 %v6246
      %v6475 = vpop.f32.mrf.mxu0
      %v6476 = vadd.f32 0.0, %v6475
      %v6477 = vpop.f32.mrf.mxu0
      %v6478 = vadd.f32 0.0, %v6477
      %6479 = vmatmul.bf16.gmra.mxu0 %v6247
      %v6480 = vpop.f32.mrf.mxu0
      %v6481 = vadd.f32 0.0, %v6480
      %v6482 = vpop.f32.mrf.mxu0
      %v6483 = vadd.f32 0.0, %v6482
      %6484 = vmatmul.bf16.gmra.mxu0 %v6248
      %v6485 = vpop.f32.mrf.mxu0
      %v6486 = vadd.f32 0.0, %v6485
      %v6487 = vpop.f32.mrf.mxu0
      %v6488 = vadd.f32 0.0, %v6487
      %6489 = vmatmul.bf16.gmra.mxu0 %v6249
      %v6490 = vpop.f32.mrf.mxu0
      %v6491 = vadd.f32 0.0, %v6490
      %v6492 = vpop.f32.mrf.mxu0
      %v6493 = vadd.f32 0.0, %v6492
      %6494 = vmatmul.bf16.gmra.mxu0 %v6250
      %v6495 = vpop.f32.mrf.mxu0
      %v6496 = vadd.f32 0.0, %v6495
      %v6497 = vpop.f32.mrf.mxu0
      %v6498 = vadd.f32 0.0, %v6497
      %6499 = vmatmul.bf16.gmra.mxu0 %v6251
      %v6500 = vpop.f32.mrf.mxu0
      %v6501 = vadd.f32 0.0, %v6500
      %v6502 = vpop.f32.mrf.mxu0
      %v6503 = vadd.f32 0.0, %v6502
      %6504 = vmatmul.bf16.gmra.mxu0 %v6252
      %v6505 = vpop.f32.mrf.mxu0
      %v6506 = vadd.f32 0.0, %v6505
      %v6507 = vpop.f32.mrf.mxu0
      %v6508 = vadd.f32 0.0, %v6507
      %6509 = vmatmul.bf16.gmra.mxu0 %v6253
      %v6510 = vpop.f32.mrf.mxu0
      %v6511 = vadd.f32 0.0, %v6510
      %v6512 = vpop.f32.mrf.mxu0
      %v6513 = vadd.f32 0.0, %v6512
      %6514 = vmatmul.bf16.gmra.mxu0 %v6254
      %v6515 = vpop.f32.mrf.mxu0
      %v6516 = vadd.f32 0.0, %v6515
      %v6517 = vpop.f32.mrf.mxu0
      %v6518 = vadd.f32 0.0, %v6517
      %6519 = vmatmul.bf16.gmra.mxu0 %v6255
      %v6520 = vpop.f32.mrf.mxu0
      %v6521 = vadd.f32 0.0, %v6520
      %v6522 = vpop.f32.mrf.mxu0
      %v6523 = vadd.f32 0.0, %v6522
      %6524 = vmatmul.bf16.gmra.mxu0 %v6256
      %v6525 = vpop.f32.mrf.mxu0
      %v6526 = vadd.f32 0.0, %v6525
      %v6527 = vpop.f32.mrf.mxu0
      %v6528 = vadd.f32 0.0, %v6527
      %6529 = vmatmul.bf16.gmra.mxu0 %v6257
      %v6530 = vpop.f32.mrf.mxu0
      %v6531 = vadd.f32 0.0, %v6530
      %v6532 = vpop.f32.mrf.mxu0
      %v6533 = vadd.f32 0.0, %v6532
      %6534 = vmatmul.bf16.gmra.mxu0 %v6258
      %v6535 = vpop.f32.mrf.mxu0
      %v6536 = vadd.f32 0.0, %v6535
      %v6537 = vpop.f32.mrf.mxu0
      %v6538 = vadd.f32 0.0, %v6537
      %6539 = vmatmul.bf16.gmra.mxu0 %v6259
      %v6540 = vpop.f32.mrf.mxu0
      %v6541 = vadd.f32 0.0, %v6540
      %v6542 = vpop.f32.mrf.mxu0
      %v6543 = vadd.f32 0.0, %v6542
      %6544 = vmatmul.bf16.gmra.mxu0 %v6260
      %v6545 = vpop.f32.mrf.mxu0
      %v6546 = vadd.f32 0.0, %v6545
      %v6547 = vpop.f32.mrf.mxu0
      %v6548 = vadd.f32 0.0, %v6547
      %6549 = vmatmul.bf16.gmra.mxu0 %v6261
      %v6550 = vpop.f32.mrf.mxu0
      %v6551 = vadd.f32 0.0, %v6550
      %v6552 = vpop.f32.mrf.mxu0
      %v6553 = vadd.f32 0.0, %v6552
      %6554 = vmatmul.bf16.gmra.mxu0 %v6262
      %v6555 = vpop.f32.mrf.mxu0
      %v6556 = vadd.f32 0.0, %v6555
      %v6557 = vpop.f32.mrf.mxu0
      %v6558 = vadd.f32 0.0, %v6557
      %6559 = vmatmul.bf16.gmra.mxu0 %v6263
      %v6560 = vpop.f32.mrf.mxu0
      %v6561 = vadd.f32 0.0, %v6560
      %v6562 = vpop.f32.mrf.mxu0
      %v6563 = vadd.f32 0.0, %v6562
      %6564 = vmatmul.bf16.gmra.mxu0 %v6264
      %v6565 = vpop.f32.mrf.mxu0
      %v6566 = vadd.f32 0.0, %v6565
      %v6567 = vpop.f32.mrf.mxu0
      %v6568 = vadd.f32 0.0, %v6567
      %6569 = vmatmul.bf16.gmra.mxu0 %v6265
      %v6570 = vpop.f32.mrf.mxu0
      %v6571 = vadd.f32 0.0, %v6570
      %v6572 = vpop.f32.mrf.mxu0
      %v6573 = vadd.f32 0.0, %v6572
      %6574 = vmatmul.bf16.gmra.mxu0 %v6266
      %v6575 = vpop.f32.mrf.mxu0
      %v6576 = vadd.f32 0.0, %v6575
      %v6577 = vpop.f32.mrf.mxu0
      %v6578 = vadd.f32 0.0, %v6577
      %6579 = vmatmul.bf16.gmra.mxu0 %v6267
      %v6580 = vpop.f32.mrf.mxu0
      %v6581 = vadd.f32 0.0, %v6580
      %v6582 = vpop.f32.mrf.mxu0
      %v6583 = vadd.f32 0.0, %v6582
      %6584 = vmatmul.bf16.gmra.mxu0 %v6268
      %v6585 = vpop.f32.mrf.mxu0
      %v6586 = vadd.f32 0.0, %v6585
      %v6587 = vpop.f32.mrf.mxu0
      %v6588 = vadd.f32 0.0, %v6587
      %6589 = vmatmul.bf16.gmra.mxu0 %v6269
      %v6590 = vpop.f32.mrf.mxu0
      %v6591 = vadd.f32 0.0, %v6590
      %v6592 = vpop.f32.mrf.mxu0
      %v6593 = vadd.f32 0.0, %v6592
      %6594 = vmatmul.bf16.gmra.mxu0 %v6270
      %v6595 = vpop.f32.mrf.mxu0
      %v6596 = vadd.f32 0.0, %v6595
      %v6597 = vpop.f32.mrf.mxu0
      %v6598 = vadd.f32 0.0, %v6597
      %6599 = vmatmul.bf16.gmra.mxu0 %v6271
      %v6600 = vpop.f32.mrf.mxu0
      %v6601 = vadd.f32 0.0, %v6600
      %v6602 = vpop.f32.mrf.mxu0
      %v6603 = vadd.f32 0.0, %v6602
      %6604 = vmatmul.bf16.gmra.mxu0 %v6272
      %v6605 = vpop.f32.mrf.mxu0
      %v6606 = vadd.f32 0.0, %v6605
      %v6607 = vpop.f32.mrf.mxu0
      %v6608 = vadd.f32 0.0, %v6607
      %6609 = vmatmul.bf16.gmra.mxu0 %v6273
      %v6610 = vpop.f32.mrf.mxu0
      %v6611 = vadd.f32 0.0, %v6610
      %v6612 = vpop.f32.mrf.mxu0
      %v6613 = vadd.f32 0.0, %v6612
      %6614 = vmatmul.bf16.gmra.mxu0 %v6274
      %v6615 = vpop.f32.mrf.mxu0
      %v6616 = vadd.f32 0.0, %v6615
      %v6617 = vpop.f32.mrf.mxu0
      %v6618 = vadd.f32 0.0, %v6617
      %6619 = vmatmul.bf16.gmra.mxu0 %v6275
      %v6620 = vpop.f32.mrf.mxu0
      %v6621 = vadd.f32 0.0, %v6620
      %v6622 = vpop.f32.mrf.mxu0
      %v6623 = vadd.f32 0.0, %v6622
      %6624 = vmatmul.bf16.gmra.mxu0 %v6276
      %v6625 = vpop.f32.mrf.mxu0
      %v6626 = vadd.f32 0.0, %v6625
      %v6627 = vpop.f32.mrf.mxu0
      %v6628 = vadd.f32 0.0, %v6627
      %6629 = vmatmul.bf16.gmra.mxu0 %v6277
      %v6630 = vpop.f32.mrf.mxu0
      %v6631 = vadd.f32 0.0, %v6630
      %v6632 = vpop.f32.mrf.mxu0
      %v6633 = vadd.f32 0.0, %v6632
      %6634 = vmatmul.bf16.gmra.mxu0 %v6278
      %v6635 = vpop.f32.mrf.mxu0
      %v6636 = vadd.f32 0.0, %v6635
      %v6637 = vpop.f32.mrf.mxu0
      %v6638 = vadd.f32 0.0, %v6637
      %6639 = vmatmul.bf16.gmra.mxu0 %v6279
      %v6640 = vpop.f32.mrf.mxu0
      %v6641 = vadd.f32 0.0, %v6640
      %v6642 = vpop.f32.mrf.mxu0
      %v6643 = vadd.f32 0.0, %v6642
      %6644 = vmatmul.bf16.gmra.mxu0 %v6280
      %v6645 = vpop.f32.mrf.mxu0
      %v6646 = vadd.f32 0.0, %v6645
      %v6647 = vpop.f32.mrf.mxu0
      %v6648 = vadd.f32 0.0, %v6647
      %6649 = vmatmul.bf16.gmra.mxu0 %v6281
      %v6650 = vpop.f32.mrf.mxu0
      %v6651 = vadd.f32 0.0, %v6650
      %v6652 = vpop.f32.mrf.mxu0
      %v6653 = vadd.f32 0.0, %v6652
      %6654 = vmatmul.bf16.gmra.mxu0 %v6282
      %v6655 = vpop.f32.mrf.mxu0
      %v6656 = vadd.f32 0.0, %v6655
      %v6657 = vpop.f32.mrf.mxu0
      %v6658 = vadd.f32 0.0, %v6657
      %6659 = vmatmul.bf16.gmra.mxu0 %v6283
      %v6660 = vpop.f32.mrf.mxu0
      %v6661 = vadd.f32 0.0, %v6660
      %v6662 = vpop.f32.mrf.mxu0
      %v6663 = vadd.f32 0.0, %v6662
      %6664 = vmatmul.bf16.gmra.mxu0 %v6284
      %v6665 = vpop.f32.mrf.mxu0
      %v6666 = vadd.f32 0.0, %v6665
      %v6667 = vpop.f32.mrf.mxu0
      %v6668 = vadd.f32 0.0, %v6667
      %6669 = vmatmul.bf16.gmra.mxu0 %v6285
      %v6670 = vpop.f32.mrf.mxu0
      %v6671 = vadd.f32 0.0, %v6670
      %v6672 = vpop.f32.mrf.mxu0
      %v6673 = vadd.f32 0.0, %v6672
      %6674 = vmatmul.bf16.gmra.mxu0 %v6286
      %v6675 = vpop.f32.mrf.mxu0
      %v6676 = vadd.f32 0.0, %v6675
      %v6677 = vpop.f32.mrf.mxu0
      %v6678 = vadd.f32 0.0, %v6677
      %6679 = vdwg.mxu0
      %v6680 = vmul.f32 %v6361, 1.442695
      %v6681 = vpow.pop %v6680
      %v6682 = vmul.f32 %v6363, 1.442695
      %v6683 = vpow.pop %v6682
      %v6684 = vmul.f32 %v6366, 1.442695
      %v6685 = vpow.pop %v6684
      %v6686 = vmul.f32 %v6368, 1.442695
      %v6687 = vpow.pop %v6686
      %v6688 = vmul.f32 %v6371, 1.442695
      %v6689 = vpow.pop %v6688
      %v6690 = vmul.f32 %v6373, 1.442695
      %v6691 = vpow.pop %v6690
      %v6692 = vmul.f32 %v6376, 1.442695
      %v6693 = vpow.pop %v6692
      %v6694 = vmul.f32 %v6378, 1.442695
      %v6695 = vpow.pop %v6694
      %v6696 = vmul.f32 %v6381, 1.442695
      %v6697 = vpow.pop %v6696
      %v6698 = vmul.f32 %v6383, 1.442695
      %v6699 = vpow.pop %v6698
      %v6700 = vmul.f32 %v6386, 1.442695
      %v6701 = vpow.pop %v6700
      %v6702 = vmul.f32 %v6388, 1.442695
      %v6703 = vpow.pop %v6702
      %v6704 = vmul.f32 %v6391, 1.442695
      %v6705 = vpow.pop %v6704
      %v6706 = vmul.f32 %v6393, 1.442695
      %v6707 = vpow.pop %v6706
      %v6708 = vmul.f32 %v6396, 1.442695
      %v6709 = vpow.pop %v6708
      %v6710 = vmul.f32 %v6398, 1.442695
      %v6711 = vpow.pop %v6710
      %v6712 = vmul.f32 %v6401, 1.442695
      %v6713 = vpow.pop %v6712
      %v6714 = vmul.f32 %v6403, 1.442695
      %v6715 = vpow.pop %v6714
      %v6716 = vmul.f32 %v6406, 1.442695
      %v6717 = vpow.pop %v6716
      %v6718 = vmul.f32 %v6408, 1.442695
      %v6719 = vpow.pop %v6718
      %v6720 = vmul.f32 %v6411, 1.442695
      %v6721 = vpow.pop %v6720
      %v6722 = vmul.f32 %v6413, 1.442695
      %v6723 = vpow.pop %v6722
      %v6724 = vmul.f32 %v6416, 1.442695
      %v6725 = vpow.pop %v6724
      %v6726 = vmul.f32 %v6418, 1.442695
      %v6727 = vpow.pop %v6726
      %v6728 = vmul.f32 %v6421, 1.442695
      %v6729 = vpow.pop %v6728
      %v6730 = vmul.f32 %v6423, 1.442695
      %v6731 = vpow.pop %v6730
      %v6732 = vmul.f32 %v6426, 1.442695
      %v6733 = vpow.pop %v6732
      %v6734 = vmul.f32 %v6428, 1.442695
      %v6735 = vpow.pop %v6734
      %v6736 = vmul.f32 %v6431, 1.442695
      %v6737 = vpow.pop %v6736
      %v6738 = vmul.f32 %v6433, 1.442695
      %v6739 = vpow.pop %v6738
      %v6740 = vmul.f32 %v6436, 1.442695
      %v6741 = vpow.pop %v6740
      %v6742 = vmul.f32 %v6438, 1.442695
      %v6743 = vpow.pop %v6742
      %v6744 = vmul.f32 %v6441, 1.442695
      %v6745 = vpow.pop %v6744
      %v6746 = vmul.f32 %v6443, 1.442695
      %v6747 = vpow.pop %v6746
      %v6748 = vmul.f32 %v6446, 1.442695
      %v6749 = vpow.pop %v6748
      %v6750 = vmul.f32 %v6448, 1.442695
      %v6751 = vpow.pop %v6750
      %v6752 = vmul.f32 %v6451, 1.442695
      %v6753 = vpow.pop %v6752
      %v6754 = vmul.f32 %v6453, 1.442695
      %v6755 = vpow.pop %v6754
      %v6756 = vmul.f32 %v6456, 1.442695
      %v6757 = vpow.pop %v6756
      %v6758 = vmul.f32 %v6458, 1.442695
      %v6759 = vpow.pop %v6758
      %v6760 = vmul.f32 %v6461, 1.442695
      %v6761 = vpow.pop %v6760
      %v6762 = vmul.f32 %v6463, 1.442695
      %v6763 = vpow.pop %v6762
      %v6764 = vmul.f32 %v6466, 1.442695
      %v6765 = vpow.pop %v6764
      %v6766 = vmul.f32 %v6468, 1.442695
      %v6767 = vpow.pop %v6766
      %v6768 = vmul.f32 %v6471, 1.442695
      %v6769 = vpow.pop %v6768
      %v6770 = vmul.f32 %v6473, 1.442695
      %v6771 = vpow.pop %v6770
      %v6772 = vmul.f32 %v6476, 1.442695
      %v6773 = vpow.pop %v6772
      %v6774 = vmul.f32 %v6478, 1.442695
      %v6775 = vpow.pop %v6774
      %v6776 = vmul.f32 %v6481, 1.442695
      %v6777 = vpow.pop %v6776
      %v6778 = vmul.f32 %v6483, 1.442695
      %v6779 = vpow.pop %v6778
      %v6780 = vmul.f32 %v6486, 1.442695
      %v6781 = vpow.pop %v6780
      %v6782 = vmul.f32 %v6488, 1.442695
      %v6783 = vpow.pop %v6782
      %v6784 = vmul.f32 %v6491, 1.442695
      %v6785 = vpow.pop %v6784
      %v6786 = vmul.f32 %v6493, 1.442695
      %v6787 = vpow.pop %v6786
      %v6788 = vmul.f32 %v6496, 1.442695
      %v6789 = vpow.pop %v6788
      %v6790 = vmul.f32 %v6498, 1.442695
      %v6791 = vpow.pop %v6790
      %v6792 = vmul.f32 %v6501, 1.442695
      %v6793 = vpow.pop %v6792
      %v6794 = vmul.f32 %v6503, 1.442695
      %v6795 = vpow.pop %v6794
      %v6796 = vmul.f32 %v6506, 1.442695
      %v6797 = vpow.pop %v6796
      %v6798 = vmul.f32 %v6508, 1.442695
      %v6799 = vpow.pop %v6798
      %v6800 = vmul.f32 %v6511, 1.442695
      %v6801 = vpow.pop %v6800
      %v6802 = vmul.f32 %v6513, 1.442695
      %v6803 = vpow.pop %v6802
      %v6804 = vmul.f32 %v6516, 1.442695
      %v6805 = vpow.pop %v6804
      %v6806 = vmul.f32 %v6518, 1.442695
      %v6807 = vpow.pop %v6806
      %v6808 = vmul.f32 %v6521, 1.442695
      %v6809 = vpow.pop %v6808
      %v6810 = vmul.f32 %v6523, 1.442695
      %v6811 = vpow.pop %v6810
      %v6812 = vmul.f32 %v6526, 1.442695
      %v6813 = vpow.pop %v6812
      %v6814 = vmul.f32 %v6528, 1.442695
      %v6815 = vpow.pop %v6814
      %v6816 = vmul.f32 %v6531, 1.442695
      %v6817 = vpow.pop %v6816
      %v6818 = vmul.f32 %v6533, 1.442695
      %v6819 = vpow.pop %v6818
      %v6820 = vmul.f32 %v6536, 1.442695
      %v6821 = vpow.pop %v6820
      %v6822 = vmul.f32 %v6538, 1.442695
      %v6823 = vpow.pop %v6822
      %v6824 = vmul.f32 %v6541, 1.442695
      %v6825 = vpow.pop %v6824
      %v6826 = vmul.f32 %v6543, 1.442695
      %v6827 = vpow.pop %v6826
      %v6828 = vmul.f32 %v6546, 1.442695
      %v6829 = vpow.pop %v6828
      %v6830 = vmul.f32 %v6548, 1.442695
      %v6831 = vpow.pop %v6830
      %v6832 = vmul.f32 %v6551, 1.442695
      %v6833 = vpow.pop %v6832
      %v6834 = vmul.f32 %v6553, 1.442695
      %v6835 = vpow.pop %v6834
      %v6836 = vmul.f32 %v6556, 1.442695
      %v6837 = vpow.pop %v6836
      %v6838 = vmul.f32 %v6558, 1.442695
      %v6839 = vpow.pop %v6838
      %v6840 = vmul.f32 %v6561, 1.442695
      %v6841 = vpow.pop %v6840
      %v6842 = vmul.f32 %v6563, 1.442695
      %v6843 = vpow.pop %v6842
      %v6844 = vmul.f32 %v6566, 1.442695
      %v6845 = vpow.pop %v6844
      %v6846 = vmul.f32 %v6568, 1.442695
      %v6847 = vpow.pop %v6846
      %v6848 = vmul.f32 %v6571, 1.442695
      %v6849 = vpow.pop %v6848
      %v6850 = vmul.f32 %v6573, 1.442695
      %v6851 = vpow.pop %v6850
      %v6852 = vmul.f32 %v6576, 1.442695
      %v6853 = vpow.pop %v6852
      %v6854 = vmul.f32 %v6578, 1.442695
      %v6855 = vpow.pop %v6854
      %v6856 = vmul.f32 %v6581, 1.442695
      %v6857 = vpow.pop %v6856
      %v6858 = vmul.f32 %v6583, 1.442695
      %v6859 = vpow.pop %v6858
      %v6860 = vmul.f32 %v6586, 1.442695
      %v6861 = vpow.pop %v6860
      %v6862 = vmul.f32 %v6588, 1.442695
      %v6863 = vpow.pop %v6862
      %v6864 = vmul.f32 %v6591, 1.442695
      %v6865 = vpow.pop %v6864
      %v6866 = vmul.f32 %v6593, 1.442695
      %v6867 = vpow.pop %v6866
      %v6868 = vmul.f32 %v6596, 1.442695
      %v6869 = vpow.pop %v6868
      %v6870 = vmul.f32 %v6598, 1.442695
      %v6871 = vpow.pop %v6870
      %v6872 = vmul.f32 %v6601, 1.442695
      %v6873 = vpow.pop %v6872
      %v6874 = vmul.f32 %v6603, 1.442695
      %v6875 = vpow.pop %v6874
      %v6876 = vmul.f32 %v6606, 1.442695
      %v6877 = vpow.pop %v6876
      %v6878 = vmul.f32 %v6608, 1.442695
      %v6879 = vpow.pop %v6878
      %v6880 = vmul.f32 %v6611, 1.442695
      %v6881 = vpow.pop %v6880
      %v6882 = vmul.f32 %v6613, 1.442695
      %v6883 = vpow.pop %v6882
      %v6884 = vmul.f32 %v6616, 1.442695
      %v6885 = vpow.pop %v6884
      %v6886 = vmul.f32 %v6618, 1.442695
      %v6887 = vpow.pop %v6886
      %v6888 = vmul.f32 %v6621, 1.442695
      %v6889 = vpow.pop %v6888
      %v6890 = vmul.f32 %v6623, 1.442695
      %v6891 = vpow.pop %v6890
      %v6892 = vmul.f32 %v6626, 1.442695
      %v6893 = vpow.pop %v6892
      %v6894 = vmul.f32 %v6628, 1.442695
      %v6895 = vpow.pop %v6894
      %v6896 = vmul.f32 %v6631, 1.442695
      %v6897 = vpow.pop %v6896
      %v6898 = vmul.f32 %v6633, 1.442695
      %v6899 = vpow.pop %v6898
      %v6900 = vmul.f32 %v6636, 1.442695
      %v6901 = vpow.pop %v6900
      %v6902 = vmul.f32 %v6638, 1.442695
      %v6903 = vpow.pop %v6902
      %v6904 = vmul.f32 %v6641, 1.442695
      %v6905 = vpow.pop %v6904
      %v6906 = vmul.f32 %v6643, 1.442695
      %v6907 = vpow.pop %v6906
      %v6908 = vmul.f32 %v6646, 1.442695
      %v6909 = vpow.pop %v6908
      %v6910 = vmul.f32 %v6648, 1.442695
      %v6911 = vpow.pop %v6910
      %v6912 = vmul.f32 %v6651, 1.442695
      %v6913 = vpow.pop %v6912
      %v6914 = vmul.f32 %v6653, 1.442695
      %v6915 = vpow.pop %v6914
      %v6916 = vmul.f32 %v6656, 1.442695
      %v6917 = vpow.pop %v6916
      %v6918 = vmul.f32 %v6658, 1.442695
      %v6919 = vpow.pop %v6918
      %v6920 = vmul.f32 %v6661, 1.442695
      %v6921 = vpow.pop %v6920
      %v6922 = vmul.f32 %v6663, 1.442695
      %v6923 = vpow.pop %v6922
      %v6924 = vmul.f32 %v6666, 1.442695
      %v6925 = vpow.pop %v6924
      %v6926 = vmul.f32 %v6668, 1.442695
      %v6927 = vpow.pop %v6926
      %v6928 = vmul.f32 %v6671, 1.442695
      %v6929 = vpow.pop %v6928
      %v6930 = vmul.f32 %v6673, 1.442695
      %v6931 = vpow.pop %v6930
      %v6932 = vmul.f32 %v6676, 1.442695
      %v6933 = vpow.pop %v6932
      %v6934 = vmul.f32 %v6678, 1.442695
      %v6935 = vpow.pop %v6934
      %v6936 = vmul.f32 %v5583, %v6681
      %v6937 = vmul.f32 %v5584, %v6683
      %v6938 = vmul.f32 %v5585, %v6685
      %v6939 = vmul.f32 %v5586, %v6687
      %v6940 = vmul.f32 %v5587, %v6689
      %v6941 = vmul.f32 %v5588, %v6691
      %v6942 = vmul.f32 %v5589, %v6693
      %v6943 = vmul.f32 %v5590, %v6695
      %v6944 = vmul.f32 %v5591, %v6697
      %v6945 = vmul.f32 %v5592, %v6699
      %v6946 = vmul.f32 %v5593, %v6701
      %v6947 = vmul.f32 %v5594, %v6703
      %v6948 = vmul.f32 %v5595, %v6705
      %v6949 = vmul.f32 %v5596, %v6707
      %v6950 = vmul.f32 %v5597, %v6709
      %v6951 = vmul.f32 %v5598, %v6711
      %v6952 = vmul.f32 %v5599, %v6713
      %v6953 = vmul.f32 %v5600, %v6715
      %v6954 = vmul.f32 %v5601, %v6717
      %v6955 = vmul.f32 %v5602, %v6719
      %v6956 = vmul.f32 %v5603, %v6721
      %v6957 = vmul.f32 %v5604, %v6723
      %v6958 = vmul.f32 %v5605, %v6725
      %v6959 = vmul.f32 %v5606, %v6727
      %v6960 = vmul.f32 %v5607, %v6729
      %v6961 = vmul.f32 %v5608, %v6731
      %v6962 = vmul.f32 %v5609, %v6733
      %v6963 = vmul.f32 %v5610, %v6735
      %v6964 = vmul.f32 %v5611, %v6737
      %v6965 = vmul.f32 %v5612, %v6739
      %v6966 = vmul.f32 %v5613, %v6741
      %v6967 = vmul.f32 %v5614, %v6743
      %v6968 = vmul.f32 %v5615, %v6745
      %v6969 = vmul.f32 %v5616, %v6747
      %v6970 = vmul.f32 %v5617, %v6749
      %v6971 = vmul.f32 %v5618, %v6751
      %v6972 = vmul.f32 %v5619, %v6753
      %v6973 = vmul.f32 %v5620, %v6755
      %v6974 = vmul.f32 %v5621, %v6757
      %v6975 = vmul.f32 %v5622, %v6759
      %v6976 = vmul.f32 %v5623, %v6761
      %v6977 = vmul.f32 %v5624, %v6763
      %v6978 = vmul.f32 %v5625, %v6765
      %v6979 = vmul.f32 %v5626, %v6767
      %v6980 = vmul.f32 %v5627, %v6769
      %v6981 = vmul.f32 %v5628, %v6771
      %v6982 = vmul.f32 %v5629, %v6773
      %v6983 = vmul.f32 %v5630, %v6775
      %v6984 = vmul.f32 %v5631, %v6777
      %v6985 = vmul.f32 %v5632, %v6779
      %v6986 = vmul.f32 %v5633, %v6781
      %v6987 = vmul.f32 %v5634, %v6783
      %v6988 = vmul.f32 %v5635, %v6785
      %v6989 = vmul.f32 %v5636, %v6787
      %v6990 = vmul.f32 %v5637, %v6789
      %v6991 = vmul.f32 %v5638, %v6791
      %v6992 = vmul.f32 %v5639, %v6793
      %v6993 = vmul.f32 %v5640, %v6795
      %v6994 = vmul.f32 %v5641, %v6797
      %v6995 = vmul.f32 %v5642, %v6799
      %v6996 = vmul.f32 %v5643, %v6801
      %v6997 = vmul.f32 %v5644, %v6803
      %v6998 = vmul.f32 %v5645, %v6805
      %v6999 = vmul.f32 %v5646, %v6807
      %v7000 = vmul.f32 %v5647, %v6809
      %v7001 = vmul.f32 %v5648, %v6811
      %v7002 = vmul.f32 %v5649, %v6813
      %v7003 = vmul.f32 %v5650, %v6815
      %v7004 = vmul.f32 %v5651, %v6817
      %v7005 = vmul.f32 %v5652, %v6819
      %v7006 = vmul.f32 %v5653, %v6821
      %v7007 = vmul.f32 %v5654, %v6823
      %v7008 = vmul.f32 %v5655, %v6825
      %v7009 = vmul.f32 %v5656, %v6827
      %v7010 = vmul.f32 %v5657, %v6829
      %v7011 = vmul.f32 %v5658, %v6831
      %v7012 = vmul.f32 %v5659, %v6833
      %v7013 = vmul.f32 %v5660, %v6835
      %v7014 = vmul.f32 %v5661, %v6837
      %v7015 = vmul.f32 %v5662, %v6839
      %v7016 = vmul.f32 %v5663, %v6841
      %v7017 = vmul.f32 %v5664, %v6843
      %v7018 = vmul.f32 %v5665, %v6845
      %v7019 = vmul.f32 %v5666, %v6847
      %v7020 = vmul.f32 %v5667, %v6849
      %v7021 = vmul.f32 %v5668, %v6851
      %v7022 = vmul.f32 %v5669, %v6853
      %v7023 = vmul.f32 %v5670, %v6855
      %v7024 = vmul.f32 %v5671, %v6857
      %v7025 = vmul.f32 %v5672, %v6859
      %v7026 = vmul.f32 %v5673, %v6861
      %v7027 = vmul.f32 %v5674, %v6863
      %v7028 = vmul.f32 %v5675, %v6865
      %v7029 = vmul.f32 %v5676, %v6867
      %v7030 = vmul.f32 %v5677, %v6869
      %v7031 = vmul.f32 %v5678, %v6871
      %v7032 = vmul.f32 %v5679, %v6873
      %v7033 = vmul.f32 %v5680, %v6875
      %v7034 = vmul.f32 %v5681, %v6877
      %v7035 = vmul.f32 %v5682, %v6879
      %v7036 = vmul.f32 %v5683, %v6881
      %v7037 = vmul.f32 %v5684, %v6883
      %v7038 = vmul.f32 %v5685, %v6885
      %v7039 = vmul.f32 %v5686, %v6887
      %v7040 = vmul.f32 %v5687, %v6889
      %v7041 = vmul.f32 %v5688, %v6891
      %v7042 = vmul.f32 %v5689, %v6893
      %v7043 = vmul.f32 %v5690, %v6895
      %v7044 = vmul.f32 %v5691, %v6897
      %v7045 = vmul.f32 %v5692, %v6899
      %v7046 = vmul.f32 %v5693, %v6901
      %v7047 = vmul.f32 %v5694, %v6903
      %v7048 = vmul.f32 %v5695, %v6905
      %v7049 = vmul.f32 %v5696, %v6907
      %v7050 = vmul.f32 %v5697, %v6909
      %v7051 = vmul.f32 %v5698, %v6911
      %v7052 = vmul.f32 %v5699, %v6913
      %v7053 = vmul.f32 %v5700, %v6915
      %v7054 = vmul.f32 %v5701, %v6917
      %v7055 = vmul.f32 %v5702, %v6919
      %v7056 = vmul.f32 %v5703, %v6921
      %v7057 = vmul.f32 %v5704, %v6923
      %v7058 = vmul.f32 %v5705, %v6925
      %v7059 = vmul.f32 %v5706, %v6927
      %v7060 = vmul.f32 %v5707, %v6929
      %v7061 = vmul.f32 %v5708, %v6931
      %v7062 = vmul.f32 %v5709, %v6933
      %v7063 = vmul.f32 %v5710, %v6935
      %v7064 = vld [vmem:[%s5] sm:$0xff]
      %v7065 = vld [vmem:[%s5 + $0x8] sm:$0xff]
      %v7066 = vld [vmem:[%s5 + $0x10] sm:$0xff]
      %v7067 = vld [vmem:[%s5 + $0x18] sm:$0xff]
      %v7068 = vld [vmem:[%s5 + $0x20] sm:$0xff]
      %v7069 = vld [vmem:[%s5 + $0x28] sm:$0xff]
      %v7070 = vld [vmem:[%s5 + $0x30] sm:$0xff]
      %v7071 = vld [vmem:[%s5 + $0x38] sm:$0xff]
      %v7072 = vld [vmem:[%s5 + $0x40] sm:$0xff]
      %v7073 = vld [vmem:[%s5 + $0x48] sm:$0xff]
      %v7074 = vld [vmem:[%s5 + $0x50] sm:$0xff]
      %v7075 = vld [vmem:[%s5 + $0x58] sm:$0xff]
      %v7076 = vld [vmem:[%s5 + $0x60] sm:$0xff]
      %v7077 = vld [vmem:[%s5 + $0x68] sm:$0xff]
      %v7078 = vld [vmem:[%s5 + $0x70] sm:$0xff]
      %v7079 = vld [vmem:[%s5 + $0x78] sm:$0xff]
      %7080 = vmatpush.msra.mxu0 %v7079
      %7081 = vmatpush.msra.mxu0 %v7078
      %7082 = vmatpush.msra.mxu0 %v7077
      %7083 = vmatpush.msra.mxu0 %v7076
      %7084 = vmatpush.msra.mxu0 %v7075
      %7085 = vmatpush.msra.mxu0 %v7074
      %7086 = vmatpush.msra.mxu0 %v7073
      %7087 = vmatpush.msra.mxu0 %v7072
      %7088 = vmatpush.msra.mxu0 %v7071
      %7089 = vmatpush.msra.mxu0 %v7070
      %7090 = vmatpush.msra.mxu0 %v7069
      %7091 = vmatpush.msra.mxu0 %v7068
      %7092 = vmatpush.msra.mxu0 %v7067
      %7093 = vmatpush.msra.mxu0 %v7066
      %7094 = vmatpush.msra.mxu0 %v7065
      %7095 = vmatpush.msra.mxu0 %v7064
      %7096 = vmatmul.f32.gmra.mxu0 %v6936
      %v7097 = vpop.f32.mrf.mxu0
      %v7098 = vadd.f32 0.0, %v7097
      %7099 = vmatmul.f32.gmra.mxu0 %v6937
      %v7100 = vpop.f32.mrf.mxu0
      %v7101 = vadd.f32 0.0, %v7100
      %7102 = vmatmul.f32.gmra.mxu0 %v6938
      %v7103 = vpop.f32.mrf.mxu0
      %v7104 = vadd.f32 0.0, %v7103
      %7105 = vmatmul.f32.gmra.mxu0 %v6939
      %v7106 = vpop.f32.mrf.mxu0
      %v7107 = vadd.f32 0.0, %v7106
      %7108 = vmatmul.f32.gmra.mxu0 %v6940
      %v7109 = vpop.f32.mrf.mxu0
      %v7110 = vadd.f32 0.0, %v7109
      %7111 = vmatmul.f32.gmra.mxu0 %v6941
      %v7112 = vpop.f32.mrf.mxu0
      %v7113 = vadd.f32 0.0, %v7112
      %7114 = vmatmul.f32.gmra.mxu0 %v6942
      %v7115 = vpop.f32.mrf.mxu0
      %v7116 = vadd.f32 0.0, %v7115
      %7117 = vmatmul.f32.gmra.mxu0 %v6943
      %v7118 = vpop.f32.mrf.mxu0
      %v7119 = vadd.f32 0.0, %v7118
      %7120 = vmatmul.f32.gmra.mxu0 %v6944
      %v7121 = vpop.f32.mrf.mxu0
      %v7122 = vadd.f32 0.0, %v7121
      %7123 = vmatmul.f32.gmra.mxu0 %v6945
      %v7124 = vpop.f32.mrf.mxu0
      %v7125 = vadd.f32 0.0, %v7124
      %7126 = vmatmul.f32.gmra.mxu0 %v6946
      %v7127 = vpop.f32.mrf.mxu0
      %v7128 = vadd.f32 0.0, %v7127
      %7129 = vmatmul.f32.gmra.mxu0 %v6947
      %v7130 = vpop.f32.mrf.mxu0
      %v7131 = vadd.f32 0.0, %v7130
      %7132 = vmatmul.f32.gmra.mxu0 %v6948
      %v7133 = vpop.f32.mrf.mxu0
      %v7134 = vadd.f32 0.0, %v7133
      %7135 = vmatmul.f32.gmra.mxu0 %v6949
      %v7136 = vpop.f32.mrf.mxu0
      %v7137 = vadd.f32 0.0, %v7136
      %7138 = vmatmul.f32.gmra.mxu0 %v6950
      %v7139 = vpop.f32.mrf.mxu0
      %v7140 = vadd.f32 0.0, %v7139
      %7141 = vmatmul.f32.gmra.mxu0 %v6951
      %v7142 = vpop.f32.mrf.mxu0
      %v7143 = vadd.f32 0.0, %v7142
      %7144 = vmatmul.f32.gmra.mxu0 %v6952
      %v7145 = vpop.f32.mrf.mxu0
      %v7146 = vadd.f32 0.0, %v7145
      %7147 = vmatmul.f32.gmra.mxu0 %v6953
      %v7148 = vpop.f32.mrf.mxu0
      %v7149 = vadd.f32 0.0, %v7148
      %7150 = vmatmul.f32.gmra.mxu0 %v6954
      %v7151 = vpop.f32.mrf.mxu0
      %v7152 = vadd.f32 0.0, %v7151
      %7153 = vmatmul.f32.gmra.mxu0 %v6955
      %v7154 = vpop.f32.mrf.mxu0
      %v7155 = vadd.f32 0.0, %v7154
      %7156 = vmatmul.f32.gmra.mxu0 %v6956
      %v7157 = vpop.f32.mrf.mxu0
      %v7158 = vadd.f32 0.0, %v7157
      %7159 = vmatmul.f32.gmra.mxu0 %v6957
      %v7160 = vpop.f32.mrf.mxu0
      %v7161 = vadd.f32 0.0, %v7160
      %7162 = vmatmul.f32.gmra.mxu0 %v6958
      %v7163 = vpop.f32.mrf.mxu0
      %v7164 = vadd.f32 0.0, %v7163
      %7165 = vmatmul.f32.gmra.mxu0 %v6959
      %v7166 = vpop.f32.mrf.mxu0
      %v7167 = vadd.f32 0.0, %v7166
      %7168 = vmatmul.f32.gmra.mxu0 %v6960
      %v7169 = vpop.f32.mrf.mxu0
      %v7170 = vadd.f32 0.0, %v7169
      %7171 = vmatmul.f32.gmra.mxu0 %v6961
      %v7172 = vpop.f32.mrf.mxu0
      %v7173 = vadd.f32 0.0, %v7172
      %7174 = vmatmul.f32.gmra.mxu0 %v6962
      %v7175 = vpop.f32.mrf.mxu0
      %v7176 = vadd.f32 0.0, %v7175
      %7177 = vmatmul.f32.gmra.mxu0 %v6963
      %v7178 = vpop.f32.mrf.mxu0
      %v7179 = vadd.f32 0.0, %v7178
      %7180 = vmatmul.f32.gmra.mxu0 %v6964
      %v7181 = vpop.f32.mrf.mxu0
      %v7182 = vadd.f32 0.0, %v7181
      %7183 = vmatmul.f32.gmra.mxu0 %v6965
      %v7184 = vpop.f32.mrf.mxu0
      %v7185 = vadd.f32 0.0, %v7184
      %7186 = vmatmul.f32.gmra.mxu0 %v6966
      %v7187 = vpop.f32.mrf.mxu0
      %v7188 = vadd.f32 0.0, %v7187
      %7189 = vmatmul.f32.gmra.mxu0 %v6967
      %v7190 = vpop.f32.mrf.mxu0
      %v7191 = vadd.f32 0.0, %v7190
      %7192 = vmatmul.f32.gmra.mxu0 %v6968
      %v7193 = vpop.f32.mrf.mxu0
      %v7194 = vadd.f32 0.0, %v7193
      %7195 = vmatmul.f32.gmra.mxu0 %v6969
      %v7196 = vpop.f32.mrf.mxu0
      %v7197 = vadd.f32 0.0, %v7196
      %7198 = vmatmul.f32.gmra.mxu0 %v6970
      %v7199 = vpop.f32.mrf.mxu0
      %v7200 = vadd.f32 0.0, %v7199
      %7201 = vmatmul.f32.gmra.mxu0 %v6971
      %v7202 = vpop.f32.mrf.mxu0
      %v7203 = vadd.f32 0.0, %v7202
      %7204 = vmatmul.f32.gmra.mxu0 %v6972
      %v7205 = vpop.f32.mrf.mxu0
      %v7206 = vadd.f32 0.0, %v7205
      %7207 = vmatmul.f32.gmra.mxu0 %v6973
      %v7208 = vpop.f32.mrf.mxu0
      %v7209 = vadd.f32 0.0, %v7208
      %7210 = vmatmul.f32.gmra.mxu0 %v6974
      %v7211 = vpop.f32.mrf.mxu0
      %v7212 = vadd.f32 0.0, %v7211
      %7213 = vmatmul.f32.gmra.mxu0 %v6975
      %v7214 = vpop.f32.mrf.mxu0
      %v7215 = vadd.f32 0.0, %v7214
      %7216 = vmatmul.f32.gmra.mxu0 %v6976
      %v7217 = vpop.f32.mrf.mxu0
      %v7218 = vadd.f32 0.0, %v7217
      %7219 = vmatmul.f32.gmra.mxu0 %v6977
      %v7220 = vpop.f32.mrf.mxu0
      %v7221 = vadd.f32 0.0, %v7220
      %7222 = vmatmul.f32.gmra.mxu0 %v6978
      %v7223 = vpop.f32.mrf.mxu0
      %v7224 = vadd.f32 0.0, %v7223
      %7225 = vmatmul.f32.gmra.mxu0 %v6979
      %v7226 = vpop.f32.mrf.mxu0
      %v7227 = vadd.f32 0.0, %v7226
      %7228 = vmatmul.f32.gmra.mxu0 %v6980
      %v7229 = vpop.f32.mrf.mxu0
      %v7230 = vadd.f32 0.0, %v7229
      %7231 = vmatmul.f32.gmra.mxu0 %v6981
      %v7232 = vpop.f32.mrf.mxu0
      %v7233 = vadd.f32 0.0, %v7232
      %7234 = vmatmul.f32.gmra.mxu0 %v6982
      %v7235 = vpop.f32.mrf.mxu0
      %v7236 = vadd.f32 0.0, %v7235
      %7237 = vmatmul.f32.gmra.mxu0 %v6983
      %v7238 = vpop.f32.mrf.mxu0
      %v7239 = vadd.f32 0.0, %v7238
      %7240 = vmatmul.f32.gmra.mxu0 %v6984
      %v7241 = vpop.f32.mrf.mxu0
      %v7242 = vadd.f32 0.0, %v7241
      %7243 = vmatmul.f32.gmra.mxu0 %v6985
      %v7244 = vpop.f32.mrf.mxu0
      %v7245 = vadd.f32 0.0, %v7244
      %7246 = vmatmul.f32.gmra.mxu0 %v6986
      %v7247 = vpop.f32.mrf.mxu0
      %v7248 = vadd.f32 0.0, %v7247
      %7249 = vmatmul.f32.gmra.mxu0 %v6987
      %v7250 = vpop.f32.mrf.mxu0
      %v7251 = vadd.f32 0.0, %v7250
      %7252 = vmatmul.f32.gmra.mxu0 %v6988
      %v7253 = vpop.f32.mrf.mxu0
      %v7254 = vadd.f32 0.0, %v7253
      %7255 = vmatmul.f32.gmra.mxu0 %v6989
      %v7256 = vpop.f32.mrf.mxu0
      %v7257 = vadd.f32 0.0, %v7256
      %7258 = vmatmul.f32.gmra.mxu0 %v6990
      %v7259 = vpop.f32.mrf.mxu0
      %v7260 = vadd.f32 0.0, %v7259
      %7261 = vmatmul.f32.gmra.mxu0 %v6991
      %v7262 = vpop.f32.mrf.mxu0
      %v7263 = vadd.f32 0.0, %v7262
      %7264 = vmatmul.f32.gmra.mxu0 %v6992
      %v7265 = vpop.f32.mrf.mxu0
      %v7266 = vadd.f32 0.0, %v7265
      %7267 = vmatmul.f32.gmra.mxu0 %v6993
      %v7268 = vpop.f32.mrf.mxu0
      %v7269 = vadd.f32 0.0, %v7268
      %7270 = vmatmul.f32.gmra.mxu0 %v6994
      %v7271 = vpop.f32.mrf.mxu0
      %v7272 = vadd.f32 0.0, %v7271
      %7273 = vmatmul.f32.gmra.mxu0 %v6995
      %v7274 = vpop.f32.mrf.mxu0
      %v7275 = vadd.f32 0.0, %v7274
      %7276 = vmatmul.f32.gmra.mxu0 %v6996
      %v7277 = vpop.f32.mrf.mxu0
      %v7278 = vadd.f32 0.0, %v7277
      %7279 = vmatmul.f32.gmra.mxu0 %v6997
      %v7280 = vpop.f32.mrf.mxu0
      %v7281 = vadd.f32 0.0, %v7280
      %7282 = vmatmul.f32.gmra.mxu0 %v6998
      %v7283 = vpop.f32.mrf.mxu0
      %v7284 = vadd.f32 0.0, %v7283
      %7285 = vmatmul.f32.gmra.mxu0 %v6999
      %v7286 = vpop.f32.mrf.mxu0
      %v7287 = vadd.f32 0.0, %v7286
      %7288 = vmatmul.f32.gmra.mxu0 %v7000
      %v7289 = vpop.f32.mrf.mxu0
      %v7290 = vadd.f32 0.0, %v7289
      %7291 = vmatmul.f32.gmra.mxu0 %v7001
      %v7292 = vpop.f32.mrf.mxu0
      %v7293 = vadd.f32 0.0, %v7292
      %7294 = vmatmul.f32.gmra.mxu0 %v7002
      %v7295 = vpop.f32.mrf.mxu0
      %v7296 = vadd.f32 0.0, %v7295
      %7297 = vmatmul.f32.gmra.mxu0 %v7003
      %v7298 = vpop.f32.mrf.mxu0
      %v7299 = vadd.f32 0.0, %v7298
      %7300 = vmatmul.f32.gmra.mxu0 %v7004
      %v7301 = vpop.f32.mrf.mxu0
      %v7302 = vadd.f32 0.0, %v7301
      %7303 = vmatmul.f32.gmra.mxu0 %v7005
      %v7304 = vpop.f32.mrf.mxu0
      %v7305 = vadd.f32 0.0, %v7304
      %7306 = vmatmul.f32.gmra.mxu0 %v7006
      %v7307 = vpop.f32.mrf.mxu0
      %v7308 = vadd.f32 0.0, %v7307
      %7309 = vmatmul.f32.gmra.mxu0 %v7007
      %v7310 = vpop.f32.mrf.mxu0
      %v7311 = vadd.f32 0.0, %v7310
      %7312 = vmatmul.f32.gmra.mxu0 %v7008
      %v7313 = vpop.f32.mrf.mxu0
      %v7314 = vadd.f32 0.0, %v7313
      %7315 = vmatmul.f32.gmra.mxu0 %v7009
      %v7316 = vpop.f32.mrf.mxu0
      %v7317 = vadd.f32 0.0, %v7316
      %7318 = vmatmul.f32.gmra.mxu0 %v7010
      %v7319 = vpop.f32.mrf.mxu0
      %v7320 = vadd.f32 0.0, %v7319
      %7321 = vmatmul.f32.gmra.mxu0 %v7011
      %v7322 = vpop.f32.mrf.mxu0
      %v7323 = vadd.f32 0.0, %v7322
      %7324 = vmatmul.f32.gmra.mxu0 %v7012
      %v7325 = vpop.f32.mrf.mxu0
      %v7326 = vadd.f32 0.0, %v7325
      %7327 = vmatmul.f32.gmra.mxu0 %v7013
      %v7328 = vpop.f32.mrf.mxu0
      %v7329 = vadd.f32 0.0, %v7328
      %7330 = vmatmul.f32.gmra.mxu0 %v7014
      %v7331 = vpop.f32.mrf.mxu0
      %v7332 = vadd.f32 0.0, %v7331
      %7333 = vmatmul.f32.gmra.mxu0 %v7015
      %v7334 = vpop.f32.mrf.mxu0
      %v7335 = vadd.f32 0.0, %v7334
      %7336 = vmatmul.f32.gmra.mxu0 %v7016
      %v7337 = vpop.f32.mrf.mxu0
      %v7338 = vadd.f32 0.0, %v7337
      %7339 = vmatmul.f32.gmra.mxu0 %v7017
      %v7340 = vpop.f32.mrf.mxu0
      %v7341 = vadd.f32 0.0, %v7340
      %7342 = vmatmul.f32.gmra.mxu0 %v7018
      %v7343 = vpop.f32.mrf.mxu0
      %v7344 = vadd.f32 0.0, %v7343
      %7345 = vmatmul.f32.gmra.mxu0 %v7019
      %v7346 = vpop.f32.mrf.mxu0
      %v7347 = vadd.f32 0.0, %v7346
      %7348 = vmatmul.f32.gmra.mxu0 %v7020
      %v7349 = vpop.f32.mrf.mxu0
      %v7350 = vadd.f32 0.0, %v7349
      %7351 = vmatmul.f32.gmra.mxu0 %v7021
      %v7352 = vpop.f32.mrf.mxu0
      %v7353 = vadd.f32 0.0, %v7352
      %7354 = vmatmul.f32.gmra.mxu0 %v7022
      %v7355 = vpop.f32.mrf.mxu0
      %v7356 = vadd.f32 0.0, %v7355
      %7357 = vmatmul.f32.gmra.mxu0 %v7023
      %v7358 = vpop.f32.mrf.mxu0
      %v7359 = vadd.f32 0.0, %v7358
      %7360 = vmatmul.f32.gmra.mxu0 %v7024
      %v7361 = vpop.f32.mrf.mxu0
      %v7362 = vadd.f32 0.0, %v7361
      %7363 = vmatmul.f32.gmra.mxu0 %v7025
      %v7364 = vpop.f32.mrf.mxu0
      %v7365 = vadd.f32 0.0, %v7364
      %7366 = vmatmul.f32.gmra.mxu0 %v7026
      %v7367 = vpop.f32.mrf.mxu0
      %v7368 = vadd.f32 0.0, %v7367
      %7369 = vmatmul.f32.gmra.mxu0 %v7027
      %v7370 = vpop.f32.mrf.mxu0
      %v7371 = vadd.f32 0.0, %v7370
      %7372 = vmatmul.f32.gmra.mxu0 %v7028
      %v7373 = vpop.f32.mrf.mxu0
      %v7374 = vadd.f32 0.0, %v7373
      %7375 = vmatmul.f32.gmra.mxu0 %v7029
      %v7376 = vpop.f32.mrf.mxu0
      %v7377 = vadd.f32 0.0, %v7376
      %7378 = vmatmul.f32.gmra.mxu0 %v7030
      %v7379 = vpop.f32.mrf.mxu0
      %v7380 = vadd.f32 0.0, %v7379
      %7381 = vmatmul.f32.gmra.mxu0 %v7031
      %v7382 = vpop.f32.mrf.mxu0
      %v7383 = vadd.f32 0.0, %v7382
      %7384 = vmatmul.f32.gmra.mxu0 %v7032
      %v7385 = vpop.f32.mrf.mxu0
      %v7386 = vadd.f32 0.0, %v7385
      %7387 = vmatmul.f32.gmra.mxu0 %v7033
      %v7388 = vpop.f32.mrf.mxu0
      %v7389 = vadd.f32 0.0, %v7388
      %7390 = vmatmul.f32.gmra.mxu0 %v7034
      %v7391 = vpop.f32.mrf.mxu0
      %v7392 = vadd.f32 0.0, %v7391
      %7393 = vmatmul.f32.gmra.mxu0 %v7035
      %v7394 = vpop.f32.mrf.mxu0
      %v7395 = vadd.f32 0.0, %v7394
      %7396 = vmatmul.f32.gmra.mxu0 %v7036
      %v7397 = vpop.f32.mrf.mxu0
      %v7398 = vadd.f32 0.0, %v7397
      %7399 = vmatmul.f32.gmra.mxu0 %v7037
      %v7400 = vpop.f32.mrf.mxu0
      %v7401 = vadd.f32 0.0, %v7400
      %7402 = vmatmul.f32.gmra.mxu0 %v7038
      %v7403 = vpop.f32.mrf.mxu0
      %v7404 = vadd.f32 0.0, %v7403
      %7405 = vmatmul.f32.gmra.mxu0 %v7039
      %v7406 = vpop.f32.mrf.mxu0
      %v7407 = vadd.f32 0.0, %v7406
      %7408 = vmatmul.f32.gmra.mxu0 %v7040
      %v7409 = vpop.f32.mrf.mxu0
      %v7410 = vadd.f32 0.0, %v7409
      %7411 = vmatmul.f32.gmra.mxu0 %v7041
      %v7412 = vpop.f32.mrf.mxu0
      %v7413 = vadd.f32 0.0, %v7412
      %7414 = vmatmul.f32.gmra.mxu0 %v7042
      %v7415 = vpop.f32.mrf.mxu0
      %v7416 = vadd.f32 0.0, %v7415
      %7417 = vmatmul.f32.gmra.mxu0 %v7043
      %v7418 = vpop.f32.mrf.mxu0
      %v7419 = vadd.f32 0.0, %v7418
      %7420 = vmatmul.f32.gmra.mxu0 %v7044
      %v7421 = vpop.f32.mrf.mxu0
      %v7422 = vadd.f32 0.0, %v7421
      %7423 = vmatmul.f32.gmra.mxu0 %v7045
      %v7424 = vpop.f32.mrf.mxu0
      %v7425 = vadd.f32 0.0, %v7424
      %7426 = vmatmul.f32.gmra.mxu0 %v7046
      %v7427 = vpop.f32.mrf.mxu0
      %v7428 = vadd.f32 0.0, %v7427
      %7429 = vmatmul.f32.gmra.mxu0 %v7047
      %v7430 = vpop.f32.mrf.mxu0
      %v7431 = vadd.f32 0.0, %v7430
      %7432 = vmatmul.f32.gmra.mxu0 %v7048
      %v7433 = vpop.f32.mrf.mxu0
      %v7434 = vadd.f32 0.0, %v7433
      %7435 = vmatmul.f32.gmra.mxu0 %v7049
      %v7436 = vpop.f32.mrf.mxu0
      %v7437 = vadd.f32 0.0, %v7436
      %7438 = vmatmul.f32.gmra.mxu0 %v7050
      %v7439 = vpop.f32.mrf.mxu0
      %v7440 = vadd.f32 0.0, %v7439
      %7441 = vmatmul.f32.gmra.mxu0 %v7051
      %v7442 = vpop.f32.mrf.mxu0
      %v7443 = vadd.f32 0.0, %v7442
      %7444 = vmatmul.f32.gmra.mxu0 %v7052
      %v7445 = vpop.f32.mrf.mxu0
      %v7446 = vadd.f32 0.0, %v7445
      %7447 = vmatmul.f32.gmra.mxu0 %v7053
      %v7448 = vpop.f32.mrf.mxu0
      %v7449 = vadd.f32 0.0, %v7448
      %7450 = vmatmul.f32.gmra.mxu0 %v7054
      %v7451 = vpop.f32.mrf.mxu0
      %v7452 = vadd.f32 0.0, %v7451
      %7453 = vmatmul.f32.gmra.mxu0 %v7055
      %v7454 = vpop.f32.mrf.mxu0
      %v7455 = vadd.f32 0.0, %v7454
      %7456 = vmatmul.f32.gmra.mxu0 %v7056
      %v7457 = vpop.f32.mrf.mxu0
      %v7458 = vadd.f32 0.0, %v7457
      %7459 = vmatmul.f32.gmra.mxu0 %v7057
      %v7460 = vpop.f32.mrf.mxu0
      %v7461 = vadd.f32 0.0, %v7460
      %7462 = vmatmul.f32.gmra.mxu0 %v7058
      %v7463 = vpop.f32.mrf.mxu0
      %v7464 = vadd.f32 0.0, %v7463
      %7465 = vmatmul.f32.gmra.mxu0 %v7059
      %v7466 = vpop.f32.mrf.mxu0
      %v7467 = vadd.f32 0.0, %v7466
      %7468 = vmatmul.f32.gmra.mxu0 %v7060
      %v7469 = vpop.f32.mrf.mxu0
      %v7470 = vadd.f32 0.0, %v7469
      %7471 = vmatmul.f32.gmra.mxu0 %v7061
      %v7472 = vpop.f32.mrf.mxu0
      %v7473 = vadd.f32 0.0, %v7472
      %7474 = vmatmul.f32.gmra.mxu0 %v7062
      %v7475 = vpop.f32.mrf.mxu0
      %v7476 = vadd.f32 0.0, %v7475
      %7477 = vmatmul.f32.gmra.mxu0 %v7063
      %v7478 = vpop.f32.mrf.mxu0
      %v7479 = vadd.f32 0.0, %v7478
      %7480 = vdwg.mxu0
      %vm7481 = vcmask 31744
      %7482 = vst.msk [vmem:[%s302] sm:$0xff] %vm7481, %v7098
      %7483 = vst.msk [vmem:[%s302 + $0x8] sm:$0xff] %vm7481, %v7101
      %7484 = vst.msk [vmem:[%s302 + $0x10] sm:$0xff] %vm7481, %v7104
      %7485 = vst.msk [vmem:[%s302 + $0x18] sm:$0xff] %vm7481, %v7107
      %7486 = vst.msk [vmem:[%s302 + $0x20] sm:$0xff] %vm7481, %v7110
      %7487 = vst.msk [vmem:[%s302 + $0x28] sm:$0xff] %vm7481, %v7113
      %7488 = vst.msk [vmem:[%s302 + $0x30] sm:$0xff] %vm7481, %v7116
      %7489 = vst.msk [vmem:[%s302 + $0x38] sm:$0xff] %vm7481, %v7119
      %7490 = vst.msk [vmem:[%s302 + $0x40] sm:$0xff] %vm7481, %v7122
      %7491 = vst.msk [vmem:[%s302 + $0x48] sm:$0xff] %vm7481, %v7125
      %7492 = vst.msk [vmem:[%s302 + $0x50] sm:$0xff] %vm7481, %v7128
      %7493 = vst.msk [vmem:[%s302 + $0x58] sm:$0xff] %vm7481, %v7131
      %7494 = vst.msk [vmem:[%s302 + $0x60] sm:$0xff] %vm7481, %v7134
      %7495 = vst.msk [vmem:[%s302 + $0x68] sm:$0xff] %vm7481, %v7137
      %7496 = vst.msk [vmem:[%s302 + $0x70] sm:$0xff] %vm7481, %v7140
      %7497 = vst.msk [vmem:[%s302 + $0x78] sm:$0xff] %vm7481, %v7143
      %7498 = vst.msk [vmem:[%s302 + $0x80] sm:$0xff] %vm7481, %v7146
      %7499 = vst.msk [vmem:[%s302 + $0x88] sm:$0xff] %vm7481, %v7149
      %7500 = vst.msk [vmem:[%s302 + $0x90] sm:$0xff] %vm7481, %v7152
      %7501 = vst.msk [vmem:[%s302 + $0x98] sm:$0xff] %vm7481, %v7155
      %7502 = vst.msk [vmem:[%s302 + $0xa0] sm:$0xff] %vm7481, %v7158
      %7503 = vst.msk [vmem:[%s302 + $0xa8] sm:$0xff] %vm7481, %v7161
      %7504 = vst.msk [vmem:[%s302 + $0xb0] sm:$0xff] %vm7481, %v7164
      %7505 = vst.msk [vmem:[%s302 + $0xb8] sm:$0xff] %vm7481, %v7167
      %7506 = vst.msk [vmem:[%s302 + $0xc0] sm:$0xff] %vm7481, %v7170
      %7507 = vst.msk [vmem:[%s302 + $0xc8] sm:$0xff] %vm7481, %v7173
      %7508 = vst.msk [vmem:[%s302 + $0xd0] sm:$0xff] %vm7481, %v7176
      %7509 = vst.msk [vmem:[%s302 + $0xd8] sm:$0xff] %vm7481, %v7179
      %7510 = vst.msk [vmem:[%s302 + $0xe0] sm:$0xff] %vm7481, %v7182
      %7511 = vst.msk [vmem:[%s302 + $0xe8] sm:$0xff] %vm7481, %v7185
      %7512 = vst.msk [vmem:[%s302 + $0xf0] sm:$0xff] %vm7481, %v7188
      %7513 = vst.msk [vmem:[%s302 + $0xf8] sm:$0xff] %vm7481, %v7191
      %7514 = vst.msk [vmem:[%s302 + $0x100] sm:$0xff] %vm7481, %v7194
      %7515 = vst.msk [vmem:[%s302 + $0x108] sm:$0xff] %vm7481, %v7197
      %7516 = vst.msk [vmem:[%s302 + $0x110] sm:$0xff] %vm7481, %v7200
      %7517 = vst.msk [vmem:[%s302 + $0x118] sm:$0xff] %vm7481, %v7203
      %7518 = vst.msk [vmem:[%s302 + $0x120] sm:$0xff] %vm7481, %v7206
      %7519 = vst.msk [vmem:[%s302 + $0x128] sm:$0xff] %vm7481, %v7209
      %7520 = vst.msk [vmem:[%s302 + $0x130] sm:$0xff] %vm7481, %v7212
      %7521 = vst.msk [vmem:[%s302 + $0x138] sm:$0xff] %vm7481, %v7215
      %7522 = vst.msk [vmem:[%s302 + $0x140] sm:$0xff] %vm7481, %v7218
      %7523 = vst.msk [vmem:[%s302 + $0x148] sm:$0xff] %vm7481, %v7221
      %7524 = vst.msk [vmem:[%s302 + $0x150] sm:$0xff] %vm7481, %v7224
      %7525 = vst.msk [vmem:[%s302 + $0x158] sm:$0xff] %vm7481, %v7227
      %7526 = vst.msk [vmem:[%s302 + $0x160] sm:$0xff] %vm7481, %v7230
      %7527 = vst.msk [vmem:[%s302 + $0x168] sm:$0xff] %vm7481, %v7233
      %7528 = vst.msk [vmem:[%s302 + $0x170] sm:$0xff] %vm7481, %v7236
      %7529 = vst.msk [vmem:[%s302 + $0x178] sm:$0xff] %vm7481, %v7239
      %7530 = vst.msk [vmem:[%s302 + $0x180] sm:$0xff] %vm7481, %v7242
      %7531 = vst.msk [vmem:[%s302 + $0x188] sm:$0xff] %vm7481, %v7245
      %7532 = vst.msk [vmem:[%s302 + $0x190] sm:$0xff] %vm7481, %v7248
      %7533 = vst.msk [vmem:[%s302 + $0x198] sm:$0xff] %vm7481, %v7251
      %7534 = vst.msk [vmem:[%s302 + $0x1a0] sm:$0xff] %vm7481, %v7254
      %7535 = vst.msk [vmem:[%s302 + $0x1a8] sm:$0xff] %vm7481, %v7257
      %7536 = vst.msk [vmem:[%s302 + $0x1b0] sm:$0xff] %vm7481, %v7260
      %7537 = vst.msk [vmem:[%s302 + $0x1b8] sm:$0xff] %vm7481, %v7263
      %7538 = vst.msk [vmem:[%s302 + $0x1c0] sm:$0xff] %vm7481, %v7266
      %7539 = vst.msk [vmem:[%s302 + $0x1c8] sm:$0xff] %vm7481, %v7269
      %7540 = vst.msk [vmem:[%s302 + $0x1d0] sm:$0xff] %vm7481, %v7272
      %7541 = vst.msk [vmem:[%s302 + $0x1d8] sm:$0xff] %vm7481, %v7275
      %7542 = vst.msk [vmem:[%s302 + $0x1e0] sm:$0xff] %vm7481, %v7278
      %7543 = vst.msk [vmem:[%s302 + $0x1e8] sm:$0xff] %vm7481, %v7281
      %7544 = vst.msk [vmem:[%s302 + $0x1f0] sm:$0xff] %vm7481, %v7284
      %7545 = vst.msk [vmem:[%s302 + $0x1f8] sm:$0xff] %vm7481, %v7287
      %7546 = vst.msk [vmem:[%s302 + $0x200] sm:$0xff] %vm7481, %v7290
      %7547 = vst.msk [vmem:[%s302 + $0x208] sm:$0xff] %vm7481, %v7293
      %7548 = vst.msk [vmem:[%s302 + $0x210] sm:$0xff] %vm7481, %v7296
      %7549 = vst.msk [vmem:[%s302 + $0x218] sm:$0xff] %vm7481, %v7299
      %7550 = vst.msk [vmem:[%s302 + $0x220] sm:$0xff] %vm7481, %v7302
      %7551 = vst.msk [vmem:[%s302 + $0x228] sm:$0xff] %vm7481, %v7305
      %7552 = vst.msk [vmem:[%s302 + $0x230] sm:$0xff] %vm7481, %v7308
      %7553 = vst.msk [vmem:[%s302 + $0x238] sm:$0xff] %vm7481, %v7311
      %7554 = vst.msk [vmem:[%s302 + $0x240] sm:$0xff] %vm7481, %v7314
      %7555 = vst.msk [vmem:[%s302 + $0x248] sm:$0xff] %vm7481, %v7317
      %7556 = vst.msk [vmem:[%s302 + $0x250] sm:$0xff] %vm7481, %v7320
      %7557 = vst.msk [vmem:[%s302 + $0x258] sm:$0xff] %vm7481, %v7323
      %7558 = vst.msk [vmem:[%s302 + $0x260] sm:$0xff] %vm7481, %v7326
      %7559 = vst.msk [vmem:[%s302 + $0x268] sm:$0xff] %vm7481, %v7329
      %7560 = vst.msk [vmem:[%s302 + $0x270] sm:$0xff] %vm7481, %v7332
      %7561 = vst.msk [vmem:[%s302 + $0x278] sm:$0xff] %vm7481, %v7335
      %7562 = vst.msk [vmem:[%s302 + $0x280] sm:$0xff] %vm7481, %v7338
      %7563 = vst.msk [vmem:[%s302 + $0x288] sm:$0xff] %vm7481, %v7341
      %7564 = vst.msk [vmem:[%s302 + $0x290] sm:$0xff] %vm7481, %v7344
      %7565 = vst.msk [vmem:[%s302 + $0x298] sm:$0xff] %vm7481, %v7347
      %7566 = vst.msk [vmem:[%s302 + $0x2a0] sm:$0xff] %vm7481, %v7350
      %7567 = vst.msk [vmem:[%s302 + $0x2a8] sm:$0xff] %vm7481, %v7353
      %7568 = vst.msk [vmem:[%s302 + $0x2b0] sm:$0xff] %vm7481, %v7356
      %7569 = vst.msk [vmem:[%s302 + $0x2b8] sm:$0xff] %vm7481, %v7359
      %7570 = vst.msk [vmem:[%s302 + $0x2c0] sm:$0xff] %vm7481, %v7362
      %7571 = vst.msk [vmem:[%s302 + $0x2c8] sm:$0xff] %vm7481, %v7365
      %7572 = vst.msk [vmem:[%s302 + $0x2d0] sm:$0xff] %vm7481, %v7368
      %7573 = vst.msk [vmem:[%s302 + $0x2d8] sm:$0xff] %vm7481, %v7371
      %7574 = vst.msk [vmem:[%s302 + $0x2e0] sm:$0xff] %vm7481, %v7374
      %7575 = vst.msk [vmem:[%s302 + $0x2e8] sm:$0xff] %vm7481, %v7377
      %7576 = vst.msk [vmem:[%s302 + $0x2f0] sm:$0xff] %vm7481, %v7380
      %7577 = vst.msk [vmem:[%s302 + $0x2f8] sm:$0xff] %vm7481, %v7383
      %7578 = vst.msk [vmem:[%s302 + $0x300] sm:$0xff] %vm7481, %v7386
      %7579 = vst.msk [vmem:[%s302 + $0x308] sm:$0xff] %vm7481, %v7389
      %7580 = vst.msk [vmem:[%s302 + $0x310] sm:$0xff] %vm7481, %v7392
      %7581 = vst.msk [vmem:[%s302 + $0x318] sm:$0xff] %vm7481, %v7395
      %7582 = vst.msk [vmem:[%s302 + $0x320] sm:$0xff] %vm7481, %v7398
      %7583 = vst.msk [vmem:[%s302 + $0x328] sm:$0xff] %vm7481, %v7401
      %7584 = vst.msk [vmem:[%s302 + $0x330] sm:$0xff] %vm7481, %v7404
      %7585 = vst.msk [vmem:[%s302 + $0x338] sm:$0xff] %vm7481, %v7407
      %7586 = vst.msk [vmem:[%s302 + $0x340] sm:$0xff] %vm7481, %v7410
      %7587 = vst.msk [vmem:[%s302 + $0x348] sm:$0xff] %vm7481, %v7413
      %7588 = vst.msk [vmem:[%s302 + $0x350] sm:$0xff] %vm7481, %v7416
      %7589 = vst.msk [vmem:[%s302 + $0x358] sm:$0xff] %vm7481, %v7419
      %7590 = vst.msk [vmem:[%s302 + $0x360] sm:$0xff] %vm7481, %v7422
      %7591 = vst.msk [vmem:[%s302 + $0x368] sm:$0xff] %vm7481, %v7425
      %7592 = vst.msk [vmem:[%s302 + $0x370] sm:$0xff] %vm7481, %v7428
      %7593 = vst.msk [vmem:[%s302 + $0x378] sm:$0xff] %vm7481, %v7431
      %7594 = vst.msk [vmem:[%s302 + $0x380] sm:$0xff] %vm7481, %v7434
      %7595 = vst.msk [vmem:[%s302 + $0x388] sm:$0xff] %vm7481, %v7437
      %7596 = vst.msk [vmem:[%s302 + $0x390] sm:$0xff] %vm7481, %v7440
      %7597 = vst.msk [vmem:[%s302 + $0x398] sm:$0xff] %vm7481, %v7443
      %7598 = vst.msk [vmem:[%s302 + $0x3a0] sm:$0xff] %vm7481, %v7446
      %7599 = vst.msk [vmem:[%s302 + $0x3a8] sm:$0xff] %vm7481, %v7449
      %7600 = vst.msk [vmem:[%s302 + $0x3b0] sm:$0xff] %vm7481, %v7452
      %7601 = vst.msk [vmem:[%s302 + $0x3b8] sm:$0xff] %vm7481, %v7455
      %7602 = vst.msk [vmem:[%s302 + $0x3c0] sm:$0xff] %vm7481, %v7458
      %7603 = vst.msk [vmem:[%s302 + $0x3c8] sm:$0xff] %vm7481, %v7461
      %7604 = vst.msk [vmem:[%s302 + $0x3d0] sm:$0xff] %vm7481, %v7464
      %7605 = vst.msk [vmem:[%s302 + $0x3d8] sm:$0xff] %vm7481, %v7467
      %7606 = vst.msk [vmem:[%s302 + $0x3e0] sm:$0xff] %vm7481, %v7470
      %7607 = vst.msk [vmem:[%s302 + $0x3e8] sm:$0xff] %vm7481, %v7473
      %7608 = vst.msk [vmem:[%s302 + $0x3f0] sm:$0xff] %vm7481, %v7476
      %7609 = vst.msk [vmem:[%s302 + $0x3f8] sm:$0xff] %vm7481, %v7479
      %s7610 = smul.u32 128, %s18
      %p7611 = scmp.lt.s32.totalorder %s7610, 255
      %s7612 = scalar_select %p7611, %s7610, 255
      %s7613 = smul.addr %s7612, 8
      %s7614 = scalar_lea.vmem %s7, %s7613
      // Predicated region
      $region49: #{tpu_custom_call.1} parent=47 // pred_check
        %p7615 = pneg %p193
      $region50: #{tpu_custom_call.1} parent=47 // pred_check_branch
        %7617 = sbr.rel (%p7615) target = $region52
      $region51: #{tpu_custom_call.1} parent=47 // pred_region
        %s7618 = smul.u32 128, %s18
      $region52: #{tpu_custom_call.1} parent=47 // pred_fallthru
        _
    $region48: #{tpu_custom_call.1} parent=5 // pred_fallthru
      _
    %p7619 = scmp.le.s32.totalorder 2, %s13
    // Predicated region
    $region53: #{tpu_custom_call.1} parent=5 // pred_check
      %p7620 = pneg %p7619
    $region54: #{tpu_custom_call.1} parent=5 // pred_check_branch
      %7622 = sbr.rel (%p7620) target = $region56
    $region55: #{tpu_custom_call.1} parent=5 // pred_region
      %s7623 = ssub.s32 %s13, 2
      // Predicated region
      $region57: #{tpu_custom_call.1} parent=55 // pred_check
        %p7624 = pneg %p199
      $region58: #{tpu_custom_call.1} parent=55 // pred_check_branch
        %7626 = sbr.rel (%p7624) target = $region60
      $region59: #{tpu_custom_call.1} parent=55 // pred_region
        %s7627 = smul.u32 128, %s19
        %p7628 = scmp.lt.s32.totalorder %s7627, 255
        %s7629 = scalar_select %p7628, %s7627, 255
        %s7630 = smul.addr %s7629, 8
        %s7631 = scalar_lea.vmem %s7, %s7630
      $region60: #{tpu_custom_call.1} parent=55 // pred_fallthru
        _
    $region56: #{tpu_custom_call.1} parent=5 // pred_fallthru
      _
  $region6: #{tpu_custom_call.1} parent=0 // loop_footer
    %s17 = sadd.s32 1, %s13
  $region7: #{tpu_custom_call.1} parent=0 // loop_footer_branch
    %12 = sbr.rel target = $region3
  $region8: #{tpu_custom_call.1} parent=0 // loop_exit
    _

</llo_original>
